<compile_context>
chip_gen: v5e
topology: v5e:2x2
jax: 0.10.0
libtpu: 0.0.40
codegen_flags: <defaults>
</compile_context>

<pallas_src>
import functools

import jax
import jax.numpy as jnp
from jax.experimental import pallas as pl
from jax.experimental.pallas import tpu as pltpu

EPS = 1e-5          # PyTorch GroupNorm default eps
NUM_GROUPS = 32     # normalization(channels) == GroupNorm32(32, channels)
LANE = 128


def _round_up(v, m):
    return (v + m - 1) // m * m


def _vmem_capacity_bytes():
    try:
        return int(pltpu.get_tpu_info().vmem_capacity_bytes)
    except Exception:
        return 64 << 20  # conservative fallback (v7x per-TensorCore VMEM)


# ----------------------------------------------------------------------------
# Pallas kernel: one grid step == one batch element, fully fused ResBlock.
# Layout: flat (HW, Cp) with Cp a multiple of 128 (lane-dense).  The 3x3 conv
# uses a zero-halo flat row buffer: pixel (y, x) lives at row base + y*W + x.
# The (dy, dx) tap is:  (dy slice at aligned start base+dy*W)  rolled by -dx
# along axis 0, with lmask/rmask killing the horizontal wrap at x==0 / x==W-1.
# ----------------------------------------------------------------------------
def _resblock_kernel(x_ref, eproj_ref,
                     gn1_g_ref, gn1_b_ref, pg_ref, pb_ref,
                     w1_ref, b1_ref,
                     gn2_g_ref, gn2_b_ref, w2_ref, b2_ref,
                     out_ref,
                     pad_ref,
                     *, W, base):
    _, HW, Cp = x_ref.shape
    R = pad_ref.shape[0]

    # Zero ONLY the halo rows, once per grid step (safe under "parallel"
    # megacore sharding: every invocation re-establishes the invariant).
    # INVARIANT: rows [base, base+HW) are fully overwritten inside conv3x3
    # before any tap read; all other rows must stay zero ("SAME" padding).
    # Requires base >= W (asserted in the wrapper).
    pad_ref[0:base, :] = jnp.zeros((base, Cp), jnp.float32)
    pad_ref[base + HW:R, :] = jnp.zeros((R - base - HW, Cp), jnp.float32)

    # Horizontal-wrap masks, computed once and reused by both convs.
    col = jax.lax.broadcasted_iota(jnp.int32, (HW, 1), 0) % W
    lmask = (col > 0).astype(jnp.float32)        # kills dx = -1 wrap at x == 0
    rmask = (col < W - 1).astype(jnp.float32)    # kills dx = +1 wrap at x == W-1

    def silu(v):
        return v * jax.nn.sigmoid(v)

    def group_norm(h2d, gamma, beta):
        # Per-channel spatial stats -> group average via skinny (Cp,G)/(G,Cp)
        # matrices (padded channels carry zero weight).  Two-pass variance.
        mean_c = jnp.mean(h2d, axis=0, keepdims=True)                      # (1, Cp)
        gmean = jnp.dot(jnp.dot(mean_c, pg_ref[...],
                                preferred_element_type=jnp.float32),
                        pb_ref[...], preferred_element_type=jnp.float32)   # (1, Cp)
        d = h2d - gmean
        var_c = jnp.mean(d * d, axis=0, keepdims=True)                     # (1, Cp)
        gvar = jnp.dot(jnp.dot(var_c, pg_ref[...],
                               preferred_element_type=jnp.float32),
                       pb_ref[...], preferred_element_type=jnp.float32)    # (1, Cp)
        scale = jax.lax.rsqrt(gvar + EPS) * gamma
        return d * scale + beta

    def conv3x3(h2d, w_ref, bias):
        # Write the image into the interior of the halo buffer (aligned store).
        pad_ref[base:base + HW, :] = h2d
        acc = None
        for dy in (-1, 0, 1):
            start = base + dy * W                 # static & multiple of 8: aligned load
            sl = pad_ref[start:start + HW, :]     # (HW, Cp) f32
            for dx in (-1, 0, 1):
                t = (dy + 1) * 3 + (dx + 1)
                if dx == -1:
                    tap = pltpu.roll(sl, shift=1, axis=0) * lmask
                elif dx == 1:
                    tap = pltpu.roll(sl, shift=HW - 1, axis=0) * rmask
                else:
                    tap = sl
                # bf16 MXU operands, f32 accumulation.
                p = jnp.dot(tap.astype(jnp.bfloat16), w_ref[t],
                            preferred_element_type=jnp.float32)
                acc = p if acc is None else acc + p
        return acc + bias

    # ---- in_layers: GroupNorm -> SiLU -> Conv3x3 ----
    h = conv3x3(silu(group_norm(x_ref[0], gn1_g_ref[...], gn1_b_ref[...])),
                w1_ref, b1_ref[...])

    # ---- emb_layers (precomputed in the wrapper): add per-image channel bias ----
    h = h + eproj_ref[0]                                                   # (1, Cp) bcast

    # ---- out_layers: GroupNorm -> SiLU -> Dropout(p=0) -> Conv3x3 ----
    h = conv3x3(silu(group_norm(h, gn2_g_ref[...], gn2_b_ref[...])),
                w2_ref, b2_ref[...])

    # ---- identity skip: re-read the still-resident x block (vreg pressure) ----
    out_ref[0] = x_ref[0] + h


# ----------------------------------------------------------------------------
# Wrapper: NCHW <-> flat NHWC glue, channel padding to 128, parameter packing.
# ----------------------------------------------------------------------------
def _const_spec(shape):
    zeros = (0,) * len(shape)
    return pl.BlockSpec(shape, lambda b, _z=zeros: _z)


@jax.jit
def resblock_forward(x_nchw, emb, params):
    N, C, H, W = x_nchw.shape
    assert C % NUM_GROUPS == 0, "GroupNorm32 requires channels % 32 == 0"
    assert W % 8 == 0, "aligned dy slices require W % 8 == 0"
    HW = H * W
    assert HW % 8 == 0

    # NOTE: for C < 128 the lane padding wastes MXU work; production diffusion
    # channels are >= 128 where the padding is essentially free.
    Cp = _round_up(C, LANE)                  # lane-dense channel padding
    base = _round_up(max(W, 8), 8)           # aligned interior start (>= W)
    R = _round_up(base + HW + W, 8)          # halo buffer rows (top + image + bottom)

    # NCHW -> flat (N, HW, Cp); reshapes/transposes stay in the wrapper.
    x_flat = jnp.transpose(x_nchw, (0, 2, 3, 1)).reshape(N, HW, C).astype(jnp.float32)
    x_flat = jnp.pad(x_flat, ((0, 0), (0, 0), (0, Cp - C)))

    # emb projection hoisted out of the kernel: SiLU(emb) @ W.T + b, all N at once.
    eproj = (jax.nn.silu(emb.astype(jnp.float32))
             @ params["emb_w"].T.astype(jnp.float32)
             + params["emb_b"].astype(jnp.float32))
    eproj = jnp.pad(eproj, ((0, 0), (0, Cp - C))).reshape(N, 1, Cp)

    # Skinny group matrices: Pg (Cp,G) sums channels into their group (weight
    # 1/cg, zero for padded channels); Pb (G,Cp) broadcasts back to channels.
    cg = C // NUM_GROUPS
    ch = jnp.arange(Cp)
    grp = jnp.where(ch < C, ch // cg, NUM_GROUPS)            # padded -> no group
    onehot = (grp[:, None] == jnp.arange(NUM_GROUPS)[None, :]).astype(jnp.float32)
    pg = onehot / cg                                         # (Cp, G)
    pb = onehot.T                                            # (G, Cp)

    def pad_vec(v):
        return jnp.pad(v.reshape(1, C).astype(jnp.float32), ((0, 0), (0, Cp - C)))

    def conv_w(w_oihw):
        # (Cout, Cin, 3, 3) -> (3, 3, Cin, Cout) -> zero-pad -> (9, Cp, Cp) bf16
        w = jnp.transpose(w_oihw.astype(jnp.float32), (2, 3, 1, 0))
        w = jnp.pad(w, ((0, 0), (0, 0), (0, Cp - C), (0, Cp - C)))
        return w.reshape(9, Cp, Cp).astype(jnp.bfloat16)

    args = (
        x_flat, eproj,
        pad_vec(params["gn1_g"]), pad_vec(params["gn1_b"]), pg, pb,
        conv_w(params["w1"]), pad_vec(params["b1"]),
        pad_vec(params["gn2_g"]), pad_vec(params["gn2_b"]),
        conv_w(params["w2"]), pad_vec(params["b2"]),
    )

    in_specs = [
        pl.BlockSpec((1, HW, Cp), lambda b: (b, 0, 0)),      # x
        pl.BlockSpec((1, 1, Cp), lambda b: (b, 0, 0)),       # eproj
    ] + [_const_spec(a.shape) for a in args[2:]]

    # VMEM budget: double-buffered x/out/eproj blocks + (double-buffered)
    # constant params + conv halo scratch + slack; capped per generation.
    blk_bytes = HW * Cp * 4
    param_bytes = sum(int(a.size) * a.dtype.itemsize for a in args[2:])
    vmem_need = (2 * blk_bytes                # x, double-buffered
                 + 2 * blk_bytes              # out, double-buffered
                 + 2 * Cp * 4                 # eproj
                 + 2 * param_bytes            # params (default double-buffered)
                 + R * Cp * 4                 # conv halo scratch
                 + (2 << 20))                 # slack
    vmem_cap = _vmem_capacity_bytes()
    vmem_limit = int(min(vmem_cap * 7 // 8, max(16 << 20, vmem_need)))

    kernel = functools.partial(_resblock_kernel, W=W, base=base)

    out_flat = pl.pallas_call(
        kernel,
        out_shape=jax.ShapeDtypeStruct((N, HW, Cp), jnp.float32),
        grid_spec=pltpu.PrefetchScalarGridSpec(
            num_scalar_prefetch=0,
            grid=(N,),
            in_specs=in_specs,
            out_specs=pl.BlockSpec((1, HW, Cp), lambda b: (b, 0, 0)),
            scratch_shapes=[
                pltpu.VMEM((R, Cp), jnp.float32),            # row-padded conv buffer
            ]),
        compiler_params=pltpu.CompilerParams(
            dimension_semantics=("parallel",),               # batch elems independent
            vmem_limit_bytes=vmem_limit),
    )(*args)

    out = out_flat[:, :, :C].reshape(N, H, W, C)
    return jnp.transpose(out, (0, 3, 1, 2))                  # back to NCHW


# ----------------------------------------------------------------------------
# Pure-JAX references (PyTorch semantics).  conv_dtype=bfloat16 reproduces the
# kernel's bf16-operand / f32-accumulate MXU numerics for a tight check.
# ----------------------------------------------------------------------------
def _ref_forward(x_nchw, emb, params, conv_dtype=jnp.float32):
    x = jnp.transpose(x_nchw, (0, 2, 3, 1)).astype(jnp.float32)          # NHWC
    N, H, W, C = x.shape

    def silu(v):
        return v * jax.nn.sigmoid(v)

    def gn(h, gamma, beta):
        cg = C // NUM_GROUPS
        hg = h.reshape(N, H * W, NUM_GROUPS, cg)
        mean = hg.mean(axis=(1, 3), keepdims=True)
        var = ((hg - mean) ** 2).mean(axis=(1, 3), keepdims=True)
        hn = ((hg - mean) / jnp.sqrt(var + EPS)).reshape(N, H, W, C)
        return hn * gamma.reshape(1, 1, 1, C) + beta.reshape(1, 1, 1, C)

    def conv3x3(h, w_oihw, b):
        w_hwio = jnp.transpose(w_oihw.astype(jnp.float32), (2, 3, 1, 0)).astype(conv_dtype)
        y = jax.lax.conv_general_dilated(
            h.astype(conv_dtype), w_hwio, window_strides=(1, 1), padding="SAME",
            dimension_numbers=("NHWC", "HWIO", "NHWC"),
            preferred_element_type=jnp.float32,
            precision=jax.lax.Precision.HIGHEST)
        return y + b.reshape(1, 1, 1, -1)

    h = conv3x3(silu(gn(x, params["gn1_g"], params["gn1_b"])),
                params["w1"], params["b1"])
    eproj = silu(emb.astype(jnp.float32)) @ params["emb_w"].T + params["emb_b"]
    h = h + eproj[:, None, None, :]
    h = conv3x3(silu(gn(h, params["gn2_g"], params["gn2_b"])),
                params["w2"], params["b2"])
    out = x + h
    return jnp.transpose(out, (0, 3, 1, 2))


# ----------------------------------------------------------------------------
if __name__ == "__main__":
    N, C, H, W = 2, 32, 16, 16        # channels must be a multiple of 32 (GroupNorm32)
    E = 64                            # emb_channels

    key = jax.random.PRNGKey(0)
    ks = jax.random.split(key, 12)

    x = jax.random.normal(ks[0], (N, C, H, W), jnp.float32)
    emb = jax.random.normal(ks[1], (N, E), jnp.float32)

    params = {
        "gn1_g": 1.0 + 0.1 * jax.random.normal(ks[2], (C,), jnp.float32),
        "gn1_b": 0.1 * jax.random.normal(ks[3], (C,), jnp.float32),
        "w1": 0.05 * jax.random.normal(ks[4], (C, C, 3, 3), jnp.float32),
        "b1": 0.05 * jax.random.normal(ks[5], (C,), jnp.float32),
        "emb_w": 0.1 * jax.random.normal(ks[6], (C, E), jnp.float32),   # Linear(E, C).weight
        "emb_b": 0.05 * jax.random.normal(ks[7], (C,), jnp.float32),
        "gn2_g": 1.0 + 0.1 * jax.random.normal(ks[8], (C,), jnp.float32),
        "gn2_b": 0.1 * jax.random.normal(ks[9], (C,), jnp.float32),
        # zero_module in the PyTorch __init__ -> small non-zero here (see NOTE above)
        "w2": 0.05 * jax.random.normal(ks[10], (C, C, 3, 3), jnp.float32),
        "b2": 0.05 * jax.random.normal(ks[11], (C,), jnp.float32),
    }

    out = jax.block_until_ready(resblock_forward(x, emb, params))
    assert out.shape == (N, C, H, W), out.shape

    # Primary check: reference with bf16 conv operands / f32 accumulation,
    # i.e. the same MXU numerics as the kernel.  Tolerance covers accumulation
    # order + tiny GroupNorm reduction-order differences.
    ref_bf16 = jax.block_until_ready(
        _ref_forward(x, emb, params, conv_dtype=jnp.bfloat16))
    err_bf16 = float(jnp.max(jnp.abs(out - ref_bf16)))
    assert jnp.allclose(out, ref_bf16, atol=1e-2, rtol=1e-2), err_bf16

    # Sanity check: full-f32 PyTorch-semantics reference with a tolerance sized
    # to the expected bf16-MXU error at these magnitudes (~1e-2 worst case).
    ref_f32 = jax.block_until_ready(
        _ref_forward(x, emb, params, conv_dtype=jnp.float32))
    err_f32 = float(jnp.max(jnp.abs(out - ref_f32)))
    assert jnp.allclose(out, ref_f32, atol=3e-2, rtol=3e-2), err_f32

    print("KERNEL_OK")
</pallas_src>

<mosaic_0001>
module attributes {stable_mosaic.version = 11 : i64} {
  func.func @_resblock_kernel(%arg0: i32, %arg1: memref<1x256x128xf32, #tpu.memory_space<vmem>>, %arg2: memref<1x1x128xf32, #tpu.memory_space<vmem>>, %arg3: memref<1x128xf32, #tpu.memory_space<vmem>>, %arg4: memref<1x128xf32, #tpu.memory_space<vmem>>, %arg5: memref<128x32xf32, #tpu.memory_space<vmem>>, %arg6: memref<32x128xf32, #tpu.memory_space<vmem>>, %arg7: memref<9x128x128xbf16, #tpu.memory_space<vmem>>, %arg8: memref<1x128xf32, #tpu.memory_space<vmem>>, %arg9: memref<1x128xf32, #tpu.memory_space<vmem>>, %arg10: memref<1x128xf32, #tpu.memory_space<vmem>>, %arg11: memref<9x128x128xbf16, #tpu.memory_space<vmem>>, %arg12: memref<1x128xf32, #tpu.memory_space<vmem>>, %arg13: memref<1x256x128xf32, #tpu.memory_space<vmem>>, %arg14: memref<288x128xf32, #tpu.memory_space<vmem>>) attributes {dimension_semantics = [#tpu.dimension_semantics<parallel>], iteration_bounds = array<i64: 2>, scalar_prefetch = 0 : i64, scratch_operands = 1 : i64, tpu.core_type = #tpu.core_type<tc>, window_params = [{transform_indices = @transform_0, window_bounds = array<i64: 1, 256, 128>}, {transform_indices = @transform_1, window_bounds = array<i64: 1, 1, 128>}, {pipeline_mode = #tpu.pipeline_mode<synchronous>, transform_indices = @transform_2, window_bounds = array<i64: 1, 128>}, {pipeline_mode = #tpu.pipeline_mode<synchronous>, transform_indices = @transform_3, window_bounds = array<i64: 1, 128>}, {pipeline_mode = #tpu.pipeline_mode<synchronous>, transform_indices = @transform_4, window_bounds = array<i64: 128, 32>}, {pipeline_mode = #tpu.pipeline_mode<synchronous>, transform_indices = @transform_5, window_bounds = array<i64: 32, 128>}, {pipeline_mode = #tpu.pipeline_mode<synchronous>, transform_indices = @transform_6, window_bounds = array<i64: 9, 128, 128>}, {pipeline_mode = #tpu.pipeline_mode<synchronous>, transform_indices = @transform_7, window_bounds = array<i64: 1, 128>}, {pipeline_mode = #tpu.pipeline_mode<synchronous>, transform_indices = @transform_8, window_bounds = array<i64: 1, 128>}, {pipeline_mode = #tpu.pipeline_mode<synchronous>, transform_indices = @transform_9, window_bounds = array<i64: 1, 128>}, {pipeline_mode = #tpu.pipeline_mode<synchronous>, transform_indices = @transform_10, window_bounds = array<i64: 9, 128, 128>}, {pipeline_mode = #tpu.pipeline_mode<synchronous>, transform_indices = @transform_11, window_bounds = array<i64: 1, 128>}, {transform_indices = @transform_12, window_bounds = array<i64: 1, 256, 128>}]} {
    %cst = arith.constant 0.000000e+00 : f32
    %0 = vector.broadcast %cst : f32 to vector<16x128xf32>
    %c0 = arith.constant 0 : index
    %c0_0 = arith.constant 0 : index
    %1 = vector.load %arg14[%c0, %c0_0] : memref<288x128xf32, #tpu.memory_space<vmem>>, vector<16x128xf32>
    tpu.vector_store %arg14[%c0, %c0_0], %0 {strides = array<i32>} : memref<288x128xf32, #tpu.memory_space<vmem>>, vector<16x128xf32>,
    %cst_1 = arith.constant 0.000000e+00 : f32
    %2 = vector.broadcast %cst_1 : f32 to vector<16x128xf32>
    %c272 = arith.constant 272 : index
    %c0_2 = arith.constant 0 : index
    %3 = vector.load %arg14[%c272, %c0_2] : memref<288x128xf32, #tpu.memory_space<vmem>>, vector<16x128xf32>
    tpu.vector_store %arg14[%c272, %c0_2], %2 {strides = array<i32>} : memref<288x128xf32, #tpu.memory_space<vmem>>, vector<16x128xf32>,
    %4 = tpu.iota {dimensions = array<i32: 0>} : vector<256x1xi32>
    %c16_i32 = arith.constant 16 : i32
    %c0_i32 = arith.constant 0 : i32
    %5 = arith.cmpi eq, %c16_i32, %c0_i32 : i32
    %c1_i32 = arith.constant 1 : i32
    %6 = arith.select %5, %c1_i32, %c16_i32 : i32
    %7 = vector.broadcast %6 : i32 to vector<256x1xi32>
    %8 = arith.remsi %4, %7 : vector<256x1xi32>
    %c0_i32_3 = arith.constant 0 : i32
    %9 = vector.broadcast %c0_i32_3 : i32 to vector<256x1xi32>
    %10 = arith.cmpi ne, %8, %9 : vector<256x1xi32>
    %c0_i32_4 = arith.constant 0 : i32
    %11 = vector.broadcast %c0_i32_4 : i32 to vector<256x1xi32>
    %12 = arith.cmpi slt, %8, %11 : vector<256x1xi32>
    %c0_i32_5 = arith.constant 0 : i32
    %13 = arith.cmpi slt, %6, %c0_i32_5 : i32
    %14 = vector.broadcast %13 : i1 to vector<256x1xi1>
    %15 = vector.broadcast %14 : vector<256x1xi1> to vector<256x1xi1>
    %16 = arith.xori %12, %15 : vector<256x1xi1>
    %17 = arith.andi %16, %10 : vector<256x1xi1>
    %18 = vector.broadcast %6 : i32 to vector<256x1xi32>
    %19 = arith.addi %8, %18 : vector<256x1xi32>
    %20 = arith.select %17, %19, %8 : vector<256x1xi1>, vector<256x1xi32>
    %c0_i32_6 = arith.constant 0 : i32
    %21 = vector.broadcast %c0_i32_6 : i32 to vector<256x1xi32>
    %22 = arith.cmpi sgt, %20, %21 : vector<256x1xi32>
    %23 = arith.extui %22 : vector<256x1xi1> to vector<256x1xi32>
    %24 = arith.sitofp %23 : vector<256x1xi32> to vector<256x1xf32>
    %c15_i32 = arith.constant 15 : i32
    %25 = vector.broadcast %c15_i32 : i32 to vector<256x1xi32>
    %26 = arith.cmpi slt, %20, %25 : vector<256x1xi32>
    %27 = arith.extui %26 : vector<256x1xi1> to vector<256x1xi32>
    %28 = arith.sitofp %27 : vector<256x1xi32> to vector<256x1xf32>
    %c0_7 = arith.constant 0 : index
    %c0_8 = arith.constant 0 : index
    %c0_9 = arith.constant 0 : index
    %29 = vector.load %arg1[%c0_7, %c0_8, %c0_9] : memref<1x256x128xf32, #tpu.memory_space<vmem>>, vector<1x256x128xf32>
    %30 = vector.shape_cast %29 : vector<1x256x128xf32> to vector<256x128xf32>
    %c0_10 = arith.constant 0 : index
    %c0_11 = arith.constant 0 : index
    %31 = vector.load %arg3[%c0_10, %c0_11] : memref<1x128xf32, #tpu.memory_space<vmem>>, vector<1x128xf32>
    %c0_12 = arith.constant 0 : index
    %c0_13 = arith.constant 0 : index
    %32 = vector.load %arg4[%c0_12, %c0_13] : memref<1x128xf32, #tpu.memory_space<vmem>>, vector<1x128xf32>
    %cst_14 = arith.constant dense<0.000000e+00> : vector<128xf32>
    %33 = vector.multi_reduction <add>, %30, %cst_14 [0] : vector<256x128xf32> to vector<128xf32>
    %34 = vector.shape_cast %33 : vector<128xf32> to vector<1x128xf32>
    %cst_15 = arith.constant 2.560000e+02 : f32
    %35 = vector.broadcast %cst_15 : f32 to vector<1x128xf32>
    %36 = arith.divf %34, %35 : vector<1x128xf32>
    %c0_16 = arith.constant 0 : index
    %c0_17 = arith.constant 0 : index
    %37 = vector.load %arg5[%c0_16, %c0_17] : memref<128x32xf32, #tpu.memory_space<vmem>>, vector<128x32xf32>
    %cst_18 = arith.constant dense<0.000000e+00> : vector<1x32xf32>
    %38 = tpu.matmul %36, %37, %cst_18 {dimension_numbers = #tpu.dot_dimension_numbers<[1], [0], [0], [1], [0, 0, 1, 1], [], []>} : vector<1x128xf32>, vector<128x32xf32>, vector<1x32xf32> -> vector<1x32xf32>
    %c0_19 = arith.constant 0 : index
    %c0_20 = arith.constant 0 : index
    %39 = vector.load %arg6[%c0_19, %c0_20] : memref<32x128xf32, #tpu.memory_space<vmem>>, vector<32x128xf32>
    %cst_21 = arith.constant dense<0.000000e+00> : vector<1x128xf32>
    %40 = tpu.matmul %38, %39, %cst_21 {dimension_numbers = #tpu.dot_dimension_numbers<[1], [0], [0], [1], [0, 0, 1, 1], [], []>} : vector<1x32xf32>, vector<32x128xf32>, vector<1x128xf32> -> vector<1x128xf32>
    %41 = vector.broadcast %40 : vector<1x128xf32> to vector<256x128xf32>
    %42 = arith.subf %30, %41 : vector<256x128xf32>
    %43 = arith.mulf %42, %42 : vector<256x128xf32>
    %cst_22 = arith.constant dense<0.000000e+00> : vector<128xf32>
    %44 = vector.multi_reduction <add>, %43, %cst_22 [0] : vector<256x128xf32> to vector<128xf32>
    %45 = vector.shape_cast %44 : vector<128xf32> to vector<1x128xf32>
    %cst_23 = arith.constant 2.560000e+02 : f32
    %46 = vector.broadcast %cst_23 : f32 to vector<1x128xf32>
    %47 = arith.divf %45, %46 : vector<1x128xf32>
    %c0_24 = arith.constant 0 : index
    %c0_25 = arith.constant 0 : index
    %48 = vector.load %arg5[%c0_24, %c0_25] : memref<128x32xf32, #tpu.memory_space<vmem>>, vector<128x32xf32>
    %cst_26 = arith.constant dense<0.000000e+00> : vector<1x32xf32>
    %49 = tpu.matmul %47, %48, %cst_26 {dimension_numbers = #tpu.dot_dimension_numbers<[1], [0], [0], [1], [0, 0, 1, 1], [], []>} : vector<1x128xf32>, vector<128x32xf32>, vector<1x32xf32> -> vector<1x32xf32>
    %c0_27 = arith.constant 0 : index
    %c0_28 = arith.constant 0 : index
    %50 = vector.load %arg6[%c0_27, %c0_28] : memref<32x128xf32, #tpu.memory_space<vmem>>, vector<32x128xf32>
    %cst_29 = arith.constant dense<0.000000e+00> : vector<1x128xf32>
    %51 = tpu.matmul %49, %50, %cst_29 {dimension_numbers = #tpu.dot_dimension_numbers<[1], [0], [0], [1], [0, 0, 1, 1], [], []>} : vector<1x32xf32>, vector<32x128xf32>, vector<1x128xf32> -> vector<1x128xf32>
    %cst_30 = arith.constant 9.99999974E-6 : f32
    %52 = vector.broadcast %cst_30 : f32 to vector<1x128xf32>
    %53 = arith.addf %51, %52 : vector<1x128xf32>
    %54 = math.rsqrt %53 : vector<1x128xf32>
    %55 = arith.mulf %54, %31 : vector<1x128xf32>
    %56 = vector.broadcast %55 : vector<1x128xf32> to vector<256x128xf32>
    %57 = arith.mulf %42, %56 : vector<256x128xf32>
    %58 = vector.broadcast %32 : vector<1x128xf32> to vector<256x128xf32>
    %59 = arith.addf %57, %58 : vector<256x128xf32>
    %60 = arith.negf %59 : vector<256x128xf32>
    %61 = math.exp %60 : vector<256x128xf32>
    %cst_31 = arith.constant 1.000000e+00 : f32
    %62 = vector.broadcast %cst_31 : f32 to vector<256x128xf32>
    %63 = arith.addf %62, %61 : vector<256x128xf32>
    %64 = arith.divf %62, %63 : vector<256x128xf32>
    %65 = arith.mulf %59, %64 : vector<256x128xf32>
    %c0_32 = arith.constant 0 : index
    %c0_33 = arith.constant 0 : index
    %66 = vector.load %arg8[%c0_32, %c0_33] : memref<1x128xf32, #tpu.memory_space<vmem>>, vector<1x128xf32>
    %c16 = arith.constant 16 : index
    %c0_34 = arith.constant 0 : index
    %67 = vector.load %arg14[%c16, %c0_34] : memref<288x128xf32, #tpu.memory_space<vmem>>, vector<256x128xf32>
    tpu.vector_store %arg14[%c16, %c0_34], %65 {strides = array<i32>} : memref<288x128xf32, #tpu.memory_space<vmem>>, vector<256x128xf32>,
    %c0_35 = arith.constant 0 : index
    %c0_36 = arith.constant 0 : index
    %68 = vector.load %arg14[%c0_35, %c0_36] : memref<288x128xf32, #tpu.memory_space<vmem>>, vector<256x128xf32>
    %c1_i32_37 = arith.constant 1 : i32
    %69 = tpu.dynamic_rotate %68 by %c1_i32_37 dim 0 : vector<256x128xf32>, i32 -> vector<256x128xf32>
    %70 = vector.broadcast %24 : vector<256x1xf32> to vector<256x128xf32>
    %71 = arith.mulf %69, %70 : vector<256x128xf32>
    %72 = arith.truncf %71 : vector<256x128xf32> to vector<256x128xbf16>
    %c0_38 = arith.constant 0 : index
    %c0_39 = arith.constant 0 : index
    %c0_40 = arith.constant 0 : index
    %73 = vector.load %arg7[%c0_38, %c0_39, %c0_40] : memref<9x128x128xbf16, #tpu.memory_space<vmem>>, vector<1x128x128xbf16>
    %74 = vector.shape_cast %73 : vector<1x128x128xbf16> to vector<128x128xbf16>
    %cst_41 = arith.constant dense<0.000000e+00> : vector<256x128xf32>
    %75 = tpu.matmul %72, %74, %cst_41 {dimension_numbers = #tpu.dot_dimension_numbers<[1], [0], [0], [1], [0, 0, 1, 1], [], []>} : vector<256x128xbf16>, vector<128x128xbf16>, vector<256x128xf32> -> vector<256x128xf32>
    %76 = arith.truncf %68 : vector<256x128xf32> to vector<256x128xbf16>
    %c1 = arith.constant 1 : index
    %c0_42 = arith.constant 0 : index
    %c0_43 = arith.constant 0 : index
    %77 = vector.load %arg7[%c1, %c0_42, %c0_43] : memref<9x128x128xbf16, #tpu.memory_space<vmem>>, vector<1x128x128xbf16>
    %78 = vector.shape_cast %77 : vector<1x128x128xbf16> to vector<128x128xbf16>
    %cst_44 = arith.constant dense<0.000000e+00> : vector<256x128xf32>
    %79 = tpu.matmul %76, %78, %cst_44 {dimension_numbers = #tpu.dot_dimension_numbers<[1], [0], [0], [1], [0, 0, 1, 1], [], []>} : vector<256x128xbf16>, vector<128x128xbf16>, vector<256x128xf32> -> vector<256x128xf32>
    %80 = arith.addf %75, %79 : vector<256x128xf32>
    %c255_i32 = arith.constant 255 : i32
    %81 = tpu.dynamic_rotate %68 by %c255_i32 dim 0 : vector<256x128xf32>, i32 -> vector<256x128xf32>
    %82 = vector.broadcast %28 : vector<256x1xf32> to vector<256x128xf32>
    %83 = arith.mulf %81, %82 : vector<256x128xf32>
    %84 = arith.truncf %83 : vector<256x128xf32> to vector<256x128xbf16>
    %c2 = arith.constant 2 : index
    %c0_45 = arith.constant 0 : index
    %c0_46 = arith.constant 0 : index
    %85 = vector.load %arg7[%c2, %c0_45, %c0_46] : memref<9x128x128xbf16, #tpu.memory_space<vmem>>, vector<1x128x128xbf16>
    %86 = vector.shape_cast %85 : vector<1x128x128xbf16> to vector<128x128xbf16>
    %cst_47 = arith.constant dense<0.000000e+00> : vector<256x128xf32>
    %87 = tpu.matmul %84, %86, %cst_47 {dimension_numbers = #tpu.dot_dimension_numbers<[1], [0], [0], [1], [0, 0, 1, 1], [], []>} : vector<256x128xbf16>, vector<128x128xbf16>, vector<256x128xf32> -> vector<256x128xf32>
    %88 = arith.addf %80, %87 : vector<256x128xf32>
    %c16_48 = arith.constant 16 : index
    %c0_49 = arith.constant 0 : index
    %89 = vector.load %arg14[%c16_48, %c0_49] : memref<288x128xf32, #tpu.memory_space<vmem>>, vector<256x128xf32>
    %c1_i32_50 = arith.constant 1 : i32
    %90 = tpu.dynamic_rotate %89 by %c1_i32_50 dim 0 : vector<256x128xf32>, i32 -> vector<256x128xf32>
    %91 = vector.broadcast %24 : vector<256x1xf32> to vector<256x128xf32>
    %92 = arith.mulf %90, %91 : vector<256x128xf32>
    %93 = arith.truncf %92 : vector<256x128xf32> to vector<256x128xbf16>
    %c3 = arith.constant 3 : index
    %c0_51 = arith.constant 0 : index
    %c0_52 = arith.constant 0 : index
    %94 = vector.load %arg7[%c3, %c0_51, %c0_52] : memref<9x128x128xbf16, #tpu.memory_space<vmem>>, vector<1x128x128xbf16>
    %95 = vector.shape_cast %94 : vector<1x128x128xbf16> to vector<128x128xbf16>
    %cst_53 = arith.constant dense<0.000000e+00> : vector<256x128xf32>
    %96 = tpu.matmul %93, %95, %cst_53 {dimension_numbers = #tpu.dot_dimension_numbers<[1], [0], [0], [1], [0, 0, 1, 1], [], []>} : vector<256x128xbf16>, vector<128x128xbf16>, vector<256x128xf32> -> vector<256x128xf32>
    %97 = arith.addf %88, %96 : vector<256x128xf32>
    %98 = arith.truncf %89 : vector<256x128xf32> to vector<256x128xbf16>
    %c4 = arith.constant 4 : index
    %c0_54 = arith.constant 0 : index
    %c0_55 = arith.constant 0 : index
    %99 = vector.load %arg7[%c4, %c0_54, %c0_55] : memref<9x128x128xbf16, #tpu.memory_space<vmem>>, vector<1x128x128xbf16>
    %100 = vector.shape_cast %99 : vector<1x128x128xbf16> to vector<128x128xbf16>
    %cst_56 = arith.constant dense<0.000000e+00> : vector<256x128xf32>
    %101 = tpu.matmul %98, %100, %cst_56 {dimension_numbers = #tpu.dot_dimension_numbers<[1], [0], [0], [1], [0, 0, 1, 1], [], []>} : vector<256x128xbf16>, vector<128x128xbf16>, vector<256x128xf32> -> vector<256x128xf32>
    %102 = arith.addf %97, %101 : vector<256x128xf32>
    %c255_i32_57 = arith.constant 255 : i32
    %103 = tpu.dynamic_rotate %89 by %c255_i32_57 dim 0 : vector<256x128xf32>, i32 -> vector<256x128xf32>
    %104 = vector.broadcast %28 : vector<256x1xf32> to vector<256x128xf32>
    %105 = arith.mulf %103, %104 : vector<256x128xf32>
    %106 = arith.truncf %105 : vector<256x128xf32> to vector<256x128xbf16>
    %c5 = arith.constant 5 : index
    %c0_58 = arith.constant 0 : index
    %c0_59 = arith.constant 0 : index
    %107 = vector.load %arg7[%c5, %c0_58, %c0_59] : memref<9x128x128xbf16, #tpu.memory_space<vmem>>, vector<1x128x128xbf16>
    %108 = vector.shape_cast %107 : vector<1x128x128xbf16> to vector<128x128xbf16>
    %cst_60 = arith.constant dense<0.000000e+00> : vector<256x128xf32>
    %109 = tpu.matmul %106, %108, %cst_60 {dimension_numbers = #tpu.dot_dimension_numbers<[1], [0], [0], [1], [0, 0, 1, 1], [], []>} : vector<256x128xbf16>, vector<128x128xbf16>, vector<256x128xf32> -> vector<256x128xf32>
    %110 = arith.addf %102, %109 : vector<256x128xf32>
    %c32 = arith.constant 32 : index
    %c0_61 = arith.constant 0 : index
    %111 = vector.load %arg14[%c32, %c0_61] : memref<288x128xf32, #tpu.memory_space<vmem>>, vector<256x128xf32>
    %c1_i32_62 = arith.constant 1 : i32
    %112 = tpu.dynamic_rotate %111 by %c1_i32_62 dim 0 : vector<256x128xf32>, i32 -> vector<256x128xf32>
    %113 = vector.broadcast %24 : vector<256x1xf32> to vector<256x128xf32>
    %114 = arith.mulf %112, %113 : vector<256x128xf32>
    %115 = arith.truncf %114 : vector<256x128xf32> to vector<256x128xbf16>
    %c6 = arith.constant 6 : index
    %c0_63 = arith.constant 0 : index
    %c0_64 = arith.constant 0 : index
    %116 = vector.load %arg7[%c6, %c0_63, %c0_64] : memref<9x128x128xbf16, #tpu.memory_space<vmem>>, vector<1x128x128xbf16>
    %117 = vector.shape_cast %116 : vector<1x128x128xbf16> to vector<128x128xbf16>
    %cst_65 = arith.constant dense<0.000000e+00> : vector<256x128xf32>
    %118 = tpu.matmul %115, %117, %cst_65 {dimension_numbers = #tpu.dot_dimension_numbers<[1], [0], [0], [1], [0, 0, 1, 1], [], []>} : vector<256x128xbf16>, vector<128x128xbf16>, vector<256x128xf32> -> vector<256x128xf32>
    %119 = arith.addf %110, %118 : vector<256x128xf32>
    %120 = arith.truncf %111 : vector<256x128xf32> to vector<256x128xbf16>
    %c7 = arith.constant 7 : index
    %c0_66 = arith.constant 0 : index
    %c0_67 = arith.constant 0 : index
    %121 = vector.load %arg7[%c7, %c0_66, %c0_67] : memref<9x128x128xbf16, #tpu.memory_space<vmem>>, vector<1x128x128xbf16>
    %122 = vector.shape_cast %121 : vector<1x128x128xbf16> to vector<128x128xbf16>
    %cst_68 = arith.constant dense<0.000000e+00> : vector<256x128xf32>
    %123 = tpu.matmul %120, %122, %cst_68 {dimension_numbers = #tpu.dot_dimension_numbers<[1], [0], [0], [1], [0, 0, 1, 1], [], []>} : vector<256x128xbf16>, vector<128x128xbf16>, vector<256x128xf32> -> vector<256x128xf32>
    %124 = arith.addf %119, %123 : vector<256x128xf32>
    %c255_i32_69 = arith.constant 255 : i32
    %125 = tpu.dynamic_rotate %111 by %c255_i32_69 dim 0 : vector<256x128xf32>, i32 -> vector<256x128xf32>
    %126 = vector.broadcast %28 : vector<256x1xf32> to vector<256x128xf32>
    %127 = arith.mulf %125, %126 : vector<256x128xf32>
    %128 = arith.truncf %127 : vector<256x128xf32> to vector<256x128xbf16>
    %c8 = arith.constant 8 : index
    %c0_70 = arith.constant 0 : index
    %c0_71 = arith.constant 0 : index
    %129 = vector.load %arg7[%c8, %c0_70, %c0_71] : memref<9x128x128xbf16, #tpu.memory_space<vmem>>, vector<1x128x128xbf16>
    %130 = vector.shape_cast %129 : vector<1x128x128xbf16> to vector<128x128xbf16>
    %cst_72 = arith.constant dense<0.000000e+00> : vector<256x128xf32>
    %131 = tpu.matmul %128, %130, %cst_72 {dimension_numbers = #tpu.dot_dimension_numbers<[1], [0], [0], [1], [0, 0, 1, 1], [], []>} : vector<256x128xbf16>, vector<128x128xbf16>, vector<256x128xf32> -> vector<256x128xf32>
    %132 = arith.addf %124, %131 : vector<256x128xf32>
    %133 = vector.broadcast %66 : vector<1x128xf32> to vector<256x128xf32>
    %134 = arith.addf %132, %133 : vector<256x128xf32>
    %c0_73 = arith.constant 0 : index
    %c0_74 = arith.constant 0 : index
    %c0_75 = arith.constant 0 : index
    %135 = vector.load %arg2[%c0_73, %c0_74, %c0_75] : memref<1x1x128xf32, #tpu.memory_space<vmem>>, vector<1x1x128xf32>
    %136 = vector.shape_cast %135 : vector<1x1x128xf32> to vector<1x128xf32>
    %137 = vector.broadcast %136 : vector<1x128xf32> to vector<256x128xf32>
    %138 = arith.addf %134, %137 : vector<256x128xf32>
    %c0_76 = arith.constant 0 : index
    %c0_77 = arith.constant 0 : index
    %139 = vector.load %arg9[%c0_76, %c0_77] : memref<1x128xf32, #tpu.memory_space<vmem>>, vector<1x128xf32>
    %c0_78 = arith.constant 0 : index
    %c0_79 = arith.constant 0 : index
    %140 = vector.load %arg10[%c0_78, %c0_79] : memref<1x128xf32, #tpu.memory_space<vmem>>, vector<1x128xf32>
    %cst_80 = arith.constant dense<0.000000e+00> : vector<128xf32>
    %141 = vector.multi_reduction <add>, %138, %cst_80 [0] : vector<256x128xf32> to vector<128xf32>
    %142 = vector.shape_cast %141 : vector<128xf32> to vector<1x128xf32>
    %cst_81 = arith.constant 2.560000e+02 : f32
    %143 = vector.broadcast %cst_81 : f32 to vector<1x128xf32>
    %144 = arith.divf %142, %143 : vector<1x128xf32>
    %c0_82 = arith.constant 0 : index
    %c0_83 = arith.constant 0 : index
    %145 = vector.load %arg5[%c0_82, %c0_83] : memref<128x32xf32, #tpu.memory_space<vmem>>, vector<128x32xf32>
    %cst_84 = arith.constant dense<0.000000e+00> : vector<1x32xf32>
    %146 = tpu.matmul %144, %145, %cst_84 {dimension_numbers = #tpu.dot_dimension_numbers<[1], [0], [0], [1], [0, 0, 1, 1], [], []>} : vector<1x128xf32>, vector<128x32xf32>, vector<1x32xf32> -> vector<1x32xf32>
    %c0_85 = arith.constant 0 : index
    %c0_86 = arith.constant 0 : index
    %147 = vector.load %arg6[%c0_85, %c0_86] : memref<32x128xf32, #tpu.memory_space<vmem>>, vector<32x128xf32>
    %cst_87 = arith.constant dense<0.000000e+00> : vector<1x128xf32>
    %148 = tpu.matmul %146, %147, %cst_87 {dimension_numbers = #tpu.dot_dimension_numbers<[1], [0], [0], [1], [0, 0, 1, 1], [], []>} : vector<1x32xf32>, vector<32x128xf32>, vector<1x128xf32> -> vector<1x128xf32>
    %149 = vector.broadcast %148 : vector<1x128xf32> to vector<256x128xf32>
    %150 = arith.subf %138, %149 : vector<256x128xf32>
    %151 = arith.mulf %150, %150 : vector<256x128xf32>
    %cst_88 = arith.constant dense<0.000000e+00> : vector<128xf32>
    %152 = vector.multi_reduction <add>, %151, %cst_88 [0] : vector<256x128xf32> to vector<128xf32>
    %153 = vector.shape_cast %152 : vector<128xf32> to vector<1x128xf32>
    %cst_89 = arith.constant 2.560000e+02 : f32
    %154 = vector.broadcast %cst_89 : f32 to vector<1x128xf32>
    %155 = arith.divf %153, %154 : vector<1x128xf32>
    %c0_90 = arith.constant 0 : index
    %c0_91 = arith.constant 0 : index
    %156 = vector.load %arg5[%c0_90, %c0_91] : memref<128x32xf32, #tpu.memory_space<vmem>>, vector<128x32xf32>
    %cst_92 = arith.constant dense<0.000000e+00> : vector<1x32xf32>
    %157 = tpu.matmul %155, %156, %cst_92 {dimension_numbers = #tpu.dot_dimension_numbers<[1], [0], [0], [1], [0, 0, 1, 1], [], []>} : vector<1x128xf32>, vector<128x32xf32>, vector<1x32xf32> -> vector<1x32xf32>
    %c0_93 = arith.constant 0 : index
    %c0_94 = arith.constant 0 : index
    %158 = vector.load %arg6[%c0_93, %c0_94] : memref<32x128xf32, #tpu.memory_space<vmem>>, vector<32x128xf32>
    %cst_95 = arith.constant dense<0.000000e+00> : vector<1x128xf32>
    %159 = tpu.matmul %157, %158, %cst_95 {dimension_numbers = #tpu.dot_dimension_numbers<[1], [0], [0], [1], [0, 0, 1, 1], [], []>} : vector<1x32xf32>, vector<32x128xf32>, vector<1x128xf32> -> vector<1x128xf32>
    %cst_96 = arith.constant 9.99999974E-6 : f32
    %160 = vector.broadcast %cst_96 : f32 to vector<1x128xf32>
    %161 = arith.addf %159, %160 : vector<1x128xf32>
    %162 = math.rsqrt %161 : vector<1x128xf32>
    %163 = arith.mulf %162, %139 : vector<1x128xf32>
    %164 = vector.broadcast %163 : vector<1x128xf32> to vector<256x128xf32>
    %165 = arith.mulf %150, %164 : vector<256x128xf32>
    %166 = vector.broadcast %140 : vector<1x128xf32> to vector<256x128xf32>
    %167 = arith.addf %165, %166 : vector<256x128xf32>
    %168 = arith.negf %167 : vector<256x128xf32>
    %169 = math.exp %168 : vector<256x128xf32>
    %cst_97 = arith.constant 1.000000e+00 : f32
    %170 = vector.broadcast %cst_97 : f32 to vector<256x128xf32>
    %171 = arith.addf %170, %169 : vector<256x128xf32>
    %172 = arith.divf %170, %171 : vector<256x128xf32>
    %173 = arith.mulf %167, %172 : vector<256x128xf32>
    %c0_98 = arith.constant 0 : index
    %c0_99 = arith.constant 0 : index
    %174 = vector.load %arg12[%c0_98, %c0_99] : memref<1x128xf32, #tpu.memory_space<vmem>>, vector<1x128xf32>
    %c16_100 = arith.constant 16 : index
    %c0_101 = arith.constant 0 : index
    %175 = vector.load %arg14[%c16_100, %c0_101] : memref<288x128xf32, #tpu.memory_space<vmem>>, vector<256x128xf32>
    tpu.vector_store %arg14[%c16_100, %c0_101], %173 {strides = array<i32>} : memref<288x128xf32, #tpu.memory_space<vmem>>, vector<256x128xf32>,
    %c0_102 = arith.constant 0 : index
    %c0_103 = arith.constant 0 : index
    %176 = vector.load %arg14[%c0_102, %c0_103] : memref<288x128xf32, #tpu.memory_space<vmem>>, vector<256x128xf32>
    %c1_i32_104 = arith.constant 1 : i32
    %177 = tpu.dynamic_rotate %176 by %c1_i32_104 dim 0 : vector<256x128xf32>, i32 -> vector<256x128xf32>
    %178 = vector.broadcast %24 : vector<256x1xf32> to vector<256x128xf32>
    %179 = arith.mulf %177, %178 : vector<256x128xf32>
    %180 = arith.truncf %179 : vector<256x128xf32> to vector<256x128xbf16>
    %c0_105 = arith.constant 0 : index
    %c0_106 = arith.constant 0 : index
    %c0_107 = arith.constant 0 : index
    %181 = vector.load %arg11[%c0_105, %c0_106, %c0_107] : memref<9x128x128xbf16, #tpu.memory_space<vmem>>, vector<1x128x128xbf16>
    %182 = vector.shape_cast %181 : vector<1x128x128xbf16> to vector<128x128xbf16>
    %cst_108 = arith.constant dense<0.000000e+00> : vector<256x128xf32>
    %183 = tpu.matmul %180, %182, %cst_108 {dimension_numbers = #tpu.dot_dimension_numbers<[1], [0], [0], [1], [0, 0, 1, 1], [], []>} : vector<256x128xbf16>, vector<128x128xbf16>, vector<256x128xf32> -> vector<256x128xf32>
    %184 = arith.truncf %176 : vector<256x128xf32> to vector<256x128xbf16>
    %c1_109 = arith.constant 1 : index
    %c0_110 = arith.constant 0 : index
    %c0_111 = arith.constant 0 : index
    %185 = vector.load %arg11[%c1_109, %c0_110, %c0_111] : memref<9x128x128xbf16, #tpu.memory_space<vmem>>, vector<1x128x128xbf16>
    %186 = vector.shape_cast %185 : vector<1x128x128xbf16> to vector<128x128xbf16>
    %cst_112 = arith.constant dense<0.000000e+00> : vector<256x128xf32>
    %187 = tpu.matmul %184, %186, %cst_112 {dimension_numbers = #tpu.dot_dimension_numbers<[1], [0], [0], [1], [0, 0, 1, 1], [], []>} : vector<256x128xbf16>, vector<128x128xbf16>, vector<256x128xf32> -> vector<256x128xf32>
    %188 = arith.addf %183, %187 : vector<256x128xf32>
    %c255_i32_113 = arith.constant 255 : i32
    %189 = tpu.dynamic_rotate %176 by %c255_i32_113 dim 0 : vector<256x128xf32>, i32 -> vector<256x128xf32>
    %190 = vector.broadcast %28 : vector<256x1xf32> to vector<256x128xf32>
    %191 = arith.mulf %189, %190 : vector<256x128xf32>
    %192 = arith.truncf %191 : vector<256x128xf32> to vector<256x128xbf16>
    %c2_114 = arith.constant 2 : index
    %c0_115 = arith.constant 0 : index
    %c0_116 = arith.constant 0 : index
    %193 = vector.load %arg11[%c2_114, %c0_115, %c0_116] : memref<9x128x128xbf16, #tpu.memory_space<vmem>>, vector<1x128x128xbf16>
    %194 = vector.shape_cast %193 : vector<1x128x128xbf16> to vector<128x128xbf16>
    %cst_117 = arith.constant dense<0.000000e+00> : vector<256x128xf32>
    %195 = tpu.matmul %192, %194, %cst_117 {dimension_numbers = #tpu.dot_dimension_numbers<[1], [0], [0], [1], [0, 0, 1, 1], [], []>} : vector<256x128xbf16>, vector<128x128xbf16>, vector<256x128xf32> -> vector<256x128xf32>
    %196 = arith.addf %188, %195 : vector<256x128xf32>
    %c16_118 = arith.constant 16 : index
    %c0_119 = arith.constant 0 : index
    %197 = vector.load %arg14[%c16_118, %c0_119] : memref<288x128xf32, #tpu.memory_space<vmem>>, vector<256x128xf32>
    %c1_i32_120 = arith.constant 1 : i32
    %198 = tpu.dynamic_rotate %197 by %c1_i32_120 dim 0 : vector<256x128xf32>, i32 -> vector<256x128xf32>
    %199 = vector.broadcast %24 : vector<256x1xf32> to vector<256x128xf32>
    %200 = arith.mulf %198, %199 : vector<256x128xf32>
    %201 = arith.truncf %200 : vector<256x128xf32> to vector<256x128xbf16>
    %c3_121 = arith.constant 3 : index
    %c0_122 = arith.constant 0 : index
    %c0_123 = arith.constant 0 : index
    %202 = vector.load %arg11[%c3_121, %c0_122, %c0_123] : memref<9x128x128xbf16, #tpu.memory_space<vmem>>, vector<1x128x128xbf16>
    %203 = vector.shape_cast %202 : vector<1x128x128xbf16> to vector<128x128xbf16>
    %cst_124 = arith.constant dense<0.000000e+00> : vector<256x128xf32>
    %204 = tpu.matmul %201, %203, %cst_124 {dimension_numbers = #tpu.dot_dimension_numbers<[1], [0], [0], [1], [0, 0, 1, 1], [], []>} : vector<256x128xbf16>, vector<128x128xbf16>, vector<256x128xf32> -> vector<256x128xf32>
    %205 = arith.addf %196, %204 : vector<256x128xf32>
    %206 = arith.truncf %197 : vector<256x128xf32> to vector<256x128xbf16>
    %c4_125 = arith.constant 4 : index
    %c0_126 = arith.constant 0 : index
    %c0_127 = arith.constant 0 : index
    %207 = vector.load %arg11[%c4_125, %c0_126, %c0_127] : memref<9x128x128xbf16, #tpu.memory_space<vmem>>, vector<1x128x128xbf16>
    %208 = vector.shape_cast %207 : vector<1x128x128xbf16> to vector<128x128xbf16>
    %cst_128 = arith.constant dense<0.000000e+00> : vector<256x128xf32>
    %209 = tpu.matmul %206, %208, %cst_128 {dimension_numbers = #tpu.dot_dimension_numbers<[1], [0], [0], [1], [0, 0, 1, 1], [], []>} : vector<256x128xbf16>, vector<128x128xbf16>, vector<256x128xf32> -> vector<256x128xf32>
    %210 = arith.addf %205, %209 : vector<256x128xf32>
    %c255_i32_129 = arith.constant 255 : i32
    %211 = tpu.dynamic_rotate %197 by %c255_i32_129 dim 0 : vector<256x128xf32>, i32 -> vector<256x128xf32>
    %212 = vector.broadcast %28 : vector<256x1xf32> to vector<256x128xf32>
    %213 = arith.mulf %211, %212 : vector<256x128xf32>
    %214 = arith.truncf %213 : vector<256x128xf32> to vector<256x128xbf16>
    %c5_130 = arith.constant 5 : index
    %c0_131 = arith.constant 0 : index
    %c0_132 = arith.constant 0 : index
    %215 = vector.load %arg11[%c5_130, %c0_131, %c0_132] : memref<9x128x128xbf16, #tpu.memory_space<vmem>>, vector<1x128x128xbf16>
    %216 = vector.shape_cast %215 : vector<1x128x128xbf16> to vector<128x128xbf16>
    %cst_133 = arith.constant dense<0.000000e+00> : vector<256x128xf32>
    %217 = tpu.matmul %214, %216, %cst_133 {dimension_numbers = #tpu.dot_dimension_numbers<[1], [0], [0], [1], [0, 0, 1, 1], [], []>} : vector<256x128xbf16>, vector<128x128xbf16>, vector<256x128xf32> -> vector<256x128xf32>
    %218 = arith.addf %210, %217 : vector<256x128xf32>
    %c32_134 = arith.constant 32 : index
    %c0_135 = arith.constant 0 : index
    %219 = vector.load %arg14[%c32_134, %c0_135] : memref<288x128xf32, #tpu.memory_space<vmem>>, vector<256x128xf32>
    %c1_i32_136 = arith.constant 1 : i32
    %220 = tpu.dynamic_rotate %219 by %c1_i32_136 dim 0 : vector<256x128xf32>, i32 -> vector<256x128xf32>
    %221 = vector.broadcast %24 : vector<256x1xf32> to vector<256x128xf32>
    %222 = arith.mulf %220, %221 : vector<256x128xf32>
    %223 = arith.truncf %222 : vector<256x128xf32> to vector<256x128xbf16>
    %c6_137 = arith.constant 6 : index
    %c0_138 = arith.constant 0 : index
    %c0_139 = arith.constant 0 : index
    %224 = vector.load %arg11[%c6_137, %c0_138, %c0_139] : memref<9x128x128xbf16, #tpu.memory_space<vmem>>, vector<1x128x128xbf16>
    %225 = vector.shape_cast %224 : vector<1x128x128xbf16> to vector<128x128xbf16>
    %cst_140 = arith.constant dense<0.000000e+00> : vector<256x128xf32>
    %226 = tpu.matmul %223, %225, %cst_140 {dimension_numbers = #tpu.dot_dimension_numbers<[1], [0], [0], [1], [0, 0, 1, 1], [], []>} : vector<256x128xbf16>, vector<128x128xbf16>, vector<256x128xf32> -> vector<256x128xf32>
    %227 = arith.addf %218, %226 : vector<256x128xf32>
    %228 = arith.truncf %219 : vector<256x128xf32> to vector<256x128xbf16>
    %c7_141 = arith.constant 7 : index
    %c0_142 = arith.constant 0 : index
    %c0_143 = arith.constant 0 : index
    %229 = vector.load %arg11[%c7_141, %c0_142, %c0_143] : memref<9x128x128xbf16, #tpu.memory_space<vmem>>, vector<1x128x128xbf16>
    %230 = vector.shape_cast %229 : vector<1x128x128xbf16> to vector<128x128xbf16>
    %cst_144 = arith.constant dense<0.000000e+00> : vector<256x128xf32>
    %231 = tpu.matmul %228, %230, %cst_144 {dimension_numbers = #tpu.dot_dimension_numbers<[1], [0], [0], [1], [0, 0, 1, 1], [], []>} : vector<256x128xbf16>, vector<128x128xbf16>, vector<256x128xf32> -> vector<256x128xf32>
    %232 = arith.addf %227, %231 : vector<256x128xf32>
    %c255_i32_145 = arith.constant 255 : i32
    %233 = tpu.dynamic_rotate %219 by %c255_i32_145 dim 0 : vector<256x128xf32>, i32 -> vector<256x128xf32>
    %234 = vector.broadcast %28 : vector<256x1xf32> to vector<256x128xf32>
    %235 = arith.mulf %233, %234 : vector<256x128xf32>
    %236 = arith.truncf %235 : vector<256x128xf32> to vector<256x128xbf16>
    %c8_146 = arith.constant 8 : index
    %c0_147 = arith.constant 0 : index
    %c0_148 = arith.constant 0 : index
    %237 = vector.load %arg11[%c8_146, %c0_147, %c0_148] : memref<9x128x128xbf16, #tpu.memory_space<vmem>>, vector<1x128x128xbf16>
    %238 = vector.shape_cast %237 : vector<1x128x128xbf16> to vector<128x128xbf16>
    %cst_149 = arith.constant dense<0.000000e+00> : vector<256x128xf32>
    %239 = tpu.matmul %236, %238, %cst_149 {dimension_numbers = #tpu.dot_dimension_numbers<[1], [0], [0], [1], [0, 0, 1, 1], [], []>} : vector<256x128xbf16>, vector<128x128xbf16>, vector<256x128xf32> -> vector<256x128xf32>
    %240 = arith.addf %232, %239 : vector<256x128xf32>
    %241 = vector.broadcast %174 : vector<1x128xf32> to vector<256x128xf32>
    %242 = arith.addf %240, %241 : vector<256x128xf32>
    %c0_150 = arith.constant 0 : index
    %c0_151 = arith.constant 0 : index
    %c0_152 = arith.constant 0 : index
    %243 = vector.load %arg1[%c0_150, %c0_151, %c0_152] : memref<1x256x128xf32, #tpu.memory_space<vmem>>, vector<1x256x128xf32>
    %244 = vector.shape_cast %243 : vector<1x256x128xf32> to vector<256x128xf32>
    %245 = arith.addf %244, %242 : vector<256x128xf32>
    %c0_153 = arith.constant 0 : index
    %c0_154 = arith.constant 0 : index
    %c0_155 = arith.constant 0 : index
    %246 = vector.load %arg13[%c0_153, %c0_154, %c0_155] : memref<1x256x128xf32, #tpu.memory_space<vmem>>, vector<1x256x128xf32>
    %247 = vector.shape_cast %246 : vector<1x256x128xf32> to vector<256x128xf32>
    %248 = vector.shape_cast %245 : vector<256x128xf32> to vector<1x256x128xf32>
    tpu.vector_store %arg13[%c0_153, %c0_154, %c0_155], %248 {strides = array<i32>} : memref<1x256x128xf32, #tpu.memory_space<vmem>>, vector<1x256x128xf32>,
    return
  }
  func.func @transform_0(%arg0: i32) -> (i32, i32, i32) {
    %c0_i32 = arith.constant 0 : i32
    %c0_i32_0 = arith.constant 0 : i32
    %c0_i32_1 = arith.constant 0 : i32
    return %arg0, %c0_i32, %c0_i32_0 : i32, i32, i32
  }
  func.func @transform_1(%arg0: i32) -> (i32, i32, i32) {
    %c0_i32 = arith.constant 0 : i32
    %c0_i32_0 = arith.constant 0 : i32
    %c0_i32_1 = arith.constant 0 : i32
    return %arg0, %c0_i32, %c0_i32_0 : i32, i32, i32
  }
  func.func @transform_2(%arg0: i32) -> (i32, i32) {
    %c0_i32 = arith.constant 0 : i32
    %c0_i32_0 = arith.constant 0 : i32
    %c0_i32_1 = arith.constant 0 : i32
    return %c0_i32, %c0_i32_0 : i32, i32
  }
  func.func @transform_3(%arg0: i32) -> (i32, i32) {
    %c0_i32 = arith.constant 0 : i32
    %c0_i32_0 = arith.constant 0 : i32
    %c0_i32_1 = arith.constant 0 : i32
    return %c0_i32, %c0_i32_0 : i32, i32
  }
  func.func @transform_4(%arg0: i32) -> (i32, i32) {
    %c0_i32 = arith.constant 0 : i32
    %c0_i32_0 = arith.constant 0 : i32
    %c0_i32_1 = arith.constant 0 : i32
    return %c0_i32, %c0_i32_0 : i32, i32
  }
  func.func @transform_5(%arg0: i32) -> (i32, i32) {
    %c0_i32 = arith.constant 0 : i32
    %c0_i32_0 = arith.constant 0 : i32
    %c0_i32_1 = arith.constant 0 : i32
    return %c0_i32, %c0_i32_0 : i32, i32
  }
  func.func @transform_6(%arg0: i32) -> (i32, i32, i32) {
    %c0_i32 = arith.constant 0 : i32
    %c0_i32_0 = arith.constant 0 : i32
    %c0_i32_1 = arith.constant 0 : i32
    %c0_i32_2 = arith.constant 0 : i32
    return %c0_i32, %c0_i32_0, %c0_i32_1 : i32, i32, i32
  }
  func.func @transform_7(%arg0: i32) -> (i32, i32) {
    %c0_i32 = arith.constant 0 : i32
    %c0_i32_0 = arith.constant 0 : i32
    %c0_i32_1 = arith.constant 0 : i32
    return %c0_i32, %c0_i32_0 : i32, i32
  }
  func.func @transform_8(%arg0: i32) -> (i32, i32) {
    %c0_i32 = arith.constant 0 : i32
    %c0_i32_0 = arith.constant 0 : i32
    %c0_i32_1 = arith.constant 0 : i32
    return %c0_i32, %c0_i32_0 : i32, i32
  }
  func.func @transform_9(%arg0: i32) -> (i32, i32) {
    %c0_i32 = arith.constant 0 : i32
    %c0_i32_0 = arith.constant 0 : i32
    %c0_i32_1 = arith.constant 0 : i32
    return %c0_i32, %c0_i32_0 : i32, i32
  }
  func.func @transform_10(%arg0: i32) -> (i32, i32, i32) {
    %c0_i32 = arith.constant 0 : i32
    %c0_i32_0 = arith.constant 0 : i32
    %c0_i32_1 = arith.constant 0 : i32
    %c0_i32_2 = arith.constant 0 : i32
    return %c0_i32, %c0_i32_0, %c0_i32_1 : i32, i32, i32
  }
  func.func @transform_11(%arg0: i32) -> (i32, i32) {
    %c0_i32 = arith.constant 0 : i32
    %c0_i32_0 = arith.constant 0 : i32
    %c0_i32_1 = arith.constant 0 : i32
    return %c0_i32, %c0_i32_0 : i32, i32
  }
  func.func @transform_12(%arg0: i32) -> (i32, i32, i32) {
    %c0_i32 = arith.constant 0 : i32
    %c0_i32_0 = arith.constant 0 : i32
    %c0_i32_1 = arith.constant 0 : i32
    return %arg0, %c0_i32, %c0_i32_0 : i32, i32, i32
  }
}

</mosaic_0001>

<llo_original>
// kernel: resblock_forward.1
$region0: #{resblock_forward.1}
  #allocation0 [shape = 'u32[]', space=smem, size = 0x4, offset = 0x4, fixed_abs, tag = 'smem constant byte address 0x4 - core index']
  #allocation1 [shape = 'u32[72,128]{1,0:T(1,128)}', space=vmem, size = 0x9000, scoped, tag = 'internal scratch']
  #allocation2 [shape = 'f32[288,128]{1,0:T(8,128)}', space=vmem, size = 0x24000, scoped, tag = 'scratch operand']
  %s0 = inlined_call_operand.vmem [shape: f32[2,256,128], index: 0, kind: input, shape index: {}]
  %s1 = inlined_call_operand.vmem [shape: f32[2,1,128], index: 1, kind: input, shape index: {}]
  %s2 = inlined_call_operand.vmem [shape: f32[1,128], index: 2, kind: input, shape index: {}]
  %s3 = inlined_call_operand.vmem [shape: f32[1,128], index: 3, kind: input, shape index: {}]
  %s4 = inlined_call_operand.vmem [shape: f32[128,32], index: 4, kind: input, shape index: {}]
  %s5 = inlined_call_operand.vmem [shape: f32[32,128], index: 5, kind: input, shape index: {}]
  %s6 = inlined_call_operand.vmem [shape: bf16[9,128,128], index: 6, kind: input, shape index: {}]
  %s7 = inlined_call_operand.vmem [shape: f32[1,128], index: 7, kind: input, shape index: {}]
  %s8 = inlined_call_operand.vmem [shape: f32[1,128], index: 8, kind: input, shape index: {}]
  %s9 = inlined_call_operand.vmem [shape: f32[1,128], index: 9, kind: input, shape index: {}]
  %s10 = inlined_call_operand.vmem [shape: bf16[9,128,128], index: 10, kind: input, shape index: {}]
  %s11 = inlined_call_operand.vmem [shape: f32[1,128], index: 11, kind: input, shape index: {}]
  %s12 = inlined_call_operand.hbm [shape: f32[2,256,128], index: 12, kind: output, shape index: {}]
  %s13 = sld [smem:[#allocation0]]
  $region81: #{resblock_forward.1} parent=0
    _
  %s15 = ssub.s32 1, %s13
  %s16 = scalar_select 0, %s15, %s13
  $region1: #{resblock_forward.1} parent=0
    #allocation3 [shape = 'u8[262144]{0}', space=vmem, size = 0x40000, scoped, tag = 'output window, operand 0']
    #allocation4 [shape = 's32[2]{0}', space=sflag, size = 0x8, scoped, tag = 'scoped memory for resblock_forward.1']
    %17 = vsyncpa [#allocation4], 0
    %s18 = scalar_lea.sflag [#allocation4], 1
    %19 = vsyncpa %s18, 0
    loop: start=0, step=1, limit=4
    $region2: #{resblock_forward.1} parent=1 // loop_pre_header
      _
    $region3: #{resblock_forward.1} parent=1 // loop_header
      %s21 = sphi 0, %s25
      %p22 = scmp.ge.s32.totalorder %s21, 4
      %s31 = sphi 0, %s33
      %s34 = sphi 0, %s31
      %s35 = sphi 0, %s34
      %s51 = sphi 0, %s35
      %s57 = sphi 0, %s59
      %s60 = sphi 0, %s57
      %s61 = sphi 0, %s60
      %s77 = sphi 0, %s61
      %s81 = sphi 0, %s81
      %s83 = sphi 0, %s81
      %s84 = sphi 0, %s83
      %s98 = sphi 0, %s84
      %s102 = sphi 0, %s102
      %s104 = sphi 0, %s102
      %s105 = sphi 0, %s104
      %s119 = sphi 0, %s105
      %s123 = sphi 0, %s123
      %s125 = sphi 0, %s123
      %s126 = sphi 0, %s125
      %s140 = sphi 0, %s126
      %s144 = sphi 0, %s144
      %s146 = sphi 0, %s144
      %s147 = sphi 0, %s146
      %s161 = sphi 0, %s147
      %s165 = sphi 0, %s165
      %s167 = sphi 0, %s165
      %s168 = sphi 0, %s167
      %s182 = sphi 0, %s168
      %s186 = sphi 0, %s186
      %s188 = sphi 0, %s186
      %s189 = sphi 0, %s188
      %s203 = sphi 0, %s189
      %s207 = sphi 0, %s207
      %s209 = sphi 0, %s207
      %s210 = sphi 0, %s209
      %s224 = sphi 0, %s210
      %s228 = sphi 0, %s228
      %s230 = sphi 0, %s228
      %s231 = sphi 0, %s230
      %s245 = sphi 0, %s231
      %s249 = sphi 0, %s249
      %s251 = sphi 0, %s249
      %s252 = sphi 0, %s251
      %s266 = sphi 0, %s252
      %s270 = sphi 0, %s270
      %s272 = sphi 0, %s270
      %s273 = sphi 0, %s272
      %s287 = sphi 0, %s273
      %s293 = sphi 0, %s295
      %s296 = sphi 0, %s293
      %s297 = sphi 0, %s296
      %s313 = sphi 0, %s297
    $region4: #{resblock_forward.1} parent=1 // loop_header_branch
      %24 = sbr.rel (%p22) target = $region8
    $region5: #{resblock_forward.1} parent=1 // loop_body
      %s26 = ssub.s32 %s21, 1
      %s27 = ssub.s32 %s21, 2
      %s28 = sadd.s32 %s21, 1
      %s29 = ssub.s32 %s21, %s28
      %p30 = scmp.eq.s32.totalorder %s29, 0
      %s32 = sadd.s32 %s31, 1
      %s33 = scalar_select %p30, %s31, %s32
      %p36 = pneg %p30
      %p37 = scmp.eq.s32.totalorder %s21, 1
      %p38 = por %p36, %p37
      %p39 = scmp.ne.s32.totalorder %s31, %s34
      %p40 = scmp.eq.s32.totalorder %s21, 0
      %p41 = por %p39, %p40
      %p42 = scmp.ne.s32.totalorder %s31, %s34
      %p43 = scmp.eq.s32.totalorder %s26, 1
      %p44 = por %p42, %p43
      %p45 = scmp.ne.s32.totalorder %s34, %s35
      %p46 = scmp.eq.s32.totalorder %s26, 0
      %p47 = por %p45, %p46
      %p48 = scmp.ne.s32.totalorder %s34, %s35
      %p49 = scmp.eq.s32.totalorder %s27, 1
      %p50 = por %p48, %p49
      %p52 = scmp.ne.s32.totalorder %s35, %s51
      %p53 = scmp.eq.s32.totalorder %s27, 0
      %p54 = por %p52, %p53
      %s55 = ssub.s32 %s21, %s28
      %p56 = scmp.eq.s32.totalorder %s55, 0
      %s58 = sadd.s32 %s57, 1
      %s59 = scalar_select %p56, %s57, %s58
      %p62 = pneg %p56
      %p63 = scmp.eq.s32.totalorder %s21, 1
      %p64 = por %p62, %p63
      %p65 = scmp.ne.s32.totalorder %s57, %s60
      %p66 = scmp.eq.s32.totalorder %s21, 0
      %p67 = por %p65, %p66
      %p68 = scmp.ne.s32.totalorder %s57, %s60
      %p69 = scmp.eq.s32.totalorder %s26, 1
      %p70 = por %p68, %p69
      %p71 = scmp.ne.s32.totalorder %s60, %s61
      %p72 = scmp.eq.s32.totalorder %s26, 0
      %p73 = por %p71, %p72
      %p74 = scmp.ne.s32.totalorder %s60, %s61
      %p75 = scmp.eq.s32.totalorder %s27, 1
      %p76 = por %p74, %p75
      %p78 = scmp.ne.s32.totalorder %s61, %s77
      %p79 = scmp.eq.s32.totalorder %s27, 0
      %p80 = por %p78, %p79
      %s82 = sadd.s32 %s81, 1
      %p85 = scmp.eq.s32.totalorder %s21, 1
      %p86 = scmp.ne.s32.totalorder %s81, %s83
      %p87 = scmp.eq.s32.totalorder %s21, 0
      %p88 = por %p86, %p87
      %p89 = scmp.ne.s32.totalorder %s81, %s83
      %p90 = scmp.eq.s32.totalorder %s26, 1
      %p91 = por %p89, %p90
      %p92 = scmp.ne.s32.totalorder %s83, %s84
      %p93 = scmp.eq.s32.totalorder %s26, 0
      %p94 = por %p92, %p93
      %p95 = scmp.ne.s32.totalorder %s83, %s84
      %p96 = scmp.eq.s32.totalorder %s27, 1
      %p97 = por %p95, %p96
      %p99 = scmp.ne.s32.totalorder %s84, %s98
      %p100 = scmp.eq.s32.totalorder %s27, 0
      %p101 = por %p99, %p100
      %s103 = sadd.s32 %s102, 1
      %p106 = scmp.eq.s32.totalorder %s21, 1
      %p107 = scmp.ne.s32.totalorder %s102, %s104
      %p108 = scmp.eq.s32.totalorder %s21, 0
      %p109 = por %p107, %p108
      %p110 = scmp.ne.s32.totalorder %s102, %s104
      %p111 = scmp.eq.s32.totalorder %s26, 1
      %p112 = por %p110, %p111
      %p113 = scmp.ne.s32.totalorder %s104, %s105
      %p114 = scmp.eq.s32.totalorder %s26, 0
      %p115 = por %p113, %p114
      %p116 = scmp.ne.s32.totalorder %s104, %s105
      %p117 = scmp.eq.s32.totalorder %s27, 1
      %p118 = por %p116, %p117
      %p120 = scmp.ne.s32.totalorder %s105, %s119
      %p121 = scmp.eq.s32.totalorder %s27, 0
      %p122 = por %p120, %p121
      %s124 = sadd.s32 %s123, 1
      %p127 = scmp.eq.s32.totalorder %s21, 1
      %p128 = scmp.ne.s32.totalorder %s123, %s125
      %p129 = scmp.eq.s32.totalorder %s21, 0
      %p130 = por %p128, %p129
      %p131 = scmp.ne.s32.totalorder %s123, %s125
      %p132 = scmp.eq.s32.totalorder %s26, 1
      %p133 = por %p131, %p132
      %p134 = scmp.ne.s32.totalorder %s125, %s126
      %p135 = scmp.eq.s32.totalorder %s26, 0
      %p136 = por %p134, %p135
      %p137 = scmp.ne.s32.totalorder %s125, %s126
      %p138 = scmp.eq.s32.totalorder %s27, 1
      %p139 = por %p137, %p138
      %p141 = scmp.ne.s32.totalorder %s126, %s140
      %p142 = scmp.eq.s32.totalorder %s27, 0
      %p143 = por %p141, %p142
      %s145 = sadd.s32 %s144, 1
      %p148 = scmp.eq.s32.totalorder %s21, 1
      %p149 = scmp.ne.s32.totalorder %s144, %s146
      %p150 = scmp.eq.s32.totalorder %s21, 0
      %p151 = por %p149, %p150
      %p152 = scmp.ne.s32.totalorder %s144, %s146
      %p153 = scmp.eq.s32.totalorder %s26, 1
      %p154 = por %p152, %p153
      %p155 = scmp.ne.s32.totalorder %s146, %s147
      %p156 = scmp.eq.s32.totalorder %s26, 0
      %p157 = por %p155, %p156
      %p158 = scmp.ne.s32.totalorder %s146, %s147
      %p159 = scmp.eq.s32.totalorder %s27, 1
      %p160 = por %p158, %p159
      %p162 = scmp.ne.s32.totalorder %s147, %s161
      %p163 = scmp.eq.s32.totalorder %s27, 0
      %p164 = por %p162, %p163
      %s166 = sadd.s32 %s165, 1
      %p169 = scmp.eq.s32.totalorder %s21, 1
      %p170 = scmp.ne.s32.totalorder %s165, %s167
      %p171 = scmp.eq.s32.totalorder %s21, 0
      %p172 = por %p170, %p171
      %p173 = scmp.ne.s32.totalorder %s165, %s167
      %p174 = scmp.eq.s32.totalorder %s26, 1
      %p175 = por %p173, %p174
      %p176 = scmp.ne.s32.totalorder %s167, %s168
      %p177 = scmp.eq.s32.totalorder %s26, 0
      %p178 = por %p176, %p177
      %p179 = scmp.ne.s32.totalorder %s167, %s168
      %p180 = scmp.eq.s32.totalorder %s27, 1
      %p181 = por %p179, %p180
      %p183 = scmp.ne.s32.totalorder %s168, %s182
      %p184 = scmp.eq.s32.totalorder %s27, 0
      %p185 = por %p183, %p184
      %s187 = sadd.s32 %s186, 1
      %p190 = scmp.eq.s32.totalorder %s21, 1
      %p191 = scmp.ne.s32.totalorder %s186, %s188
      %p192 = scmp.eq.s32.totalorder %s21, 0
      %p193 = por %p191, %p192
      %p194 = scmp.ne.s32.totalorder %s186, %s188
      %p195 = scmp.eq.s32.totalorder %s26, 1
      %p196 = por %p194, %p195
      %p197 = scmp.ne.s32.totalorder %s188, %s189
      %p198 = scmp.eq.s32.totalorder %s26, 0
      %p199 = por %p197, %p198
      %p200 = scmp.ne.s32.totalorder %s188, %s189
      %p201 = scmp.eq.s32.totalorder %s27, 1
      %p202 = por %p200, %p201
      %p204 = scmp.ne.s32.totalorder %s189, %s203
      %p205 = scmp.eq.s32.totalorder %s27, 0
      %p206 = por %p204, %p205
      %s208 = sadd.s32 %s207, 1
      %p211 = scmp.eq.s32.totalorder %s21, 1
      %p212 = scmp.ne.s32.totalorder %s207, %s209
      %p213 = scmp.eq.s32.totalorder %s21, 0
      %p214 = por %p212, %p213
      %p215 = scmp.ne.s32.totalorder %s207, %s209
      %p216 = scmp.eq.s32.totalorder %s26, 1
      %p217 = por %p215, %p216
      %p218 = scmp.ne.s32.totalorder %s209, %s210
      %p219 = scmp.eq.s32.totalorder %s26, 0
      %p220 = por %p218, %p219
      %p221 = scmp.ne.s32.totalorder %s209, %s210
      %p222 = scmp.eq.s32.totalorder %s27, 1
      %p223 = por %p221, %p222
      %p225 = scmp.ne.s32.totalorder %s210, %s224
      %p226 = scmp.eq.s32.totalorder %s27, 0
      %p227 = por %p225, %p226
      %s229 = sadd.s32 %s228, 1
      %p232 = scmp.eq.s32.totalorder %s21, 1
      %p233 = scmp.ne.s32.totalorder %s228, %s230
      %p234 = scmp.eq.s32.totalorder %s21, 0
      %p235 = por %p233, %p234
      %p236 = scmp.ne.s32.totalorder %s228, %s230
      %p237 = scmp.eq.s32.totalorder %s26, 1
      %p238 = por %p236, %p237
      %p239 = scmp.ne.s32.totalorder %s230, %s231
      %p240 = scmp.eq.s32.totalorder %s26, 0
      %p241 = por %p239, %p240
      %p242 = scmp.ne.s32.totalorder %s230, %s231
      %p243 = scmp.eq.s32.totalorder %s27, 1
      %p244 = por %p242, %p243
      %p246 = scmp.ne.s32.totalorder %s231, %s245
      %p247 = scmp.eq.s32.totalorder %s27, 0
      %p248 = por %p246, %p247
      %s250 = sadd.s32 %s249, 1
      %p253 = scmp.eq.s32.totalorder %s21, 1
      %p254 = scmp.ne.s32.totalorder %s249, %s251
      %p255 = scmp.eq.s32.totalorder %s21, 0
      %p256 = por %p254, %p255
      %p257 = scmp.ne.s32.totalorder %s249, %s251
      %p258 = scmp.eq.s32.totalorder %s26, 1
      %p259 = por %p257, %p258
      %p260 = scmp.ne.s32.totalorder %s251, %s252
      %p261 = scmp.eq.s32.totalorder %s26, 0
      %p262 = por %p260, %p261
      %p263 = scmp.ne.s32.totalorder %s251, %s252
      %p264 = scmp.eq.s32.totalorder %s27, 1
      %p265 = por %p263, %p264
      %p267 = scmp.ne.s32.totalorder %s252, %s266
      %p268 = scmp.eq.s32.totalorder %s27, 0
      %p269 = por %p267, %p268
      %s271 = sadd.s32 %s270, 1
      %p274 = scmp.eq.s32.totalorder %s21, 1
      %p275 = scmp.ne.s32.totalorder %s270, %s272
      %p276 = scmp.eq.s32.totalorder %s21, 0
      %p277 = por %p275, %p276
      %p278 = scmp.ne.s32.totalorder %s270, %s272
      %p279 = scmp.eq.s32.totalorder %s26, 1
      %p280 = por %p278, %p279
      %p281 = scmp.ne.s32.totalorder %s272, %s273
      %p282 = scmp.eq.s32.totalorder %s26, 0
      %p283 = por %p281, %p282
      %p284 = scmp.ne.s32.totalorder %s272, %s273
      %p285 = scmp.eq.s32.totalorder %s27, 1
      %p286 = por %p284, %p285
      %p288 = scmp.ne.s32.totalorder %s273, %s287
      %p289 = scmp.eq.s32.totalorder %s27, 0
      %p290 = por %p288, %p289
      %s291 = ssub.s32 %s21, %s28
      %p292 = scmp.eq.s32.totalorder %s291, 0
      %s294 = sadd.s32 %s293, 1
      %s295 = scalar_select %p292, %s293, %s294
      %p298 = pneg %p292
      %p299 = scmp.eq.s32.totalorder %s21, 1
      %p300 = por %p298, %p299
      %p301 = scmp.ne.s32.totalorder %s293, %s296
      %p302 = scmp.eq.s32.totalorder %s21, 0
      %p303 = por %p301, %p302
      %p304 = scmp.ne.s32.totalorder %s293, %s296
      %p305 = scmp.eq.s32.totalorder %s26, 1
      %p306 = por %p304, %p305
      %p307 = scmp.ne.s32.totalorder %s296, %s297
      %p308 = scmp.eq.s32.totalorder %s26, 0
      %p309 = por %p307, %p308
      %p310 = scmp.ne.s32.totalorder %s296, %s297
      %p311 = scmp.eq.s32.totalorder %s27, 1
      %p312 = por %p310, %p311
      %p314 = scmp.ne.s32.totalorder %s297, %s313
      %p315 = scmp.eq.s32.totalorder %s27, 0
      %p316 = por %p314, %p315
      %p317 = scmp.le.s32.totalorder 1, %s21
      %p318 = scmp.lt.s32.totalorder %s21, 3
      %p319 = pnand %p317, %p318
      %p320 = pneg %p319
      // Predicated region
      $region9: #{resblock_forward.1} parent=5 // pred_check
        _
      $region10: #{resblock_forward.1} parent=5 // pred_check_branch
        %322 = sbr.rel (%p319) target = $region12
      $region11: #{resblock_forward.1} parent=5 // pred_region
        %s323 = ssub.s32 %s21, 1
        // Predicated region
        $region13: #{resblock_forward.1} parent=11 // pred_check
          %p324 = pneg %p94
        $region14: #{resblock_forward.1} parent=11 // pred_check_branch
          %326 = sbr.rel (%p324) target = $region16
        $region15: #{resblock_forward.1} parent=11 // pred_region
          _
        $region16: #{resblock_forward.1} parent=11 // pred_fallthru
          _
        // Predicated region
        $region17: #{resblock_forward.1} parent=11 // pred_check
          %p327 = pneg %p115
        $region18: #{resblock_forward.1} parent=11 // pred_check_branch
          %329 = sbr.rel (%p327) target = $region20
        $region19: #{resblock_forward.1} parent=11 // pred_region
          _
        $region20: #{resblock_forward.1} parent=11 // pred_fallthru
          _
        // Predicated region
        $region21: #{resblock_forward.1} parent=11 // pred_check
          %p330 = pneg %p136
        $region22: #{resblock_forward.1} parent=11 // pred_check_branch
          %332 = sbr.rel (%p330) target = $region24
        $region23: #{resblock_forward.1} parent=11 // pred_region
          _
        $region24: #{resblock_forward.1} parent=11 // pred_fallthru
          _
        // Predicated region
        $region25: #{resblock_forward.1} parent=11 // pred_check
          %p333 = pneg %p157
        $region26: #{resblock_forward.1} parent=11 // pred_check_branch
          %335 = sbr.rel (%p333) target = $region28
        $region27: #{resblock_forward.1} parent=11 // pred_region
          _
        $region28: #{resblock_forward.1} parent=11 // pred_fallthru
          _
        // Predicated region
        $region29: #{resblock_forward.1} parent=11 // pred_check
          %p336 = pneg %p178
        $region30: #{resblock_forward.1} parent=11 // pred_check_branch
          %338 = sbr.rel (%p336) target = $region32
        $region31: #{resblock_forward.1} parent=11 // pred_region
          _
        $region32: #{resblock_forward.1} parent=11 // pred_fallthru
          _
        // Predicated region
        $region33: #{resblock_forward.1} parent=11 // pred_check
          %p339 = pneg %p199
        $region34: #{resblock_forward.1} parent=11 // pred_check_branch
          %341 = sbr.rel (%p339) target = $region36
        $region35: #{resblock_forward.1} parent=11 // pred_region
          _
        $region36: #{resblock_forward.1} parent=11 // pred_fallthru
          _
        // Predicated region
        $region37: #{resblock_forward.1} parent=11 // pred_check
          %p342 = pneg %p220
        $region38: #{resblock_forward.1} parent=11 // pred_check_branch
          %344 = sbr.rel (%p342) target = $region40
        $region39: #{resblock_forward.1} parent=11 // pred_region
          _
        $region40: #{resblock_forward.1} parent=11 // pred_fallthru
          _
        // Predicated region
        $region41: #{resblock_forward.1} parent=11 // pred_check
          %p345 = pneg %p241
        $region42: #{resblock_forward.1} parent=11 // pred_check_branch
          %347 = sbr.rel (%p345) target = $region44
        $region43: #{resblock_forward.1} parent=11 // pred_region
          _
        $region44: #{resblock_forward.1} parent=11 // pred_fallthru
          _
        // Predicated region
        $region45: #{resblock_forward.1} parent=11 // pred_check
          %p348 = pneg %p262
        $region46: #{resblock_forward.1} parent=11 // pred_check_branch
          %350 = sbr.rel (%p348) target = $region48
        $region47: #{resblock_forward.1} parent=11 // pred_region
          _
        $region48: #{resblock_forward.1} parent=11 // pred_fallthru
          _
        // Predicated region
        $region49: #{resblock_forward.1} parent=11 // pred_check
          %p351 = pneg %p283
        $region50: #{resblock_forward.1} parent=11 // pred_check_branch
          %353 = sbr.rel (%p351) target = $region52
        $region51: #{resblock_forward.1} parent=11 // pred_region
          _
        $region52: #{resblock_forward.1} parent=11 // pred_fallthru
          _
      $region12: #{resblock_forward.1} parent=5 // pred_fallthru
        _
      %p354 = scmp.lt.s32.totalorder %s21, 2
      // Predicated region
      $region53: #{resblock_forward.1} parent=5 // pred_check
        %p355 = pneg %p354
      $region54: #{resblock_forward.1} parent=5 // pred_check_branch
        %357 = sbr.rel (%p355) target = $region56
      $region55: #{resblock_forward.1} parent=5 // pred_region
        // Predicated region
        $region57: #{resblock_forward.1} parent=55 // pred_check
          %p358 = pneg %p41
        $region58: #{resblock_forward.1} parent=55 // pred_check_branch
          %360 = sbr.rel (%p358) target = $region60
        $region59: #{resblock_forward.1} parent=55 // pred_region
          %p361 = scmp.lt.s32.totalorder %s21, 1
          %s362 = scalar_select %p361, %s21, 1
          %s363 = smul.addr %s362, 32
          %s364 = smul.addr %s363, 8
          %s365 = scalar_lea.vmem %s0, %s364
        $region60: #{resblock_forward.1} parent=55 // pred_fallthru
          _
        // Predicated region
        $region61: #{resblock_forward.1} parent=55 // pred_check
          %p366 = pneg %p67
        $region62: #{resblock_forward.1} parent=55 // pred_check_branch
          %368 = sbr.rel (%p366) target = $region64
        $region63: #{resblock_forward.1} parent=55 // pred_region
          %p369 = scmp.lt.s32.totalorder %s21, 1
          %s370 = scalar_select %p369, %s21, 1
          %s371 = scalar_lea.vmem %s1, %s370
        $region64: #{resblock_forward.1} parent=55 // pred_fallthru
          _
      $region56: #{resblock_forward.1} parent=5 // pred_fallthru
        _
      %p372 = scmp.le.s32.totalorder 1, %s21
      %p373 = scmp.lt.s32.totalorder %s21, 3
      %p374 = pnand %p372, %p373
      %p375 = pneg %p374
      // Predicated region
      $region65: #{resblock_forward.1} parent=5 // pred_check
        _
      $region66: #{resblock_forward.1} parent=5 // pred_check_branch
        %377 = sbr.rel (%p374) target = $region68
      $region67: #{resblock_forward.1} parent=5 // pred_region
        %s378 = ssub.s32 %s21, 1
        %p379 = scmp.lt.s32.totalorder %s26, 1
        %s380 = scalar_select %p379, %s26, 1
        %s381 = smul.addr %s380, 32
        %s382 = smul.addr %s381, 8
        %s383 = scalar_lea.vmem %s0, %s382
        %p384 = pneg %p47
        %p385 = pneg %p44
        %p386 = scmp.lt.s32.totalorder %s26, 1
        %s387 = scalar_select %p386, %s26, 1
        %s388 = scalar_lea.vmem %s1, %s387
        %p389 = pneg %p73
        %p390 = pneg %p70
        %p391 = pneg %p94
        %p392 = pneg %p91
        %p393 = pneg %p115
        %p394 = pneg %p112
        %p395 = pneg %p136
        %p396 = pneg %p133
        %p397 = pneg %p157
        %p398 = pneg %p154
        %p399 = pneg %p178
        %p400 = pneg %p175
        %p401 = pneg %p199
        %p402 = pneg %p196
        %p403 = pneg %p220
        %p404 = pneg %p217
        %p405 = pneg %p241
        %p406 = pneg %p238
        %p407 = pneg %p262
        %p408 = pneg %p259
        %p409 = pneg %p283
        %p410 = pneg %p280
        %p411 = pneg %p309
        %p412 = pneg %p306
        %s413 = sand.u32 %s296, 1
        %s414 = scalar_lea.sflag [#allocation4], %s413
        %s415 = sand.u32 %s296, 1
        %s416 = smul.addr %s415, 256
        %s417 = scalar_lea.vmem [#allocation3], %s416
        %p418 = scmp.lt.s32.totalorder %s26, 1
        %s419 = scalar_select %p418, %s26, 1
        %s420 = smul.addr %s419, 32
        %s421 = smul.addr %s420, 8
        %s422 = scalar_lea.vmem %s0, %s421
        %p423 = scmp.lt.s32.totalorder %s26, 1
        %s424 = scalar_select %p423, %s26, 1
        %s425 = scalar_lea.vmem %s1, %s424
        %426 = vst [vmem:[#allocation2] sm:$0xff] 0.0
        %427 = vst [vmem:[#allocation2 + $0x8] sm:$0xff] 0.0
        %428 = vst [vmem:[#allocation2 + $0x110] sm:$0xff] 0.0
        %429 = vst [vmem:[#allocation2 + $0x118] sm:$0xff] 0.0
        %v430 = vlaneseq
        %v431 = vshrl.u32 %v430, 7
        %v432 = vadd.s32 %v431, 8
        %v433 = vadd.s32 %v431, 16
        %v434 = vadd.s32 %v431, 24
        %v435 = vadd.s32 %v431, 32
        %v436 = vadd.s32 %v431, 40
        %v437 = vadd.s32 %v431, 48
        %v438 = vadd.s32 %v431, 56
        %v439 = vadd.s32 %v431, 64
        %v440 = vadd.s32 %v431, 72
        %v441 = vadd.s32 %v431, 80
        %v442 = vadd.s32 %v431, 88
        %v443 = vadd.s32 %v431, 96
        %v444 = vadd.s32 %v431, 104
        %v445 = vadd.s32 %v431, 112
        %v446 = vadd.s32 %v431, 120
        %v447 = vadd.s32 %v431, 128
        %v448 = vadd.s32 %v431, 136
        %v449 = vadd.s32 %v431, 144
        %v450 = vadd.s32 %v431, 152
        %v451 = vadd.s32 %v431, 160
        %v452 = vadd.s32 %v431, 168
        %v453 = vadd.s32 %v431, 176
        %v454 = vadd.s32 %v431, 184
        %v455 = vadd.s32 %v431, 192
        %v456 = vadd.s32 %v431, 200
        %v457 = vadd.s32 %v431, 208
        %v458 = vadd.s32 %v431, 216
        %v459 = vadd.s32 %v431, 224
        %v460 = vadd.s32 %v431, 232
        %v461 = vadd.s32 %v431, 240
        %v462 = vadd.s32 %v431, 248
        %vm463 = vcmp.lt.s32.totalorder %v431, 0
        %v464 = vsub.s32 0, %v431
        %v465 = vsel %vm463, %v464, %v431
        %v466 = vshrl.u32 %v465, 4
        %v467 = vand.u32 %v465, 15
        %v468 = vsub.s32 0, %v467
        %v469 = vsel %vm463, %v468, %v467
        %vm470 = vcmp.lt.s32.totalorder %v432, 0
        %v471 = vsub.s32 0, %v432
        %v472 = vsel %vm470, %v471, %v432
        %v473 = vshrl.u32 %v472, 4
        %v474 = vand.u32 %v472, 15
        %v475 = vsub.s32 0, %v474
        %v476 = vsel %vm470, %v475, %v474
        %vm477 = vcmp.lt.s32.totalorder %v433, 0
        %v478 = vsub.s32 0, %v433
        %v479 = vsel %vm477, %v478, %v433
        %v480 = vshrl.u32 %v479, 4
        %v481 = vand.u32 %v479, 15
        %v482 = vsub.s32 0, %v481
        %v483 = vsel %vm477, %v482, %v481
        %vm484 = vcmp.lt.s32.totalorder %v434, 0
        %v485 = vsub.s32 0, %v434
        %v486 = vsel %vm484, %v485, %v434
        %v487 = vshrl.u32 %v486, 4
        %v488 = vand.u32 %v486, 15
        %v489 = vsub.s32 0, %v488
        %v490 = vsel %vm484, %v489, %v488
        %vm491 = vcmp.lt.s32.totalorder %v435, 0
        %v492 = vsub.s32 0, %v435
        %v493 = vsel %vm491, %v492, %v435
        %v494 = vshrl.u32 %v493, 4
        %v495 = vand.u32 %v493, 15
        %v496 = vsub.s32 0, %v495
        %v497 = vsel %vm491, %v496, %v495
        %vm498 = vcmp.lt.s32.totalorder %v436, 0
        %v499 = vsub.s32 0, %v436
        %v500 = vsel %vm498, %v499, %v436
        %v501 = vshrl.u32 %v500, 4
        %v502 = vand.u32 %v500, 15
        %v503 = vsub.s32 0, %v502
        %v504 = vsel %vm498, %v503, %v502
        %vm505 = vcmp.lt.s32.totalorder %v437, 0
        %v506 = vsub.s32 0, %v437
        %v507 = vsel %vm505, %v506, %v437
        %v508 = vshrl.u32 %v507, 4
        %v509 = vand.u32 %v507, 15
        %v510 = vsub.s32 0, %v509
        %v511 = vsel %vm505, %v510, %v509
        %vm512 = vcmp.lt.s32.totalorder %v438, 0
        %v513 = vsub.s32 0, %v438
        %v514 = vsel %vm512, %v513, %v438
        %v515 = vshrl.u32 %v514, 4
        %v516 = vand.u32 %v514, 15
        %v517 = vsub.s32 0, %v516
        %v518 = vsel %vm512, %v517, %v516
        %vm519 = vcmp.lt.s32.totalorder %v439, 0
        %v520 = vsub.s32 0, %v439
        %v521 = vsel %vm519, %v520, %v439
        %v522 = vshrl.u32 %v521, 4
        %v523 = vand.u32 %v521, 15
        %v524 = vsub.s32 0, %v523
        %v525 = vsel %vm519, %v524, %v523
        %vm526 = vcmp.lt.s32.totalorder %v440, 0
        %v527 = vsub.s32 0, %v440
        %v528 = vsel %vm526, %v527, %v440
        %v529 = vshrl.u32 %v528, 4
        %v530 = vand.u32 %v528, 15
        %v531 = vsub.s32 0, %v530
        %v532 = vsel %vm526, %v531, %v530
        %vm533 = vcmp.lt.s32.totalorder %v441, 0
        %v534 = vsub.s32 0, %v441
        %v535 = vsel %vm533, %v534, %v441
        %v536 = vshrl.u32 %v535, 4
        %v537 = vand.u32 %v535, 15
        %v538 = vsub.s32 0, %v537
        %v539 = vsel %vm533, %v538, %v537
        %vm540 = vcmp.lt.s32.totalorder %v442, 0
        %v541 = vsub.s32 0, %v442
        %v542 = vsel %vm540, %v541, %v442
        %v543 = vshrl.u32 %v542, 4
        %v544 = vand.u32 %v542, 15
        %v545 = vsub.s32 0, %v544
        %v546 = vsel %vm540, %v545, %v544
        %vm547 = vcmp.lt.s32.totalorder %v443, 0
        %v548 = vsub.s32 0, %v443
        %v549 = vsel %vm547, %v548, %v443
        %v550 = vshrl.u32 %v549, 4
        %v551 = vand.u32 %v549, 15
        %v552 = vsub.s32 0, %v551
        %v553 = vsel %vm547, %v552, %v551
        %vm554 = vcmp.lt.s32.totalorder %v444, 0
        %v555 = vsub.s32 0, %v444
        %v556 = vsel %vm554, %v555, %v444
        %v557 = vshrl.u32 %v556, 4
        %v558 = vand.u32 %v556, 15
        %v559 = vsub.s32 0, %v558
        %v560 = vsel %vm554, %v559, %v558
        %vm561 = vcmp.lt.s32.totalorder %v445, 0
        %v562 = vsub.s32 0, %v445
        %v563 = vsel %vm561, %v562, %v445
        %v564 = vshrl.u32 %v563, 4
        %v565 = vand.u32 %v563, 15
        %v566 = vsub.s32 0, %v565
        %v567 = vsel %vm561, %v566, %v565
        %vm568 = vcmp.lt.s32.totalorder %v446, 0
        %v569 = vsub.s32 0, %v446
        %v570 = vsel %vm568, %v569, %v446
        %v571 = vshrl.u32 %v570, 4
        %v572 = vand.u32 %v570, 15
        %v573 = vsub.s32 0, %v572
        %v574 = vsel %vm568, %v573, %v572
        %vm575 = vcmp.lt.s32.totalorder %v447, 0
        %v576 = vsub.s32 0, %v447
        %v577 = vsel %vm575, %v576, %v447
        %v578 = vshrl.u32 %v577, 4
        %v579 = vand.u32 %v577, 15
        %v580 = vsub.s32 0, %v579
        %v581 = vsel %vm575, %v580, %v579
        %vm582 = vcmp.lt.s32.totalorder %v448, 0
        %v583 = vsub.s32 0, %v448
        %v584 = vsel %vm582, %v583, %v448
        %v585 = vshrl.u32 %v584, 4
        %v586 = vand.u32 %v584, 15
        %v587 = vsub.s32 0, %v586
        %v588 = vsel %vm582, %v587, %v586
        %vm589 = vcmp.lt.s32.totalorder %v449, 0
        %v590 = vsub.s32 0, %v449
        %v591 = vsel %vm589, %v590, %v449
        %v592 = vshrl.u32 %v591, 4
        %v593 = vand.u32 %v591, 15
        %v594 = vsub.s32 0, %v593
        %v595 = vsel %vm589, %v594, %v593
        %vm596 = vcmp.lt.s32.totalorder %v450, 0
        %v597 = vsub.s32 0, %v450
        %v598 = vsel %vm596, %v597, %v450
        %v599 = vshrl.u32 %v598, 4
        %v600 = vand.u32 %v598, 15
        %v601 = vsub.s32 0, %v600
        %v602 = vsel %vm596, %v601, %v600
        %vm603 = vcmp.lt.s32.totalorder %v451, 0
        %v604 = vsub.s32 0, %v451
        %v605 = vsel %vm603, %v604, %v451
        %v606 = vshrl.u32 %v605, 4
        %v607 = vand.u32 %v605, 15
        %v608 = vsub.s32 0, %v607
        %v609 = vsel %vm603, %v608, %v607
        %vm610 = vcmp.lt.s32.totalorder %v452, 0
        %v611 = vsub.s32 0, %v452
        %v612 = vsel %vm610, %v611, %v452
        %v613 = vshrl.u32 %v612, 4
        %v614 = vand.u32 %v612, 15
        %v615 = vsub.s32 0, %v614
        %v616 = vsel %vm610, %v615, %v614
        %vm617 = vcmp.lt.s32.totalorder %v453, 0
        %v618 = vsub.s32 0, %v453
        %v619 = vsel %vm617, %v618, %v453
        %v620 = vshrl.u32 %v619, 4
        %v621 = vand.u32 %v619, 15
        %v622 = vsub.s32 0, %v621
        %v623 = vsel %vm617, %v622, %v621
        %vm624 = vcmp.lt.s32.totalorder %v454, 0
        %v625 = vsub.s32 0, %v454
        %v626 = vsel %vm624, %v625, %v454
        %v627 = vshrl.u32 %v626, 4
        %v628 = vand.u32 %v626, 15
        %v629 = vsub.s32 0, %v628
        %v630 = vsel %vm624, %v629, %v628
        %vm631 = vcmp.lt.s32.totalorder %v455, 0
        %v632 = vsub.s32 0, %v455
        %v633 = vsel %vm631, %v632, %v455
        %v634 = vshrl.u32 %v633, 4
        %v635 = vand.u32 %v633, 15
        %v636 = vsub.s32 0, %v635
        %v637 = vsel %vm631, %v636, %v635
        %vm638 = vcmp.lt.s32.totalorder %v456, 0
        %v639 = vsub.s32 0, %v456
        %v640 = vsel %vm638, %v639, %v456
        %v641 = vshrl.u32 %v640, 4
        %v642 = vand.u32 %v640, 15
        %v643 = vsub.s32 0, %v642
        %v644 = vsel %vm638, %v643, %v642
        %vm645 = vcmp.lt.s32.totalorder %v457, 0
        %v646 = vsub.s32 0, %v457
        %v647 = vsel %vm645, %v646, %v457
        %v648 = vshrl.u32 %v647, 4
        %v649 = vand.u32 %v647, 15
        %v650 = vsub.s32 0, %v649
        %v651 = vsel %vm645, %v650, %v649
        %vm652 = vcmp.lt.s32.totalorder %v458, 0
        %v653 = vsub.s32 0, %v458
        %v654 = vsel %vm652, %v653, %v458
        %v655 = vshrl.u32 %v654, 4
        %v656 = vand.u32 %v654, 15
        %v657 = vsub.s32 0, %v656
        %v658 = vsel %vm652, %v657, %v656
        %vm659 = vcmp.lt.s32.totalorder %v459, 0
        %v660 = vsub.s32 0, %v459
        %v661 = vsel %vm659, %v660, %v459
        %v662 = vshrl.u32 %v661, 4
        %v663 = vand.u32 %v661, 15
        %v664 = vsub.s32 0, %v663
        %v665 = vsel %vm659, %v664, %v663
        %vm666 = vcmp.lt.s32.totalorder %v460, 0
        %v667 = vsub.s32 0, %v460
        %v668 = vsel %vm666, %v667, %v460
        %v669 = vshrl.u32 %v668, 4
        %v670 = vand.u32 %v668, 15
        %v671 = vsub.s32 0, %v670
        %v672 = vsel %vm666, %v671, %v670
        %vm673 = vcmp.lt.s32.totalorder %v461, 0
        %v674 = vsub.s32 0, %v461
        %v675 = vsel %vm673, %v674, %v461
        %v676 = vshrl.u32 %v675, 4
        %v677 = vand.u32 %v675, 15
        %v678 = vsub.s32 0, %v677
        %v679 = vsel %vm673, %v678, %v677
        %vm680 = vcmp.lt.s32.totalorder %v462, 0
        %v681 = vsub.s32 0, %v462
        %v682 = vsel %vm680, %v681, %v462
        %v683 = vshrl.u32 %v682, 4
        %v684 = vand.u32 %v682, 15
        %v685 = vsub.s32 0, %v684
        %v686 = vsel %vm680, %v685, %v684
        %vm687 = vcmp.ne.s32.totalorder %v469, 0
        %vm688 = vcmp.ne.s32.totalorder %v476, 0
        %vm689 = vcmp.ne.s32.totalorder %v483, 0
        %vm690 = vcmp.ne.s32.totalorder %v490, 0
        %vm691 = vcmp.ne.s32.totalorder %v497, 0
        %vm692 = vcmp.ne.s32.totalorder %v504, 0
        %vm693 = vcmp.ne.s32.totalorder %v511, 0
        %vm694 = vcmp.ne.s32.totalorder %v518, 0
        %vm695 = vcmp.ne.s32.totalorder %v525, 0
        %vm696 = vcmp.ne.s32.totalorder %v532, 0
        %vm697 = vcmp.ne.s32.totalorder %v539, 0
        %vm698 = vcmp.ne.s32.totalorder %v546, 0
        %vm699 = vcmp.ne.s32.totalorder %v553, 0
        %vm700 = vcmp.ne.s32.totalorder %v560, 0
        %vm701 = vcmp.ne.s32.totalorder %v567, 0
        %vm702 = vcmp.ne.s32.totalorder %v574, 0
        %vm703 = vcmp.ne.s32.totalorder %v581, 0
        %vm704 = vcmp.ne.s32.totalorder %v588, 0
        %vm705 = vcmp.ne.s32.totalorder %v595, 0
        %vm706 = vcmp.ne.s32.totalorder %v602, 0
        %vm707 = vcmp.ne.s32.totalorder %v609, 0
        %vm708 = vcmp.ne.s32.totalorder %v616, 0
        %vm709 = vcmp.ne.s32.totalorder %v623, 0
        %vm710 = vcmp.ne.s32.totalorder %v630, 0
        %vm711 = vcmp.ne.s32.totalorder %v637, 0
        %vm712 = vcmp.ne.s32.totalorder %v644, 0
        %vm713 = vcmp.ne.s32.totalorder %v651, 0
        %vm714 = vcmp.ne.s32.totalorder %v658, 0
        %vm715 = vcmp.ne.s32.totalorder %v665, 0
        %vm716 = vcmp.ne.s32.totalorder %v672, 0
        %vm717 = vcmp.ne.s32.totalorder %v679, 0
        %vm718 = vcmp.ne.s32.totalorder %v686, 0
        %vm719 = vcmp.lt.s32.totalorder %v469, 0
        %vm720 = vcmp.lt.s32.totalorder %v476, 0
        %vm721 = vcmp.lt.s32.totalorder %v483, 0
        %vm722 = vcmp.lt.s32.totalorder %v490, 0
        %vm723 = vcmp.lt.s32.totalorder %v497, 0
        %vm724 = vcmp.lt.s32.totalorder %v504, 0
        %vm725 = vcmp.lt.s32.totalorder %v511, 0
        %vm726 = vcmp.lt.s32.totalorder %v518, 0
        %vm727 = vcmp.lt.s32.totalorder %v525, 0
        %vm728 = vcmp.lt.s32.totalorder %v532, 0
        %vm729 = vcmp.lt.s32.totalorder %v539, 0
        %vm730 = vcmp.lt.s32.totalorder %v546, 0
        %vm731 = vcmp.lt.s32.totalorder %v553, 0
        %vm732 = vcmp.lt.s32.totalorder %v560, 0
        %vm733 = vcmp.lt.s32.totalorder %v567, 0
        %vm734 = vcmp.lt.s32.totalorder %v574, 0
        %vm735 = vcmp.lt.s32.totalorder %v581, 0
        %vm736 = vcmp.lt.s32.totalorder %v588, 0
        %vm737 = vcmp.lt.s32.totalorder %v595, 0
        %vm738 = vcmp.lt.s32.totalorder %v602, 0
        %vm739 = vcmp.lt.s32.totalorder %v609, 0
        %vm740 = vcmp.lt.s32.totalorder %v616, 0
        %vm741 = vcmp.lt.s32.totalorder %v623, 0
        %vm742 = vcmp.lt.s32.totalorder %v630, 0
        %vm743 = vcmp.lt.s32.totalorder %v637, 0
        %vm744 = vcmp.lt.s32.totalorder %v644, 0
        %vm745 = vcmp.lt.s32.totalorder %v651, 0
        %vm746 = vcmp.lt.s32.totalorder %v658, 0
        %vm747 = vcmp.lt.s32.totalorder %v665, 0
        %vm748 = vcmp.lt.s32.totalorder %v672, 0
        %vm749 = vcmp.lt.s32.totalorder %v679, 0
        %vm750 = vcmp.lt.s32.totalorder %v686, 0
        %vm751 = vmand %vm719, %vm687
        %vm752 = vmand %vm720, %vm688
        %vm753 = vmand %vm721, %vm689
        %vm754 = vmand %vm722, %vm690
        %vm755 = vmand %vm723, %vm691
        %vm756 = vmand %vm724, %vm692
        %vm757 = vmand %vm725, %vm693
        %vm758 = vmand %vm726, %vm694
        %vm759 = vmand %vm727, %vm695
        %vm760 = vmand %vm728, %vm696
        %vm761 = vmand %vm729, %vm697
        %vm762 = vmand %vm730, %vm698
        %vm763 = vmand %vm731, %vm699
        %vm764 = vmand %vm732, %vm700
        %vm765 = vmand %vm733, %vm701
        %vm766 = vmand %vm734, %vm702
        %vm767 = vmand %vm735, %vm703
        %vm768 = vmand %vm736, %vm704
        %vm769 = vmand %vm737, %vm705
        %vm770 = vmand %vm738, %vm706
        %vm771 = vmand %vm739, %vm707
        %vm772 = vmand %vm740, %vm708
        %vm773 = vmand %vm741, %vm709
        %vm774 = vmand %vm742, %vm710
        %vm775 = vmand %vm743, %vm711
        %vm776 = vmand %vm744, %vm712
        %vm777 = vmand %vm745, %vm713
        %vm778 = vmand %vm746, %vm714
        %vm779 = vmand %vm747, %vm715
        %vm780 = vmand %vm748, %vm716
        %vm781 = vmand %vm749, %vm717
        %vm782 = vmand %vm750, %vm718
        %v783 = vadd.s32 %v469, 16
        %v784 = vadd.s32 %v476, 16
        %v785 = vadd.s32 %v483, 16
        %v786 = vadd.s32 %v490, 16
        %v787 = vadd.s32 %v497, 16
        %v788 = vadd.s32 %v504, 16
        %v789 = vadd.s32 %v511, 16
        %v790 = vadd.s32 %v518, 16
        %v791 = vadd.s32 %v525, 16
        %v792 = vadd.s32 %v532, 16
        %v793 = vadd.s32 %v539, 16
        %v794 = vadd.s32 %v546, 16
        %v795 = vadd.s32 %v553, 16
        %v796 = vadd.s32 %v560, 16
        %v797 = vadd.s32 %v567, 16
        %v798 = vadd.s32 %v574, 16
        %v799 = vadd.s32 %v581, 16
        %v800 = vadd.s32 %v588, 16
        %v801 = vadd.s32 %v595, 16
        %v802 = vadd.s32 %v602, 16
        %v803 = vadd.s32 %v609, 16
        %v804 = vadd.s32 %v616, 16
        %v805 = vadd.s32 %v623, 16
        %v806 = vadd.s32 %v630, 16
        %v807 = vadd.s32 %v637, 16
        %v808 = vadd.s32 %v644, 16
        %v809 = vadd.s32 %v651, 16
        %v810 = vadd.s32 %v658, 16
        %v811 = vadd.s32 %v665, 16
        %v812 = vadd.s32 %v672, 16
        %v813 = vadd.s32 %v679, 16
        %v814 = vadd.s32 %v686, 16
        %v815 = vsel %vm751, %v783, %v469
        %v816 = vsel %vm752, %v784, %v476
        %v817 = vsel %vm753, %v785, %v483
        %v818 = vsel %vm754, %v786, %v490
        %v819 = vsel %vm755, %v787, %v497
        %v820 = vsel %vm756, %v788, %v504
        %v821 = vsel %vm757, %v789, %v511
        %v822 = vsel %vm758, %v790, %v518
        %v823 = vsel %vm759, %v791, %v525
        %v824 = vsel %vm760, %v792, %v532
        %v825 = vsel %vm761, %v793, %v539
        %v826 = vsel %vm762, %v794, %v546
        %v827 = vsel %vm763, %v795, %v553
        %v828 = vsel %vm764, %v796, %v560
        %v829 = vsel %vm765, %v797, %v567
        %v830 = vsel %vm766, %v798, %v574
        %v831 = vsel %vm767, %v799, %v581
        %v832 = vsel %vm768, %v800, %v588
        %v833 = vsel %vm769, %v801, %v595
        %v834 = vsel %vm770, %v802, %v602
        %v835 = vsel %vm771, %v803, %v609
        %v836 = vsel %vm772, %v804, %v616
        %v837 = vsel %vm773, %v805, %v623
        %v838 = vsel %vm774, %v806, %v630
        %v839 = vsel %vm775, %v807, %v637
        %v840 = vsel %vm776, %v808, %v644
        %v841 = vsel %vm777, %v809, %v651
        %v842 = vsel %vm778, %v810, %v658
        %v843 = vsel %vm779, %v811, %v665
        %v844 = vsel %vm780, %v812, %v672
        %v845 = vsel %vm781, %v813, %v679
        %v846 = vsel %vm782, %v814, %v686
        %vm847 = vcmp.gt.s32.totalorder %v815, 0
        %vm848 = vcmp.gt.s32.totalorder %v816, 0
        %vm849 = vcmp.gt.s32.totalorder %v817, 0
        %vm850 = vcmp.gt.s32.totalorder %v818, 0
        %vm851 = vcmp.gt.s32.totalorder %v819, 0
        %vm852 = vcmp.gt.s32.totalorder %v820, 0
        %vm853 = vcmp.gt.s32.totalorder %v821, 0
        %vm854 = vcmp.gt.s32.totalorder %v822, 0
        %vm855 = vcmp.gt.s32.totalorder %v823, 0
        %vm856 = vcmp.gt.s32.totalorder %v824, 0
        %vm857 = vcmp.gt.s32.totalorder %v825, 0
        %vm858 = vcmp.gt.s32.totalorder %v826, 0
        %vm859 = vcmp.gt.s32.totalorder %v827, 0
        %vm860 = vcmp.gt.s32.totalorder %v828, 0
        %vm861 = vcmp.gt.s32.totalorder %v829, 0
        %vm862 = vcmp.gt.s32.totalorder %v830, 0
        %vm863 = vcmp.gt.s32.totalorder %v831, 0
        %vm864 = vcmp.gt.s32.totalorder %v832, 0
        %vm865 = vcmp.gt.s32.totalorder %v833, 0
        %vm866 = vcmp.gt.s32.totalorder %v834, 0
        %vm867 = vcmp.gt.s32.totalorder %v835, 0
        %vm868 = vcmp.gt.s32.totalorder %v836, 0
        %vm869 = vcmp.gt.s32.totalorder %v837, 0
        %vm870 = vcmp.gt.s32.totalorder %v838, 0
        %vm871 = vcmp.gt.s32.totalorder %v839, 0
        %vm872 = vcmp.gt.s32.totalorder %v840, 0
        %vm873 = vcmp.gt.s32.totalorder %v841, 0
        %vm874 = vcmp.gt.s32.totalorder %v842, 0
        %vm875 = vcmp.gt.s32.totalorder %v843, 0
        %vm876 = vcmp.gt.s32.totalorder %v844, 0
        %vm877 = vcmp.gt.s32.totalorder %v845, 0
        %vm878 = vcmp.gt.s32.totalorder %v846, 0
        %v879 = vsel %vm847, 1, 0
        %v880 = vsel %vm848, 1, 0
        %v881 = vsel %vm849, 1, 0
        %v882 = vsel %vm850, 1, 0
        %v883 = vsel %vm851, 1, 0
        %v884 = vsel %vm852, 1, 0
        %v885 = vsel %vm853, 1, 0
        %v886 = vsel %vm854, 1, 0
        %v887 = vsel %vm855, 1, 0
        %v888 = vsel %vm856, 1, 0
        %v889 = vsel %vm857, 1, 0
        %v890 = vsel %vm858, 1, 0
        %v891 = vsel %vm859, 1, 0
        %v892 = vsel %vm860, 1, 0
        %v893 = vsel %vm861, 1, 0
        %v894 = vsel %vm862, 1, 0
        %v895 = vsel %vm863, 1, 0
        %v896 = vsel %vm864, 1, 0
        %v897 = vsel %vm865, 1, 0
        %v898 = vsel %vm866, 1, 0
        %v899 = vsel %vm867, 1, 0
        %v900 = vsel %vm868, 1, 0
        %v901 = vsel %vm869, 1, 0
        %v902 = vsel %vm870, 1, 0
        %v903 = vsel %vm871, 1, 0
        %v904 = vsel %vm872, 1, 0
        %v905 = vsel %vm873, 1, 0
        %v906 = vsel %vm874, 1, 0
        %v907 = vsel %vm875, 1, 0
        %v908 = vsel %vm876, 1, 0
        %v909 = vsel %vm877, 1, 0
        %v910 = vsel %vm878, 1, 0
        %v911 = vcvt.s32.f32 %v879
        %v912 = vcvt.s32.f32 %v880
        %v913 = vcvt.s32.f32 %v881
        %v914 = vcvt.s32.f32 %v882
        %v915 = vcvt.s32.f32 %v883
        %v916 = vcvt.s32.f32 %v884
        %v917 = vcvt.s32.f32 %v885
        %v918 = vcvt.s32.f32 %v886
        %v919 = vcvt.s32.f32 %v887
        %v920 = vcvt.s32.f32 %v888
        %v921 = vcvt.s32.f32 %v889
        %v922 = vcvt.s32.f32 %v890
        %v923 = vcvt.s32.f32 %v891
        %v924 = vcvt.s32.f32 %v892
        %v925 = vcvt.s32.f32 %v893
        %v926 = vcvt.s32.f32 %v894
        %v927 = vcvt.s32.f32 %v895
        %v928 = vcvt.s32.f32 %v896
        %v929 = vcvt.s32.f32 %v897
        %v930 = vcvt.s32.f32 %v898
        %v931 = vcvt.s32.f32 %v899
        %v932 = vcvt.s32.f32 %v900
        %v933 = vcvt.s32.f32 %v901
        %v934 = vcvt.s32.f32 %v902
        %v935 = vcvt.s32.f32 %v903
        %v936 = vcvt.s32.f32 %v904
        %v937 = vcvt.s32.f32 %v905
        %v938 = vcvt.s32.f32 %v906
        %v939 = vcvt.s32.f32 %v907
        %v940 = vcvt.s32.f32 %v908
        %v941 = vcvt.s32.f32 %v909
        %v942 = vcvt.s32.f32 %v910
        %vm943 = vcmp.lt.s32.totalorder %v815, 15
        %vm944 = vcmp.lt.s32.totalorder %v816, 15
        %vm945 = vcmp.lt.s32.totalorder %v817, 15
        %vm946 = vcmp.lt.s32.totalorder %v818, 15
        %vm947 = vcmp.lt.s32.totalorder %v819, 15
        %vm948 = vcmp.lt.s32.totalorder %v820, 15
        %vm949 = vcmp.lt.s32.totalorder %v821, 15
        %vm950 = vcmp.lt.s32.totalorder %v822, 15
        %vm951 = vcmp.lt.s32.totalorder %v823, 15
        %vm952 = vcmp.lt.s32.totalorder %v824, 15
        %vm953 = vcmp.lt.s32.totalorder %v825, 15
        %vm954 = vcmp.lt.s32.totalorder %v826, 15
        %vm955 = vcmp.lt.s32.totalorder %v827, 15
        %vm956 = vcmp.lt.s32.totalorder %v828, 15
        %vm957 = vcmp.lt.s32.totalorder %v829, 15
        %vm958 = vcmp.lt.s32.totalorder %v830, 15
        %vm959 = vcmp.lt.s32.totalorder %v831, 15
        %vm960 = vcmp.lt.s32.totalorder %v832, 15
        %vm961 = vcmp.lt.s32.totalorder %v833, 15
        %vm962 = vcmp.lt.s32.totalorder %v834, 15
        %vm963 = vcmp.lt.s32.totalorder %v835, 15
        %vm964 = vcmp.lt.s32.totalorder %v836, 15
        %vm965 = vcmp.lt.s32.totalorder %v837, 15
        %vm966 = vcmp.lt.s32.totalorder %v838, 15
        %vm967 = vcmp.lt.s32.totalorder %v839, 15
        %vm968 = vcmp.lt.s32.totalorder %v840, 15
        %vm969 = vcmp.lt.s32.totalorder %v841, 15
        %vm970 = vcmp.lt.s32.totalorder %v842, 15
        %vm971 = vcmp.lt.s32.totalorder %v843, 15
        %vm972 = vcmp.lt.s32.totalorder %v844, 15
        %vm973 = vcmp.lt.s32.totalorder %v845, 15
        %vm974 = vcmp.lt.s32.totalorder %v846, 15
        %v975 = vsel %vm943, 1, 0
        %v976 = vsel %vm944, 1, 0
        %v977 = vsel %vm945, 1, 0
        %v978 = vsel %vm946, 1, 0
        %v979 = vsel %vm947, 1, 0
        %v980 = vsel %vm948, 1, 0
        %v981 = vsel %vm949, 1, 0
        %v982 = vsel %vm950, 1, 0
        %v983 = vsel %vm951, 1, 0
        %v984 = vsel %vm952, 1, 0
        %v985 = vsel %vm953, 1, 0
        %v986 = vsel %vm954, 1, 0
        %v987 = vsel %vm955, 1, 0
        %v988 = vsel %vm956, 1, 0
        %v989 = vsel %vm957, 1, 0
        %v990 = vsel %vm958, 1, 0
        %v991 = vsel %vm959, 1, 0
        %v992 = vsel %vm960, 1, 0
        %v993 = vsel %vm961, 1, 0
        %v994 = vsel %vm962, 1, 0
        %v995 = vsel %vm963, 1, 0
        %v996 = vsel %vm964, 1, 0
        %v997 = vsel %vm965, 1, 0
        %v998 = vsel %vm966, 1, 0
        %v999 = vsel %vm967, 1, 0
        %v1000 = vsel %vm968, 1, 0
        %v1001 = vsel %vm969, 1, 0
        %v1002 = vsel %vm970, 1, 0
        %v1003 = vsel %vm971, 1, 0
        %v1004 = vsel %vm972, 1, 0
        %v1005 = vsel %vm973, 1, 0
        %v1006 = vsel %vm974, 1, 0
        %v1007 = vcvt.s32.f32 %v975
        %v1008 = vcvt.s32.f32 %v976
        %v1009 = vcvt.s32.f32 %v977
        %v1010 = vcvt.s32.f32 %v978
        %v1011 = vcvt.s32.f32 %v979
        %v1012 = vcvt.s32.f32 %v980
        %v1013 = vcvt.s32.f32 %v981
        %v1014 = vcvt.s32.f32 %v982
        %v1015 = vcvt.s32.f32 %v983
        %v1016 = vcvt.s32.f32 %v984
        %v1017 = vcvt.s32.f32 %v985
        %v1018 = vcvt.s32.f32 %v986
        %v1019 = vcvt.s32.f32 %v987
        %v1020 = vcvt.s32.f32 %v988
        %v1021 = vcvt.s32.f32 %v989
        %v1022 = vcvt.s32.f32 %v990
        %v1023 = vcvt.s32.f32 %v991
        %v1024 = vcvt.s32.f32 %v992
        %v1025 = vcvt.s32.f32 %v993
        %v1026 = vcvt.s32.f32 %v994
        %v1027 = vcvt.s32.f32 %v995
        %v1028 = vcvt.s32.f32 %v996
        %v1029 = vcvt.s32.f32 %v997
        %v1030 = vcvt.s32.f32 %v998
        %v1031 = vcvt.s32.f32 %v999
        %v1032 = vcvt.s32.f32 %v1000
        %v1033 = vcvt.s32.f32 %v1001
        %v1034 = vcvt.s32.f32 %v1002
        %v1035 = vcvt.s32.f32 %v1003
        %v1036 = vcvt.s32.f32 %v1004
        %v1037 = vcvt.s32.f32 %v1005
        %v1038 = vcvt.s32.f32 %v1006
        %v1039 = vld [vmem:[%s422] sm:$0xff]
        %v1040 = vld [vmem:[%s422 + $0x8] sm:$0xff]
        %v1041 = vld [vmem:[%s422 + $0x10] sm:$0xff]
        %v1042 = vld [vmem:[%s422 + $0x18] sm:$0xff]
        %v1043 = vld [vmem:[%s422 + $0x20] sm:$0xff]
        %v1044 = vld [vmem:[%s422 + $0x28] sm:$0xff]
        %v1045 = vld [vmem:[%s422 + $0x30] sm:$0xff]
        %v1046 = vld [vmem:[%s422 + $0x38] sm:$0xff]
        %v1047 = vld [vmem:[%s422 + $0x40] sm:$0xff]
        %v1048 = vld [vmem:[%s422 + $0x48] sm:$0xff]
        %v1049 = vld [vmem:[%s422 + $0x50] sm:$0xff]
        %v1050 = vld [vmem:[%s422 + $0x58] sm:$0xff]
        %v1051 = vld [vmem:[%s422 + $0x60] sm:$0xff]
        %v1052 = vld [vmem:[%s422 + $0x68] sm:$0xff]
        %v1053 = vld [vmem:[%s422 + $0x70] sm:$0xff]
        %v1054 = vld [vmem:[%s422 + $0x78] sm:$0xff]
        %v1055 = vld [vmem:[%s422 + $0x80] sm:$0xff]
        %v1056 = vld [vmem:[%s422 + $0x88] sm:$0xff]
        %v1057 = vld [vmem:[%s422 + $0x90] sm:$0xff]
        %v1058 = vld [vmem:[%s422 + $0x98] sm:$0xff]
        %v1059 = vld [vmem:[%s422 + $0xa0] sm:$0xff]
        %v1060 = vld [vmem:[%s422 + $0xa8] sm:$0xff]
        %v1061 = vld [vmem:[%s422 + $0xb0] sm:$0xff]
        %v1062 = vld [vmem:[%s422 + $0xb8] sm:$0xff]
        %v1063 = vld [vmem:[%s422 + $0xc0] sm:$0xff]
        %v1064 = vld [vmem:[%s422 + $0xc8] sm:$0xff]
        %v1065 = vld [vmem:[%s422 + $0xd0] sm:$0xff]
        %v1066 = vld [vmem:[%s422 + $0xd8] sm:$0xff]
        %v1067 = vld [vmem:[%s422 + $0xe0] sm:$0xff]
        %v1068 = vld [vmem:[%s422 + $0xe8] sm:$0xff]
        %v1069 = vld [vmem:[%s422 + $0xf0] sm:$0xff]
        %v1070 = vld [vmem:[%s422 + $0xf8] sm:$0xff]
        %v1071 = vld [vmem:[%s2] sm:$0x1]
        %v1072 = vld [vmem:[%s3] sm:$0x1]
        %v1073 = vadd.f32 %v1039, %v1040
        %v1074 = vadd.f32 %v1073, %v1041
        %v1075 = vadd.f32 %v1074, %v1042
        %v1076 = vadd.f32 %v1075, %v1043
        %v1077 = vadd.f32 %v1076, %v1044
        %v1078 = vadd.f32 %v1077, %v1045
        %v1079 = vadd.f32 %v1078, %v1046
        %v1080 = vadd.f32 %v1079, %v1047
        %v1081 = vadd.f32 %v1080, %v1048
        %v1082 = vadd.f32 %v1081, %v1049
        %v1083 = vadd.f32 %v1082, %v1050
        %v1084 = vadd.f32 %v1083, %v1051
        %v1085 = vadd.f32 %v1084, %v1052
        %v1086 = vadd.f32 %v1085, %v1053
        %v1087 = vadd.f32 %v1086, %v1054
        %v1088 = vadd.f32 %v1087, %v1055
        %v1089 = vadd.f32 %v1088, %v1056
        %v1090 = vadd.f32 %v1089, %v1057
        %v1091 = vadd.f32 %v1090, %v1058
        %v1092 = vadd.f32 %v1091, %v1059
        %v1093 = vadd.f32 %v1092, %v1060
        %v1094 = vadd.f32 %v1093, %v1061
        %v1095 = vadd.f32 %v1094, %v1062
        %v1096 = vadd.f32 %v1095, %v1063
        %v1097 = vadd.f32 %v1096, %v1064
        %v1098 = vadd.f32 %v1097, %v1065
        %v1099 = vadd.f32 %v1098, %v1066
        %v1100 = vadd.f32 %v1099, %v1067
        %v1101 = vadd.f32 %v1100, %v1068
        %v1102 = vadd.f32 %v1101, %v1069
        %v1103 = vadd.f32 %v1102, %v1070
        %v1104 = vrot.slane %v1103, 4
        %v1105 = vadd.f32 %v1103, %v1104
        %v1106 = vrot.slane %v1105, 2
        %v1107 = vadd.f32 %v1105, %v1106
        %v1108 = vrot.slane %v1107, 1
        %v1109 = vadd.f32 %v1107, %v1108
        %v1110 = vrcp.pop 256.0
        %v1111 = vmul.f32 256.0, %v1110
        %v1112 = vsub.f32 1.0, %v1111
        %v1113 = vmul.f32 %v1110, %v1112
        %v1114 = vadd.f32 %v1110, %v1113
        %vm1115 = vweird.f32 %v1110
        %v1116 = vsel %vm1115, %v1110, %v1114
        %v1117 = vmul.f32 %v1109, %v1116
        %v1118 = vld [vmem:[%s4] sm:$0xff]
        %v1119 = vld [vmem:[%s4 + $0x8] sm:$0xff]
        %v1120 = vld [vmem:[%s4 + $0x10] sm:$0xff]
        %v1121 = vld [vmem:[%s4 + $0x18] sm:$0xff]
        %v1122 = vld [vmem:[%s4 + $0x20] sm:$0xff]
        %v1123 = vld [vmem:[%s4 + $0x28] sm:$0xff]
        %v1124 = vld [vmem:[%s4 + $0x30] sm:$0xff]
        %v1125 = vld [vmem:[%s4 + $0x38] sm:$0xff]
        %v1126 = vld [vmem:[%s4 + $0x40] sm:$0xff]
        %v1127 = vld [vmem:[%s4 + $0x48] sm:$0xff]
        %v1128 = vld [vmem:[%s4 + $0x50] sm:$0xff]
        %v1129 = vld [vmem:[%s4 + $0x58] sm:$0xff]
        %v1130 = vld [vmem:[%s4 + $0x60] sm:$0xff]
        %v1131 = vld [vmem:[%s4 + $0x68] sm:$0xff]
        %v1132 = vld [vmem:[%s4 + $0x70] sm:$0xff]
        %v1133 = vld [vmem:[%s4 + $0x78] sm:$0xff]
        %1134 = vmatpush.msra.mxu0 %v1133
        %1135 = vmatpush.msra.mxu0 %v1132
        %1136 = vmatpush.msra.mxu0 %v1131
        %1137 = vmatpush.msra.mxu0 %v1130
        %1138 = vmatpush.msra.mxu0 %v1129
        %1139 = vmatpush.msra.mxu0 %v1128
        %1140 = vmatpush.msra.mxu0 %v1127
        %1141 = vmatpush.msra.mxu0 %v1126
        %1142 = vmatpush.msra.mxu0 %v1125
        %1143 = vmatpush.msra.mxu0 %v1124
        %1144 = vmatpush.msra.mxu0 %v1123
        %1145 = vmatpush.msra.mxu0 %v1122
        %1146 = vmatpush.msra.mxu0 %v1121
        %1147 = vmatpush.msra.mxu0 %v1120
        %1148 = vmatpush.msra.mxu0 %v1119
        %1149 = vmatpush.msra.mxu0 %v1118
        %1150 = vmatmul.f32.gmra.mxu0 %v1117
        %v1151 = vpop.f32.mrf.mxu0
        %v1152 = vadd.f32 0.0, %v1151
        %1153 = vdwg.mxu0
        %v1154 = vld [vmem:[%s5] sm:$0xff]
        %v1155 = vld [vmem:[%s5 + $0x8] sm:$0xff]
        %v1156 = vld [vmem:[%s5 + $0x10] sm:$0xff]
        %v1157 = vld [vmem:[%s5 + $0x18] sm:$0xff]
        %vm1158 = vcmask 261120
        %v1160 = vsel %vm1158, %v1152, 0
        %1162 = vmatpush.msra.mxu0 0.0
        %1163 = vmatpush.msra.mxu0 0.0
        %1164 = vmatpush.msra.mxu0 0.0
        %1165 = vmatpush.msra.mxu0 0.0
        %1166 = vmatpush.msra.mxu0 0.0
        %1167 = vmatpush.msra.mxu0 0.0
        %1168 = vmatpush.msra.mxu0 0.0
        %1169 = vmatpush.msra.mxu0 0.0
        %1170 = vmatpush.msra.mxu0 0.0
        %1171 = vmatpush.msra.mxu0 0.0
        %1172 = vmatpush.msra.mxu0 0.0
        %1173 = vmatpush.msra.mxu0 0.0
        %1174 = vmatpush.msra.mxu0 %v1157
        %1175 = vmatpush.msra.mxu0 %v1156
        %1176 = vmatpush.msra.mxu0 %v1155
        %1177 = vmatpush.msra.mxu0 %v1154
        %1178 = vmatmul.f32.gmra.mxu0 %v1160
        %v1179 = vpop.f32.mrf.mxu0
        %v1180 = vadd.f32 0.0, %v1179
        %1181 = vdwg.mxu0
        %v1182 = vperm.slane %v1180, 0
        %v1183 = vsub.f32 %v1039, %v1182
        %v1184 = vsub.f32 %v1040, %v1182
        %v1185 = vsub.f32 %v1041, %v1182
        %v1186 = vsub.f32 %v1042, %v1182
        %v1187 = vsub.f32 %v1043, %v1182
        %v1188 = vsub.f32 %v1044, %v1182
        %v1189 = vsub.f32 %v1045, %v1182
        %v1190 = vsub.f32 %v1046, %v1182
        %v1191 = vsub.f32 %v1047, %v1182
        %v1192 = vsub.f32 %v1048, %v1182
        %v1193 = vsub.f32 %v1049, %v1182
        %v1194 = vsub.f32 %v1050, %v1182
        %v1195 = vsub.f32 %v1051, %v1182
        %v1196 = vsub.f32 %v1052, %v1182
        %v1197 = vsub.f32 %v1053, %v1182
        %v1198 = vsub.f32 %v1054, %v1182
        %v1199 = vsub.f32 %v1055, %v1182
        %v1200 = vsub.f32 %v1056, %v1182
        %v1201 = vsub.f32 %v1057, %v1182
        %v1202 = vsub.f32 %v1058, %v1182
        %v1203 = vsub.f32 %v1059, %v1182
        %v1204 = vsub.f32 %v1060, %v1182
        %v1205 = vsub.f32 %v1061, %v1182
        %v1206 = vsub.f32 %v1062, %v1182
        %v1207 = vsub.f32 %v1063, %v1182
        %v1208 = vsub.f32 %v1064, %v1182
        %v1209 = vsub.f32 %v1065, %v1182
        %v1210 = vsub.f32 %v1066, %v1182
        %v1211 = vsub.f32 %v1067, %v1182
        %v1212 = vsub.f32 %v1068, %v1182
        %v1213 = vsub.f32 %v1069, %v1182
        %v1214 = vsub.f32 %v1070, %v1182
        %v1215 = vmul.f32 %v1183, %v1183
        %v1216 = vmul.f32 %v1184, %v1184
        %v1217 = vmul.f32 %v1185, %v1185
        %v1218 = vmul.f32 %v1186, %v1186
        %v1219 = vmul.f32 %v1187, %v1187
        %v1220 = vmul.f32 %v1188, %v1188
        %v1221 = vmul.f32 %v1189, %v1189
        %v1222 = vmul.f32 %v1190, %v1190
        %v1223 = vmul.f32 %v1191, %v1191
        %v1224 = vmul.f32 %v1192, %v1192
        %v1225 = vmul.f32 %v1193, %v1193
        %v1226 = vmul.f32 %v1194, %v1194
        %v1227 = vmul.f32 %v1195, %v1195
        %v1228 = vmul.f32 %v1196, %v1196
        %v1229 = vmul.f32 %v1197, %v1197
        %v1230 = vmul.f32 %v1198, %v1198
        %v1231 = vmul.f32 %v1199, %v1199
        %v1232 = vmul.f32 %v1200, %v1200
        %v1233 = vmul.f32 %v1201, %v1201
        %v1234 = vmul.f32 %v1202, %v1202
        %v1235 = vmul.f32 %v1203, %v1203
        %v1236 = vmul.f32 %v1204, %v1204
        %v1237 = vmul.f32 %v1205, %v1205
        %v1238 = vmul.f32 %v1206, %v1206
        %v1239 = vmul.f32 %v1207, %v1207
        %v1240 = vmul.f32 %v1208, %v1208
        %v1241 = vmul.f32 %v1209, %v1209
        %v1242 = vmul.f32 %v1210, %v1210
        %v1243 = vmul.f32 %v1211, %v1211
        %v1244 = vmul.f32 %v1212, %v1212
        %v1245 = vmul.f32 %v1213, %v1213
        %v1246 = vmul.f32 %v1214, %v1214
        %v1247 = vadd.f32 %v1215, %v1216
        %v1248 = vadd.f32 %v1247, %v1217
        %v1249 = vadd.f32 %v1248, %v1218
        %v1250 = vadd.f32 %v1249, %v1219
        %v1251 = vadd.f32 %v1250, %v1220
        %v1252 = vadd.f32 %v1251, %v1221
        %v1253 = vadd.f32 %v1252, %v1222
        %v1254 = vadd.f32 %v1253, %v1223
        %v1255 = vadd.f32 %v1254, %v1224
        %v1256 = vadd.f32 %v1255, %v1225
        %v1257 = vadd.f32 %v1256, %v1226
        %v1258 = vadd.f32 %v1257, %v1227
        %v1259 = vadd.f32 %v1258, %v1228
        %v1260 = vadd.f32 %v1259, %v1229
        %v1261 = vadd.f32 %v1260, %v1230
        %v1262 = vadd.f32 %v1261, %v1231
        %v1263 = vadd.f32 %v1262, %v1232
        %v1264 = vadd.f32 %v1263, %v1233
        %v1265 = vadd.f32 %v1264, %v1234
        %v1266 = vadd.f32 %v1265, %v1235
        %v1267 = vadd.f32 %v1266, %v1236
        %v1268 = vadd.f32 %v1267, %v1237
        %v1269 = vadd.f32 %v1268, %v1238
        %v1270 = vadd.f32 %v1269, %v1239
        %v1271 = vadd.f32 %v1270, %v1240
        %v1272 = vadd.f32 %v1271, %v1241
        %v1273 = vadd.f32 %v1272, %v1242
        %v1274 = vadd.f32 %v1273, %v1243
        %v1275 = vadd.f32 %v1274, %v1244
        %v1276 = vadd.f32 %v1275, %v1245
        %v1277 = vadd.f32 %v1276, %v1246
        %v1278 = vrot.slane %v1277, 4
        %v1279 = vadd.f32 %v1277, %v1278
        %v1280 = vrot.slane %v1279, 2
        %v1281 = vadd.f32 %v1279, %v1280
        %v1282 = vrot.slane %v1281, 1
        %v1283 = vadd.f32 %v1281, %v1282
        %v1284 = vmul.f32 %v1283, %v1116
        %1285 = vmatpush.msra.mxu0 %v1133
        %1286 = vmatpush.msra.mxu0 %v1132
        %1287 = vmatpush.msra.mxu0 %v1131
        %1288 = vmatpush.msra.mxu0 %v1130
        %1289 = vmatpush.msra.mxu0 %v1129
        %1290 = vmatpush.msra.mxu0 %v1128
        %1291 = vmatpush.msra.mxu0 %v1127
        %1292 = vmatpush.msra.mxu0 %v1126
        %1293 = vmatpush.msra.mxu0 %v1125
        %1294 = vmatpush.msra.mxu0 %v1124
        %1295 = vmatpush.msra.mxu0 %v1123
        %1296 = vmatpush.msra.mxu0 %v1122
        %1297 = vmatpush.msra.mxu0 %v1121
        %1298 = vmatpush.msra.mxu0 %v1120
        %1299 = vmatpush.msra.mxu0 %v1119
        %1300 = vmatpush.msra.mxu0 %v1118
        %1301 = vmatmul.f32.gmra.mxu0 %v1284
        %v1302 = vpop.f32.mrf.mxu0
        %v1303 = vadd.f32 0.0, %v1302
        %1304 = vdwg.mxu0
        %v1306 = vsel %vm1158, %v1303, 0
        %1308 = vmatpush.msra.mxu0 0.0
        %1309 = vmatpush.msra.mxu0 0.0
        %1310 = vmatpush.msra.mxu0 0.0
        %1311 = vmatpush.msra.mxu0 0.0
        %1312 = vmatpush.msra.mxu0 0.0
        %1313 = vmatpush.msra.mxu0 0.0
        %1314 = vmatpush.msra.mxu0 0.0
        %1315 = vmatpush.msra.mxu0 0.0
        %1316 = vmatpush.msra.mxu0 0.0
        %1317 = vmatpush.msra.mxu0 0.0
        %1318 = vmatpush.msra.mxu0 0.0
        %1319 = vmatpush.msra.mxu0 0.0
        %1320 = vmatpush.msra.mxu0 %v1157
        %1321 = vmatpush.msra.mxu0 %v1156
        %1322 = vmatpush.msra.mxu0 %v1155
        %1323 = vmatpush.msra.mxu0 %v1154
        %1324 = vmatmul.f32.gmra.mxu0 %v1306
        %v1325 = vpop.f32.mrf.mxu0
        %v1326 = vadd.f32 1e-05, %v1325
        %1327 = vdwg.mxu0
        %v1328 = vrsqrt.pop %v1326
        %v1329 = vmul.f32 %v1328, %v1326
        %v1330 = vmul.f32 %v1329, %v1328
        %v1331 = vmul.f32 0.5, %v1330
        %v1332 = vsub.f32 1.5, %v1331
        %v1333 = vmul.f32 %v1328, %v1332
        %vm1334 = vweird.f32 %v1326
        %vm1335 = vweird.f32 %v1328
        %vm1336 = vmor %vm1334, %vm1335
        %v1337 = vsel %vm1336, %v1328, %v1333
        %v1338 = vmul.f32 %v1337, %v1071
        %v1339 = vperm.slane %v1338, 0
        %v1340 = vmul.f32 %v1183, %v1339
        %v1341 = vmul.f32 %v1184, %v1339
        %v1342 = vmul.f32 %v1185, %v1339
        %v1343 = vmul.f32 %v1186, %v1339
        %v1344 = vmul.f32 %v1187, %v1339
        %v1345 = vmul.f32 %v1188, %v1339
        %v1346 = vmul.f32 %v1189, %v1339
        %v1347 = vmul.f32 %v1190, %v1339
        %v1348 = vmul.f32 %v1191, %v1339
        %v1349 = vmul.f32 %v1192, %v1339
        %v1350 = vmul.f32 %v1193, %v1339
        %v1351 = vmul.f32 %v1194, %v1339
        %v1352 = vmul.f32 %v1195, %v1339
        %v1353 = vmul.f32 %v1196, %v1339
        %v1354 = vmul.f32 %v1197, %v1339
        %v1355 = vmul.f32 %v1198, %v1339
        %v1356 = vmul.f32 %v1199, %v1339
        %v1357 = vmul.f32 %v1200, %v1339
        %v1358 = vmul.f32 %v1201, %v1339
        %v1359 = vmul.f32 %v1202, %v1339
        %v1360 = vmul.f32 %v1203, %v1339
        %v1361 = vmul.f32 %v1204, %v1339
        %v1362 = vmul.f32 %v1205, %v1339
        %v1363 = vmul.f32 %v1206, %v1339
        %v1364 = vmul.f32 %v1207, %v1339
        %v1365 = vmul.f32 %v1208, %v1339
        %v1366 = vmul.f32 %v1209, %v1339
        %v1367 = vmul.f32 %v1210, %v1339
        %v1368 = vmul.f32 %v1211, %v1339
        %v1369 = vmul.f32 %v1212, %v1339
        %v1370 = vmul.f32 %v1213, %v1339
        %v1371 = vmul.f32 %v1214, %v1339
        %v1373 = vperm.slane %v1072, 0
        %v1375 = vadd.f32 %v1340, %v1373
        %v1376 = vadd.f32 %v1341, %v1373
        %v1377 = vadd.f32 %v1342, %v1373
        %v1378 = vadd.f32 %v1343, %v1373
        %v1379 = vadd.f32 %v1344, %v1373
        %v1380 = vadd.f32 %v1345, %v1373
        %v1381 = vadd.f32 %v1346, %v1373
        %v1382 = vadd.f32 %v1347, %v1373
        %v1383 = vadd.f32 %v1348, %v1373
        %v1384 = vadd.f32 %v1349, %v1373
        %v1385 = vadd.f32 %v1350, %v1373
        %v1386 = vadd.f32 %v1351, %v1373
        %v1387 = vadd.f32 %v1352, %v1373
        %v1388 = vadd.f32 %v1353, %v1373
        %v1389 = vadd.f32 %v1354, %v1373
        %v1390 = vadd.f32 %v1355, %v1373
        %v1391 = vadd.f32 %v1356, %v1373
        %v1392 = vadd.f32 %v1357, %v1373
        %v1393 = vadd.f32 %v1358, %v1373
        %v1394 = vadd.f32 %v1359, %v1373
        %v1395 = vadd.f32 %v1360, %v1373
        %v1396 = vadd.f32 %v1361, %v1373
        %v1397 = vadd.f32 %v1362, %v1373
        %v1398 = vadd.f32 %v1363, %v1373
        %v1399 = vadd.f32 %v1364, %v1373
        %v1400 = vadd.f32 %v1365, %v1373
        %v1401 = vadd.f32 %v1366, %v1373
        %v1402 = vadd.f32 %v1367, %v1373
        %v1403 = vadd.f32 %v1368, %v1373
        %v1404 = vadd.f32 %v1369, %v1373
        %v1405 = vadd.f32 %v1370, %v1373
        %v1406 = vadd.f32 %v1371, %v1373
        %v1407 = vxor.u32 %v1375, 2147483648
        %v1408 = vxor.u32 %v1376, 2147483648
        %v1409 = vxor.u32 %v1377, 2147483648
        %v1410 = vxor.u32 %v1378, 2147483648
        %v1411 = vxor.u32 %v1379, 2147483648
        %v1412 = vxor.u32 %v1380, 2147483648
        %v1413 = vxor.u32 %v1381, 2147483648
        %v1414 = vxor.u32 %v1382, 2147483648
        %v1415 = vxor.u32 %v1383, 2147483648
        %v1416 = vxor.u32 %v1384, 2147483648
        %v1417 = vxor.u32 %v1385, 2147483648
        %v1418 = vxor.u32 %v1386, 2147483648
        %v1419 = vxor.u32 %v1387, 2147483648
        %v1420 = vxor.u32 %v1388, 2147483648
        %v1421 = vxor.u32 %v1389, 2147483648
        %v1422 = vxor.u32 %v1390, 2147483648
        %v1423 = vxor.u32 %v1391, 2147483648
        %v1424 = vxor.u32 %v1392, 2147483648
        %v1425 = vxor.u32 %v1393, 2147483648
        %v1426 = vxor.u32 %v1394, 2147483648
        %v1427 = vxor.u32 %v1395, 2147483648
        %v1428 = vxor.u32 %v1396, 2147483648
        %v1429 = vxor.u32 %v1397, 2147483648
        %v1430 = vxor.u32 %v1398, 2147483648
        %v1431 = vxor.u32 %v1399, 2147483648
        %v1432 = vxor.u32 %v1400, 2147483648
        %v1433 = vxor.u32 %v1401, 2147483648
        %v1434 = vxor.u32 %v1402, 2147483648
        %v1435 = vxor.u32 %v1403, 2147483648
        %v1436 = vxor.u32 %v1404, 2147483648
        %v1437 = vxor.u32 %v1405, 2147483648
        %v1438 = vxor.u32 %v1406, 2147483648
        %v1439 = vmul.f32 %v1407, 1.442695
        %v1440 = vpow.pop %v1439
        %v1441 = vmul.f32 %v1408, 1.442695
        %v1442 = vpow.pop %v1441
        %v1443 = vmul.f32 %v1409, 1.442695
        %v1444 = vpow.pop %v1443
        %v1445 = vmul.f32 %v1410, 1.442695
        %v1446 = vpow.pop %v1445
        %v1447 = vmul.f32 %v1411, 1.442695
        %v1448 = vpow.pop %v1447
        %v1449 = vmul.f32 %v1412, 1.442695
        %v1450 = vpow.pop %v1449
        %v1451 = vmul.f32 %v1413, 1.442695
        %v1452 = vpow.pop %v1451
        %v1453 = vmul.f32 %v1414, 1.442695
        %v1454 = vpow.pop %v1453
        %v1455 = vmul.f32 %v1415, 1.442695
        %v1456 = vpow.pop %v1455
        %v1457 = vmul.f32 %v1416, 1.442695
        %v1458 = vpow.pop %v1457
        %v1459 = vmul.f32 %v1417, 1.442695
        %v1460 = vpow.pop %v1459
        %v1461 = vmul.f32 %v1418, 1.442695
        %v1462 = vpow.pop %v1461
        %v1463 = vmul.f32 %v1419, 1.442695
        %v1464 = vpow.pop %v1463
        %v1465 = vmul.f32 %v1420, 1.442695
        %v1466 = vpow.pop %v1465
        %v1467 = vmul.f32 %v1421, 1.442695
        %v1468 = vpow.pop %v1467
        %v1469 = vmul.f32 %v1422, 1.442695
        %v1470 = vpow.pop %v1469
        %v1471 = vmul.f32 %v1423, 1.442695
        %v1472 = vpow.pop %v1471
        %v1473 = vmul.f32 %v1424, 1.442695
        %v1474 = vpow.pop %v1473
        %v1475 = vmul.f32 %v1425, 1.442695
        %v1476 = vpow.pop %v1475
        %v1477 = vmul.f32 %v1426, 1.442695
        %v1478 = vpow.pop %v1477
        %v1479 = vmul.f32 %v1427, 1.442695
        %v1480 = vpow.pop %v1479
        %v1481 = vmul.f32 %v1428, 1.442695
        %v1482 = vpow.pop %v1481
        %v1483 = vmul.f32 %v1429, 1.442695
        %v1484 = vpow.pop %v1483
        %v1485 = vmul.f32 %v1430, 1.442695
        %v1486 = vpow.pop %v1485
        %v1487 = vmul.f32 %v1431, 1.442695
        %v1488 = vpow.pop %v1487
        %v1489 = vmul.f32 %v1432, 1.442695
        %v1490 = vpow.pop %v1489
        %v1491 = vmul.f32 %v1433, 1.442695
        %v1492 = vpow.pop %v1491
        %v1493 = vmul.f32 %v1434, 1.442695
        %v1494 = vpow.pop %v1493
        %v1495 = vmul.f32 %v1435, 1.442695
        %v1496 = vpow.pop %v1495
        %v1497 = vmul.f32 %v1436, 1.442695
        %v1498 = vpow.pop %v1497
        %v1499 = vmul.f32 %v1437, 1.442695
        %v1500 = vpow.pop %v1499
        %v1501 = vmul.f32 %v1438, 1.442695
        %v1502 = vpow.pop %v1501
        %v1503 = vadd.f32 %v1440, 1.0
        %v1504 = vadd.f32 %v1442, 1.0
        %v1505 = vadd.f32 %v1444, 1.0
        %v1506 = vadd.f32 %v1446, 1.0
        %v1507 = vadd.f32 %v1448, 1.0
        %v1508 = vadd.f32 %v1450, 1.0
        %v1509 = vadd.f32 %v1452, 1.0
        %v1510 = vadd.f32 %v1454, 1.0
        %v1511 = vadd.f32 %v1456, 1.0
        %v1512 = vadd.f32 %v1458, 1.0
        %v1513 = vadd.f32 %v1460, 1.0
        %v1514 = vadd.f32 %v1462, 1.0
        %v1515 = vadd.f32 %v1464, 1.0
        %v1516 = vadd.f32 %v1466, 1.0
        %v1517 = vadd.f32 %v1468, 1.0
        %v1518 = vadd.f32 %v1470, 1.0
        %v1519 = vadd.f32 %v1472, 1.0
        %v1520 = vadd.f32 %v1474, 1.0
        %v1521 = vadd.f32 %v1476, 1.0
        %v1522 = vadd.f32 %v1478, 1.0
        %v1523 = vadd.f32 %v1480, 1.0
        %v1524 = vadd.f32 %v1482, 1.0
        %v1525 = vadd.f32 %v1484, 1.0
        %v1526 = vadd.f32 %v1486, 1.0
        %v1527 = vadd.f32 %v1488, 1.0
        %v1528 = vadd.f32 %v1490, 1.0
        %v1529 = vadd.f32 %v1492, 1.0
        %v1530 = vadd.f32 %v1494, 1.0
        %v1531 = vadd.f32 %v1496, 1.0
        %v1532 = vadd.f32 %v1498, 1.0
        %v1533 = vadd.f32 %v1500, 1.0
        %v1534 = vadd.f32 %v1502, 1.0
        %v1535 = vrcp.pop %v1503
        %v1536 = vmul.f32 %v1503, %v1535
        %v1537 = vsub.f32 1.0, %v1536
        %v1538 = vmul.f32 %v1535, %v1537
        %v1539 = vadd.f32 %v1535, %v1538
        %vm1540 = vweird.f32 %v1503
        %vm1541 = vweird.f32 %v1535
        %vm1542 = vmor %vm1540, %vm1541
        %v1543 = vsel %vm1542, %v1535, %v1539
        %v1544 = vand.u32 2147483647, %v1503
        %vm1545 = vcmp.eq.f32.partialorder %v1544, 8.507059e+37
        %v1546 = vand.u32 %v1503, 2147483648
        %v1547 = vor.u32 1.1754944e-38, %v1546
        %v1548 = vsel %vm1545, %v1547, %v1543
        %v1549 = vmul.f32 1.0, %v1548
        %v1550 = vrcp.pop %v1504
        %v1551 = vmul.f32 %v1504, %v1550
        %v1552 = vsub.f32 1.0, %v1551
        %v1553 = vmul.f32 %v1550, %v1552
        %v1554 = vadd.f32 %v1550, %v1553
        %vm1555 = vweird.f32 %v1504
        %vm1556 = vweird.f32 %v1550
        %vm1557 = vmor %vm1555, %vm1556
        %v1558 = vsel %vm1557, %v1550, %v1554
        %v1559 = vand.u32 2147483647, %v1504
        %vm1560 = vcmp.eq.f32.partialorder %v1559, 8.507059e+37
        %v1561 = vand.u32 %v1504, 2147483648
        %v1562 = vor.u32 1.1754944e-38, %v1561
        %v1563 = vsel %vm1560, %v1562, %v1558
        %v1564 = vmul.f32 1.0, %v1563
        %v1565 = vrcp.pop %v1505
        %v1566 = vmul.f32 %v1505, %v1565
        %v1567 = vsub.f32 1.0, %v1566
        %v1568 = vmul.f32 %v1565, %v1567
        %v1569 = vadd.f32 %v1565, %v1568
        %vm1570 = vweird.f32 %v1505
        %vm1571 = vweird.f32 %v1565
        %vm1572 = vmor %vm1570, %vm1571
        %v1573 = vsel %vm1572, %v1565, %v1569
        %v1574 = vand.u32 2147483647, %v1505
        %vm1575 = vcmp.eq.f32.partialorder %v1574, 8.507059e+37
        %v1576 = vand.u32 %v1505, 2147483648
        %v1577 = vor.u32 1.1754944e-38, %v1576
        %v1578 = vsel %vm1575, %v1577, %v1573
        %v1579 = vmul.f32 1.0, %v1578
        %v1580 = vrcp.pop %v1506
        %v1581 = vmul.f32 %v1506, %v1580
        %v1582 = vsub.f32 1.0, %v1581
        %v1583 = vmul.f32 %v1580, %v1582
        %v1584 = vadd.f32 %v1580, %v1583
        %vm1585 = vweird.f32 %v1506
        %vm1586 = vweird.f32 %v1580
        %vm1587 = vmor %vm1585, %vm1586
        %v1588 = vsel %vm1587, %v1580, %v1584
        %v1589 = vand.u32 2147483647, %v1506
        %vm1590 = vcmp.eq.f32.partialorder %v1589, 8.507059e+37
        %v1591 = vand.u32 %v1506, 2147483648
        %v1592 = vor.u32 1.1754944e-38, %v1591
        %v1593 = vsel %vm1590, %v1592, %v1588
        %v1594 = vmul.f32 1.0, %v1593
        %v1595 = vrcp.pop %v1507
        %v1596 = vmul.f32 %v1507, %v1595
        %v1597 = vsub.f32 1.0, %v1596
        %v1598 = vmul.f32 %v1595, %v1597
        %v1599 = vadd.f32 %v1595, %v1598
        %vm1600 = vweird.f32 %v1507
        %vm1601 = vweird.f32 %v1595
        %vm1602 = vmor %vm1600, %vm1601
        %v1603 = vsel %vm1602, %v1595, %v1599
        %v1604 = vand.u32 2147483647, %v1507
        %vm1605 = vcmp.eq.f32.partialorder %v1604, 8.507059e+37
        %v1606 = vand.u32 %v1507, 2147483648
        %v1607 = vor.u32 1.1754944e-38, %v1606
        %v1608 = vsel %vm1605, %v1607, %v1603
        %v1609 = vmul.f32 1.0, %v1608
        %v1610 = vrcp.pop %v1508
        %v1611 = vmul.f32 %v1508, %v1610
        %v1612 = vsub.f32 1.0, %v1611
        %v1613 = vmul.f32 %v1610, %v1612
        %v1614 = vadd.f32 %v1610, %v1613
        %vm1615 = vweird.f32 %v1508
        %vm1616 = vweird.f32 %v1610
        %vm1617 = vmor %vm1615, %vm1616
        %v1618 = vsel %vm1617, %v1610, %v1614
        %v1619 = vand.u32 2147483647, %v1508
        %vm1620 = vcmp.eq.f32.partialorder %v1619, 8.507059e+37
        %v1621 = vand.u32 %v1508, 2147483648
        %v1622 = vor.u32 1.1754944e-38, %v1621
        %v1623 = vsel %vm1620, %v1622, %v1618
        %v1624 = vmul.f32 1.0, %v1623
        %v1625 = vrcp.pop %v1509
        %v1626 = vmul.f32 %v1509, %v1625
        %v1627 = vsub.f32 1.0, %v1626
        %v1628 = vmul.f32 %v1625, %v1627
        %v1629 = vadd.f32 %v1625, %v1628
        %vm1630 = vweird.f32 %v1509
        %vm1631 = vweird.f32 %v1625
        %vm1632 = vmor %vm1630, %vm1631
        %v1633 = vsel %vm1632, %v1625, %v1629
        %v1634 = vand.u32 2147483647, %v1509
        %vm1635 = vcmp.eq.f32.partialorder %v1634, 8.507059e+37
        %v1636 = vand.u32 %v1509, 2147483648
        %v1637 = vor.u32 1.1754944e-38, %v1636
        %v1638 = vsel %vm1635, %v1637, %v1633
        %v1639 = vmul.f32 1.0, %v1638
        %v1640 = vrcp.pop %v1510
        %v1641 = vmul.f32 %v1510, %v1640
        %v1642 = vsub.f32 1.0, %v1641
        %v1643 = vmul.f32 %v1640, %v1642
        %v1644 = vadd.f32 %v1640, %v1643
        %vm1645 = vweird.f32 %v1510
        %vm1646 = vweird.f32 %v1640
        %vm1647 = vmor %vm1645, %vm1646
        %v1648 = vsel %vm1647, %v1640, %v1644
        %v1649 = vand.u32 2147483647, %v1510
        %vm1650 = vcmp.eq.f32.partialorder %v1649, 8.507059e+37
        %v1651 = vand.u32 %v1510, 2147483648
        %v1652 = vor.u32 1.1754944e-38, %v1651
        %v1653 = vsel %vm1650, %v1652, %v1648
        %v1654 = vmul.f32 1.0, %v1653
        %v1655 = vrcp.pop %v1511
        %v1656 = vmul.f32 %v1511, %v1655
        %v1657 = vsub.f32 1.0, %v1656
        %v1658 = vmul.f32 %v1655, %v1657
        %v1659 = vadd.f32 %v1655, %v1658
        %vm1660 = vweird.f32 %v1511
        %vm1661 = vweird.f32 %v1655
        %vm1662 = vmor %vm1660, %vm1661
        %v1663 = vsel %vm1662, %v1655, %v1659
        %v1664 = vand.u32 2147483647, %v1511
        %vm1665 = vcmp.eq.f32.partialorder %v1664, 8.507059e+37
        %v1666 = vand.u32 %v1511, 2147483648
        %v1667 = vor.u32 1.1754944e-38, %v1666
        %v1668 = vsel %vm1665, %v1667, %v1663
        %v1669 = vmul.f32 1.0, %v1668
        %v1670 = vrcp.pop %v1512
        %v1671 = vmul.f32 %v1512, %v1670
        %v1672 = vsub.f32 1.0, %v1671
        %v1673 = vmul.f32 %v1670, %v1672
        %v1674 = vadd.f32 %v1670, %v1673
        %vm1675 = vweird.f32 %v1512
        %vm1676 = vweird.f32 %v1670
        %vm1677 = vmor %vm1675, %vm1676
        %v1678 = vsel %vm1677, %v1670, %v1674
        %v1679 = vand.u32 2147483647, %v1512
        %vm1680 = vcmp.eq.f32.partialorder %v1679, 8.507059e+37
        %v1681 = vand.u32 %v1512, 2147483648
        %v1682 = vor.u32 1.1754944e-38, %v1681
        %v1683 = vsel %vm1680, %v1682, %v1678
        %v1684 = vmul.f32 1.0, %v1683
        %v1685 = vrcp.pop %v1513
        %v1686 = vmul.f32 %v1513, %v1685
        %v1687 = vsub.f32 1.0, %v1686
        %v1688 = vmul.f32 %v1685, %v1687
        %v1689 = vadd.f32 %v1685, %v1688
        %vm1690 = vweird.f32 %v1513
        %vm1691 = vweird.f32 %v1685
        %vm1692 = vmor %vm1690, %vm1691
        %v1693 = vsel %vm1692, %v1685, %v1689
        %v1694 = vand.u32 2147483647, %v1513
        %vm1695 = vcmp.eq.f32.partialorder %v1694, 8.507059e+37
        %v1696 = vand.u32 %v1513, 2147483648
        %v1697 = vor.u32 1.1754944e-38, %v1696
        %v1698 = vsel %vm1695, %v1697, %v1693
        %v1699 = vmul.f32 1.0, %v1698
        %v1700 = vrcp.pop %v1514
        %v1701 = vmul.f32 %v1514, %v1700
        %v1702 = vsub.f32 1.0, %v1701
        %v1703 = vmul.f32 %v1700, %v1702
        %v1704 = vadd.f32 %v1700, %v1703
        %vm1705 = vweird.f32 %v1514
        %vm1706 = vweird.f32 %v1700
        %vm1707 = vmor %vm1705, %vm1706
        %v1708 = vsel %vm1707, %v1700, %v1704
        %v1709 = vand.u32 2147483647, %v1514
        %vm1710 = vcmp.eq.f32.partialorder %v1709, 8.507059e+37
        %v1711 = vand.u32 %v1514, 2147483648
        %v1712 = vor.u32 1.1754944e-38, %v1711
        %v1713 = vsel %vm1710, %v1712, %v1708
        %v1714 = vmul.f32 1.0, %v1713
        %v1715 = vrcp.pop %v1515
        %v1716 = vmul.f32 %v1515, %v1715
        %v1717 = vsub.f32 1.0, %v1716
        %v1718 = vmul.f32 %v1715, %v1717
        %v1719 = vadd.f32 %v1715, %v1718
        %vm1720 = vweird.f32 %v1515
        %vm1721 = vweird.f32 %v1715
        %vm1722 = vmor %vm1720, %vm1721
        %v1723 = vsel %vm1722, %v1715, %v1719
        %v1724 = vand.u32 2147483647, %v1515
        %vm1725 = vcmp.eq.f32.partialorder %v1724, 8.507059e+37
        %v1726 = vand.u32 %v1515, 2147483648
        %v1727 = vor.u32 1.1754944e-38, %v1726
        %v1728 = vsel %vm1725, %v1727, %v1723
        %v1729 = vmul.f32 1.0, %v1728
        %v1730 = vrcp.pop %v1516
        %v1731 = vmul.f32 %v1516, %v1730
        %v1732 = vsub.f32 1.0, %v1731
        %v1733 = vmul.f32 %v1730, %v1732
        %v1734 = vadd.f32 %v1730, %v1733
        %vm1735 = vweird.f32 %v1516
        %vm1736 = vweird.f32 %v1730
        %vm1737 = vmor %vm1735, %vm1736
        %v1738 = vsel %vm1737, %v1730, %v1734
        %v1739 = vand.u32 2147483647, %v1516
        %vm1740 = vcmp.eq.f32.partialorder %v1739, 8.507059e+37
        %v1741 = vand.u32 %v1516, 2147483648
        %v1742 = vor.u32 1.1754944e-38, %v1741
        %v1743 = vsel %vm1740, %v1742, %v1738
        %v1744 = vmul.f32 1.0, %v1743
        %v1745 = vrcp.pop %v1517
        %v1746 = vmul.f32 %v1517, %v1745
        %v1747 = vsub.f32 1.0, %v1746
        %v1748 = vmul.f32 %v1745, %v1747
        %v1749 = vadd.f32 %v1745, %v1748
        %vm1750 = vweird.f32 %v1517
        %vm1751 = vweird.f32 %v1745
        %vm1752 = vmor %vm1750, %vm1751
        %v1753 = vsel %vm1752, %v1745, %v1749
        %v1754 = vand.u32 2147483647, %v1517
        %vm1755 = vcmp.eq.f32.partialorder %v1754, 8.507059e+37
        %v1756 = vand.u32 %v1517, 2147483648
        %v1757 = vor.u32 1.1754944e-38, %v1756
        %v1758 = vsel %vm1755, %v1757, %v1753
        %v1759 = vmul.f32 1.0, %v1758
        %v1760 = vrcp.pop %v1518
        %v1761 = vmul.f32 %v1518, %v1760
        %v1762 = vsub.f32 1.0, %v1761
        %v1763 = vmul.f32 %v1760, %v1762
        %v1764 = vadd.f32 %v1760, %v1763
        %vm1765 = vweird.f32 %v1518
        %vm1766 = vweird.f32 %v1760
        %vm1767 = vmor %vm1765, %vm1766
        %v1768 = vsel %vm1767, %v1760, %v1764
        %v1769 = vand.u32 2147483647, %v1518
        %vm1770 = vcmp.eq.f32.partialorder %v1769, 8.507059e+37
        %v1771 = vand.u32 %v1518, 2147483648
        %v1772 = vor.u32 1.1754944e-38, %v1771
        %v1773 = vsel %vm1770, %v1772, %v1768
        %v1774 = vmul.f32 1.0, %v1773
        %v1775 = vrcp.pop %v1519
        %v1776 = vmul.f32 %v1519, %v1775
        %v1777 = vsub.f32 1.0, %v1776
        %v1778 = vmul.f32 %v1775, %v1777
        %v1779 = vadd.f32 %v1775, %v1778
        %vm1780 = vweird.f32 %v1519
        %vm1781 = vweird.f32 %v1775
        %vm1782 = vmor %vm1780, %vm1781
        %v1783 = vsel %vm1782, %v1775, %v1779
        %v1784 = vand.u32 2147483647, %v1519
        %vm1785 = vcmp.eq.f32.partialorder %v1784, 8.507059e+37
        %v1786 = vand.u32 %v1519, 2147483648
        %v1787 = vor.u32 1.1754944e-38, %v1786
        %v1788 = vsel %vm1785, %v1787, %v1783
        %v1789 = vmul.f32 1.0, %v1788
        %v1790 = vrcp.pop %v1520
        %v1791 = vmul.f32 %v1520, %v1790
        %v1792 = vsub.f32 1.0, %v1791
        %v1793 = vmul.f32 %v1790, %v1792
        %v1794 = vadd.f32 %v1790, %v1793
        %vm1795 = vweird.f32 %v1520
        %vm1796 = vweird.f32 %v1790
        %vm1797 = vmor %vm1795, %vm1796
        %v1798 = vsel %vm1797, %v1790, %v1794
        %v1799 = vand.u32 2147483647, %v1520
        %vm1800 = vcmp.eq.f32.partialorder %v1799, 8.507059e+37
        %v1801 = vand.u32 %v1520, 2147483648
        %v1802 = vor.u32 1.1754944e-38, %v1801
        %v1803 = vsel %vm1800, %v1802, %v1798
        %v1804 = vmul.f32 1.0, %v1803
        %v1805 = vrcp.pop %v1521
        %v1806 = vmul.f32 %v1521, %v1805
        %v1807 = vsub.f32 1.0, %v1806
        %v1808 = vmul.f32 %v1805, %v1807
        %v1809 = vadd.f32 %v1805, %v1808
        %vm1810 = vweird.f32 %v1521
        %vm1811 = vweird.f32 %v1805
        %vm1812 = vmor %vm1810, %vm1811
        %v1813 = vsel %vm1812, %v1805, %v1809
        %v1814 = vand.u32 2147483647, %v1521
        %vm1815 = vcmp.eq.f32.partialorder %v1814, 8.507059e+37
        %v1816 = vand.u32 %v1521, 2147483648
        %v1817 = vor.u32 1.1754944e-38, %v1816
        %v1818 = vsel %vm1815, %v1817, %v1813
        %v1819 = vmul.f32 1.0, %v1818
        %v1820 = vrcp.pop %v1522
        %v1821 = vmul.f32 %v1522, %v1820
        %v1822 = vsub.f32 1.0, %v1821
        %v1823 = vmul.f32 %v1820, %v1822
        %v1824 = vadd.f32 %v1820, %v1823
        %vm1825 = vweird.f32 %v1522
        %vm1826 = vweird.f32 %v1820
        %vm1827 = vmor %vm1825, %vm1826
        %v1828 = vsel %vm1827, %v1820, %v1824
        %v1829 = vand.u32 2147483647, %v1522
        %vm1830 = vcmp.eq.f32.partialorder %v1829, 8.507059e+37
        %v1831 = vand.u32 %v1522, 2147483648
        %v1832 = vor.u32 1.1754944e-38, %v1831
        %v1833 = vsel %vm1830, %v1832, %v1828
        %v1834 = vmul.f32 1.0, %v1833
        %v1835 = vrcp.pop %v1523
        %v1836 = vmul.f32 %v1523, %v1835
        %v1837 = vsub.f32 1.0, %v1836
        %v1838 = vmul.f32 %v1835, %v1837
        %v1839 = vadd.f32 %v1835, %v1838
        %vm1840 = vweird.f32 %v1523
        %vm1841 = vweird.f32 %v1835
        %vm1842 = vmor %vm1840, %vm1841
        %v1843 = vsel %vm1842, %v1835, %v1839
        %v1844 = vand.u32 2147483647, %v1523
        %vm1845 = vcmp.eq.f32.partialorder %v1844, 8.507059e+37
        %v1846 = vand.u32 %v1523, 2147483648
        %v1847 = vor.u32 1.1754944e-38, %v1846
        %v1848 = vsel %vm1845, %v1847, %v1843
        %v1849 = vmul.f32 1.0, %v1848
        %v1850 = vrcp.pop %v1524
        %v1851 = vmul.f32 %v1524, %v1850
        %v1852 = vsub.f32 1.0, %v1851
        %v1853 = vmul.f32 %v1850, %v1852
        %v1854 = vadd.f32 %v1850, %v1853
        %vm1855 = vweird.f32 %v1524
        %vm1856 = vweird.f32 %v1850
        %vm1857 = vmor %vm1855, %vm1856
        %v1858 = vsel %vm1857, %v1850, %v1854
        %v1859 = vand.u32 2147483647, %v1524
        %vm1860 = vcmp.eq.f32.partialorder %v1859, 8.507059e+37
        %v1861 = vand.u32 %v1524, 2147483648
        %v1862 = vor.u32 1.1754944e-38, %v1861
        %v1863 = vsel %vm1860, %v1862, %v1858
        %v1864 = vmul.f32 1.0, %v1863
        %v1865 = vrcp.pop %v1525
        %v1866 = vmul.f32 %v1525, %v1865
        %v1867 = vsub.f32 1.0, %v1866
        %v1868 = vmul.f32 %v1865, %v1867
        %v1869 = vadd.f32 %v1865, %v1868
        %vm1870 = vweird.f32 %v1525
        %vm1871 = vweird.f32 %v1865
        %vm1872 = vmor %vm1870, %vm1871
        %v1873 = vsel %vm1872, %v1865, %v1869
        %v1874 = vand.u32 2147483647, %v1525
        %vm1875 = vcmp.eq.f32.partialorder %v1874, 8.507059e+37
        %v1876 = vand.u32 %v1525, 2147483648
        %v1877 = vor.u32 1.1754944e-38, %v1876
        %v1878 = vsel %vm1875, %v1877, %v1873
        %v1879 = vmul.f32 1.0, %v1878
        %v1880 = vrcp.pop %v1526
        %v1881 = vmul.f32 %v1526, %v1880
        %v1882 = vsub.f32 1.0, %v1881
        %v1883 = vmul.f32 %v1880, %v1882
        %v1884 = vadd.f32 %v1880, %v1883
        %vm1885 = vweird.f32 %v1526
        %vm1886 = vweird.f32 %v1880
        %vm1887 = vmor %vm1885, %vm1886
        %v1888 = vsel %vm1887, %v1880, %v1884
        %v1889 = vand.u32 2147483647, %v1526
        %vm1890 = vcmp.eq.f32.partialorder %v1889, 8.507059e+37
        %v1891 = vand.u32 %v1526, 2147483648
        %v1892 = vor.u32 1.1754944e-38, %v1891
        %v1893 = vsel %vm1890, %v1892, %v1888
        %v1894 = vmul.f32 1.0, %v1893
        %v1895 = vrcp.pop %v1527
        %v1896 = vmul.f32 %v1527, %v1895
        %v1897 = vsub.f32 1.0, %v1896
        %v1898 = vmul.f32 %v1895, %v1897
        %v1899 = vadd.f32 %v1895, %v1898
        %vm1900 = vweird.f32 %v1527
        %vm1901 = vweird.f32 %v1895
        %vm1902 = vmor %vm1900, %vm1901
        %v1903 = vsel %vm1902, %v1895, %v1899
        %v1904 = vand.u32 2147483647, %v1527
        %vm1905 = vcmp.eq.f32.partialorder %v1904, 8.507059e+37
        %v1906 = vand.u32 %v1527, 2147483648
        %v1907 = vor.u32 1.1754944e-38, %v1906
        %v1908 = vsel %vm1905, %v1907, %v1903
        %v1909 = vmul.f32 1.0, %v1908
        %v1910 = vrcp.pop %v1528
        %v1911 = vmul.f32 %v1528, %v1910
        %v1912 = vsub.f32 1.0, %v1911
        %v1913 = vmul.f32 %v1910, %v1912
        %v1914 = vadd.f32 %v1910, %v1913
        %vm1915 = vweird.f32 %v1528
        %vm1916 = vweird.f32 %v1910
        %vm1917 = vmor %vm1915, %vm1916
        %v1918 = vsel %vm1917, %v1910, %v1914
        %v1919 = vand.u32 2147483647, %v1528
        %vm1920 = vcmp.eq.f32.partialorder %v1919, 8.507059e+37
        %v1921 = vand.u32 %v1528, 2147483648
        %v1922 = vor.u32 1.1754944e-38, %v1921
        %v1923 = vsel %vm1920, %v1922, %v1918
        %v1924 = vmul.f32 1.0, %v1923
        %v1925 = vrcp.pop %v1529
        %v1926 = vmul.f32 %v1529, %v1925
        %v1927 = vsub.f32 1.0, %v1926
        %v1928 = vmul.f32 %v1925, %v1927
        %v1929 = vadd.f32 %v1925, %v1928
        %vm1930 = vweird.f32 %v1529
        %vm1931 = vweird.f32 %v1925
        %vm1932 = vmor %vm1930, %vm1931
        %v1933 = vsel %vm1932, %v1925, %v1929
        %v1934 = vand.u32 2147483647, %v1529
        %vm1935 = vcmp.eq.f32.partialorder %v1934, 8.507059e+37
        %v1936 = vand.u32 %v1529, 2147483648
        %v1937 = vor.u32 1.1754944e-38, %v1936
        %v1938 = vsel %vm1935, %v1937, %v1933
        %v1939 = vmul.f32 1.0, %v1938
        %v1940 = vrcp.pop %v1530
        %v1941 = vmul.f32 %v1530, %v1940
        %v1942 = vsub.f32 1.0, %v1941
        %v1943 = vmul.f32 %v1940, %v1942
        %v1944 = vadd.f32 %v1940, %v1943
        %vm1945 = vweird.f32 %v1530
        %vm1946 = vweird.f32 %v1940
        %vm1947 = vmor %vm1945, %vm1946
        %v1948 = vsel %vm1947, %v1940, %v1944
        %v1949 = vand.u32 2147483647, %v1530
        %vm1950 = vcmp.eq.f32.partialorder %v1949, 8.507059e+37
        %v1951 = vand.u32 %v1530, 2147483648
        %v1952 = vor.u32 1.1754944e-38, %v1951
        %v1953 = vsel %vm1950, %v1952, %v1948
        %v1954 = vmul.f32 1.0, %v1953
        %v1955 = vrcp.pop %v1531
        %v1956 = vmul.f32 %v1531, %v1955
        %v1957 = vsub.f32 1.0, %v1956
        %v1958 = vmul.f32 %v1955, %v1957
        %v1959 = vadd.f32 %v1955, %v1958
        %vm1960 = vweird.f32 %v1531
        %vm1961 = vweird.f32 %v1955
        %vm1962 = vmor %vm1960, %vm1961
        %v1963 = vsel %vm1962, %v1955, %v1959
        %v1964 = vand.u32 2147483647, %v1531
        %vm1965 = vcmp.eq.f32.partialorder %v1964, 8.507059e+37
        %v1966 = vand.u32 %v1531, 2147483648
        %v1967 = vor.u32 1.1754944e-38, %v1966
        %v1968 = vsel %vm1965, %v1967, %v1963
        %v1969 = vmul.f32 1.0, %v1968
        %v1970 = vrcp.pop %v1532
        %v1971 = vmul.f32 %v1532, %v1970
        %v1972 = vsub.f32 1.0, %v1971
        %v1973 = vmul.f32 %v1970, %v1972
        %v1974 = vadd.f32 %v1970, %v1973
        %vm1975 = vweird.f32 %v1532
        %vm1976 = vweird.f32 %v1970
        %vm1977 = vmor %vm1975, %vm1976
        %v1978 = vsel %vm1977, %v1970, %v1974
        %v1979 = vand.u32 2147483647, %v1532
        %vm1980 = vcmp.eq.f32.partialorder %v1979, 8.507059e+37
        %v1981 = vand.u32 %v1532, 2147483648
        %v1982 = vor.u32 1.1754944e-38, %v1981
        %v1983 = vsel %vm1980, %v1982, %v1978
        %v1984 = vmul.f32 1.0, %v1983
        %v1985 = vrcp.pop %v1533
        %v1986 = vmul.f32 %v1533, %v1985
        %v1987 = vsub.f32 1.0, %v1986
        %v1988 = vmul.f32 %v1985, %v1987
        %v1989 = vadd.f32 %v1985, %v1988
        %vm1990 = vweird.f32 %v1533
        %vm1991 = vweird.f32 %v1985
        %vm1992 = vmor %vm1990, %vm1991
        %v1993 = vsel %vm1992, %v1985, %v1989
        %v1994 = vand.u32 2147483647, %v1533
        %vm1995 = vcmp.eq.f32.partialorder %v1994, 8.507059e+37
        %v1996 = vand.u32 %v1533, 2147483648
        %v1997 = vor.u32 1.1754944e-38, %v1996
        %v1998 = vsel %vm1995, %v1997, %v1993
        %v1999 = vmul.f32 1.0, %v1998
        %v2000 = vrcp.pop %v1534
        %v2001 = vmul.f32 %v1534, %v2000
        %v2002 = vsub.f32 1.0, %v2001
        %v2003 = vmul.f32 %v2000, %v2002
        %v2004 = vadd.f32 %v2000, %v2003
        %vm2005 = vweird.f32 %v1534
        %vm2006 = vweird.f32 %v2000
        %vm2007 = vmor %vm2005, %vm2006
        %v2008 = vsel %vm2007, %v2000, %v2004
        %v2009 = vand.u32 2147483647, %v1534
        %vm2010 = vcmp.eq.f32.partialorder %v2009, 8.507059e+37
        %v2011 = vand.u32 %v1534, 2147483648
        %v2012 = vor.u32 1.1754944e-38, %v2011
        %v2013 = vsel %vm2010, %v2012, %v2008
        %v2014 = vmul.f32 1.0, %v2013
        %v2015 = vmul.f32 %v1375, %v1549
        %v2016 = vmul.f32 %v1376, %v1564
        %v2017 = vmul.f32 %v1377, %v1579
        %v2018 = vmul.f32 %v1378, %v1594
        %v2019 = vmul.f32 %v1379, %v1609
        %v2020 = vmul.f32 %v1380, %v1624
        %v2021 = vmul.f32 %v1381, %v1639
        %v2022 = vmul.f32 %v1382, %v1654
        %v2023 = vmul.f32 %v1383, %v1669
        %v2024 = vmul.f32 %v1384, %v1684
        %v2025 = vmul.f32 %v1385, %v1699
        %v2026 = vmul.f32 %v1386, %v1714
        %v2027 = vmul.f32 %v1387, %v1729
        %v2028 = vmul.f32 %v1388, %v1744
        %v2029 = vmul.f32 %v1389, %v1759
        %v2030 = vmul.f32 %v1390, %v1774
        %v2031 = vmul.f32 %v1391, %v1789
        %v2032 = vmul.f32 %v1392, %v1804
        %v2033 = vmul.f32 %v1393, %v1819
        %v2034 = vmul.f32 %v1394, %v1834
        %v2035 = vmul.f32 %v1395, %v1849
        %v2036 = vmul.f32 %v1396, %v1864
        %v2037 = vmul.f32 %v1397, %v1879
        %v2038 = vmul.f32 %v1398, %v1894
        %v2039 = vmul.f32 %v1399, %v1909
        %v2040 = vmul.f32 %v1400, %v1924
        %v2041 = vmul.f32 %v1401, %v1939
        %v2042 = vmul.f32 %v1402, %v1954
        %v2043 = vmul.f32 %v1403, %v1969
        %v2044 = vmul.f32 %v1404, %v1984
        %v2045 = vmul.f32 %v1405, %v1999
        %v2046 = vmul.f32 %v1406, %v2014
        %v2047 = vld [vmem:[%s7] sm:$0x1]
        %2048 = vst [vmem:[#allocation2 + $0x10] sm:$0xff] %v2015
        %2049 = vst [vmem:[#allocation2 + $0x18] sm:$0xff] %v2016
        %2050 = vst [vmem:[#allocation2 + $0x20] sm:$0xff] %v2017
        %2051 = vst [vmem:[#allocation2 + $0x28] sm:$0xff] %v2018
        %2052 = vst [vmem:[#allocation2 + $0x30] sm:$0xff] %v2019
        %2053 = vst [vmem:[#allocation2 + $0x38] sm:$0xff] %v2020
        %2054 = vst [vmem:[#allocation2 + $0x40] sm:$0xff] %v2021
        %2055 = vst [vmem:[#allocation2 + $0x48] sm:$0xff] %v2022
        %2056 = vst [vmem:[#allocation2 + $0x50] sm:$0xff] %v2023
        %2057 = vst [vmem:[#allocation2 + $0x58] sm:$0xff] %v2024
        %2058 = vst [vmem:[#allocation2 + $0x60] sm:$0xff] %v2025
        %2059 = vst [vmem:[#allocation2 + $0x68] sm:$0xff] %v2026
        %2060 = vst [vmem:[#allocation2 + $0x70] sm:$0xff] %v2027
        %2061 = vst [vmem:[#allocation2 + $0x78] sm:$0xff] %v2028
        %2062 = vst [vmem:[#allocation2 + $0x80] sm:$0xff] %v2029
        %2063 = vst [vmem:[#allocation2 + $0x88] sm:$0xff] %v2030
        %2064 = vst [vmem:[#allocation2 + $0x90] sm:$0xff] %v2031
        %2065 = vst [vmem:[#allocation2 + $0x98] sm:$0xff] %v2032
        %2066 = vst [vmem:[#allocation2 + $0xa0] sm:$0xff] %v2033
        %2067 = vst [vmem:[#allocation2 + $0xa8] sm:$0xff] %v2034
        %2068 = vst [vmem:[#allocation2 + $0xb0] sm:$0xff] %v2035
        %2069 = vst [vmem:[#allocation2 + $0xb8] sm:$0xff] %v2036
        %2070 = vst [vmem:[#allocation2 + $0xc0] sm:$0xff] %v2037
        %2071 = vst [vmem:[#allocation2 + $0xc8] sm:$0xff] %v2038
        %2072 = vst [vmem:[#allocation2 + $0xd0] sm:$0xff] %v2039
        %2073 = vst [vmem:[#allocation2 + $0xd8] sm:$0xff] %v2040
        %2074 = vst [vmem:[#allocation2 + $0xe0] sm:$0xff] %v2041
        %2075 = vst [vmem:[#allocation2 + $0xe8] sm:$0xff] %v2042
        %2076 = vst [vmem:[#allocation2 + $0xf0] sm:$0xff] %v2043
        %2077 = vst [vmem:[#allocation2 + $0xf8] sm:$0xff] %v2044
        %2078 = vst [vmem:[#allocation2 + $0x100] sm:$0xff] %v2045
        %2079 = vst [vmem:[#allocation2 + $0x108] sm:$0xff] %v2046
        %v2080 = vld [vmem:[#allocation2] sm:$0xff]
        %v2081 = vld [vmem:[#allocation2 + $0x8] sm:$0xff]
        %v2082 = vld [vmem:[#allocation2 + $0x10] sm:$0xff]
        %v2083 = vld [vmem:[#allocation2 + $0x18] sm:$0xff]
        %v2084 = vld [vmem:[#allocation2 + $0x20] sm:$0xff]
        %v2085 = vld [vmem:[#allocation2 + $0x28] sm:$0xff]
        %v2086 = vld [vmem:[#allocation2 + $0x30] sm:$0xff]
        %v2087 = vld [vmem:[#allocation2 + $0x38] sm:$0xff]
        %v2088 = vld [vmem:[#allocation2 + $0x40] sm:$0xff]
        %v2089 = vld [vmem:[#allocation2 + $0x48] sm:$0xff]
        %v2090 = vld [vmem:[#allocation2 + $0x50] sm:$0xff]
        %v2091 = vld [vmem:[#allocation2 + $0x58] sm:$0xff]
        %v2092 = vld [vmem:[#allocation2 + $0x60] sm:$0xff]
        %v2093 = vld [vmem:[#allocation2 + $0x68] sm:$0xff]
        %v2094 = vld [vmem:[#allocation2 + $0x70] sm:$0xff]
        %v2095 = vld [vmem:[#allocation2 + $0x78] sm:$0xff]
        %v2096 = vld [vmem:[#allocation2 + $0x80] sm:$0xff]
        %v2097 = vld [vmem:[#allocation2 + $0x88] sm:$0xff]
        %v2098 = vld [vmem:[#allocation2 + $0x90] sm:$0xff]
        %v2099 = vld [vmem:[#allocation2 + $0x98] sm:$0xff]
        %v2100 = vld [vmem:[#allocation2 + $0xa0] sm:$0xff]
        %v2101 = vld [vmem:[#allocation2 + $0xa8] sm:$0xff]
        %v2102 = vld [vmem:[#allocation2 + $0xb0] sm:$0xff]
        %v2103 = vld [vmem:[#allocation2 + $0xb8] sm:$0xff]
        %v2104 = vld [vmem:[#allocation2 + $0xc0] sm:$0xff]
        %v2105 = vld [vmem:[#allocation2 + $0xc8] sm:$0xff]
        %v2106 = vld [vmem:[#allocation2 + $0xd0] sm:$0xff]
        %v2107 = vld [vmem:[#allocation2 + $0xd8] sm:$0xff]
        %v2108 = vld [vmem:[#allocation2 + $0xe0] sm:$0xff]
        %v2109 = vld [vmem:[#allocation2 + $0xe8] sm:$0xff]
        %v2110 = vld [vmem:[#allocation2 + $0xf0] sm:$0xff]
        %v2111 = vld [vmem:[#allocation2 + $0xf8] sm:$0xff]
        %v2112 = vrot.slane %v2080, 7
        %v2113 = vrot.slane %v2081, 7
        %v2114 = vrot.slane %v2082, 7
        %v2115 = vrot.slane %v2083, 7
        %v2116 = vrot.slane %v2084, 7
        %v2117 = vrot.slane %v2085, 7
        %v2118 = vrot.slane %v2086, 7
        %v2119 = vrot.slane %v2087, 7
        %v2120 = vrot.slane %v2088, 7
        %v2121 = vrot.slane %v2089, 7
        %v2122 = vrot.slane %v2090, 7
        %v2123 = vrot.slane %v2091, 7
        %v2124 = vrot.slane %v2092, 7
        %v2125 = vrot.slane %v2093, 7
        %v2126 = vrot.slane %v2094, 7
        %v2127 = vrot.slane %v2095, 7
        %v2128 = vrot.slane %v2096, 7
        %v2129 = vrot.slane %v2097, 7
        %v2130 = vrot.slane %v2098, 7
        %v2131 = vrot.slane %v2099, 7
        %v2132 = vrot.slane %v2100, 7
        %v2133 = vrot.slane %v2101, 7
        %v2134 = vrot.slane %v2102, 7
        %v2135 = vrot.slane %v2103, 7
        %v2136 = vrot.slane %v2104, 7
        %v2137 = vrot.slane %v2105, 7
        %v2138 = vrot.slane %v2106, 7
        %v2139 = vrot.slane %v2107, 7
        %v2140 = vrot.slane %v2108, 7
        %v2141 = vrot.slane %v2109, 7
        %v2142 = vrot.slane %v2110, 7
        %v2143 = vrot.slane %v2111, 7
        %vm2144 = vcmp.lt.s32.totalorder %v431, 1
        %v2145 = vsel %vm2144, %v2142, %v2143
        %v2146 = vsel %vm2144, %v2141, %v2142
        %v2147 = vsel %vm2144, %v2140, %v2141
        %v2148 = vsel %vm2144, %v2139, %v2140
        %v2149 = vsel %vm2144, %v2138, %v2139
        %v2150 = vsel %vm2144, %v2137, %v2138
        %v2151 = vsel %vm2144, %v2136, %v2137
        %v2152 = vsel %vm2144, %v2135, %v2136
        %v2153 = vsel %vm2144, %v2134, %v2135
        %v2154 = vsel %vm2144, %v2133, %v2134
        %v2155 = vsel %vm2144, %v2132, %v2133
        %v2156 = vsel %vm2144, %v2131, %v2132
        %v2157 = vsel %vm2144, %v2130, %v2131
        %v2158 = vsel %vm2144, %v2129, %v2130
        %v2159 = vsel %vm2144, %v2128, %v2129
        %v2160 = vsel %vm2144, %v2127, %v2128
        %v2161 = vsel %vm2144, %v2126, %v2127
        %v2162 = vsel %vm2144, %v2125, %v2126
        %v2163 = vsel %vm2144, %v2124, %v2125
        %v2164 = vsel %vm2144, %v2123, %v2124
        %v2165 = vsel %vm2144, %v2122, %v2123
        %v2166 = vsel %vm2144, %v2121, %v2122
        %v2167 = vsel %vm2144, %v2120, %v2121
        %v2168 = vsel %vm2144, %v2119, %v2120
        %v2169 = vsel %vm2144, %v2118, %v2119
        %v2170 = vsel %vm2144, %v2117, %v2118
        %v2171 = vsel %vm2144, %v2116, %v2117
        %v2172 = vsel %vm2144, %v2115, %v2116
        %v2173 = vsel %vm2144, %v2114, %v2115
        %v2174 = vsel %vm2144, %v2113, %v2114
        %v2175 = vsel %vm2144, %v2112, %v2113
        %v2176 = vsel %vm2144, %v2143, %v2112
        %v2177 = vmul.f32 %v2176, %v911
        %v2178 = vmul.f32 %v2175, %v912
        %v2179 = vmul.f32 %v2174, %v913
        %v2180 = vmul.f32 %v2173, %v914
        %v2181 = vmul.f32 %v2172, %v915
        %v2182 = vmul.f32 %v2171, %v916
        %v2183 = vmul.f32 %v2170, %v917
        %v2184 = vmul.f32 %v2169, %v918
        %v2185 = vmul.f32 %v2168, %v919
        %v2186 = vmul.f32 %v2167, %v920
        %v2187 = vmul.f32 %v2166, %v921
        %v2188 = vmul.f32 %v2165, %v922
        %v2189 = vmul.f32 %v2164, %v923
        %v2190 = vmul.f32 %v2163, %v924
        %v2191 = vmul.f32 %v2162, %v925
        %v2192 = vmul.f32 %v2161, %v926
        %v2193 = vmul.f32 %v2160, %v927
        %v2194 = vmul.f32 %v2159, %v928
        %v2195 = vmul.f32 %v2158, %v929
        %v2196 = vmul.f32 %v2157, %v930
        %v2197 = vmul.f32 %v2156, %v931
        %v2198 = vmul.f32 %v2155, %v932
        %v2199 = vmul.f32 %v2154, %v933
        %v2200 = vmul.f32 %v2153, %v934
        %v2201 = vmul.f32 %v2152, %v935
        %v2202 = vmul.f32 %v2151, %v936
        %v2203 = vmul.f32 %v2150, %v937
        %v2204 = vmul.f32 %v2149, %v938
        %v2205 = vmul.f32 %v2148, %v939
        %v2206 = vmul.f32 %v2147, %v940
        %v2207 = vmul.f32 %v2146, %v941
        %v2208 = vmul.f32 %v2145, %v942
        %v2209 = vpack.c.bf16 %v2178, %v2177
        %v2210 = vpack.c.bf16 %v2180, %v2179
        %v2211 = vpack.c.bf16 %v2182, %v2181
        %v2212 = vpack.c.bf16 %v2184, %v2183
        %v2213 = vpack.c.bf16 %v2186, %v2185
        %v2214 = vpack.c.bf16 %v2188, %v2187
        %v2215 = vpack.c.bf16 %v2190, %v2189
        %v2216 = vpack.c.bf16 %v2192, %v2191
        %v2217 = vpack.c.bf16 %v2194, %v2193
        %v2218 = vpack.c.bf16 %v2196, %v2195
        %v2219 = vpack.c.bf16 %v2198, %v2197
        %v2220 = vpack.c.bf16 %v2200, %v2199
        %v2221 = vpack.c.bf16 %v2202, %v2201
        %v2222 = vpack.c.bf16 %v2204, %v2203
        %v2223 = vpack.c.bf16 %v2206, %v2205
        %v2224 = vpack.c.bf16 %v2208, %v2207
        %v2225 = vld [vmem:[%s6] sm:$0xf]
        %v2226 = vld [vmem:[%s6 + $0x4] sm:$0xf]
        %v2227 = vld [vmem:[%s6 + $0x8] sm:$0xf]
        %v2228 = vld [vmem:[%s6 + $0xc] sm:$0xf]
        %v2229 = vld [vmem:[%s6 + $0x10] sm:$0xf]
        %v2230 = vld [vmem:[%s6 + $0x14] sm:$0xf]
        %v2231 = vld [vmem:[%s6 + $0x18] sm:$0xf]
        %v2232 = vld [vmem:[%s6 + $0x1c] sm:$0xf]
        %v2233 = vld [vmem:[%s6 + $0x20] sm:$0xf]
        %v2234 = vld [vmem:[%s6 + $0x24] sm:$0xf]
        %v2235 = vld [vmem:[%s6 + $0x28] sm:$0xf]
        %v2236 = vld [vmem:[%s6 + $0x2c] sm:$0xf]
        %v2237 = vld [vmem:[%s6 + $0x30] sm:$0xf]
        %v2238 = vld [vmem:[%s6 + $0x34] sm:$0xf]
        %v2239 = vld [vmem:[%s6 + $0x38] sm:$0xf]
        %v2240 = vld [vmem:[%s6 + $0x3c] sm:$0xf]
        %v2241 = vpack.c.bf16 %v2081, %v2080
        %v2242 = vpack.c.bf16 %v2083, %v2082
        %v2243 = vpack.c.bf16 %v2085, %v2084
        %v2244 = vpack.c.bf16 %v2087, %v2086
        %v2245 = vpack.c.bf16 %v2089, %v2088
        %v2246 = vpack.c.bf16 %v2091, %v2090
        %v2247 = vpack.c.bf16 %v2093, %v2092
        %v2248 = vpack.c.bf16 %v2095, %v2094
        %v2249 = vpack.c.bf16 %v2097, %v2096
        %v2250 = vpack.c.bf16 %v2099, %v2098
        %v2251 = vpack.c.bf16 %v2101, %v2100
        %v2252 = vpack.c.bf16 %v2103, %v2102
        %v2253 = vpack.c.bf16 %v2105, %v2104
        %v2254 = vpack.c.bf16 %v2107, %v2106
        %v2255 = vpack.c.bf16 %v2109, %v2108
        %v2256 = vpack.c.bf16 %v2111, %v2110
        %s2257 = scalar_lea.vmem %s6, 64
        %v2258 = vld [vmem:[%s2257] sm:$0xf]
        %v2259 = vld [vmem:[%s2257 + $0x4] sm:$0xf]
        %v2260 = vld [vmem:[%s2257 + $0x8] sm:$0xf]
        %v2261 = vld [vmem:[%s2257 + $0xc] sm:$0xf]
        %v2262 = vld [vmem:[%s2257 + $0x10] sm:$0xf]
        %v2263 = vld [vmem:[%s2257 + $0x14] sm:$0xf]
        %v2264 = vld [vmem:[%s2257 + $0x18] sm:$0xf]
        %v2265 = vld [vmem:[%s2257 + $0x1c] sm:$0xf]
        %v2266 = vld [vmem:[%s2257 + $0x20] sm:$0xf]
        %v2267 = vld [vmem:[%s2257 + $0x24] sm:$0xf]
        %v2268 = vld [vmem:[%s2257 + $0x28] sm:$0xf]
        %v2269 = vld [vmem:[%s2257 + $0x2c] sm:$0xf]
        %v2270 = vld [vmem:[%s2257 + $0x30] sm:$0xf]
        %v2271 = vld [vmem:[%s2257 + $0x34] sm:$0xf]
        %v2272 = vld [vmem:[%s2257 + $0x38] sm:$0xf]
        %v2273 = vld [vmem:[%s2257 + $0x3c] sm:$0xf]
        %v2290 = vunpack.c.l.b16 %v2258
        %v2291 = vunpack.c.l.b16 %v2259
        %v2292 = vunpack.c.l.b16 %v2260
        %v2293 = vunpack.c.l.b16 %v2261
        %v2294 = vunpack.c.l.b16 %v2262
        %v2295 = vunpack.c.l.b16 %v2263
        %v2296 = vunpack.c.l.b16 %v2264
        %v2297 = vunpack.c.l.b16 %v2265
        %v2298 = vunpack.c.l.b16 %v2266
        %v2299 = vunpack.c.l.b16 %v2267
        %v2300 = vunpack.c.l.b16 %v2268
        %v2301 = vunpack.c.l.b16 %v2269
        %v2302 = vunpack.c.l.b16 %v2270
        %v2303 = vunpack.c.l.b16 %v2271
        %v2304 = vunpack.c.l.b16 %v2272
        %v2305 = vunpack.c.l.b16 %v2273
        %v2306 = vpack.c.b16 %v2291, %v2290
        %v2307 = vpack.c.b16 %v2293, %v2292
        %v2308 = vpack.c.b16 %v2295, %v2294
        %v2309 = vpack.c.b16 %v2297, %v2296
        %v2310 = vpack.c.b16 %v2299, %v2298
        %v2311 = vpack.c.b16 %v2301, %v2300
        %v2312 = vpack.c.b16 %v2303, %v2302
        %v2313 = vpack.c.b16 %v2305, %v2304
        %2322 = vmatpush.bf16.msra.mxu0 %v2313
        %2323 = vmatpush.bf16.msra.mxu0 %v2312
        %2324 = vmatpush.bf16.msra.mxu0 %v2311
        %2325 = vmatpush.bf16.msra.mxu0 %v2310
        %2326 = vmatpush.bf16.msra.mxu0 %v2309
        %2327 = vmatpush.bf16.msra.mxu0 %v2308
        %2328 = vmatpush.bf16.msra.mxu0 %v2307
        %2329 = vmatpush.bf16.msra.mxu0 %v2306
        %2330 = vmatmul.bf16.gmra.mxu0 %v2241
        %v2331 = vpop.f32.mrf.mxu0
        %v2332 = vadd.f32 0.0, %v2331
        %v2333 = vpop.f32.mrf.mxu0
        %v2334 = vadd.f32 0.0, %v2333
        %2335 = vmatmul.bf16.gmra.mxu0 %v2242
        %v2336 = vpop.f32.mrf.mxu0
        %v2337 = vadd.f32 0.0, %v2336
        %v2338 = vpop.f32.mrf.mxu0
        %v2339 = vadd.f32 0.0, %v2338
        %2340 = vmatmul.bf16.gmra.mxu0 %v2243
        %v2341 = vpop.f32.mrf.mxu0
        %v2342 = vadd.f32 0.0, %v2341
        %v2343 = vpop.f32.mrf.mxu0
        %v2344 = vadd.f32 0.0, %v2343
        %2345 = vmatmul.bf16.gmra.mxu0 %v2244
        %v2346 = vpop.f32.mrf.mxu0
        %v2347 = vadd.f32 0.0, %v2346
        %v2348 = vpop.f32.mrf.mxu0
        %v2349 = vadd.f32 0.0, %v2348
        %2350 = vmatmul.bf16.gmra.mxu0 %v2245
        %v2351 = vpop.f32.mrf.mxu0
        %v2352 = vadd.f32 0.0, %v2351
        %v2353 = vpop.f32.mrf.mxu0
        %v2354 = vadd.f32 0.0, %v2353
        %2355 = vmatmul.bf16.gmra.mxu0 %v2246
        %v2356 = vpop.f32.mrf.mxu0
        %v2357 = vadd.f32 0.0, %v2356
        %v2358 = vpop.f32.mrf.mxu0
        %v2359 = vadd.f32 0.0, %v2358
        %2360 = vmatmul.bf16.gmra.mxu0 %v2247
        %v2361 = vpop.f32.mrf.mxu0
        %v2362 = vadd.f32 0.0, %v2361
        %v2363 = vpop.f32.mrf.mxu0
        %v2364 = vadd.f32 0.0, %v2363
        %2365 = vmatmul.bf16.gmra.mxu0 %v2248
        %v2366 = vpop.f32.mrf.mxu0
        %v2367 = vadd.f32 0.0, %v2366
        %v2368 = vpop.f32.mrf.mxu0
        %v2369 = vadd.f32 0.0, %v2368
        %2370 = vmatmul.bf16.gmra.mxu0 %v2249
        %v2371 = vpop.f32.mrf.mxu0
        %v2372 = vadd.f32 0.0, %v2371
        %v2373 = vpop.f32.mrf.mxu0
        %v2374 = vadd.f32 0.0, %v2373
        %2375 = vmatmul.bf16.gmra.mxu0 %v2250
        %v2376 = vpop.f32.mrf.mxu0
        %v2377 = vadd.f32 0.0, %v2376
        %v2378 = vpop.f32.mrf.mxu0
        %v2379 = vadd.f32 0.0, %v2378
        %2380 = vmatmul.bf16.gmra.mxu0 %v2251
        %v2381 = vpop.f32.mrf.mxu0
        %v2382 = vadd.f32 0.0, %v2381
        %v2383 = vpop.f32.mrf.mxu0
        %v2384 = vadd.f32 0.0, %v2383
        %2385 = vmatmul.bf16.gmra.mxu0 %v2252
        %v2386 = vpop.f32.mrf.mxu0
        %v2387 = vadd.f32 0.0, %v2386
        %v2388 = vpop.f32.mrf.mxu0
        %v2389 = vadd.f32 0.0, %v2388
        %2390 = vmatmul.bf16.gmra.mxu0 %v2253
        %v2391 = vpop.f32.mrf.mxu0
        %v2392 = vadd.f32 0.0, %v2391
        %v2393 = vpop.f32.mrf.mxu0
        %v2394 = vadd.f32 0.0, %v2393
        %2395 = vmatmul.bf16.gmra.mxu0 %v2254
        %v2396 = vpop.f32.mrf.mxu0
        %v2397 = vadd.f32 0.0, %v2396
        %v2398 = vpop.f32.mrf.mxu0
        %v2399 = vadd.f32 0.0, %v2398
        %2400 = vmatmul.bf16.gmra.mxu0 %v2255
        %v2401 = vpop.f32.mrf.mxu0
        %v2402 = vadd.f32 0.0, %v2401
        %v2403 = vpop.f32.mrf.mxu0
        %v2404 = vadd.f32 0.0, %v2403
        %2405 = vmatmul.bf16.gmra.mxu0 %v2256
        %v2406 = vpop.f32.mrf.mxu0
        %v2407 = vadd.f32 0.0, %v2406
        %v2408 = vpop.f32.mrf.mxu0
        %v2409 = vadd.f32 0.0, %v2408
        %2410 = vdwg.mxu0
        %v2427 = vunpack.c.l.b16 %v2225
        %v2428 = vunpack.c.l.b16 %v2226
        %v2429 = vunpack.c.l.b16 %v2227
        %v2430 = vunpack.c.l.b16 %v2228
        %v2431 = vunpack.c.l.b16 %v2229
        %v2432 = vunpack.c.l.b16 %v2230
        %v2433 = vunpack.c.l.b16 %v2231
        %v2434 = vunpack.c.l.b16 %v2232
        %v2435 = vunpack.c.l.b16 %v2233
        %v2436 = vunpack.c.l.b16 %v2234
        %v2437 = vunpack.c.l.b16 %v2235
        %v2438 = vunpack.c.l.b16 %v2236
        %v2439 = vunpack.c.l.b16 %v2237
        %v2440 = vunpack.c.l.b16 %v2238
        %v2441 = vunpack.c.l.b16 %v2239
        %v2442 = vunpack.c.l.b16 %v2240
        %v2443 = vpack.c.b16 %v2428, %v2427
        %v2444 = vpack.c.b16 %v2430, %v2429
        %v2445 = vpack.c.b16 %v2432, %v2431
        %v2446 = vpack.c.b16 %v2434, %v2433
        %v2447 = vpack.c.b16 %v2436, %v2435
        %v2448 = vpack.c.b16 %v2438, %v2437
        %v2449 = vpack.c.b16 %v2440, %v2439
        %v2450 = vpack.c.b16 %v2442, %v2441
        %2459 = vmatpush.bf16.msra.mxu0 %v2450
        %2460 = vmatpush.bf16.msra.mxu0 %v2449
        %2461 = vmatpush.bf16.msra.mxu0 %v2448
        %2462 = vmatpush.bf16.msra.mxu0 %v2447
        %2463 = vmatpush.bf16.msra.mxu0 %v2446
        %2464 = vmatpush.bf16.msra.mxu0 %v2445
        %2465 = vmatpush.bf16.msra.mxu0 %v2444
        %2466 = vmatpush.bf16.msra.mxu0 %v2443
        %2467 = vmatmul.bf16.gmra.mxu0 %v2209
        %v2468 = vpop.f32.mrf.mxu0
        %v2469 = vadd.f32 %v2332, %v2468
        %v2470 = vpop.f32.mrf.mxu0
        %v2471 = vadd.f32 %v2334, %v2470
        %2472 = vmatmul.bf16.gmra.mxu0 %v2210
        %v2473 = vpop.f32.mrf.mxu0
        %v2474 = vadd.f32 %v2337, %v2473
        %v2475 = vpop.f32.mrf.mxu0
        %v2476 = vadd.f32 %v2339, %v2475
        %2477 = vmatmul.bf16.gmra.mxu0 %v2211
        %v2478 = vpop.f32.mrf.mxu0
        %v2479 = vadd.f32 %v2342, %v2478
        %v2480 = vpop.f32.mrf.mxu0
        %v2481 = vadd.f32 %v2344, %v2480
        %2482 = vmatmul.bf16.gmra.mxu0 %v2212
        %v2483 = vpop.f32.mrf.mxu0
        %v2484 = vadd.f32 %v2347, %v2483
        %v2485 = vpop.f32.mrf.mxu0
        %v2486 = vadd.f32 %v2349, %v2485
        %2487 = vmatmul.bf16.gmra.mxu0 %v2213
        %v2488 = vpop.f32.mrf.mxu0
        %v2489 = vadd.f32 %v2352, %v2488
        %v2490 = vpop.f32.mrf.mxu0
        %v2491 = vadd.f32 %v2354, %v2490
        %2492 = vmatmul.bf16.gmra.mxu0 %v2214
        %v2493 = vpop.f32.mrf.mxu0
        %v2494 = vadd.f32 %v2357, %v2493
        %v2495 = vpop.f32.mrf.mxu0
        %v2496 = vadd.f32 %v2359, %v2495
        %2497 = vmatmul.bf16.gmra.mxu0 %v2215
        %v2498 = vpop.f32.mrf.mxu0
        %v2499 = vadd.f32 %v2362, %v2498
        %v2500 = vpop.f32.mrf.mxu0
        %v2501 = vadd.f32 %v2364, %v2500
        %2502 = vmatmul.bf16.gmra.mxu0 %v2216
        %v2503 = vpop.f32.mrf.mxu0
        %v2504 = vadd.f32 %v2367, %v2503
        %v2505 = vpop.f32.mrf.mxu0
        %v2506 = vadd.f32 %v2369, %v2505
        %2507 = vmatmul.bf16.gmra.mxu0 %v2217
        %v2508 = vpop.f32.mrf.mxu0
        %v2509 = vadd.f32 %v2372, %v2508
        %v2510 = vpop.f32.mrf.mxu0
        %v2511 = vadd.f32 %v2374, %v2510
        %2512 = vmatmul.bf16.gmra.mxu0 %v2218
        %v2513 = vpop.f32.mrf.mxu0
        %v2514 = vadd.f32 %v2377, %v2513
        %v2515 = vpop.f32.mrf.mxu0
        %v2516 = vadd.f32 %v2379, %v2515
        %2517 = vmatmul.bf16.gmra.mxu0 %v2219
        %v2518 = vpop.f32.mrf.mxu0
        %v2519 = vadd.f32 %v2382, %v2518
        %v2520 = vpop.f32.mrf.mxu0
        %v2521 = vadd.f32 %v2384, %v2520
        %2522 = vmatmul.bf16.gmra.mxu0 %v2220
        %v2523 = vpop.f32.mrf.mxu0
        %v2524 = vadd.f32 %v2387, %v2523
        %v2525 = vpop.f32.mrf.mxu0
        %v2526 = vadd.f32 %v2389, %v2525
        %2527 = vmatmul.bf16.gmra.mxu0 %v2221
        %v2528 = vpop.f32.mrf.mxu0
        %v2529 = vadd.f32 %v2392, %v2528
        %v2530 = vpop.f32.mrf.mxu0
        %v2531 = vadd.f32 %v2394, %v2530
        %2532 = vmatmul.bf16.gmra.mxu0 %v2222
        %v2533 = vpop.f32.mrf.mxu0
        %v2534 = vadd.f32 %v2397, %v2533
        %v2535 = vpop.f32.mrf.mxu0
        %v2536 = vadd.f32 %v2399, %v2535
        %2537 = vmatmul.bf16.gmra.mxu0 %v2223
        %v2538 = vpop.f32.mrf.mxu0
        %v2539 = vadd.f32 %v2402, %v2538
        %v2540 = vpop.f32.mrf.mxu0
        %v2541 = vadd.f32 %v2404, %v2540
        %2542 = vmatmul.bf16.gmra.mxu0 %v2224
        %v2543 = vpop.f32.mrf.mxu0
        %v2544 = vadd.f32 %v2407, %v2543
        %v2545 = vpop.f32.mrf.mxu0
        %v2546 = vadd.f32 %v2409, %v2545
        %2547 = vdwg.mxu0
        %v2548 = vrot.slane %v2080, 1
        %v2549 = vrot.slane %v2081, 1
        %v2550 = vrot.slane %v2082, 1
        %v2551 = vrot.slane %v2083, 1
        %v2552 = vrot.slane %v2084, 1
        %v2553 = vrot.slane %v2085, 1
        %v2554 = vrot.slane %v2086, 1
        %v2555 = vrot.slane %v2087, 1
        %v2556 = vrot.slane %v2088, 1
        %v2557 = vrot.slane %v2089, 1
        %v2558 = vrot.slane %v2090, 1
        %v2559 = vrot.slane %v2091, 1
        %v2560 = vrot.slane %v2092, 1
        %v2561 = vrot.slane %v2093, 1
        %v2562 = vrot.slane %v2094, 1
        %v2563 = vrot.slane %v2095, 1
        %v2564 = vrot.slane %v2096, 1
        %v2565 = vrot.slane %v2097, 1
        %v2566 = vrot.slane %v2098, 1
        %v2567 = vrot.slane %v2099, 1
        %v2568 = vrot.slane %v2100, 1
        %v2569 = vrot.slane %v2101, 1
        %v2570 = vrot.slane %v2102, 1
        %v2571 = vrot.slane %v2103, 1
        %v2572 = vrot.slane %v2104, 1
        %v2573 = vrot.slane %v2105, 1
        %v2574 = vrot.slane %v2106, 1
        %v2575 = vrot.slane %v2107, 1
        %v2576 = vrot.slane %v2108, 1
        %v2577 = vrot.slane %v2109, 1
        %v2578 = vrot.slane %v2110, 1
        %v2579 = vrot.slane %v2111, 1
        %vm2580 = vcmp.lt.s32.totalorder %v431, 7
        %v2581 = vsel %vm2580, %v2578, %v2579
        %v2582 = vsel %vm2580, %v2577, %v2578
        %v2583 = vsel %vm2580, %v2576, %v2577
        %v2584 = vsel %vm2580, %v2575, %v2576
        %v2585 = vsel %vm2580, %v2574, %v2575
        %v2586 = vsel %vm2580, %v2573, %v2574
        %v2587 = vsel %vm2580, %v2572, %v2573
        %v2588 = vsel %vm2580, %v2571, %v2572
        %v2589 = vsel %vm2580, %v2570, %v2571
        %v2590 = vsel %vm2580, %v2569, %v2570
        %v2591 = vsel %vm2580, %v2568, %v2569
        %v2592 = vsel %vm2580, %v2567, %v2568
        %v2593 = vsel %vm2580, %v2566, %v2567
        %v2594 = vsel %vm2580, %v2565, %v2566
        %v2595 = vsel %vm2580, %v2564, %v2565
        %v2596 = vsel %vm2580, %v2563, %v2564
        %v2597 = vsel %vm2580, %v2562, %v2563
        %v2598 = vsel %vm2580, %v2561, %v2562
        %v2599 = vsel %vm2580, %v2560, %v2561
        %v2600 = vsel %vm2580, %v2559, %v2560
        %v2601 = vsel %vm2580, %v2558, %v2559
        %v2602 = vsel %vm2580, %v2557, %v2558
        %v2603 = vsel %vm2580, %v2556, %v2557
        %v2604 = vsel %vm2580, %v2555, %v2556
        %v2605 = vsel %vm2580, %v2554, %v2555
        %v2606 = vsel %vm2580, %v2553, %v2554
        %v2607 = vsel %vm2580, %v2552, %v2553
        %v2608 = vsel %vm2580, %v2551, %v2552
        %v2609 = vsel %vm2580, %v2550, %v2551
        %v2610 = vsel %vm2580, %v2549, %v2550
        %v2611 = vsel %vm2580, %v2548, %v2549
        %v2612 = vsel %vm2580, %v2579, %v2548
        %v2613 = vmul.f32 %v2611, %v1007
        %v2614 = vmul.f32 %v2610, %v1008
        %v2615 = vmul.f32 %v2609, %v1009
        %v2616 = vmul.f32 %v2608, %v1010
        %v2617 = vmul.f32 %v2607, %v1011
        %v2618 = vmul.f32 %v2606, %v1012
        %v2619 = vmul.f32 %v2605, %v1013
        %v2620 = vmul.f32 %v2604, %v1014
        %v2621 = vmul.f32 %v2603, %v1015
        %v2622 = vmul.f32 %v2602, %v1016
        %v2623 = vmul.f32 %v2601, %v1017
        %v2624 = vmul.f32 %v2600, %v1018
        %v2625 = vmul.f32 %v2599, %v1019
        %v2626 = vmul.f32 %v2598, %v1020
        %v2627 = vmul.f32 %v2597, %v1021
        %v2628 = vmul.f32 %v2596, %v1022
        %v2629 = vmul.f32 %v2595, %v1023
        %v2630 = vmul.f32 %v2594, %v1024
        %v2631 = vmul.f32 %v2593, %v1025
        %v2632 = vmul.f32 %v2592, %v1026
        %v2633 = vmul.f32 %v2591, %v1027
        %v2634 = vmul.f32 %v2590, %v1028
        %v2635 = vmul.f32 %v2589, %v1029
        %v2636 = vmul.f32 %v2588, %v1030
        %v2637 = vmul.f32 %v2587, %v1031
        %v2638 = vmul.f32 %v2586, %v1032
        %v2639 = vmul.f32 %v2585, %v1033
        %v2640 = vmul.f32 %v2584, %v1034
        %v2641 = vmul.f32 %v2583, %v1035
        %v2642 = vmul.f32 %v2582, %v1036
        %v2643 = vmul.f32 %v2581, %v1037
        %v2644 = vmul.f32 %v2612, %v1038
        %v2645 = vpack.c.bf16 %v2614, %v2613
        %v2646 = vpack.c.bf16 %v2616, %v2615
        %v2647 = vpack.c.bf16 %v2618, %v2617
        %v2648 = vpack.c.bf16 %v2620, %v2619
        %v2649 = vpack.c.bf16 %v2622, %v2621
        %v2650 = vpack.c.bf16 %v2624, %v2623
        %v2651 = vpack.c.bf16 %v2626, %v2625
        %v2652 = vpack.c.bf16 %v2628, %v2627
        %v2653 = vpack.c.bf16 %v2630, %v2629
        %v2654 = vpack.c.bf16 %v2632, %v2631
        %v2655 = vpack.c.bf16 %v2634, %v2633
        %v2656 = vpack.c.bf16 %v2636, %v2635
        %v2657 = vpack.c.bf16 %v2638, %v2637
        %v2658 = vpack.c.bf16 %v2640, %v2639
        %v2659 = vpack.c.bf16 %v2642, %v2641
        %v2660 = vpack.c.bf16 %v2644, %v2643
        %s2661 = scalar_lea.vmem %s6, 128
        %v2662 = vld [vmem:[%s2661] sm:$0xf]
        %v2663 = vld [vmem:[%s2661 + $0x4] sm:$0xf]
        %v2664 = vld [vmem:[%s2661 + $0x8] sm:$0xf]
        %v2665 = vld [vmem:[%s2661 + $0xc] sm:$0xf]
        %v2666 = vld [vmem:[%s2661 + $0x10] sm:$0xf]
        %v2667 = vld [vmem:[%s2661 + $0x14] sm:$0xf]
        %v2668 = vld [vmem:[%s2661 + $0x18] sm:$0xf]
        %v2669 = vld [vmem:[%s2661 + $0x1c] sm:$0xf]
        %v2670 = vld [vmem:[%s2661 + $0x20] sm:$0xf]
        %v2671 = vld [vmem:[%s2661 + $0x24] sm:$0xf]
        %v2672 = vld [vmem:[%s2661 + $0x28] sm:$0xf]
        %v2673 = vld [vmem:[%s2661 + $0x2c] sm:$0xf]
        %v2674 = vld [vmem:[%s2661 + $0x30] sm:$0xf]
        %v2675 = vld [vmem:[%s2661 + $0x34] sm:$0xf]
        %v2676 = vld [vmem:[%s2661 + $0x38] sm:$0xf]
        %v2677 = vld [vmem:[%s2661 + $0x3c] sm:$0xf]
        %v2694 = vunpack.c.l.b16 %v2662
        %v2695 = vunpack.c.l.b16 %v2663
        %v2696 = vunpack.c.l.b16 %v2664
        %v2697 = vunpack.c.l.b16 %v2665
        %v2698 = vunpack.c.l.b16 %v2666
        %v2699 = vunpack.c.l.b16 %v2667
        %v2700 = vunpack.c.l.b16 %v2668
        %v2701 = vunpack.c.l.b16 %v2669
        %v2702 = vunpack.c.l.b16 %v2670
        %v2703 = vunpack.c.l.b16 %v2671
        %v2704 = vunpack.c.l.b16 %v2672
        %v2705 = vunpack.c.l.b16 %v2673
        %v2706 = vunpack.c.l.b16 %v2674
        %v2707 = vunpack.c.l.b16 %v2675
        %v2708 = vunpack.c.l.b16 %v2676
        %v2709 = vunpack.c.l.b16 %v2677
        %v2710 = vpack.c.b16 %v2695, %v2694
        %v2711 = vpack.c.b16 %v2697, %v2696
        %v2712 = vpack.c.b16 %v2699, %v2698
        %v2713 = vpack.c.b16 %v2701, %v2700
        %v2714 = vpack.c.b16 %v2703, %v2702
        %v2715 = vpack.c.b16 %v2705, %v2704
        %v2716 = vpack.c.b16 %v2707, %v2706
        %v2717 = vpack.c.b16 %v2709, %v2708
        %2726 = vmatpush.bf16.msra.mxu0 %v2717
        %2727 = vmatpush.bf16.msra.mxu0 %v2716
        %2728 = vmatpush.bf16.msra.mxu0 %v2715
        %2729 = vmatpush.bf16.msra.mxu0 %v2714
        %2730 = vmatpush.bf16.msra.mxu0 %v2713
        %2731 = vmatpush.bf16.msra.mxu0 %v2712
        %2732 = vmatpush.bf16.msra.mxu0 %v2711
        %2733 = vmatpush.bf16.msra.mxu0 %v2710
        %2734 = vmatmul.bf16.gmra.mxu0 %v2645
        %v2735 = vpop.f32.mrf.mxu0
        %v2736 = vadd.f32 0.0, %v2735
        %v2737 = vpop.f32.mrf.mxu0
        %v2738 = vadd.f32 0.0, %v2737
        %2739 = vmatmul.bf16.gmra.mxu0 %v2646
        %v2740 = vpop.f32.mrf.mxu0
        %v2741 = vadd.f32 0.0, %v2740
        %v2742 = vpop.f32.mrf.mxu0
        %v2743 = vadd.f32 0.0, %v2742
        %2744 = vmatmul.bf16.gmra.mxu0 %v2647
        %v2745 = vpop.f32.mrf.mxu0
        %v2746 = vadd.f32 0.0, %v2745
        %v2747 = vpop.f32.mrf.mxu0
        %v2748 = vadd.f32 0.0, %v2747
        %2749 = vmatmul.bf16.gmra.mxu0 %v2648
        %v2750 = vpop.f32.mrf.mxu0
        %v2751 = vadd.f32 0.0, %v2750
        %v2752 = vpop.f32.mrf.mxu0
        %v2753 = vadd.f32 0.0, %v2752
        %2754 = vmatmul.bf16.gmra.mxu0 %v2649
        %v2755 = vpop.f32.mrf.mxu0
        %v2756 = vadd.f32 0.0, %v2755
        %v2757 = vpop.f32.mrf.mxu0
        %v2758 = vadd.f32 0.0, %v2757
        %2759 = vmatmul.bf16.gmra.mxu0 %v2650
        %v2760 = vpop.f32.mrf.mxu0
        %v2761 = vadd.f32 0.0, %v2760
        %v2762 = vpop.f32.mrf.mxu0
        %v2763 = vadd.f32 0.0, %v2762
        %2764 = vmatmul.bf16.gmra.mxu0 %v2651
        %v2765 = vpop.f32.mrf.mxu0
        %v2766 = vadd.f32 0.0, %v2765
        %v2767 = vpop.f32.mrf.mxu0
        %v2768 = vadd.f32 0.0, %v2767
        %2769 = vmatmul.bf16.gmra.mxu0 %v2652
        %v2770 = vpop.f32.mrf.mxu0
        %v2771 = vadd.f32 0.0, %v2770
        %v2772 = vpop.f32.mrf.mxu0
        %v2773 = vadd.f32 0.0, %v2772
        %2774 = vmatmul.bf16.gmra.mxu0 %v2653
        %v2775 = vpop.f32.mrf.mxu0
        %v2776 = vadd.f32 0.0, %v2775
        %v2777 = vpop.f32.mrf.mxu0
        %v2778 = vadd.f32 0.0, %v2777
        %2779 = vmatmul.bf16.gmra.mxu0 %v2654
        %v2780 = vpop.f32.mrf.mxu0
        %v2781 = vadd.f32 0.0, %v2780
        %v2782 = vpop.f32.mrf.mxu0
        %v2783 = vadd.f32 0.0, %v2782
        %2784 = vmatmul.bf16.gmra.mxu0 %v2655
        %v2785 = vpop.f32.mrf.mxu0
        %v2786 = vadd.f32 0.0, %v2785
        %v2787 = vpop.f32.mrf.mxu0
        %v2788 = vadd.f32 0.0, %v2787
        %2789 = vmatmul.bf16.gmra.mxu0 %v2656
        %v2790 = vpop.f32.mrf.mxu0
        %v2791 = vadd.f32 0.0, %v2790
        %v2792 = vpop.f32.mrf.mxu0
        %v2793 = vadd.f32 0.0, %v2792
        %2794 = vmatmul.bf16.gmra.mxu0 %v2657
        %v2795 = vpop.f32.mrf.mxu0
        %v2796 = vadd.f32 0.0, %v2795
        %v2797 = vpop.f32.mrf.mxu0
        %v2798 = vadd.f32 0.0, %v2797
        %2799 = vmatmul.bf16.gmra.mxu0 %v2658
        %v2800 = vpop.f32.mrf.mxu0
        %v2801 = vadd.f32 0.0, %v2800
        %v2802 = vpop.f32.mrf.mxu0
        %v2803 = vadd.f32 0.0, %v2802
        %2804 = vmatmul.bf16.gmra.mxu0 %v2659
        %v2805 = vpop.f32.mrf.mxu0
        %v2806 = vadd.f32 0.0, %v2805
        %v2807 = vpop.f32.mrf.mxu0
        %v2808 = vadd.f32 0.0, %v2807
        %2809 = vmatmul.bf16.gmra.mxu0 %v2660
        %v2810 = vpop.f32.mrf.mxu0
        %v2811 = vadd.f32 0.0, %v2810
        %v2812 = vpop.f32.mrf.mxu0
        %v2813 = vadd.f32 0.0, %v2812
        %2814 = vdwg.mxu0
        %v2815 = vadd.f32 %v2469, %v2736
        %v2816 = vadd.f32 %v2471, %v2738
        %v2817 = vadd.f32 %v2474, %v2741
        %v2818 = vadd.f32 %v2476, %v2743
        %v2819 = vadd.f32 %v2479, %v2746
        %v2820 = vadd.f32 %v2481, %v2748
        %v2821 = vadd.f32 %v2484, %v2751
        %v2822 = vadd.f32 %v2486, %v2753
        %v2823 = vadd.f32 %v2489, %v2756
        %v2824 = vadd.f32 %v2491, %v2758
        %v2825 = vadd.f32 %v2494, %v2761
        %v2826 = vadd.f32 %v2496, %v2763
        %v2827 = vadd.f32 %v2499, %v2766
        %v2828 = vadd.f32 %v2501, %v2768
        %v2829 = vadd.f32 %v2504, %v2771
        %v2830 = vadd.f32 %v2506, %v2773
        %v2831 = vadd.f32 %v2509, %v2776
        %v2832 = vadd.f32 %v2511, %v2778
        %v2833 = vadd.f32 %v2514, %v2781
        %v2834 = vadd.f32 %v2516, %v2783
        %v2835 = vadd.f32 %v2519, %v2786
        %v2836 = vadd.f32 %v2521, %v2788
        %v2837 = vadd.f32 %v2524, %v2791
        %v2838 = vadd.f32 %v2526, %v2793
        %v2839 = vadd.f32 %v2529, %v2796
        %v2840 = vadd.f32 %v2531, %v2798
        %v2841 = vadd.f32 %v2534, %v2801
        %v2842 = vadd.f32 %v2536, %v2803
        %v2843 = vadd.f32 %v2539, %v2806
        %v2844 = vadd.f32 %v2541, %v2808
        %v2845 = vadd.f32 %v2544, %v2811
        %v2846 = vadd.f32 %v2546, %v2813
        %v2847 = vld [vmem:[#allocation2 + $0x10] sm:$0xff]
        %v2848 = vld [vmem:[#allocation2 + $0x18] sm:$0xff]
        %v2849 = vld [vmem:[#allocation2 + $0x20] sm:$0xff]
        %v2850 = vld [vmem:[#allocation2 + $0x28] sm:$0xff]
        %v2851 = vld [vmem:[#allocation2 + $0x30] sm:$0xff]
        %v2852 = vld [vmem:[#allocation2 + $0x38] sm:$0xff]
        %v2853 = vld [vmem:[#allocation2 + $0x40] sm:$0xff]
        %v2854 = vld [vmem:[#allocation2 + $0x48] sm:$0xff]
        %v2855 = vld [vmem:[#allocation2 + $0x50] sm:$0xff]
        %v2856 = vld [vmem:[#allocation2 + $0x58] sm:$0xff]
        %v2857 = vld [vmem:[#allocation2 + $0x60] sm:$0xff]
        %v2858 = vld [vmem:[#allocation2 + $0x68] sm:$0xff]
        %v2859 = vld [vmem:[#allocation2 + $0x70] sm:$0xff]
        %v2860 = vld [vmem:[#allocation2 + $0x78] sm:$0xff]
        %v2861 = vld [vmem:[#allocation2 + $0x80] sm:$0xff]
        %v2862 = vld [vmem:[#allocation2 + $0x88] sm:$0xff]
        %v2863 = vld [vmem:[#allocation2 + $0x90] sm:$0xff]
        %v2864 = vld [vmem:[#allocation2 + $0x98] sm:$0xff]
        %v2865 = vld [vmem:[#allocation2 + $0xa0] sm:$0xff]
        %v2866 = vld [vmem:[#allocation2 + $0xa8] sm:$0xff]
        %v2867 = vld [vmem:[#allocation2 + $0xb0] sm:$0xff]
        %v2868 = vld [vmem:[#allocation2 + $0xb8] sm:$0xff]
        %v2869 = vld [vmem:[#allocation2 + $0xc0] sm:$0xff]
        %v2870 = vld [vmem:[#allocation2 + $0xc8] sm:$0xff]
        %v2871 = vld [vmem:[#allocation2 + $0xd0] sm:$0xff]
        %v2872 = vld [vmem:[#allocation2 + $0xd8] sm:$0xff]
        %v2873 = vld [vmem:[#allocation2 + $0xe0] sm:$0xff]
        %v2874 = vld [vmem:[#allocation2 + $0xe8] sm:$0xff]
        %v2875 = vld [vmem:[#allocation2 + $0xf0] sm:$0xff]
        %v2876 = vld [vmem:[#allocation2 + $0xf8] sm:$0xff]
        %v2877 = vld [vmem:[#allocation2 + $0x100] sm:$0xff]
        %v2878 = vld [vmem:[#allocation2 + $0x108] sm:$0xff]
        %v2879 = vrot.slane %v2847, 7
        %v2880 = vrot.slane %v2848, 7
        %v2881 = vrot.slane %v2849, 7
        %v2882 = vrot.slane %v2850, 7
        %v2883 = vrot.slane %v2851, 7
        %v2884 = vrot.slane %v2852, 7
        %v2885 = vrot.slane %v2853, 7
        %v2886 = vrot.slane %v2854, 7
        %v2887 = vrot.slane %v2855, 7
        %v2888 = vrot.slane %v2856, 7
        %v2889 = vrot.slane %v2857, 7
        %v2890 = vrot.slane %v2858, 7
        %v2891 = vrot.slane %v2859, 7
        %v2892 = vrot.slane %v2860, 7
        %v2893 = vrot.slane %v2861, 7
        %v2894 = vrot.slane %v2862, 7
        %v2895 = vrot.slane %v2863, 7
        %v2896 = vrot.slane %v2864, 7
        %v2897 = vrot.slane %v2865, 7
        %v2898 = vrot.slane %v2866, 7
        %v2899 = vrot.slane %v2867, 7
        %v2900 = vrot.slane %v2868, 7
        %v2901 = vrot.slane %v2869, 7
        %v2902 = vrot.slane %v2870, 7
        %v2903 = vrot.slane %v2871, 7
        %v2904 = vrot.slane %v2872, 7
        %v2905 = vrot.slane %v2873, 7
        %v2906 = vrot.slane %v2874, 7
        %v2907 = vrot.slane %v2875, 7
        %v2908 = vrot.slane %v2876, 7
        %v2909 = vrot.slane %v2877, 7
        %v2910 = vrot.slane %v2878, 7
        %v2911 = vsel %vm2144, %v2909, %v2910
        %v2912 = vsel %vm2144, %v2908, %v2909
        %v2913 = vsel %vm2144, %v2907, %v2908
        %v2914 = vsel %vm2144, %v2906, %v2907
        %v2915 = vsel %vm2144, %v2905, %v2906
        %v2916 = vsel %vm2144, %v2904, %v2905
        %v2917 = vsel %vm2144, %v2903, %v2904
        %v2918 = vsel %vm2144, %v2902, %v2903
        %v2919 = vsel %vm2144, %v2901, %v2902
        %v2920 = vsel %vm2144, %v2900, %v2901
        %v2921 = vsel %vm2144, %v2899, %v2900
        %v2922 = vsel %vm2144, %v2898, %v2899
        %v2923 = vsel %vm2144, %v2897, %v2898
        %v2924 = vsel %vm2144, %v2896, %v2897
        %v2925 = vsel %vm2144, %v2895, %v2896
        %v2926 = vsel %vm2144, %v2894, %v2895
        %v2927 = vsel %vm2144, %v2893, %v2894
        %v2928 = vsel %vm2144, %v2892, %v2893
        %v2929 = vsel %vm2144, %v2891, %v2892
        %v2930 = vsel %vm2144, %v2890, %v2891
        %v2931 = vsel %vm2144, %v2889, %v2890
        %v2932 = vsel %vm2144, %v2888, %v2889
        %v2933 = vsel %vm2144, %v2887, %v2888
        %v2934 = vsel %vm2144, %v2886, %v2887
        %v2935 = vsel %vm2144, %v2885, %v2886
        %v2936 = vsel %vm2144, %v2884, %v2885
        %v2937 = vsel %vm2144, %v2883, %v2884
        %v2938 = vsel %vm2144, %v2882, %v2883
        %v2939 = vsel %vm2144, %v2881, %v2882
        %v2940 = vsel %vm2144, %v2880, %v2881
        %v2941 = vsel %vm2144, %v2879, %v2880
        %v2942 = vsel %vm2144, %v2910, %v2879
        %v2943 = vmul.f32 %v2942, %v911
        %v2944 = vmul.f32 %v2941, %v912
        %v2945 = vmul.f32 %v2940, %v913
        %v2946 = vmul.f32 %v2939, %v914
        %v2947 = vmul.f32 %v2938, %v915
        %v2948 = vmul.f32 %v2937, %v916
        %v2949 = vmul.f32 %v2936, %v917
        %v2950 = vmul.f32 %v2935, %v918
        %v2951 = vmul.f32 %v2934, %v919
        %v2952 = vmul.f32 %v2933, %v920
        %v2953 = vmul.f32 %v2932, %v921
        %v2954 = vmul.f32 %v2931, %v922
        %v2955 = vmul.f32 %v2930, %v923
        %v2956 = vmul.f32 %v2929, %v924
        %v2957 = vmul.f32 %v2928, %v925
        %v2958 = vmul.f32 %v2927, %v926
        %v2959 = vmul.f32 %v2926, %v927
        %v2960 = vmul.f32 %v2925, %v928
        %v2961 = vmul.f32 %v2924, %v929
        %v2962 = vmul.f32 %v2923, %v930
        %v2963 = vmul.f32 %v2922, %v931
        %v2964 = vmul.f32 %v2921, %v932
        %v2965 = vmul.f32 %v2920, %v933
        %v2966 = vmul.f32 %v2919, %v934
        %v2967 = vmul.f32 %v2918, %v935
        %v2968 = vmul.f32 %v2917, %v936
        %v2969 = vmul.f32 %v2916, %v937
        %v2970 = vmul.f32 %v2915, %v938
        %v2971 = vmul.f32 %v2914, %v939
        %v2972 = vmul.f32 %v2913, %v940
        %v2973 = vmul.f32 %v2912, %v941
        %v2974 = vmul.f32 %v2911, %v942
        %v2975 = vpack.c.bf16 %v2944, %v2943
        %v2976 = vpack.c.bf16 %v2946, %v2945
        %v2977 = vpack.c.bf16 %v2948, %v2947
        %v2978 = vpack.c.bf16 %v2950, %v2949
        %v2979 = vpack.c.bf16 %v2952, %v2951
        %v2980 = vpack.c.bf16 %v2954, %v2953
        %v2981 = vpack.c.bf16 %v2956, %v2955
        %v2982 = vpack.c.bf16 %v2958, %v2957
        %v2983 = vpack.c.bf16 %v2960, %v2959
        %v2984 = vpack.c.bf16 %v2962, %v2961
        %v2985 = vpack.c.bf16 %v2964, %v2963
        %v2986 = vpack.c.bf16 %v2966, %v2965
        %v2987 = vpack.c.bf16 %v2968, %v2967
        %v2988 = vpack.c.bf16 %v2970, %v2969
        %v2989 = vpack.c.bf16 %v2972, %v2971
        %v2990 = vpack.c.bf16 %v2974, %v2973
        %s2991 = scalar_lea.vmem %s6, 192
        %v2992 = vld [vmem:[%s2991] sm:$0xf]
        %v2993 = vld [vmem:[%s2991 + $0x4] sm:$0xf]
        %v2994 = vld [vmem:[%s2991 + $0x8] sm:$0xf]
        %v2995 = vld [vmem:[%s2991 + $0xc] sm:$0xf]
        %v2996 = vld [vmem:[%s2991 + $0x10] sm:$0xf]
        %v2997 = vld [vmem:[%s2991 + $0x14] sm:$0xf]
        %v2998 = vld [vmem:[%s2991 + $0x18] sm:$0xf]
        %v2999 = vld [vmem:[%s2991 + $0x1c] sm:$0xf]
        %v3000 = vld [vmem:[%s2991 + $0x20] sm:$0xf]
        %v3001 = vld [vmem:[%s2991 + $0x24] sm:$0xf]
        %v3002 = vld [vmem:[%s2991 + $0x28] sm:$0xf]
        %v3003 = vld [vmem:[%s2991 + $0x2c] sm:$0xf]
        %v3004 = vld [vmem:[%s2991 + $0x30] sm:$0xf]
        %v3005 = vld [vmem:[%s2991 + $0x34] sm:$0xf]
        %v3006 = vld [vmem:[%s2991 + $0x38] sm:$0xf]
        %v3007 = vld [vmem:[%s2991 + $0x3c] sm:$0xf]
        %v3024 = vunpack.c.l.b16 %v2992
        %v3025 = vunpack.c.l.b16 %v2993
        %v3026 = vunpack.c.l.b16 %v2994
        %v3027 = vunpack.c.l.b16 %v2995
        %v3028 = vunpack.c.l.b16 %v2996
        %v3029 = vunpack.c.l.b16 %v2997
        %v3030 = vunpack.c.l.b16 %v2998
        %v3031 = vunpack.c.l.b16 %v2999
        %v3032 = vunpack.c.l.b16 %v3000
        %v3033 = vunpack.c.l.b16 %v3001
        %v3034 = vunpack.c.l.b16 %v3002
        %v3035 = vunpack.c.l.b16 %v3003
        %v3036 = vunpack.c.l.b16 %v3004
        %v3037 = vunpack.c.l.b16 %v3005
        %v3038 = vunpack.c.l.b16 %v3006
        %v3039 = vunpack.c.l.b16 %v3007
        %v3040 = vpack.c.b16 %v3025, %v3024
        %v3041 = vpack.c.b16 %v3027, %v3026
        %v3042 = vpack.c.b16 %v3029, %v3028
        %v3043 = vpack.c.b16 %v3031, %v3030
        %v3044 = vpack.c.b16 %v3033, %v3032
        %v3045 = vpack.c.b16 %v3035, %v3034
        %v3046 = vpack.c.b16 %v3037, %v3036
        %v3047 = vpack.c.b16 %v3039, %v3038
        %3056 = vmatpush.bf16.msra.mxu0 %v3047
        %3057 = vmatpush.bf16.msra.mxu0 %v3046
        %3058 = vmatpush.bf16.msra.mxu0 %v3045
        %3059 = vmatpush.bf16.msra.mxu0 %v3044
        %3060 = vmatpush.bf16.msra.mxu0 %v3043
        %3061 = vmatpush.bf16.msra.mxu0 %v3042
        %3062 = vmatpush.bf16.msra.mxu0 %v3041
        %3063 = vmatpush.bf16.msra.mxu0 %v3040
        %3064 = vmatmul.bf16.gmra.mxu0 %v2975
        %v3065 = vpop.f32.mrf.mxu0
        %v3066 = vadd.f32 0.0, %v3065
        %v3067 = vpop.f32.mrf.mxu0
        %v3068 = vadd.f32 0.0, %v3067
        %3069 = vmatmul.bf16.gmra.mxu0 %v2976
        %v3070 = vpop.f32.mrf.mxu0
        %v3071 = vadd.f32 0.0, %v3070
        %v3072 = vpop.f32.mrf.mxu0
        %v3073 = vadd.f32 0.0, %v3072
        %3074 = vmatmul.bf16.gmra.mxu0 %v2977
        %v3075 = vpop.f32.mrf.mxu0
        %v3076 = vadd.f32 0.0, %v3075
        %v3077 = vpop.f32.mrf.mxu0
        %v3078 = vadd.f32 0.0, %v3077
        %3079 = vmatmul.bf16.gmra.mxu0 %v2978
        %v3080 = vpop.f32.mrf.mxu0
        %v3081 = vadd.f32 0.0, %v3080
        %v3082 = vpop.f32.mrf.mxu0
        %v3083 = vadd.f32 0.0, %v3082
        %3084 = vmatmul.bf16.gmra.mxu0 %v2979
        %v3085 = vpop.f32.mrf.mxu0
        %v3086 = vadd.f32 0.0, %v3085
        %v3087 = vpop.f32.mrf.mxu0
        %v3088 = vadd.f32 0.0, %v3087
        %3089 = vmatmul.bf16.gmra.mxu0 %v2980
        %v3090 = vpop.f32.mrf.mxu0
        %v3091 = vadd.f32 0.0, %v3090
        %v3092 = vpop.f32.mrf.mxu0
        %v3093 = vadd.f32 0.0, %v3092
        %3094 = vmatmul.bf16.gmra.mxu0 %v2981
        %v3095 = vpop.f32.mrf.mxu0
        %v3096 = vadd.f32 0.0, %v3095
        %v3097 = vpop.f32.mrf.mxu0
        %v3098 = vadd.f32 0.0, %v3097
        %3099 = vmatmul.bf16.gmra.mxu0 %v2982
        %v3100 = vpop.f32.mrf.mxu0
        %v3101 = vadd.f32 0.0, %v3100
        %v3102 = vpop.f32.mrf.mxu0
        %v3103 = vadd.f32 0.0, %v3102
        %3104 = vmatmul.bf16.gmra.mxu0 %v2983
        %v3105 = vpop.f32.mrf.mxu0
        %v3106 = vadd.f32 0.0, %v3105
        %v3107 = vpop.f32.mrf.mxu0
        %v3108 = vadd.f32 0.0, %v3107
        %3109 = vmatmul.bf16.gmra.mxu0 %v2984
        %v3110 = vpop.f32.mrf.mxu0
        %v3111 = vadd.f32 0.0, %v3110
        %v3112 = vpop.f32.mrf.mxu0
        %v3113 = vadd.f32 0.0, %v3112
        %3114 = vmatmul.bf16.gmra.mxu0 %v2985
        %v3115 = vpop.f32.mrf.mxu0
        %v3116 = vadd.f32 0.0, %v3115
        %v3117 = vpop.f32.mrf.mxu0
        %v3118 = vadd.f32 0.0, %v3117
        %3119 = vmatmul.bf16.gmra.mxu0 %v2986
        %v3120 = vpop.f32.mrf.mxu0
        %v3121 = vadd.f32 0.0, %v3120
        %v3122 = vpop.f32.mrf.mxu0
        %v3123 = vadd.f32 0.0, %v3122
        %3124 = vmatmul.bf16.gmra.mxu0 %v2987
        %v3125 = vpop.f32.mrf.mxu0
        %v3126 = vadd.f32 0.0, %v3125
        %v3127 = vpop.f32.mrf.mxu0
        %v3128 = vadd.f32 0.0, %v3127
        %3129 = vmatmul.bf16.gmra.mxu0 %v2988
        %v3130 = vpop.f32.mrf.mxu0
        %v3131 = vadd.f32 0.0, %v3130
        %v3132 = vpop.f32.mrf.mxu0
        %v3133 = vadd.f32 0.0, %v3132
        %3134 = vmatmul.bf16.gmra.mxu0 %v2989
        %v3135 = vpop.f32.mrf.mxu0
        %v3136 = vadd.f32 0.0, %v3135
        %v3137 = vpop.f32.mrf.mxu0
        %v3138 = vadd.f32 0.0, %v3137
        %3139 = vmatmul.bf16.gmra.mxu0 %v2990
        %v3140 = vpop.f32.mrf.mxu0
        %v3141 = vadd.f32 0.0, %v3140
        %v3142 = vpop.f32.mrf.mxu0
        %v3143 = vadd.f32 0.0, %v3142
        %3144 = vdwg.mxu0
        %v3145 = vadd.f32 %v2815, %v3066
        %v3146 = vadd.f32 %v2816, %v3068
        %v3147 = vadd.f32 %v2817, %v3071
        %v3148 = vadd.f32 %v2818, %v3073
        %v3149 = vadd.f32 %v2819, %v3076
        %v3150 = vadd.f32 %v2820, %v3078
        %v3151 = vadd.f32 %v2821, %v3081
        %v3152 = vadd.f32 %v2822, %v3083
        %v3153 = vadd.f32 %v2823, %v3086
        %v3154 = vadd.f32 %v2824, %v3088
        %v3155 = vadd.f32 %v2825, %v3091
        %v3156 = vadd.f32 %v2826, %v3093
        %v3157 = vadd.f32 %v2827, %v3096
        %v3158 = vadd.f32 %v2828, %v3098
        %v3159 = vadd.f32 %v2829, %v3101
        %v3160 = vadd.f32 %v2830, %v3103
        %v3161 = vadd.f32 %v2831, %v3106
        %v3162 = vadd.f32 %v2832, %v3108
        %v3163 = vadd.f32 %v2833, %v3111
        %v3164 = vadd.f32 %v2834, %v3113
        %v3165 = vadd.f32 %v2835, %v3116
        %v3166 = vadd.f32 %v2836, %v3118
        %v3167 = vadd.f32 %v2837, %v3121
        %v3168 = vadd.f32 %v2838, %v3123
        %v3169 = vadd.f32 %v2839, %v3126
        %v3170 = vadd.f32 %v2840, %v3128
        %v3171 = vadd.f32 %v2841, %v3131
        %v3172 = vadd.f32 %v2842, %v3133
        %v3173 = vadd.f32 %v2843, %v3136
        %v3174 = vadd.f32 %v2844, %v3138
        %v3175 = vadd.f32 %v2845, %v3141
        %v3176 = vadd.f32 %v2846, %v3143
        %v3177 = vpack.c.bf16 %v2848, %v2847
        %v3178 = vpack.c.bf16 %v2850, %v2849
        %v3179 = vpack.c.bf16 %v2852, %v2851
        %v3180 = vpack.c.bf16 %v2854, %v2853
        %v3181 = vpack.c.bf16 %v2856, %v2855
        %v3182 = vpack.c.bf16 %v2858, %v2857
        %v3183 = vpack.c.bf16 %v2860, %v2859
        %v3184 = vpack.c.bf16 %v2862, %v2861
        %v3185 = vpack.c.bf16 %v2864, %v2863
        %v3186 = vpack.c.bf16 %v2866, %v2865
        %v3187 = vpack.c.bf16 %v2868, %v2867
        %v3188 = vpack.c.bf16 %v2870, %v2869
        %v3189 = vpack.c.bf16 %v2872, %v2871
        %v3190 = vpack.c.bf16 %v2874, %v2873
        %v3191 = vpack.c.bf16 %v2876, %v2875
        %v3192 = vpack.c.bf16 %v2878, %v2877
        %s3193 = scalar_lea.vmem %s6, 256
        %v3194 = vld [vmem:[%s3193] sm:$0xf]
        %v3195 = vld [vmem:[%s3193 + $0x4] sm:$0xf]
        %v3196 = vld [vmem:[%s3193 + $0x8] sm:$0xf]
        %v3197 = vld [vmem:[%s3193 + $0xc] sm:$0xf]
        %v3198 = vld [vmem:[%s3193 + $0x10] sm:$0xf]
        %v3199 = vld [vmem:[%s3193 + $0x14] sm:$0xf]
        %v3200 = vld [vmem:[%s3193 + $0x18] sm:$0xf]
        %v3201 = vld [vmem:[%s3193 + $0x1c] sm:$0xf]
        %v3202 = vld [vmem:[%s3193 + $0x20] sm:$0xf]
        %v3203 = vld [vmem:[%s3193 + $0x24] sm:$0xf]
        %v3204 = vld [vmem:[%s3193 + $0x28] sm:$0xf]
        %v3205 = vld [vmem:[%s3193 + $0x2c] sm:$0xf]
        %v3206 = vld [vmem:[%s3193 + $0x30] sm:$0xf]
        %v3207 = vld [vmem:[%s3193 + $0x34] sm:$0xf]
        %v3208 = vld [vmem:[%s3193 + $0x38] sm:$0xf]
        %v3209 = vld [vmem:[%s3193 + $0x3c] sm:$0xf]
        %v3226 = vunpack.c.l.b16 %v3194
        %v3227 = vunpack.c.l.b16 %v3195
        %v3228 = vunpack.c.l.b16 %v3196
        %v3229 = vunpack.c.l.b16 %v3197
        %v3230 = vunpack.c.l.b16 %v3198
        %v3231 = vunpack.c.l.b16 %v3199
        %v3232 = vunpack.c.l.b16 %v3200
        %v3233 = vunpack.c.l.b16 %v3201
        %v3234 = vunpack.c.l.b16 %v3202
        %v3235 = vunpack.c.l.b16 %v3203
        %v3236 = vunpack.c.l.b16 %v3204
        %v3237 = vunpack.c.l.b16 %v3205
        %v3238 = vunpack.c.l.b16 %v3206
        %v3239 = vunpack.c.l.b16 %v3207
        %v3240 = vunpack.c.l.b16 %v3208
        %v3241 = vunpack.c.l.b16 %v3209
        %v3242 = vpack.c.b16 %v3227, %v3226
        %v3243 = vpack.c.b16 %v3229, %v3228
        %v3244 = vpack.c.b16 %v3231, %v3230
        %v3245 = vpack.c.b16 %v3233, %v3232
        %v3246 = vpack.c.b16 %v3235, %v3234
        %v3247 = vpack.c.b16 %v3237, %v3236
        %v3248 = vpack.c.b16 %v3239, %v3238
        %v3249 = vpack.c.b16 %v3241, %v3240
        %3258 = vmatpush.bf16.msra.mxu0 %v3249
        %3259 = vmatpush.bf16.msra.mxu0 %v3248
        %3260 = vmatpush.bf16.msra.mxu0 %v3247
        %3261 = vmatpush.bf16.msra.mxu0 %v3246
        %3262 = vmatpush.bf16.msra.mxu0 %v3245
        %3263 = vmatpush.bf16.msra.mxu0 %v3244
        %3264 = vmatpush.bf16.msra.mxu0 %v3243
        %3265 = vmatpush.bf16.msra.mxu0 %v3242
        %3266 = vmatmul.bf16.gmra.mxu0 %v3177
        %v3267 = vpop.f32.mrf.mxu0
        %v3268 = vadd.f32 0.0, %v3267
        %v3269 = vpop.f32.mrf.mxu0
        %v3270 = vadd.f32 0.0, %v3269
        %3271 = vmatmul.bf16.gmra.mxu0 %v3178
        %v3272 = vpop.f32.mrf.mxu0
        %v3273 = vadd.f32 0.0, %v3272
        %v3274 = vpop.f32.mrf.mxu0
        %v3275 = vadd.f32 0.0, %v3274
        %3276 = vmatmul.bf16.gmra.mxu0 %v3179
        %v3277 = vpop.f32.mrf.mxu0
        %v3278 = vadd.f32 0.0, %v3277
        %v3279 = vpop.f32.mrf.mxu0
        %v3280 = vadd.f32 0.0, %v3279
        %3281 = vmatmul.bf16.gmra.mxu0 %v3180
        %v3282 = vpop.f32.mrf.mxu0
        %v3283 = vadd.f32 0.0, %v3282
        %v3284 = vpop.f32.mrf.mxu0
        %v3285 = vadd.f32 0.0, %v3284
        %3286 = vmatmul.bf16.gmra.mxu0 %v3181
        %v3287 = vpop.f32.mrf.mxu0
        %v3288 = vadd.f32 0.0, %v3287
        %v3289 = vpop.f32.mrf.mxu0
        %v3290 = vadd.f32 0.0, %v3289
        %3291 = vmatmul.bf16.gmra.mxu0 %v3182
        %v3292 = vpop.f32.mrf.mxu0
        %v3293 = vadd.f32 0.0, %v3292
        %v3294 = vpop.f32.mrf.mxu0
        %v3295 = vadd.f32 0.0, %v3294
        %3296 = vmatmul.bf16.gmra.mxu0 %v3183
        %v3297 = vpop.f32.mrf.mxu0
        %v3298 = vadd.f32 0.0, %v3297
        %v3299 = vpop.f32.mrf.mxu0
        %v3300 = vadd.f32 0.0, %v3299
        %3301 = vmatmul.bf16.gmra.mxu0 %v3184
        %v3302 = vpop.f32.mrf.mxu0
        %v3303 = vadd.f32 0.0, %v3302
        %v3304 = vpop.f32.mrf.mxu0
        %v3305 = vadd.f32 0.0, %v3304
        %3306 = vmatmul.bf16.gmra.mxu0 %v3185
        %v3307 = vpop.f32.mrf.mxu0
        %v3308 = vadd.f32 0.0, %v3307
        %v3309 = vpop.f32.mrf.mxu0
        %v3310 = vadd.f32 0.0, %v3309
        %3311 = vmatmul.bf16.gmra.mxu0 %v3186
        %v3312 = vpop.f32.mrf.mxu0
        %v3313 = vadd.f32 0.0, %v3312
        %v3314 = vpop.f32.mrf.mxu0
        %v3315 = vadd.f32 0.0, %v3314
        %3316 = vmatmul.bf16.gmra.mxu0 %v3187
        %v3317 = vpop.f32.mrf.mxu0
        %v3318 = vadd.f32 0.0, %v3317
        %v3319 = vpop.f32.mrf.mxu0
        %v3320 = vadd.f32 0.0, %v3319
        %3321 = vmatmul.bf16.gmra.mxu0 %v3188
        %v3322 = vpop.f32.mrf.mxu0
        %v3323 = vadd.f32 0.0, %v3322
        %v3324 = vpop.f32.mrf.mxu0
        %v3325 = vadd.f32 0.0, %v3324
        %3326 = vmatmul.bf16.gmra.mxu0 %v3189
        %v3327 = vpop.f32.mrf.mxu0
        %v3328 = vadd.f32 0.0, %v3327
        %v3329 = vpop.f32.mrf.mxu0
        %v3330 = vadd.f32 0.0, %v3329
        %3331 = vmatmul.bf16.gmra.mxu0 %v3190
        %v3332 = vpop.f32.mrf.mxu0
        %v3333 = vadd.f32 0.0, %v3332
        %v3334 = vpop.f32.mrf.mxu0
        %v3335 = vadd.f32 0.0, %v3334
        %3336 = vmatmul.bf16.gmra.mxu0 %v3191
        %v3337 = vpop.f32.mrf.mxu0
        %v3338 = vadd.f32 0.0, %v3337
        %v3339 = vpop.f32.mrf.mxu0
        %v3340 = vadd.f32 0.0, %v3339
        %3341 = vmatmul.bf16.gmra.mxu0 %v3192
        %v3342 = vpop.f32.mrf.mxu0
        %v3343 = vadd.f32 0.0, %v3342
        %v3344 = vpop.f32.mrf.mxu0
        %v3345 = vadd.f32 0.0, %v3344
        %3346 = vdwg.mxu0
        %v3347 = vadd.f32 %v3145, %v3268
        %v3348 = vadd.f32 %v3146, %v3270
        %v3349 = vadd.f32 %v3147, %v3273
        %v3350 = vadd.f32 %v3148, %v3275
        %v3351 = vadd.f32 %v3149, %v3278
        %v3352 = vadd.f32 %v3150, %v3280
        %v3353 = vadd.f32 %v3151, %v3283
        %v3354 = vadd.f32 %v3152, %v3285
        %v3355 = vadd.f32 %v3153, %v3288
        %v3356 = vadd.f32 %v3154, %v3290
        %v3357 = vadd.f32 %v3155, %v3293
        %v3358 = vadd.f32 %v3156, %v3295
        %v3359 = vadd.f32 %v3157, %v3298
        %v3360 = vadd.f32 %v3158, %v3300
        %v3361 = vadd.f32 %v3159, %v3303
        %v3362 = vadd.f32 %v3160, %v3305
        %v3363 = vadd.f32 %v3161, %v3308
        %v3364 = vadd.f32 %v3162, %v3310
        %v3365 = vadd.f32 %v3163, %v3313
        %v3366 = vadd.f32 %v3164, %v3315
        %v3367 = vadd.f32 %v3165, %v3318
        %v3368 = vadd.f32 %v3166, %v3320
        %v3369 = vadd.f32 %v3167, %v3323
        %v3370 = vadd.f32 %v3168, %v3325
        %v3371 = vadd.f32 %v3169, %v3328
        %v3372 = vadd.f32 %v3170, %v3330
        %v3373 = vadd.f32 %v3171, %v3333
        %v3374 = vadd.f32 %v3172, %v3335
        %v3375 = vadd.f32 %v3173, %v3338
        %v3376 = vadd.f32 %v3174, %v3340
        %v3377 = vadd.f32 %v3175, %v3343
        %v3378 = vadd.f32 %v3176, %v3345
        %v3379 = vrot.slane %v2847, 1
        %v3380 = vrot.slane %v2848, 1
        %v3381 = vrot.slane %v2849, 1
        %v3382 = vrot.slane %v2850, 1
        %v3383 = vrot.slane %v2851, 1
        %v3384 = vrot.slane %v2852, 1
        %v3385 = vrot.slane %v2853, 1
        %v3386 = vrot.slane %v2854, 1
        %v3387 = vrot.slane %v2855, 1
        %v3388 = vrot.slane %v2856, 1
        %v3389 = vrot.slane %v2857, 1
        %v3390 = vrot.slane %v2858, 1
        %v3391 = vrot.slane %v2859, 1
        %v3392 = vrot.slane %v2860, 1
        %v3393 = vrot.slane %v2861, 1
        %v3394 = vrot.slane %v2862, 1
        %v3395 = vrot.slane %v2863, 1
        %v3396 = vrot.slane %v2864, 1
        %v3397 = vrot.slane %v2865, 1
        %v3398 = vrot.slane %v2866, 1
        %v3399 = vrot.slane %v2867, 1
        %v3400 = vrot.slane %v2868, 1
        %v3401 = vrot.slane %v2869, 1
        %v3402 = vrot.slane %v2870, 1
        %v3403 = vrot.slane %v2871, 1
        %v3404 = vrot.slane %v2872, 1
        %v3405 = vrot.slane %v2873, 1
        %v3406 = vrot.slane %v2874, 1
        %v3407 = vrot.slane %v2875, 1
        %v3408 = vrot.slane %v2876, 1
        %v3409 = vrot.slane %v2877, 1
        %v3410 = vrot.slane %v2878, 1
        %v3411 = vsel %vm2580, %v3409, %v3410
        %v3412 = vsel %vm2580, %v3408, %v3409
        %v3413 = vsel %vm2580, %v3407, %v3408
        %v3414 = vsel %vm2580, %v3406, %v3407
        %v3415 = vsel %vm2580, %v3405, %v3406
        %v3416 = vsel %vm2580, %v3404, %v3405
        %v3417 = vsel %vm2580, %v3403, %v3404
        %v3418 = vsel %vm2580, %v3402, %v3403
        %v3419 = vsel %vm2580, %v3401, %v3402
        %v3420 = vsel %vm2580, %v3400, %v3401
        %v3421 = vsel %vm2580, %v3399, %v3400
        %v3422 = vsel %vm2580, %v3398, %v3399
        %v3423 = vsel %vm2580, %v3397, %v3398
        %v3424 = vsel %vm2580, %v3396, %v3397
        %v3425 = vsel %vm2580, %v3395, %v3396
        %v3426 = vsel %vm2580, %v3394, %v3395
        %v3427 = vsel %vm2580, %v3393, %v3394
        %v3428 = vsel %vm2580, %v3392, %v3393
        %v3429 = vsel %vm2580, %v3391, %v3392
        %v3430 = vsel %vm2580, %v3390, %v3391
        %v3431 = vsel %vm2580, %v3389, %v3390
        %v3432 = vsel %vm2580, %v3388, %v3389
        %v3433 = vsel %vm2580, %v3387, %v3388
        %v3434 = vsel %vm2580, %v3386, %v3387
        %v3435 = vsel %vm2580, %v3385, %v3386
        %v3436 = vsel %vm2580, %v3384, %v3385
        %v3437 = vsel %vm2580, %v3383, %v3384
        %v3438 = vsel %vm2580, %v3382, %v3383
        %v3439 = vsel %vm2580, %v3381, %v3382
        %v3440 = vsel %vm2580, %v3380, %v3381
        %v3441 = vsel %vm2580, %v3379, %v3380
        %v3442 = vsel %vm2580, %v3410, %v3379
        %v3443 = vmul.f32 %v3441, %v1007
        %v3444 = vmul.f32 %v3440, %v1008
        %v3445 = vmul.f32 %v3439, %v1009
        %v3446 = vmul.f32 %v3438, %v1010
        %v3447 = vmul.f32 %v3437, %v1011
        %v3448 = vmul.f32 %v3436, %v1012
        %v3449 = vmul.f32 %v3435, %v1013
        %v3450 = vmul.f32 %v3434, %v1014
        %v3451 = vmul.f32 %v3433, %v1015
        %v3452 = vmul.f32 %v3432, %v1016
        %v3453 = vmul.f32 %v3431, %v1017
        %v3454 = vmul.f32 %v3430, %v1018
        %v3455 = vmul.f32 %v3429, %v1019
        %v3456 = vmul.f32 %v3428, %v1020
        %v3457 = vmul.f32 %v3427, %v1021
        %v3458 = vmul.f32 %v3426, %v1022
        %v3459 = vmul.f32 %v3425, %v1023
        %v3460 = vmul.f32 %v3424, %v1024
        %v3461 = vmul.f32 %v3423, %v1025
        %v3462 = vmul.f32 %v3422, %v1026
        %v3463 = vmul.f32 %v3421, %v1027
        %v3464 = vmul.f32 %v3420, %v1028
        %v3465 = vmul.f32 %v3419, %v1029
        %v3466 = vmul.f32 %v3418, %v1030
        %v3467 = vmul.f32 %v3417, %v1031
        %v3468 = vmul.f32 %v3416, %v1032
        %v3469 = vmul.f32 %v3415, %v1033
        %v3470 = vmul.f32 %v3414, %v1034
        %v3471 = vmul.f32 %v3413, %v1035
        %v3472 = vmul.f32 %v3412, %v1036
        %v3473 = vmul.f32 %v3411, %v1037
        %v3474 = vmul.f32 %v3442, %v1038
        %v3475 = vpack.c.bf16 %v3444, %v3443
        %v3476 = vpack.c.bf16 %v3446, %v3445
        %v3477 = vpack.c.bf16 %v3448, %v3447
        %v3478 = vpack.c.bf16 %v3450, %v3449
        %v3479 = vpack.c.bf16 %v3452, %v3451
        %v3480 = vpack.c.bf16 %v3454, %v3453
        %v3481 = vpack.c.bf16 %v3456, %v3455
        %v3482 = vpack.c.bf16 %v3458, %v3457
        %v3483 = vpack.c.bf16 %v3460, %v3459
        %v3484 = vpack.c.bf16 %v3462, %v3461
        %v3485 = vpack.c.bf16 %v3464, %v3463
        %v3486 = vpack.c.bf16 %v3466, %v3465
        %v3487 = vpack.c.bf16 %v3468, %v3467
        %v3488 = vpack.c.bf16 %v3470, %v3469
        %v3489 = vpack.c.bf16 %v3472, %v3471
        %v3490 = vpack.c.bf16 %v3474, %v3473
        %s3491 = scalar_lea.vmem %s6, 320
        %v3492 = vld [vmem:[%s3491] sm:$0xf]
        %v3493 = vld [vmem:[%s3491 + $0x4] sm:$0xf]
        %v3494 = vld [vmem:[%s3491 + $0x8] sm:$0xf]
        %v3495 = vld [vmem:[%s3491 + $0xc] sm:$0xf]
        %v3496 = vld [vmem:[%s3491 + $0x10] sm:$0xf]
        %v3497 = vld [vmem:[%s3491 + $0x14] sm:$0xf]
        %v3498 = vld [vmem:[%s3491 + $0x18] sm:$0xf]
        %v3499 = vld [vmem:[%s3491 + $0x1c] sm:$0xf]
        %v3500 = vld [vmem:[%s3491 + $0x20] sm:$0xf]
        %v3501 = vld [vmem:[%s3491 + $0x24] sm:$0xf]
        %v3502 = vld [vmem:[%s3491 + $0x28] sm:$0xf]
        %v3503 = vld [vmem:[%s3491 + $0x2c] sm:$0xf]
        %v3504 = vld [vmem:[%s3491 + $0x30] sm:$0xf]
        %v3505 = vld [vmem:[%s3491 + $0x34] sm:$0xf]
        %v3506 = vld [vmem:[%s3491 + $0x38] sm:$0xf]
        %v3507 = vld [vmem:[%s3491 + $0x3c] sm:$0xf]
        %v3524 = vunpack.c.l.b16 %v3492
        %v3525 = vunpack.c.l.b16 %v3493
        %v3526 = vunpack.c.l.b16 %v3494
        %v3527 = vunpack.c.l.b16 %v3495
        %v3528 = vunpack.c.l.b16 %v3496
        %v3529 = vunpack.c.l.b16 %v3497
        %v3530 = vunpack.c.l.b16 %v3498
        %v3531 = vunpack.c.l.b16 %v3499
        %v3532 = vunpack.c.l.b16 %v3500
        %v3533 = vunpack.c.l.b16 %v3501
        %v3534 = vunpack.c.l.b16 %v3502
        %v3535 = vunpack.c.l.b16 %v3503
        %v3536 = vunpack.c.l.b16 %v3504
        %v3537 = vunpack.c.l.b16 %v3505
        %v3538 = vunpack.c.l.b16 %v3506
        %v3539 = vunpack.c.l.b16 %v3507
        %v3540 = vpack.c.b16 %v3525, %v3524
        %v3541 = vpack.c.b16 %v3527, %v3526
        %v3542 = vpack.c.b16 %v3529, %v3528
        %v3543 = vpack.c.b16 %v3531, %v3530
        %v3544 = vpack.c.b16 %v3533, %v3532
        %v3545 = vpack.c.b16 %v3535, %v3534
        %v3546 = vpack.c.b16 %v3537, %v3536
        %v3547 = vpack.c.b16 %v3539, %v3538
        %3556 = vmatpush.bf16.msra.mxu0 %v3547
        %3557 = vmatpush.bf16.msra.mxu0 %v3546
        %3558 = vmatpush.bf16.msra.mxu0 %v3545
        %3559 = vmatpush.bf16.msra.mxu0 %v3544
        %3560 = vmatpush.bf16.msra.mxu0 %v3543
        %3561 = vmatpush.bf16.msra.mxu0 %v3542
        %3562 = vmatpush.bf16.msra.mxu0 %v3541
        %3563 = vmatpush.bf16.msra.mxu0 %v3540
        %3564 = vmatmul.bf16.gmra.mxu0 %v3475
        %v3565 = vpop.f32.mrf.mxu0
        %v3566 = vadd.f32 0.0, %v3565
        %v3567 = vpop.f32.mrf.mxu0
        %v3568 = vadd.f32 0.0, %v3567
        %3569 = vmatmul.bf16.gmra.mxu0 %v3476
        %v3570 = vpop.f32.mrf.mxu0
        %v3571 = vadd.f32 0.0, %v3570
        %v3572 = vpop.f32.mrf.mxu0
        %v3573 = vadd.f32 0.0, %v3572
        %3574 = vmatmul.bf16.gmra.mxu0 %v3477
        %v3575 = vpop.f32.mrf.mxu0
        %v3576 = vadd.f32 0.0, %v3575
        %v3577 = vpop.f32.mrf.mxu0
        %v3578 = vadd.f32 0.0, %v3577
        %3579 = vmatmul.bf16.gmra.mxu0 %v3478
        %v3580 = vpop.f32.mrf.mxu0
        %v3581 = vadd.f32 0.0, %v3580
        %v3582 = vpop.f32.mrf.mxu0
        %v3583 = vadd.f32 0.0, %v3582
        %3584 = vmatmul.bf16.gmra.mxu0 %v3479
        %v3585 = vpop.f32.mrf.mxu0
        %v3586 = vadd.f32 0.0, %v3585
        %v3587 = vpop.f32.mrf.mxu0
        %v3588 = vadd.f32 0.0, %v3587
        %3589 = vmatmul.bf16.gmra.mxu0 %v3480
        %v3590 = vpop.f32.mrf.mxu0
        %v3591 = vadd.f32 0.0, %v3590
        %v3592 = vpop.f32.mrf.mxu0
        %v3593 = vadd.f32 0.0, %v3592
        %3594 = vmatmul.bf16.gmra.mxu0 %v3481
        %v3595 = vpop.f32.mrf.mxu0
        %v3596 = vadd.f32 0.0, %v3595
        %v3597 = vpop.f32.mrf.mxu0
        %v3598 = vadd.f32 0.0, %v3597
        %3599 = vmatmul.bf16.gmra.mxu0 %v3482
        %v3600 = vpop.f32.mrf.mxu0
        %v3601 = vadd.f32 0.0, %v3600
        %v3602 = vpop.f32.mrf.mxu0
        %v3603 = vadd.f32 0.0, %v3602
        %3604 = vmatmul.bf16.gmra.mxu0 %v3483
        %v3605 = vpop.f32.mrf.mxu0
        %v3606 = vadd.f32 0.0, %v3605
        %v3607 = vpop.f32.mrf.mxu0
        %v3608 = vadd.f32 0.0, %v3607
        %3609 = vmatmul.bf16.gmra.mxu0 %v3484
        %v3610 = vpop.f32.mrf.mxu0
        %v3611 = vadd.f32 0.0, %v3610
        %v3612 = vpop.f32.mrf.mxu0
        %v3613 = vadd.f32 0.0, %v3612
        %3614 = vmatmul.bf16.gmra.mxu0 %v3485
        %v3615 = vpop.f32.mrf.mxu0
        %v3616 = vadd.f32 0.0, %v3615
        %v3617 = vpop.f32.mrf.mxu0
        %v3618 = vadd.f32 0.0, %v3617
        %3619 = vmatmul.bf16.gmra.mxu0 %v3486
        %v3620 = vpop.f32.mrf.mxu0
        %v3621 = vadd.f32 0.0, %v3620
        %v3622 = vpop.f32.mrf.mxu0
        %v3623 = vadd.f32 0.0, %v3622
        %3624 = vmatmul.bf16.gmra.mxu0 %v3487
        %v3625 = vpop.f32.mrf.mxu0
        %v3626 = vadd.f32 0.0, %v3625
        %v3627 = vpop.f32.mrf.mxu0
        %v3628 = vadd.f32 0.0, %v3627
        %3629 = vmatmul.bf16.gmra.mxu0 %v3488
        %v3630 = vpop.f32.mrf.mxu0
        %v3631 = vadd.f32 0.0, %v3630
        %v3632 = vpop.f32.mrf.mxu0
        %v3633 = vadd.f32 0.0, %v3632
        %3634 = vmatmul.bf16.gmra.mxu0 %v3489
        %v3635 = vpop.f32.mrf.mxu0
        %v3636 = vadd.f32 0.0, %v3635
        %v3637 = vpop.f32.mrf.mxu0
        %v3638 = vadd.f32 0.0, %v3637
        %3639 = vmatmul.bf16.gmra.mxu0 %v3490
        %v3640 = vpop.f32.mrf.mxu0
        %v3641 = vadd.f32 0.0, %v3640
        %v3642 = vpop.f32.mrf.mxu0
        %v3643 = vadd.f32 0.0, %v3642
        %3644 = vdwg.mxu0
        %v3645 = vadd.f32 %v3347, %v3566
        %v3646 = vadd.f32 %v3348, %v3568
        %v3647 = vadd.f32 %v3349, %v3571
        %v3648 = vadd.f32 %v3350, %v3573
        %v3649 = vadd.f32 %v3351, %v3576
        %v3650 = vadd.f32 %v3352, %v3578
        %v3651 = vadd.f32 %v3353, %v3581
        %v3652 = vadd.f32 %v3354, %v3583
        %v3653 = vadd.f32 %v3355, %v3586
        %v3654 = vadd.f32 %v3356, %v3588
        %v3655 = vadd.f32 %v3357, %v3591
        %v3656 = vadd.f32 %v3358, %v3593
        %v3657 = vadd.f32 %v3359, %v3596
        %v3658 = vadd.f32 %v3360, %v3598
        %v3659 = vadd.f32 %v3361, %v3601
        %v3660 = vadd.f32 %v3362, %v3603
        %v3661 = vadd.f32 %v3363, %v3606
        %v3662 = vadd.f32 %v3364, %v3608
        %v3663 = vadd.f32 %v3365, %v3611
        %v3664 = vadd.f32 %v3366, %v3613
        %v3665 = vadd.f32 %v3367, %v3616
        %v3666 = vadd.f32 %v3368, %v3618
        %v3667 = vadd.f32 %v3369, %v3621
        %v3668 = vadd.f32 %v3370, %v3623
        %v3669 = vadd.f32 %v3371, %v3626
        %v3670 = vadd.f32 %v3372, %v3628
        %v3671 = vadd.f32 %v3373, %v3631
        %v3672 = vadd.f32 %v3374, %v3633
        %v3673 = vadd.f32 %v3375, %v3636
        %v3674 = vadd.f32 %v3376, %v3638
        %v3675 = vadd.f32 %v3377, %v3641
        %v3676 = vadd.f32 %v3378, %v3643
        %v3677 = vld [vmem:[#allocation2 + $0x20] sm:$0xff]
        %v3678 = vld [vmem:[#allocation2 + $0x28] sm:$0xff]
        %v3679 = vld [vmem:[#allocation2 + $0x30] sm:$0xff]
        %v3680 = vld [vmem:[#allocation2 + $0x38] sm:$0xff]
        %v3681 = vld [vmem:[#allocation2 + $0x40] sm:$0xff]
        %v3682 = vld [vmem:[#allocation2 + $0x48] sm:$0xff]
        %v3683 = vld [vmem:[#allocation2 + $0x50] sm:$0xff]
        %v3684 = vld [vmem:[#allocation2 + $0x58] sm:$0xff]
        %v3685 = vld [vmem:[#allocation2 + $0x60] sm:$0xff]
        %v3686 = vld [vmem:[#allocation2 + $0x68] sm:$0xff]
        %v3687 = vld [vmem:[#allocation2 + $0x70] sm:$0xff]
        %v3688 = vld [vmem:[#allocation2 + $0x78] sm:$0xff]
        %v3689 = vld [vmem:[#allocation2 + $0x80] sm:$0xff]
        %v3690 = vld [vmem:[#allocation2 + $0x88] sm:$0xff]
        %v3691 = vld [vmem:[#allocation2 + $0x90] sm:$0xff]
        %v3692 = vld [vmem:[#allocation2 + $0x98] sm:$0xff]
        %v3693 = vld [vmem:[#allocation2 + $0xa0] sm:$0xff]
        %v3694 = vld [vmem:[#allocation2 + $0xa8] sm:$0xff]
        %v3695 = vld [vmem:[#allocation2 + $0xb0] sm:$0xff]
        %v3696 = vld [vmem:[#allocation2 + $0xb8] sm:$0xff]
        %v3697 = vld [vmem:[#allocation2 + $0xc0] sm:$0xff]
        %v3698 = vld [vmem:[#allocation2 + $0xc8] sm:$0xff]
        %v3699 = vld [vmem:[#allocation2 + $0xd0] sm:$0xff]
        %v3700 = vld [vmem:[#allocation2 + $0xd8] sm:$0xff]
        %v3701 = vld [vmem:[#allocation2 + $0xe0] sm:$0xff]
        %v3702 = vld [vmem:[#allocation2 + $0xe8] sm:$0xff]
        %v3703 = vld [vmem:[#allocation2 + $0xf0] sm:$0xff]
        %v3704 = vld [vmem:[#allocation2 + $0xf8] sm:$0xff]
        %v3705 = vld [vmem:[#allocation2 + $0x100] sm:$0xff]
        %v3706 = vld [vmem:[#allocation2 + $0x108] sm:$0xff]
        %v3707 = vld [vmem:[#allocation2 + $0x110] sm:$0xff]
        %v3708 = vld [vmem:[#allocation2 + $0x118] sm:$0xff]
        %v3709 = vrot.slane %v3677, 7
        %v3710 = vrot.slane %v3678, 7
        %v3711 = vrot.slane %v3679, 7
        %v3712 = vrot.slane %v3680, 7
        %v3713 = vrot.slane %v3681, 7
        %v3714 = vrot.slane %v3682, 7
        %v3715 = vrot.slane %v3683, 7
        %v3716 = vrot.slane %v3684, 7
        %v3717 = vrot.slane %v3685, 7
        %v3718 = vrot.slane %v3686, 7
        %v3719 = vrot.slane %v3687, 7
        %v3720 = vrot.slane %v3688, 7
        %v3721 = vrot.slane %v3689, 7
        %v3722 = vrot.slane %v3690, 7
        %v3723 = vrot.slane %v3691, 7
        %v3724 = vrot.slane %v3692, 7
        %v3725 = vrot.slane %v3693, 7
        %v3726 = vrot.slane %v3694, 7
        %v3727 = vrot.slane %v3695, 7
        %v3728 = vrot.slane %v3696, 7
        %v3729 = vrot.slane %v3697, 7
        %v3730 = vrot.slane %v3698, 7
        %v3731 = vrot.slane %v3699, 7
        %v3732 = vrot.slane %v3700, 7
        %v3733 = vrot.slane %v3701, 7
        %v3734 = vrot.slane %v3702, 7
        %v3735 = vrot.slane %v3703, 7
        %v3736 = vrot.slane %v3704, 7
        %v3737 = vrot.slane %v3705, 7
        %v3738 = vrot.slane %v3706, 7
        %v3739 = vrot.slane %v3707, 7
        %v3740 = vrot.slane %v3708, 7
        %v3741 = vsel %vm2144, %v3739, %v3740
        %v3742 = vsel %vm2144, %v3738, %v3739
        %v3743 = vsel %vm2144, %v3737, %v3738
        %v3744 = vsel %vm2144, %v3736, %v3737
        %v3745 = vsel %vm2144, %v3735, %v3736
        %v3746 = vsel %vm2144, %v3734, %v3735
        %v3747 = vsel %vm2144, %v3733, %v3734
        %v3748 = vsel %vm2144, %v3732, %v3733
        %v3749 = vsel %vm2144, %v3731, %v3732
        %v3750 = vsel %vm2144, %v3730, %v3731
        %v3751 = vsel %vm2144, %v3729, %v3730
        %v3752 = vsel %vm2144, %v3728, %v3729
        %v3753 = vsel %vm2144, %v3727, %v3728
        %v3754 = vsel %vm2144, %v3726, %v3727
        %v3755 = vsel %vm2144, %v3725, %v3726
        %v3756 = vsel %vm2144, %v3724, %v3725
        %v3757 = vsel %vm2144, %v3723, %v3724
        %v3758 = vsel %vm2144, %v3722, %v3723
        %v3759 = vsel %vm2144, %v3721, %v3722
        %v3760 = vsel %vm2144, %v3720, %v3721
        %v3761 = vsel %vm2144, %v3719, %v3720
        %v3762 = vsel %vm2144, %v3718, %v3719
        %v3763 = vsel %vm2144, %v3717, %v3718
        %v3764 = vsel %vm2144, %v3716, %v3717
        %v3765 = vsel %vm2144, %v3715, %v3716
        %v3766 = vsel %vm2144, %v3714, %v3715
        %v3767 = vsel %vm2144, %v3713, %v3714
        %v3768 = vsel %vm2144, %v3712, %v3713
        %v3769 = vsel %vm2144, %v3711, %v3712
        %v3770 = vsel %vm2144, %v3710, %v3711
        %v3771 = vsel %vm2144, %v3709, %v3710
        %v3772 = vsel %vm2144, %v3740, %v3709
        %v3773 = vmul.f32 %v3772, %v911
        %v3774 = vmul.f32 %v3771, %v912
        %v3775 = vmul.f32 %v3770, %v913
        %v3776 = vmul.f32 %v3769, %v914
        %v3777 = vmul.f32 %v3768, %v915
        %v3778 = vmul.f32 %v3767, %v916
        %v3779 = vmul.f32 %v3766, %v917
        %v3780 = vmul.f32 %v3765, %v918
        %v3781 = vmul.f32 %v3764, %v919
        %v3782 = vmul.f32 %v3763, %v920
        %v3783 = vmul.f32 %v3762, %v921
        %v3784 = vmul.f32 %v3761, %v922
        %v3785 = vmul.f32 %v3760, %v923
        %v3786 = vmul.f32 %v3759, %v924
        %v3787 = vmul.f32 %v3758, %v925
        %v3788 = vmul.f32 %v3757, %v926
        %v3789 = vmul.f32 %v3756, %v927
        %v3790 = vmul.f32 %v3755, %v928
        %v3791 = vmul.f32 %v3754, %v929
        %v3792 = vmul.f32 %v3753, %v930
        %v3793 = vmul.f32 %v3752, %v931
        %v3794 = vmul.f32 %v3751, %v932
        %v3795 = vmul.f32 %v3750, %v933
        %v3796 = vmul.f32 %v3749, %v934
        %v3797 = vmul.f32 %v3748, %v935
        %v3798 = vmul.f32 %v3747, %v936
        %v3799 = vmul.f32 %v3746, %v937
        %v3800 = vmul.f32 %v3745, %v938
        %v3801 = vmul.f32 %v3744, %v939
        %v3802 = vmul.f32 %v3743, %v940
        %v3803 = vmul.f32 %v3742, %v941
        %v3804 = vmul.f32 %v3741, %v942
        %v3805 = vpack.c.bf16 %v3774, %v3773
        %v3806 = vpack.c.bf16 %v3776, %v3775
        %v3807 = vpack.c.bf16 %v3778, %v3777
        %v3808 = vpack.c.bf16 %v3780, %v3779
        %v3809 = vpack.c.bf16 %v3782, %v3781
        %v3810 = vpack.c.bf16 %v3784, %v3783
        %v3811 = vpack.c.bf16 %v3786, %v3785
        %v3812 = vpack.c.bf16 %v3788, %v3787
        %v3813 = vpack.c.bf16 %v3790, %v3789
        %v3814 = vpack.c.bf16 %v3792, %v3791
        %v3815 = vpack.c.bf16 %v3794, %v3793
        %v3816 = vpack.c.bf16 %v3796, %v3795
        %v3817 = vpack.c.bf16 %v3798, %v3797
        %v3818 = vpack.c.bf16 %v3800, %v3799
        %v3819 = vpack.c.bf16 %v3802, %v3801
        %v3820 = vpack.c.bf16 %v3804, %v3803
        %s3821 = scalar_lea.vmem %s6, 384
        %v3822 = vld [vmem:[%s3821] sm:$0xf]
        %v3823 = vld [vmem:[%s3821 + $0x4] sm:$0xf]
        %v3824 = vld [vmem:[%s3821 + $0x8] sm:$0xf]
        %v3825 = vld [vmem:[%s3821 + $0xc] sm:$0xf]
        %v3826 = vld [vmem:[%s3821 + $0x10] sm:$0xf]
        %v3827 = vld [vmem:[%s3821 + $0x14] sm:$0xf]
        %v3828 = vld [vmem:[%s3821 + $0x18] sm:$0xf]
        %v3829 = vld [vmem:[%s3821 + $0x1c] sm:$0xf]
        %v3830 = vld [vmem:[%s3821 + $0x20] sm:$0xf]
        %v3831 = vld [vmem:[%s3821 + $0x24] sm:$0xf]
        %v3832 = vld [vmem:[%s3821 + $0x28] sm:$0xf]
        %v3833 = vld [vmem:[%s3821 + $0x2c] sm:$0xf]
        %v3834 = vld [vmem:[%s3821 + $0x30] sm:$0xf]
        %v3835 = vld [vmem:[%s3821 + $0x34] sm:$0xf]
        %v3836 = vld [vmem:[%s3821 + $0x38] sm:$0xf]
        %v3837 = vld [vmem:[%s3821 + $0x3c] sm:$0xf]
        %v3854 = vunpack.c.l.b16 %v3822
        %v3855 = vunpack.c.l.b16 %v3823
        %v3856 = vunpack.c.l.b16 %v3824
        %v3857 = vunpack.c.l.b16 %v3825
        %v3858 = vunpack.c.l.b16 %v3826
        %v3859 = vunpack.c.l.b16 %v3827
        %v3860 = vunpack.c.l.b16 %v3828
        %v3861 = vunpack.c.l.b16 %v3829
        %v3862 = vunpack.c.l.b16 %v3830
        %v3863 = vunpack.c.l.b16 %v3831
        %v3864 = vunpack.c.l.b16 %v3832
        %v3865 = vunpack.c.l.b16 %v3833
        %v3866 = vunpack.c.l.b16 %v3834
        %v3867 = vunpack.c.l.b16 %v3835
        %v3868 = vunpack.c.l.b16 %v3836
        %v3869 = vunpack.c.l.b16 %v3837
        %v3870 = vpack.c.b16 %v3855, %v3854
        %v3871 = vpack.c.b16 %v3857, %v3856
        %v3872 = vpack.c.b16 %v3859, %v3858
        %v3873 = vpack.c.b16 %v3861, %v3860
        %v3874 = vpack.c.b16 %v3863, %v3862
        %v3875 = vpack.c.b16 %v3865, %v3864
        %v3876 = vpack.c.b16 %v3867, %v3866
        %v3877 = vpack.c.b16 %v3869, %v3868
        %3886 = vmatpush.bf16.msra.mxu0 %v3877
        %3887 = vmatpush.bf16.msra.mxu0 %v3876
        %3888 = vmatpush.bf16.msra.mxu0 %v3875
        %3889 = vmatpush.bf16.msra.mxu0 %v3874
        %3890 = vmatpush.bf16.msra.mxu0 %v3873
        %3891 = vmatpush.bf16.msra.mxu0 %v3872
        %3892 = vmatpush.bf16.msra.mxu0 %v3871
        %3893 = vmatpush.bf16.msra.mxu0 %v3870
        %3894 = vmatmul.bf16.gmra.mxu0 %v3805
        %v3895 = vpop.f32.mrf.mxu0
        %v3896 = vadd.f32 0.0, %v3895
        %v3897 = vpop.f32.mrf.mxu0
        %v3898 = vadd.f32 0.0, %v3897
        %3899 = vmatmul.bf16.gmra.mxu0 %v3806
        %v3900 = vpop.f32.mrf.mxu0
        %v3901 = vadd.f32 0.0, %v3900
        %v3902 = vpop.f32.mrf.mxu0
        %v3903 = vadd.f32 0.0, %v3902
        %3904 = vmatmul.bf16.gmra.mxu0 %v3807
        %v3905 = vpop.f32.mrf.mxu0
        %v3906 = vadd.f32 0.0, %v3905
        %v3907 = vpop.f32.mrf.mxu0
        %v3908 = vadd.f32 0.0, %v3907
        %3909 = vmatmul.bf16.gmra.mxu0 %v3808
        %v3910 = vpop.f32.mrf.mxu0
        %v3911 = vadd.f32 0.0, %v3910
        %v3912 = vpop.f32.mrf.mxu0
        %v3913 = vadd.f32 0.0, %v3912
        %3914 = vmatmul.bf16.gmra.mxu0 %v3809
        %v3915 = vpop.f32.mrf.mxu0
        %v3916 = vadd.f32 0.0, %v3915
        %v3917 = vpop.f32.mrf.mxu0
        %v3918 = vadd.f32 0.0, %v3917
        %3919 = vmatmul.bf16.gmra.mxu0 %v3810
        %v3920 = vpop.f32.mrf.mxu0
        %v3921 = vadd.f32 0.0, %v3920
        %v3922 = vpop.f32.mrf.mxu0
        %v3923 = vadd.f32 0.0, %v3922
        %3924 = vmatmul.bf16.gmra.mxu0 %v3811
        %v3925 = vpop.f32.mrf.mxu0
        %v3926 = vadd.f32 0.0, %v3925
        %v3927 = vpop.f32.mrf.mxu0
        %v3928 = vadd.f32 0.0, %v3927
        %3929 = vmatmul.bf16.gmra.mxu0 %v3812
        %v3930 = vpop.f32.mrf.mxu0
        %v3931 = vadd.f32 0.0, %v3930
        %v3932 = vpop.f32.mrf.mxu0
        %v3933 = vadd.f32 0.0, %v3932
        %3934 = vmatmul.bf16.gmra.mxu0 %v3813
        %v3935 = vpop.f32.mrf.mxu0
        %v3936 = vadd.f32 0.0, %v3935
        %v3937 = vpop.f32.mrf.mxu0
        %v3938 = vadd.f32 0.0, %v3937
        %3939 = vmatmul.bf16.gmra.mxu0 %v3814
        %v3940 = vpop.f32.mrf.mxu0
        %v3941 = vadd.f32 0.0, %v3940
        %v3942 = vpop.f32.mrf.mxu0
        %v3943 = vadd.f32 0.0, %v3942
        %3944 = vmatmul.bf16.gmra.mxu0 %v3815
        %v3945 = vpop.f32.mrf.mxu0
        %v3946 = vadd.f32 0.0, %v3945
        %v3947 = vpop.f32.mrf.mxu0
        %v3948 = vadd.f32 0.0, %v3947
        %3949 = vmatmul.bf16.gmra.mxu0 %v3816
        %v3950 = vpop.f32.mrf.mxu0
        %v3951 = vadd.f32 0.0, %v3950
        %v3952 = vpop.f32.mrf.mxu0
        %v3953 = vadd.f32 0.0, %v3952
        %3954 = vmatmul.bf16.gmra.mxu0 %v3817
        %v3955 = vpop.f32.mrf.mxu0
        %v3956 = vadd.f32 0.0, %v3955
        %v3957 = vpop.f32.mrf.mxu0
        %v3958 = vadd.f32 0.0, %v3957
        %3959 = vmatmul.bf16.gmra.mxu0 %v3818
        %v3960 = vpop.f32.mrf.mxu0
        %v3961 = vadd.f32 0.0, %v3960
        %v3962 = vpop.f32.mrf.mxu0
        %v3963 = vadd.f32 0.0, %v3962
        %3964 = vmatmul.bf16.gmra.mxu0 %v3819
        %v3965 = vpop.f32.mrf.mxu0
        %v3966 = vadd.f32 0.0, %v3965
        %v3967 = vpop.f32.mrf.mxu0
        %v3968 = vadd.f32 0.0, %v3967
        %3969 = vmatmul.bf16.gmra.mxu0 %v3820
        %v3970 = vpop.f32.mrf.mxu0
        %v3971 = vadd.f32 0.0, %v3970
        %v3972 = vpop.f32.mrf.mxu0
        %v3973 = vadd.f32 0.0, %v3972
        %3974 = vdwg.mxu0
        %v3975 = vadd.f32 %v3645, %v3896
        %v3976 = vadd.f32 %v3646, %v3898
        %v3977 = vadd.f32 %v3647, %v3901
        %v3978 = vadd.f32 %v3648, %v3903
        %v3979 = vadd.f32 %v3649, %v3906
        %v3980 = vadd.f32 %v3650, %v3908
        %v3981 = vadd.f32 %v3651, %v3911
        %v3982 = vadd.f32 %v3652, %v3913
        %v3983 = vadd.f32 %v3653, %v3916
        %v3984 = vadd.f32 %v3654, %v3918
        %v3985 = vadd.f32 %v3655, %v3921
        %v3986 = vadd.f32 %v3656, %v3923
        %v3987 = vadd.f32 %v3657, %v3926
        %v3988 = vadd.f32 %v3658, %v3928
        %v3989 = vadd.f32 %v3659, %v3931
        %v3990 = vadd.f32 %v3660, %v3933
        %v3991 = vadd.f32 %v3661, %v3936
        %v3992 = vadd.f32 %v3662, %v3938
        %v3993 = vadd.f32 %v3663, %v3941
        %v3994 = vadd.f32 %v3664, %v3943
        %v3995 = vadd.f32 %v3665, %v3946
        %v3996 = vadd.f32 %v3666, %v3948
        %v3997 = vadd.f32 %v3667, %v3951
        %v3998 = vadd.f32 %v3668, %v3953
        %v3999 = vadd.f32 %v3669, %v3956
        %v4000 = vadd.f32 %v3670, %v3958
        %v4001 = vadd.f32 %v3671, %v3961
        %v4002 = vadd.f32 %v3672, %v3963
        %v4003 = vadd.f32 %v3673, %v3966
        %v4004 = vadd.f32 %v3674, %v3968
        %v4005 = vadd.f32 %v3675, %v3971
        %v4006 = vadd.f32 %v3676, %v3973
        %v4007 = vpack.c.bf16 %v3678, %v3677
        %v4008 = vpack.c.bf16 %v3680, %v3679
        %v4009 = vpack.c.bf16 %v3682, %v3681
        %v4010 = vpack.c.bf16 %v3684, %v3683
        %v4011 = vpack.c.bf16 %v3686, %v3685
        %v4012 = vpack.c.bf16 %v3688, %v3687
        %v4013 = vpack.c.bf16 %v3690, %v3689
        %v4014 = vpack.c.bf16 %v3692, %v3691
        %v4015 = vpack.c.bf16 %v3694, %v3693
        %v4016 = vpack.c.bf16 %v3696, %v3695
        %v4017 = vpack.c.bf16 %v3698, %v3697
        %v4018 = vpack.c.bf16 %v3700, %v3699
        %v4019 = vpack.c.bf16 %v3702, %v3701
        %v4020 = vpack.c.bf16 %v3704, %v3703
        %v4021 = vpack.c.bf16 %v3706, %v3705
        %v4022 = vpack.c.bf16 %v3708, %v3707
        %s4023 = scalar_lea.vmem %s6, 448
        %v4024 = vld [vmem:[%s4023] sm:$0xf]
        %v4025 = vld [vmem:[%s4023 + $0x4] sm:$0xf]
        %v4026 = vld [vmem:[%s4023 + $0x8] sm:$0xf]
        %v4027 = vld [vmem:[%s4023 + $0xc] sm:$0xf]
        %v4028 = vld [vmem:[%s4023 + $0x10] sm:$0xf]
        %v4029 = vld [vmem:[%s4023 + $0x14] sm:$0xf]
        %v4030 = vld [vmem:[%s4023 + $0x18] sm:$0xf]
        %v4031 = vld [vmem:[%s4023 + $0x1c] sm:$0xf]
        %v4032 = vld [vmem:[%s4023 + $0x20] sm:$0xf]
        %v4033 = vld [vmem:[%s4023 + $0x24] sm:$0xf]
        %v4034 = vld [vmem:[%s4023 + $0x28] sm:$0xf]
        %v4035 = vld [vmem:[%s4023 + $0x2c] sm:$0xf]
        %v4036 = vld [vmem:[%s4023 + $0x30] sm:$0xf]
        %v4037 = vld [vmem:[%s4023 + $0x34] sm:$0xf]
        %v4038 = vld [vmem:[%s4023 + $0x38] sm:$0xf]
        %v4039 = vld [vmem:[%s4023 + $0x3c] sm:$0xf]
        %v4056 = vunpack.c.l.b16 %v4024
        %v4057 = vunpack.c.l.b16 %v4025
        %v4058 = vunpack.c.l.b16 %v4026
        %v4059 = vunpack.c.l.b16 %v4027
        %v4060 = vunpack.c.l.b16 %v4028
        %v4061 = vunpack.c.l.b16 %v4029
        %v4062 = vunpack.c.l.b16 %v4030
        %v4063 = vunpack.c.l.b16 %v4031
        %v4064 = vunpack.c.l.b16 %v4032
        %v4065 = vunpack.c.l.b16 %v4033
        %v4066 = vunpack.c.l.b16 %v4034
        %v4067 = vunpack.c.l.b16 %v4035
        %v4068 = vunpack.c.l.b16 %v4036
        %v4069 = vunpack.c.l.b16 %v4037
        %v4070 = vunpack.c.l.b16 %v4038
        %v4071 = vunpack.c.l.b16 %v4039
        %v4072 = vpack.c.b16 %v4057, %v4056
        %v4073 = vpack.c.b16 %v4059, %v4058
        %v4074 = vpack.c.b16 %v4061, %v4060
        %v4075 = vpack.c.b16 %v4063, %v4062
        %v4076 = vpack.c.b16 %v4065, %v4064
        %v4077 = vpack.c.b16 %v4067, %v4066
        %v4078 = vpack.c.b16 %v4069, %v4068
        %v4079 = vpack.c.b16 %v4071, %v4070
        %4088 = vmatpush.bf16.msra.mxu0 %v4079
        %4089 = vmatpush.bf16.msra.mxu0 %v4078
        %4090 = vmatpush.bf16.msra.mxu0 %v4077
        %4091 = vmatpush.bf16.msra.mxu0 %v4076
        %4092 = vmatpush.bf16.msra.mxu0 %v4075
        %4093 = vmatpush.bf16.msra.mxu0 %v4074
        %4094 = vmatpush.bf16.msra.mxu0 %v4073
        %4095 = vmatpush.bf16.msra.mxu0 %v4072
        %4096 = vmatmul.bf16.gmra.mxu0 %v4007
        %v4097 = vpop.f32.mrf.mxu0
        %v4098 = vadd.f32 0.0, %v4097
        %v4099 = vpop.f32.mrf.mxu0
        %v4100 = vadd.f32 0.0, %v4099
        %4101 = vmatmul.bf16.gmra.mxu0 %v4008
        %v4102 = vpop.f32.mrf.mxu0
        %v4103 = vadd.f32 0.0, %v4102
        %v4104 = vpop.f32.mrf.mxu0
        %v4105 = vadd.f32 0.0, %v4104
        %4106 = vmatmul.bf16.gmra.mxu0 %v4009
        %v4107 = vpop.f32.mrf.mxu0
        %v4108 = vadd.f32 0.0, %v4107
        %v4109 = vpop.f32.mrf.mxu0
        %v4110 = vadd.f32 0.0, %v4109
        %4111 = vmatmul.bf16.gmra.mxu0 %v4010
        %v4112 = vpop.f32.mrf.mxu0
        %v4113 = vadd.f32 0.0, %v4112
        %v4114 = vpop.f32.mrf.mxu0
        %v4115 = vadd.f32 0.0, %v4114
        %4116 = vmatmul.bf16.gmra.mxu0 %v4011
        %v4117 = vpop.f32.mrf.mxu0
        %v4118 = vadd.f32 0.0, %v4117
        %v4119 = vpop.f32.mrf.mxu0
        %v4120 = vadd.f32 0.0, %v4119
        %4121 = vmatmul.bf16.gmra.mxu0 %v4012
        %v4122 = vpop.f32.mrf.mxu0
        %v4123 = vadd.f32 0.0, %v4122
        %v4124 = vpop.f32.mrf.mxu0
        %v4125 = vadd.f32 0.0, %v4124
        %4126 = vmatmul.bf16.gmra.mxu0 %v4013
        %v4127 = vpop.f32.mrf.mxu0
        %v4128 = vadd.f32 0.0, %v4127
        %v4129 = vpop.f32.mrf.mxu0
        %v4130 = vadd.f32 0.0, %v4129
        %4131 = vmatmul.bf16.gmra.mxu0 %v4014
        %v4132 = vpop.f32.mrf.mxu0
        %v4133 = vadd.f32 0.0, %v4132
        %v4134 = vpop.f32.mrf.mxu0
        %v4135 = vadd.f32 0.0, %v4134
        %4136 = vmatmul.bf16.gmra.mxu0 %v4015
        %v4137 = vpop.f32.mrf.mxu0
        %v4138 = vadd.f32 0.0, %v4137
        %v4139 = vpop.f32.mrf.mxu0
        %v4140 = vadd.f32 0.0, %v4139
        %4141 = vmatmul.bf16.gmra.mxu0 %v4016
        %v4142 = vpop.f32.mrf.mxu0
        %v4143 = vadd.f32 0.0, %v4142
        %v4144 = vpop.f32.mrf.mxu0
        %v4145 = vadd.f32 0.0, %v4144
        %4146 = vmatmul.bf16.gmra.mxu0 %v4017
        %v4147 = vpop.f32.mrf.mxu0
        %v4148 = vadd.f32 0.0, %v4147
        %v4149 = vpop.f32.mrf.mxu0
        %v4150 = vadd.f32 0.0, %v4149
        %4151 = vmatmul.bf16.gmra.mxu0 %v4018
        %v4152 = vpop.f32.mrf.mxu0
        %v4153 = vadd.f32 0.0, %v4152
        %v4154 = vpop.f32.mrf.mxu0
        %v4155 = vadd.f32 0.0, %v4154
        %4156 = vmatmul.bf16.gmra.mxu0 %v4019
        %v4157 = vpop.f32.mrf.mxu0
        %v4158 = vadd.f32 0.0, %v4157
        %v4159 = vpop.f32.mrf.mxu0
        %v4160 = vadd.f32 0.0, %v4159
        %4161 = vmatmul.bf16.gmra.mxu0 %v4020
        %v4162 = vpop.f32.mrf.mxu0
        %v4163 = vadd.f32 0.0, %v4162
        %v4164 = vpop.f32.mrf.mxu0
        %v4165 = vadd.f32 0.0, %v4164
        %4166 = vmatmul.bf16.gmra.mxu0 %v4021
        %v4167 = vpop.f32.mrf.mxu0
        %v4168 = vadd.f32 0.0, %v4167
        %v4169 = vpop.f32.mrf.mxu0
        %v4170 = vadd.f32 0.0, %v4169
        %4171 = vmatmul.bf16.gmra.mxu0 %v4022
        %v4172 = vpop.f32.mrf.mxu0
        %v4173 = vadd.f32 0.0, %v4172
        %v4174 = vpop.f32.mrf.mxu0
        %v4175 = vadd.f32 0.0, %v4174
        %4176 = vdwg.mxu0
        %v4177 = vadd.f32 %v3975, %v4098
        %v4178 = vadd.f32 %v3976, %v4100
        %v4179 = vadd.f32 %v3977, %v4103
        %v4180 = vadd.f32 %v3978, %v4105
        %v4181 = vadd.f32 %v3979, %v4108
        %v4182 = vadd.f32 %v3980, %v4110
        %v4183 = vadd.f32 %v3981, %v4113
        %v4184 = vadd.f32 %v3982, %v4115
        %v4185 = vadd.f32 %v3983, %v4118
        %v4186 = vadd.f32 %v3984, %v4120
        %v4187 = vadd.f32 %v3985, %v4123
        %v4188 = vadd.f32 %v3986, %v4125
        %v4189 = vadd.f32 %v3987, %v4128
        %v4190 = vadd.f32 %v3988, %v4130
        %v4191 = vadd.f32 %v3989, %v4133
        %v4192 = vadd.f32 %v3990, %v4135
        %v4193 = vadd.f32 %v3991, %v4138
        %v4194 = vadd.f32 %v3992, %v4140
        %v4195 = vadd.f32 %v3993, %v4143
        %v4196 = vadd.f32 %v3994, %v4145
        %v4197 = vadd.f32 %v3995, %v4148
        %v4198 = vadd.f32 %v3996, %v4150
        %v4199 = vadd.f32 %v3997, %v4153
        %v4200 = vadd.f32 %v3998, %v4155
        %v4201 = vadd.f32 %v3999, %v4158
        %v4202 = vadd.f32 %v4000, %v4160
        %v4203 = vadd.f32 %v4001, %v4163
        %v4204 = vadd.f32 %v4002, %v4165
        %v4205 = vadd.f32 %v4003, %v4168
        %v4206 = vadd.f32 %v4004, %v4170
        %v4207 = vadd.f32 %v4005, %v4173
        %v4208 = vadd.f32 %v4006, %v4175
        %v4209 = vrot.slane %v3677, 1
        %v4210 = vrot.slane %v3678, 1
        %v4211 = vrot.slane %v3679, 1
        %v4212 = vrot.slane %v3680, 1
        %v4213 = vrot.slane %v3681, 1
        %v4214 = vrot.slane %v3682, 1
        %v4215 = vrot.slane %v3683, 1
        %v4216 = vrot.slane %v3684, 1
        %v4217 = vrot.slane %v3685, 1
        %v4218 = vrot.slane %v3686, 1
        %v4219 = vrot.slane %v3687, 1
        %v4220 = vrot.slane %v3688, 1
        %v4221 = vrot.slane %v3689, 1
        %v4222 = vrot.slane %v3690, 1
        %v4223 = vrot.slane %v3691, 1
        %v4224 = vrot.slane %v3692, 1
        %v4225 = vrot.slane %v3693, 1
        %v4226 = vrot.slane %v3694, 1
        %v4227 = vrot.slane %v3695, 1
        %v4228 = vrot.slane %v3696, 1
        %v4229 = vrot.slane %v3697, 1
        %v4230 = vrot.slane %v3698, 1
        %v4231 = vrot.slane %v3699, 1
        %v4232 = vrot.slane %v3700, 1
        %v4233 = vrot.slane %v3701, 1
        %v4234 = vrot.slane %v3702, 1
        %v4235 = vrot.slane %v3703, 1
        %v4236 = vrot.slane %v3704, 1
        %v4237 = vrot.slane %v3705, 1
        %v4238 = vrot.slane %v3706, 1
        %v4239 = vrot.slane %v3707, 1
        %v4240 = vrot.slane %v3708, 1
        %v4241 = vsel %vm2580, %v4239, %v4240
        %v4242 = vsel %vm2580, %v4238, %v4239
        %v4243 = vsel %vm2580, %v4237, %v4238
        %v4244 = vsel %vm2580, %v4236, %v4237
        %v4245 = vsel %vm2580, %v4235, %v4236
        %v4246 = vsel %vm2580, %v4234, %v4235
        %v4247 = vsel %vm2580, %v4233, %v4234
        %v4248 = vsel %vm2580, %v4232, %v4233
        %v4249 = vsel %vm2580, %v4231, %v4232
        %v4250 = vsel %vm2580, %v4230, %v4231
        %v4251 = vsel %vm2580, %v4229, %v4230
        %v4252 = vsel %vm2580, %v4228, %v4229
        %v4253 = vsel %vm2580, %v4227, %v4228
        %v4254 = vsel %vm2580, %v4226, %v4227
        %v4255 = vsel %vm2580, %v4225, %v4226
        %v4256 = vsel %vm2580, %v4224, %v4225
        %v4257 = vsel %vm2580, %v4223, %v4224
        %v4258 = vsel %vm2580, %v4222, %v4223
        %v4259 = vsel %vm2580, %v4221, %v4222
        %v4260 = vsel %vm2580, %v4220, %v4221
        %v4261 = vsel %vm2580, %v4219, %v4220
        %v4262 = vsel %vm2580, %v4218, %v4219
        %v4263 = vsel %vm2580, %v4217, %v4218
        %v4264 = vsel %vm2580, %v4216, %v4217
        %v4265 = vsel %vm2580, %v4215, %v4216
        %v4266 = vsel %vm2580, %v4214, %v4215
        %v4267 = vsel %vm2580, %v4213, %v4214
        %v4268 = vsel %vm2580, %v4212, %v4213
        %v4269 = vsel %vm2580, %v4211, %v4212
        %v4270 = vsel %vm2580, %v4210, %v4211
        %v4271 = vsel %vm2580, %v4209, %v4210
        %v4272 = vsel %vm2580, %v4240, %v4209
        %v4273 = vmul.f32 %v4271, %v1007
        %v4274 = vmul.f32 %v4270, %v1008
        %v4275 = vmul.f32 %v4269, %v1009
        %v4276 = vmul.f32 %v4268, %v1010
        %v4277 = vmul.f32 %v4267, %v1011
        %v4278 = vmul.f32 %v4266, %v1012
        %v4279 = vmul.f32 %v4265, %v1013
        %v4280 = vmul.f32 %v4264, %v1014
        %v4281 = vmul.f32 %v4263, %v1015
        %v4282 = vmul.f32 %v4262, %v1016
        %v4283 = vmul.f32 %v4261, %v1017
        %v4284 = vmul.f32 %v4260, %v1018
        %v4285 = vmul.f32 %v4259, %v1019
        %v4286 = vmul.f32 %v4258, %v1020
        %v4287 = vmul.f32 %v4257, %v1021
        %v4288 = vmul.f32 %v4256, %v1022
        %v4289 = vmul.f32 %v4255, %v1023
        %v4290 = vmul.f32 %v4254, %v1024
        %v4291 = vmul.f32 %v4253, %v1025
        %v4292 = vmul.f32 %v4252, %v1026
        %v4293 = vmul.f32 %v4251, %v1027
        %v4294 = vmul.f32 %v4250, %v1028
        %v4295 = vmul.f32 %v4249, %v1029
        %v4296 = vmul.f32 %v4248, %v1030
        %v4297 = vmul.f32 %v4247, %v1031
        %v4298 = vmul.f32 %v4246, %v1032
        %v4299 = vmul.f32 %v4245, %v1033
        %v4300 = vmul.f32 %v4244, %v1034
        %v4301 = vmul.f32 %v4243, %v1035
        %v4302 = vmul.f32 %v4242, %v1036
        %v4303 = vmul.f32 %v4241, %v1037
        %v4304 = vmul.f32 %v4272, %v1038
        %v4305 = vpack.c.bf16 %v4274, %v4273
        %v4306 = vpack.c.bf16 %v4276, %v4275
        %v4307 = vpack.c.bf16 %v4278, %v4277
        %v4308 = vpack.c.bf16 %v4280, %v4279
        %v4309 = vpack.c.bf16 %v4282, %v4281
        %v4310 = vpack.c.bf16 %v4284, %v4283
        %v4311 = vpack.c.bf16 %v4286, %v4285
        %v4312 = vpack.c.bf16 %v4288, %v4287
        %v4313 = vpack.c.bf16 %v4290, %v4289
        %v4314 = vpack.c.bf16 %v4292, %v4291
        %v4315 = vpack.c.bf16 %v4294, %v4293
        %v4316 = vpack.c.bf16 %v4296, %v4295
        %v4317 = vpack.c.bf16 %v4298, %v4297
        %v4318 = vpack.c.bf16 %v4300, %v4299
        %v4319 = vpack.c.bf16 %v4302, %v4301
        %v4320 = vpack.c.bf16 %v4304, %v4303
        %s4321 = scalar_lea.vmem %s6, 512
        %v4322 = vld [vmem:[%s4321] sm:$0xf]
        %v4323 = vld [vmem:[%s4321 + $0x4] sm:$0xf]
        %v4324 = vld [vmem:[%s4321 + $0x8] sm:$0xf]
        %v4325 = vld [vmem:[%s4321 + $0xc] sm:$0xf]
        %v4326 = vld [vmem:[%s4321 + $0x10] sm:$0xf]
        %v4327 = vld [vmem:[%s4321 + $0x14] sm:$0xf]
        %v4328 = vld [vmem:[%s4321 + $0x18] sm:$0xf]
        %v4329 = vld [vmem:[%s4321 + $0x1c] sm:$0xf]
        %v4330 = vld [vmem:[%s4321 + $0x20] sm:$0xf]
        %v4331 = vld [vmem:[%s4321 + $0x24] sm:$0xf]
        %v4332 = vld [vmem:[%s4321 + $0x28] sm:$0xf]
        %v4333 = vld [vmem:[%s4321 + $0x2c] sm:$0xf]
        %v4334 = vld [vmem:[%s4321 + $0x30] sm:$0xf]
        %v4335 = vld [vmem:[%s4321 + $0x34] sm:$0xf]
        %v4336 = vld [vmem:[%s4321 + $0x38] sm:$0xf]
        %v4337 = vld [vmem:[%s4321 + $0x3c] sm:$0xf]
        %v4354 = vunpack.c.l.b16 %v4322
        %v4355 = vunpack.c.l.b16 %v4323
        %v4356 = vunpack.c.l.b16 %v4324
        %v4357 = vunpack.c.l.b16 %v4325
        %v4358 = vunpack.c.l.b16 %v4326
        %v4359 = vunpack.c.l.b16 %v4327
        %v4360 = vunpack.c.l.b16 %v4328
        %v4361 = vunpack.c.l.b16 %v4329
        %v4362 = vunpack.c.l.b16 %v4330
        %v4363 = vunpack.c.l.b16 %v4331
        %v4364 = vunpack.c.l.b16 %v4332
        %v4365 = vunpack.c.l.b16 %v4333
        %v4366 = vunpack.c.l.b16 %v4334
        %v4367 = vunpack.c.l.b16 %v4335
        %v4368 = vunpack.c.l.b16 %v4336
        %v4369 = vunpack.c.l.b16 %v4337
        %v4370 = vpack.c.b16 %v4355, %v4354
        %v4371 = vpack.c.b16 %v4357, %v4356
        %v4372 = vpack.c.b16 %v4359, %v4358
        %v4373 = vpack.c.b16 %v4361, %v4360
        %v4374 = vpack.c.b16 %v4363, %v4362
        %v4375 = vpack.c.b16 %v4365, %v4364
        %v4376 = vpack.c.b16 %v4367, %v4366
        %v4377 = vpack.c.b16 %v4369, %v4368
        %4386 = vmatpush.bf16.msra.mxu0 %v4377
        %4387 = vmatpush.bf16.msra.mxu0 %v4376
        %4388 = vmatpush.bf16.msra.mxu0 %v4375
        %4389 = vmatpush.bf16.msra.mxu0 %v4374
        %4390 = vmatpush.bf16.msra.mxu0 %v4373
        %4391 = vmatpush.bf16.msra.mxu0 %v4372
        %4392 = vmatpush.bf16.msra.mxu0 %v4371
        %4393 = vmatpush.bf16.msra.mxu0 %v4370
        %4394 = vmatmul.bf16.gmra.mxu0 %v4305
        %v4395 = vpop.f32.mrf.mxu0
        %v4396 = vadd.f32 0.0, %v4395
        %v4397 = vpop.f32.mrf.mxu0
        %v4398 = vadd.f32 0.0, %v4397
        %4399 = vmatmul.bf16.gmra.mxu0 %v4306
        %v4400 = vpop.f32.mrf.mxu0
        %v4401 = vadd.f32 0.0, %v4400
        %v4402 = vpop.f32.mrf.mxu0
        %v4403 = vadd.f32 0.0, %v4402
        %4404 = vmatmul.bf16.gmra.mxu0 %v4307
        %v4405 = vpop.f32.mrf.mxu0
        %v4406 = vadd.f32 0.0, %v4405
        %v4407 = vpop.f32.mrf.mxu0
        %v4408 = vadd.f32 0.0, %v4407
        %4409 = vmatmul.bf16.gmra.mxu0 %v4308
        %v4410 = vpop.f32.mrf.mxu0
        %v4411 = vadd.f32 0.0, %v4410
        %v4412 = vpop.f32.mrf.mxu0
        %v4413 = vadd.f32 0.0, %v4412
        %4414 = vmatmul.bf16.gmra.mxu0 %v4309
        %v4415 = vpop.f32.mrf.mxu0
        %v4416 = vadd.f32 0.0, %v4415
        %v4417 = vpop.f32.mrf.mxu0
        %v4418 = vadd.f32 0.0, %v4417
        %4419 = vmatmul.bf16.gmra.mxu0 %v4310
        %v4420 = vpop.f32.mrf.mxu0
        %v4421 = vadd.f32 0.0, %v4420
        %v4422 = vpop.f32.mrf.mxu0
        %v4423 = vadd.f32 0.0, %v4422
        %4424 = vmatmul.bf16.gmra.mxu0 %v4311
        %v4425 = vpop.f32.mrf.mxu0
        %v4426 = vadd.f32 0.0, %v4425
        %v4427 = vpop.f32.mrf.mxu0
        %v4428 = vadd.f32 0.0, %v4427
        %4429 = vmatmul.bf16.gmra.mxu0 %v4312
        %v4430 = vpop.f32.mrf.mxu0
        %v4431 = vadd.f32 0.0, %v4430
        %v4432 = vpop.f32.mrf.mxu0
        %v4433 = vadd.f32 0.0, %v4432
        %4434 = vmatmul.bf16.gmra.mxu0 %v4313
        %v4435 = vpop.f32.mrf.mxu0
        %v4436 = vadd.f32 0.0, %v4435
        %v4437 = vpop.f32.mrf.mxu0
        %v4438 = vadd.f32 0.0, %v4437
        %4439 = vmatmul.bf16.gmra.mxu0 %v4314
        %v4440 = vpop.f32.mrf.mxu0
        %v4441 = vadd.f32 0.0, %v4440
        %v4442 = vpop.f32.mrf.mxu0
        %v4443 = vadd.f32 0.0, %v4442
        %4444 = vmatmul.bf16.gmra.mxu0 %v4315
        %v4445 = vpop.f32.mrf.mxu0
        %v4446 = vadd.f32 0.0, %v4445
        %v4447 = vpop.f32.mrf.mxu0
        %v4448 = vadd.f32 0.0, %v4447
        %4449 = vmatmul.bf16.gmra.mxu0 %v4316
        %v4450 = vpop.f32.mrf.mxu0
        %v4451 = vadd.f32 0.0, %v4450
        %v4452 = vpop.f32.mrf.mxu0
        %v4453 = vadd.f32 0.0, %v4452
        %4454 = vmatmul.bf16.gmra.mxu0 %v4317
        %v4455 = vpop.f32.mrf.mxu0
        %v4456 = vadd.f32 0.0, %v4455
        %v4457 = vpop.f32.mrf.mxu0
        %v4458 = vadd.f32 0.0, %v4457
        %4459 = vmatmul.bf16.gmra.mxu0 %v4318
        %v4460 = vpop.f32.mrf.mxu0
        %v4461 = vadd.f32 0.0, %v4460
        %v4462 = vpop.f32.mrf.mxu0
        %v4463 = vadd.f32 0.0, %v4462
        %4464 = vmatmul.bf16.gmra.mxu0 %v4319
        %v4465 = vpop.f32.mrf.mxu0
        %v4466 = vadd.f32 0.0, %v4465
        %v4467 = vpop.f32.mrf.mxu0
        %v4468 = vadd.f32 0.0, %v4467
        %4469 = vmatmul.bf16.gmra.mxu0 %v4320
        %v4470 = vpop.f32.mrf.mxu0
        %v4471 = vadd.f32 0.0, %v4470
        %v4472 = vpop.f32.mrf.mxu0
        %v4473 = vadd.f32 0.0, %v4472
        %4474 = vdwg.mxu0
        %v4475 = vadd.f32 %v4177, %v4396
        %v4476 = vadd.f32 %v4178, %v4398
        %v4477 = vadd.f32 %v4179, %v4401
        %v4478 = vadd.f32 %v4180, %v4403
        %v4479 = vadd.f32 %v4181, %v4406
        %v4480 = vadd.f32 %v4182, %v4408
        %v4481 = vadd.f32 %v4183, %v4411
        %v4482 = vadd.f32 %v4184, %v4413
        %v4483 = vadd.f32 %v4185, %v4416
        %v4484 = vadd.f32 %v4186, %v4418
        %v4485 = vadd.f32 %v4187, %v4421
        %v4486 = vadd.f32 %v4188, %v4423
        %v4487 = vadd.f32 %v4189, %v4426
        %v4488 = vadd.f32 %v4190, %v4428
        %v4489 = vadd.f32 %v4191, %v4431
        %v4490 = vadd.f32 %v4192, %v4433
        %v4491 = vadd.f32 %v4193, %v4436
        %v4492 = vadd.f32 %v4194, %v4438
        %v4493 = vadd.f32 %v4195, %v4441
        %v4494 = vadd.f32 %v4196, %v4443
        %v4495 = vadd.f32 %v4197, %v4446
        %v4496 = vadd.f32 %v4198, %v4448
        %v4497 = vadd.f32 %v4199, %v4451
        %v4498 = vadd.f32 %v4200, %v4453
        %v4499 = vadd.f32 %v4201, %v4456
        %v4500 = vadd.f32 %v4202, %v4458
        %v4501 = vadd.f32 %v4203, %v4461
        %v4502 = vadd.f32 %v4204, %v4463
        %v4503 = vadd.f32 %v4205, %v4466
        %v4504 = vadd.f32 %v4206, %v4468
        %v4505 = vadd.f32 %v4207, %v4471
        %v4506 = vadd.f32 %v4208, %v4473
        %v4508 = vperm.slane %v2047, 0
        %v4510 = vadd.f32 %v4475, %v4508
        %v4511 = vadd.f32 %v4476, %v4508
        %v4512 = vadd.f32 %v4477, %v4508
        %v4513 = vadd.f32 %v4478, %v4508
        %v4514 = vadd.f32 %v4479, %v4508
        %v4515 = vadd.f32 %v4480, %v4508
        %v4516 = vadd.f32 %v4481, %v4508
        %v4517 = vadd.f32 %v4482, %v4508
        %v4518 = vadd.f32 %v4483, %v4508
        %v4519 = vadd.f32 %v4484, %v4508
        %v4520 = vadd.f32 %v4485, %v4508
        %v4521 = vadd.f32 %v4486, %v4508
        %v4522 = vadd.f32 %v4487, %v4508
        %v4523 = vadd.f32 %v4488, %v4508
        %v4524 = vadd.f32 %v4489, %v4508
        %v4525 = vadd.f32 %v4490, %v4508
        %v4526 = vadd.f32 %v4491, %v4508
        %v4527 = vadd.f32 %v4492, %v4508
        %v4528 = vadd.f32 %v4493, %v4508
        %v4529 = vadd.f32 %v4494, %v4508
        %v4530 = vadd.f32 %v4495, %v4508
        %v4531 = vadd.f32 %v4496, %v4508
        %v4532 = vadd.f32 %v4497, %v4508
        %v4533 = vadd.f32 %v4498, %v4508
        %v4534 = vadd.f32 %v4499, %v4508
        %v4535 = vadd.f32 %v4500, %v4508
        %v4536 = vadd.f32 %v4501, %v4508
        %v4537 = vadd.f32 %v4502, %v4508
        %v4538 = vadd.f32 %v4503, %v4508
        %v4539 = vadd.f32 %v4504, %v4508
        %v4540 = vadd.f32 %v4505, %v4508
        %v4541 = vadd.f32 %v4506, %v4508
        %v4542 = vld [vmem:[%s425] sm:$0x1]
        %v4544 = vperm.slane %v4542, 0
        %v4546 = vadd.f32 %v4510, %v4544
        %v4547 = vadd.f32 %v4511, %v4544
        %v4548 = vadd.f32 %v4512, %v4544
        %v4549 = vadd.f32 %v4513, %v4544
        %v4550 = vadd.f32 %v4514, %v4544
        %v4551 = vadd.f32 %v4515, %v4544
        %v4552 = vadd.f32 %v4516, %v4544
        %v4553 = vadd.f32 %v4517, %v4544
        %v4554 = vadd.f32 %v4518, %v4544
        %v4555 = vadd.f32 %v4519, %v4544
        %v4556 = vadd.f32 %v4520, %v4544
        %v4557 = vadd.f32 %v4521, %v4544
        %v4558 = vadd.f32 %v4522, %v4544
        %v4559 = vadd.f32 %v4523, %v4544
        %v4560 = vadd.f32 %v4524, %v4544
        %v4561 = vadd.f32 %v4525, %v4544
        %v4562 = vadd.f32 %v4526, %v4544
        %v4563 = vadd.f32 %v4527, %v4544
        %v4564 = vadd.f32 %v4528, %v4544
        %v4565 = vadd.f32 %v4529, %v4544
        %v4566 = vadd.f32 %v4530, %v4544
        %v4567 = vadd.f32 %v4531, %v4544
        %v4568 = vadd.f32 %v4532, %v4544
        %v4569 = vadd.f32 %v4533, %v4544
        %v4570 = vadd.f32 %v4534, %v4544
        %v4571 = vadd.f32 %v4535, %v4544
        %v4572 = vadd.f32 %v4536, %v4544
        %v4573 = vadd.f32 %v4537, %v4544
        %v4574 = vadd.f32 %v4538, %v4544
        %v4575 = vadd.f32 %v4539, %v4544
        %v4576 = vadd.f32 %v4540, %v4544
        %v4577 = vadd.f32 %v4541, %v4544
        %v4578 = vld [vmem:[%s8] sm:$0x1]
        %v4579 = vld [vmem:[%s9] sm:$0x1]
        %v4580 = vadd.f32 %v4546, %v4547
        %v4581 = vadd.f32 %v4580, %v4548
        %v4582 = vadd.f32 %v4581, %v4549
        %v4583 = vadd.f32 %v4582, %v4550
        %v4584 = vadd.f32 %v4583, %v4551
        %v4585 = vadd.f32 %v4584, %v4552
        %v4586 = vadd.f32 %v4585, %v4553
        %v4587 = vadd.f32 %v4586, %v4554
        %v4588 = vadd.f32 %v4587, %v4555
        %v4589 = vadd.f32 %v4588, %v4556
        %v4590 = vadd.f32 %v4589, %v4557
        %v4591 = vadd.f32 %v4590, %v4558
        %v4592 = vadd.f32 %v4591, %v4559
        %v4593 = vadd.f32 %v4592, %v4560
        %v4594 = vadd.f32 %v4593, %v4561
        %v4595 = vadd.f32 %v4594, %v4562
        %v4596 = vadd.f32 %v4595, %v4563
        %v4597 = vadd.f32 %v4596, %v4564
        %v4598 = vadd.f32 %v4597, %v4565
        %v4599 = vadd.f32 %v4598, %v4566
        %v4600 = vadd.f32 %v4599, %v4567
        %v4601 = vadd.f32 %v4600, %v4568
        %v4602 = vadd.f32 %v4601, %v4569
        %v4603 = vadd.f32 %v4602, %v4570
        %v4604 = vadd.f32 %v4603, %v4571
        %v4605 = vadd.f32 %v4604, %v4572
        %v4606 = vadd.f32 %v4605, %v4573
        %v4607 = vadd.f32 %v4606, %v4574
        %v4608 = vadd.f32 %v4607, %v4575
        %v4609 = vadd.f32 %v4608, %v4576
        %v4610 = vadd.f32 %v4609, %v4577
        %v4611 = vrot.slane %v4610, 4
        %v4612 = vadd.f32 %v4610, %v4611
        %v4613 = vrot.slane %v4612, 2
        %v4614 = vadd.f32 %v4612, %v4613
        %v4615 = vrot.slane %v4614, 1
        %v4616 = vadd.f32 %v4614, %v4615
        %v4617 = vmul.f32 %v4616, %v1116
        %v4618 = vld [vmem:[%s4] sm:$0xff]
        %v4619 = vld [vmem:[%s4 + $0x8] sm:$0xff]
        %v4620 = vld [vmem:[%s4 + $0x10] sm:$0xff]
        %v4621 = vld [vmem:[%s4 + $0x18] sm:$0xff]
        %v4622 = vld [vmem:[%s4 + $0x20] sm:$0xff]
        %v4623 = vld [vmem:[%s4 + $0x28] sm:$0xff]
        %v4624 = vld [vmem:[%s4 + $0x30] sm:$0xff]
        %v4625 = vld [vmem:[%s4 + $0x38] sm:$0xff]
        %v4626 = vld [vmem:[%s4 + $0x40] sm:$0xff]
        %v4627 = vld [vmem:[%s4 + $0x48] sm:$0xff]
        %v4628 = vld [vmem:[%s4 + $0x50] sm:$0xff]
        %v4629 = vld [vmem:[%s4 + $0x58] sm:$0xff]
        %v4630 = vld [vmem:[%s4 + $0x60] sm:$0xff]
        %v4631 = vld [vmem:[%s4 + $0x68] sm:$0xff]
        %v4632 = vld [vmem:[%s4 + $0x70] sm:$0xff]
        %v4633 = vld [vmem:[%s4 + $0x78] sm:$0xff]
        %4634 = vmatpush.msra.mxu0 %v4633
        %4635 = vmatpush.msra.mxu0 %v4632
        %4636 = vmatpush.msra.mxu0 %v4631
        %4637 = vmatpush.msra.mxu0 %v4630
        %4638 = vmatpush.msra.mxu0 %v4629
        %4639 = vmatpush.msra.mxu0 %v4628
        %4640 = vmatpush.msra.mxu0 %v4627
        %4641 = vmatpush.msra.mxu0 %v4626
        %4642 = vmatpush.msra.mxu0 %v4625
        %4643 = vmatpush.msra.mxu0 %v4624
        %4644 = vmatpush.msra.mxu0 %v4623
        %4645 = vmatpush.msra.mxu0 %v4622
        %4646 = vmatpush.msra.mxu0 %v4621
        %4647 = vmatpush.msra.mxu0 %v4620
        %4648 = vmatpush.msra.mxu0 %v4619
        %4649 = vmatpush.msra.mxu0 %v4618
        %4650 = vmatmul.f32.gmra.mxu0 %v4617
        %v4651 = vpop.f32.mrf.mxu0
        %v4652 = vadd.f32 0.0, %v4651
        %4653 = vdwg.mxu0
        %v4654 = vld [vmem:[%s5] sm:$0xff]
        %v4655 = vld [vmem:[%s5 + $0x8] sm:$0xff]
        %v4656 = vld [vmem:[%s5 + $0x10] sm:$0xff]
        %v4657 = vld [vmem:[%s5 + $0x18] sm:$0xff]
        %v4659 = vsel %vm1158, %v4652, 0
        %4661 = vmatpush.msra.mxu0 0.0
        %4662 = vmatpush.msra.mxu0 0.0
        %4663 = vmatpush.msra.mxu0 0.0
        %4664 = vmatpush.msra.mxu0 0.0
        %4665 = vmatpush.msra.mxu0 0.0
        %4666 = vmatpush.msra.mxu0 0.0
        %4667 = vmatpush.msra.mxu0 0.0
        %4668 = vmatpush.msra.mxu0 0.0
        %4669 = vmatpush.msra.mxu0 0.0
        %4670 = vmatpush.msra.mxu0 0.0
        %4671 = vmatpush.msra.mxu0 0.0
        %4672 = vmatpush.msra.mxu0 0.0
        %4673 = vmatpush.msra.mxu0 %v4657
        %4674 = vmatpush.msra.mxu0 %v4656
        %4675 = vmatpush.msra.mxu0 %v4655
        %4676 = vmatpush.msra.mxu0 %v4654
        %4677 = vmatmul.f32.gmra.mxu0 %v4659
        %v4678 = vpop.f32.mrf.mxu0
        %v4679 = vadd.f32 0.0, %v4678
        %4680 = vdwg.mxu0
        %v4681 = vperm.slane %v4679, 0
        %v4682 = vsub.f32 %v4546, %v4681
        %v4683 = vsub.f32 %v4547, %v4681
        %v4684 = vsub.f32 %v4548, %v4681
        %v4685 = vsub.f32 %v4549, %v4681
        %v4686 = vsub.f32 %v4550, %v4681
        %v4687 = vsub.f32 %v4551, %v4681
        %v4688 = vsub.f32 %v4552, %v4681
        %v4689 = vsub.f32 %v4553, %v4681
        %v4690 = vsub.f32 %v4554, %v4681
        %v4691 = vsub.f32 %v4555, %v4681
        %v4692 = vsub.f32 %v4556, %v4681
        %v4693 = vsub.f32 %v4557, %v4681
        %v4694 = vsub.f32 %v4558, %v4681
        %v4695 = vsub.f32 %v4559, %v4681
        %v4696 = vsub.f32 %v4560, %v4681
        %v4697 = vsub.f32 %v4561, %v4681
        %v4698 = vsub.f32 %v4562, %v4681
        %v4699 = vsub.f32 %v4563, %v4681
        %v4700 = vsub.f32 %v4564, %v4681
        %v4701 = vsub.f32 %v4565, %v4681
        %v4702 = vsub.f32 %v4566, %v4681
        %v4703 = vsub.f32 %v4567, %v4681
        %v4704 = vsub.f32 %v4568, %v4681
        %v4705 = vsub.f32 %v4569, %v4681
        %v4706 = vsub.f32 %v4570, %v4681
        %v4707 = vsub.f32 %v4571, %v4681
        %v4708 = vsub.f32 %v4572, %v4681
        %v4709 = vsub.f32 %v4573, %v4681
        %v4710 = vsub.f32 %v4574, %v4681
        %v4711 = vsub.f32 %v4575, %v4681
        %v4712 = vsub.f32 %v4576, %v4681
        %v4713 = vsub.f32 %v4577, %v4681
        %v4714 = vmul.f32 %v4682, %v4682
        %v4715 = vmul.f32 %v4683, %v4683
        %v4716 = vmul.f32 %v4684, %v4684
        %v4717 = vmul.f32 %v4685, %v4685
        %v4718 = vmul.f32 %v4686, %v4686
        %v4719 = vmul.f32 %v4687, %v4687
        %v4720 = vmul.f32 %v4688, %v4688
        %v4721 = vmul.f32 %v4689, %v4689
        %v4722 = vmul.f32 %v4690, %v4690
        %v4723 = vmul.f32 %v4691, %v4691
        %v4724 = vmul.f32 %v4692, %v4692
        %v4725 = vmul.f32 %v4693, %v4693
        %v4726 = vmul.f32 %v4694, %v4694
        %v4727 = vmul.f32 %v4695, %v4695
        %v4728 = vmul.f32 %v4696, %v4696
        %v4729 = vmul.f32 %v4697, %v4697
        %v4730 = vmul.f32 %v4698, %v4698
        %v4731 = vmul.f32 %v4699, %v4699
        %v4732 = vmul.f32 %v4700, %v4700
        %v4733 = vmul.f32 %v4701, %v4701
        %v4734 = vmul.f32 %v4702, %v4702
        %v4735 = vmul.f32 %v4703, %v4703
        %v4736 = vmul.f32 %v4704, %v4704
        %v4737 = vmul.f32 %v4705, %v4705
        %v4738 = vmul.f32 %v4706, %v4706
        %v4739 = vmul.f32 %v4707, %v4707
        %v4740 = vmul.f32 %v4708, %v4708
        %v4741 = vmul.f32 %v4709, %v4709
        %v4742 = vmul.f32 %v4710, %v4710
        %v4743 = vmul.f32 %v4711, %v4711
        %v4744 = vmul.f32 %v4712, %v4712
        %v4745 = vmul.f32 %v4713, %v4713
        %v4746 = vadd.f32 %v4714, %v4715
        %v4747 = vadd.f32 %v4746, %v4716
        %v4748 = vadd.f32 %v4747, %v4717
        %v4749 = vadd.f32 %v4748, %v4718
        %v4750 = vadd.f32 %v4749, %v4719
        %v4751 = vadd.f32 %v4750, %v4720
        %v4752 = vadd.f32 %v4751, %v4721
        %v4753 = vadd.f32 %v4752, %v4722
        %v4754 = vadd.f32 %v4753, %v4723
        %v4755 = vadd.f32 %v4754, %v4724
        %v4756 = vadd.f32 %v4755, %v4725
        %v4757 = vadd.f32 %v4756, %v4726
        %v4758 = vadd.f32 %v4757, %v4727
        %v4759 = vadd.f32 %v4758, %v4728
        %v4760 = vadd.f32 %v4759, %v4729
        %v4761 = vadd.f32 %v4760, %v4730
        %v4762 = vadd.f32 %v4761, %v4731
        %v4763 = vadd.f32 %v4762, %v4732
        %v4764 = vadd.f32 %v4763, %v4733
        %v4765 = vadd.f32 %v4764, %v4734
        %v4766 = vadd.f32 %v4765, %v4735
        %v4767 = vadd.f32 %v4766, %v4736
        %v4768 = vadd.f32 %v4767, %v4737
        %v4769 = vadd.f32 %v4768, %v4738
        %v4770 = vadd.f32 %v4769, %v4739
        %v4771 = vadd.f32 %v4770, %v4740
        %v4772 = vadd.f32 %v4771, %v4741
        %v4773 = vadd.f32 %v4772, %v4742
        %v4774 = vadd.f32 %v4773, %v4743
        %v4775 = vadd.f32 %v4774, %v4744
        %v4776 = vadd.f32 %v4775, %v4745
        %v4777 = vrot.slane %v4776, 4
        %v4778 = vadd.f32 %v4776, %v4777
        %v4779 = vrot.slane %v4778, 2
        %v4780 = vadd.f32 %v4778, %v4779
        %v4781 = vrot.slane %v4780, 1
        %v4782 = vadd.f32 %v4780, %v4781
        %v4783 = vmul.f32 %v4782, %v1116
        %4784 = vmatpush.msra.mxu0 %v4633
        %4785 = vmatpush.msra.mxu0 %v4632
        %4786 = vmatpush.msra.mxu0 %v4631
        %4787 = vmatpush.msra.mxu0 %v4630
        %4788 = vmatpush.msra.mxu0 %v4629
        %4789 = vmatpush.msra.mxu0 %v4628
        %4790 = vmatpush.msra.mxu0 %v4627
        %4791 = vmatpush.msra.mxu0 %v4626
        %4792 = vmatpush.msra.mxu0 %v4625
        %4793 = vmatpush.msra.mxu0 %v4624
        %4794 = vmatpush.msra.mxu0 %v4623
        %4795 = vmatpush.msra.mxu0 %v4622
        %4796 = vmatpush.msra.mxu0 %v4621
        %4797 = vmatpush.msra.mxu0 %v4620
        %4798 = vmatpush.msra.mxu0 %v4619
        %4799 = vmatpush.msra.mxu0 %v4618
        %4800 = vmatmul.f32.gmra.mxu0 %v4783
        %v4801 = vpop.f32.mrf.mxu0
        %v4802 = vadd.f32 0.0, %v4801
        %4803 = vdwg.mxu0
        %v4805 = vsel %vm1158, %v4802, 0
        %4807 = vmatpush.msra.mxu0 0.0
        %4808 = vmatpush.msra.mxu0 0.0
        %4809 = vmatpush.msra.mxu0 0.0
        %4810 = vmatpush.msra.mxu0 0.0
        %4811 = vmatpush.msra.mxu0 0.0
        %4812 = vmatpush.msra.mxu0 0.0
        %4813 = vmatpush.msra.mxu0 0.0
        %4814 = vmatpush.msra.mxu0 0.0
        %4815 = vmatpush.msra.mxu0 0.0
        %4816 = vmatpush.msra.mxu0 0.0
        %4817 = vmatpush.msra.mxu0 0.0
        %4818 = vmatpush.msra.mxu0 0.0
        %4819 = vmatpush.msra.mxu0 %v4657
        %4820 = vmatpush.msra.mxu0 %v4656
        %4821 = vmatpush.msra.mxu0 %v4655
        %4822 = vmatpush.msra.mxu0 %v4654
        %4823 = vmatmul.f32.gmra.mxu0 %v4805
        %v4824 = vpop.f32.mrf.mxu0
        %v4825 = vadd.f32 1e-05, %v4824
        %4826 = vdwg.mxu0
        %v4827 = vrsqrt.pop %v4825
        %v4828 = vmul.f32 %v4827, %v4825
        %v4829 = vmul.f32 %v4828, %v4827
        %v4830 = vmul.f32 0.5, %v4829
        %v4831 = vsub.f32 1.5, %v4830
        %v4832 = vmul.f32 %v4827, %v4831
        %vm4833 = vweird.f32 %v4825
        %vm4834 = vweird.f32 %v4827
        %vm4835 = vmor %vm4833, %vm4834
        %v4836 = vsel %vm4835, %v4827, %v4832
        %v4837 = vmul.f32 %v4836, %v4578
        %v4838 = vperm.slane %v4837, 0
        %v4839 = vmul.f32 %v4682, %v4838
        %v4840 = vmul.f32 %v4683, %v4838
        %v4841 = vmul.f32 %v4684, %v4838
        %v4842 = vmul.f32 %v4685, %v4838
        %v4843 = vmul.f32 %v4686, %v4838
        %v4844 = vmul.f32 %v4687, %v4838
        %v4845 = vmul.f32 %v4688, %v4838
        %v4846 = vmul.f32 %v4689, %v4838
        %v4847 = vmul.f32 %v4690, %v4838
        %v4848 = vmul.f32 %v4691, %v4838
        %v4849 = vmul.f32 %v4692, %v4838
        %v4850 = vmul.f32 %v4693, %v4838
        %v4851 = vmul.f32 %v4694, %v4838
        %v4852 = vmul.f32 %v4695, %v4838
        %v4853 = vmul.f32 %v4696, %v4838
        %v4854 = vmul.f32 %v4697, %v4838
        %v4855 = vmul.f32 %v4698, %v4838
        %v4856 = vmul.f32 %v4699, %v4838
        %v4857 = vmul.f32 %v4700, %v4838
        %v4858 = vmul.f32 %v4701, %v4838
        %v4859 = vmul.f32 %v4702, %v4838
        %v4860 = vmul.f32 %v4703, %v4838
        %v4861 = vmul.f32 %v4704, %v4838
        %v4862 = vmul.f32 %v4705, %v4838
        %v4863 = vmul.f32 %v4706, %v4838
        %v4864 = vmul.f32 %v4707, %v4838
        %v4865 = vmul.f32 %v4708, %v4838
        %v4866 = vmul.f32 %v4709, %v4838
        %v4867 = vmul.f32 %v4710, %v4838
        %v4868 = vmul.f32 %v4711, %v4838
        %v4869 = vmul.f32 %v4712, %v4838
        %v4870 = vmul.f32 %v4713, %v4838
        %v4872 = vperm.slane %v4579, 0
        %v4874 = vadd.f32 %v4839, %v4872
        %v4875 = vadd.f32 %v4840, %v4872
        %v4876 = vadd.f32 %v4841, %v4872
        %v4877 = vadd.f32 %v4842, %v4872
        %v4878 = vadd.f32 %v4843, %v4872
        %v4879 = vadd.f32 %v4844, %v4872
        %v4880 = vadd.f32 %v4845, %v4872
        %v4881 = vadd.f32 %v4846, %v4872
        %v4882 = vadd.f32 %v4847, %v4872
        %v4883 = vadd.f32 %v4848, %v4872
        %v4884 = vadd.f32 %v4849, %v4872
        %v4885 = vadd.f32 %v4850, %v4872
        %v4886 = vadd.f32 %v4851, %v4872
        %v4887 = vadd.f32 %v4852, %v4872
        %v4888 = vadd.f32 %v4853, %v4872
        %v4889 = vadd.f32 %v4854, %v4872
        %v4890 = vadd.f32 %v4855, %v4872
        %v4891 = vadd.f32 %v4856, %v4872
        %v4892 = vadd.f32 %v4857, %v4872
        %v4893 = vadd.f32 %v4858, %v4872
        %v4894 = vadd.f32 %v4859, %v4872
        %v4895 = vadd.f32 %v4860, %v4872
        %v4896 = vadd.f32 %v4861, %v4872
        %v4897 = vadd.f32 %v4862, %v4872
        %v4898 = vadd.f32 %v4863, %v4872
        %v4899 = vadd.f32 %v4864, %v4872
        %v4900 = vadd.f32 %v4865, %v4872
        %v4901 = vadd.f32 %v4866, %v4872
        %v4902 = vadd.f32 %v4867, %v4872
        %v4903 = vadd.f32 %v4868, %v4872
        %v4904 = vadd.f32 %v4869, %v4872
        %v4905 = vadd.f32 %v4870, %v4872
        %v4906 = vxor.u32 %v4874, 2147483648
        %v4907 = vxor.u32 %v4875, 2147483648
        %v4908 = vxor.u32 %v4876, 2147483648
        %v4909 = vxor.u32 %v4877, 2147483648
        %v4910 = vxor.u32 %v4878, 2147483648
        %v4911 = vxor.u32 %v4879, 2147483648
        %v4912 = vxor.u32 %v4880, 2147483648
        %v4913 = vxor.u32 %v4881, 2147483648
        %v4914 = vxor.u32 %v4882, 2147483648
        %v4915 = vxor.u32 %v4883, 2147483648
        %v4916 = vxor.u32 %v4884, 2147483648
        %v4917 = vxor.u32 %v4885, 2147483648
        %v4918 = vxor.u32 %v4886, 2147483648
        %v4919 = vxor.u32 %v4887, 2147483648
        %v4920 = vxor.u32 %v4888, 2147483648
        %v4921 = vxor.u32 %v4889, 2147483648
        %v4922 = vxor.u32 %v4890, 2147483648
        %v4923 = vxor.u32 %v4891, 2147483648
        %v4924 = vxor.u32 %v4892, 2147483648
        %v4925 = vxor.u32 %v4893, 2147483648
        %v4926 = vxor.u32 %v4894, 2147483648
        %v4927 = vxor.u32 %v4895, 2147483648
        %v4928 = vxor.u32 %v4896, 2147483648
        %v4929 = vxor.u32 %v4897, 2147483648
        %v4930 = vxor.u32 %v4898, 2147483648
        %v4931 = vxor.u32 %v4899, 2147483648
        %v4932 = vxor.u32 %v4900, 2147483648
        %v4933 = vxor.u32 %v4901, 2147483648
        %v4934 = vxor.u32 %v4902, 2147483648
        %v4935 = vxor.u32 %v4903, 2147483648
        %v4936 = vxor.u32 %v4904, 2147483648
        %v4937 = vxor.u32 %v4905, 2147483648
        %v4938 = vmul.f32 %v4906, 1.442695
        %v4939 = vpow.pop %v4938
        %v4940 = vmul.f32 %v4907, 1.442695
        %v4941 = vpow.pop %v4940
        %v4942 = vmul.f32 %v4908, 1.442695
        %v4943 = vpow.pop %v4942
        %v4944 = vmul.f32 %v4909, 1.442695
        %v4945 = vpow.pop %v4944
        %v4946 = vmul.f32 %v4910, 1.442695
        %v4947 = vpow.pop %v4946
        %v4948 = vmul.f32 %v4911, 1.442695
        %v4949 = vpow.pop %v4948
        %v4950 = vmul.f32 %v4912, 1.442695
        %v4951 = vpow.pop %v4950
        %v4952 = vmul.f32 %v4913, 1.442695
        %v4953 = vpow.pop %v4952
        %v4954 = vmul.f32 %v4914, 1.442695
        %v4955 = vpow.pop %v4954
        %v4956 = vmul.f32 %v4915, 1.442695
        %v4957 = vpow.pop %v4956
        %v4958 = vmul.f32 %v4916, 1.442695
        %v4959 = vpow.pop %v4958
        %v4960 = vmul.f32 %v4917, 1.442695
        %v4961 = vpow.pop %v4960
        %v4962 = vmul.f32 %v4918, 1.442695
        %v4963 = vpow.pop %v4962
        %v4964 = vmul.f32 %v4919, 1.442695
        %v4965 = vpow.pop %v4964
        %v4966 = vmul.f32 %v4920, 1.442695
        %v4967 = vpow.pop %v4966
        %v4968 = vmul.f32 %v4921, 1.442695
        %v4969 = vpow.pop %v4968
        %v4970 = vmul.f32 %v4922, 1.442695
        %v4971 = vpow.pop %v4970
        %v4972 = vmul.f32 %v4923, 1.442695
        %v4973 = vpow.pop %v4972
        %v4974 = vmul.f32 %v4924, 1.442695
        %v4975 = vpow.pop %v4974
        %v4976 = vmul.f32 %v4925, 1.442695
        %v4977 = vpow.pop %v4976
        %v4978 = vmul.f32 %v4926, 1.442695
        %v4979 = vpow.pop %v4978
        %v4980 = vmul.f32 %v4927, 1.442695
        %v4981 = vpow.pop %v4980
        %v4982 = vmul.f32 %v4928, 1.442695
        %v4983 = vpow.pop %v4982
        %v4984 = vmul.f32 %v4929, 1.442695
        %v4985 = vpow.pop %v4984
        %v4986 = vmul.f32 %v4930, 1.442695
        %v4987 = vpow.pop %v4986
        %v4988 = vmul.f32 %v4931, 1.442695
        %v4989 = vpow.pop %v4988
        %v4990 = vmul.f32 %v4932, 1.442695
        %v4991 = vpow.pop %v4990
        %v4992 = vmul.f32 %v4933, 1.442695
        %v4993 = vpow.pop %v4992
        %v4994 = vmul.f32 %v4934, 1.442695
        %v4995 = vpow.pop %v4994
        %v4996 = vmul.f32 %v4935, 1.442695
        %v4997 = vpow.pop %v4996
        %v4998 = vmul.f32 %v4936, 1.442695
        %v4999 = vpow.pop %v4998
        %v5000 = vmul.f32 %v4937, 1.442695
        %v5001 = vpow.pop %v5000
        %v5002 = vadd.f32 %v4939, 1.0
        %v5003 = vadd.f32 %v4941, 1.0
        %v5004 = vadd.f32 %v4943, 1.0
        %v5005 = vadd.f32 %v4945, 1.0
        %v5006 = vadd.f32 %v4947, 1.0
        %v5007 = vadd.f32 %v4949, 1.0
        %v5008 = vadd.f32 %v4951, 1.0
        %v5009 = vadd.f32 %v4953, 1.0
        %v5010 = vadd.f32 %v4955, 1.0
        %v5011 = vadd.f32 %v4957, 1.0
        %v5012 = vadd.f32 %v4959, 1.0
        %v5013 = vadd.f32 %v4961, 1.0
        %v5014 = vadd.f32 %v4963, 1.0
        %v5015 = vadd.f32 %v4965, 1.0
        %v5016 = vadd.f32 %v4967, 1.0
        %v5017 = vadd.f32 %v4969, 1.0
        %v5018 = vadd.f32 %v4971, 1.0
        %v5019 = vadd.f32 %v4973, 1.0
        %v5020 = vadd.f32 %v4975, 1.0
        %v5021 = vadd.f32 %v4977, 1.0
        %v5022 = vadd.f32 %v4979, 1.0
        %v5023 = vadd.f32 %v4981, 1.0
        %v5024 = vadd.f32 %v4983, 1.0
        %v5025 = vadd.f32 %v4985, 1.0
        %v5026 = vadd.f32 %v4987, 1.0
        %v5027 = vadd.f32 %v4989, 1.0
        %v5028 = vadd.f32 %v4991, 1.0
        %v5029 = vadd.f32 %v4993, 1.0
        %v5030 = vadd.f32 %v4995, 1.0
        %v5031 = vadd.f32 %v4997, 1.0
        %v5032 = vadd.f32 %v4999, 1.0
        %v5033 = vadd.f32 %v5001, 1.0
        %v5034 = vrcp.pop %v5002
        %v5035 = vmul.f32 %v5002, %v5034
        %v5036 = vsub.f32 1.0, %v5035
        %v5037 = vmul.f32 %v5034, %v5036
        %v5038 = vadd.f32 %v5034, %v5037
        %vm5039 = vweird.f32 %v5002
        %vm5040 = vweird.f32 %v5034
        %vm5041 = vmor %vm5039, %vm5040
        %v5042 = vsel %vm5041, %v5034, %v5038
        %v5043 = vand.u32 2147483647, %v5002
        %vm5044 = vcmp.eq.f32.partialorder %v5043, 8.507059e+37
        %v5045 = vand.u32 %v5002, 2147483648
        %v5046 = vor.u32 1.1754944e-38, %v5045
        %v5047 = vsel %vm5044, %v5046, %v5042
        %v5048 = vmul.f32 1.0, %v5047
        %v5049 = vrcp.pop %v5003
        %v5050 = vmul.f32 %v5003, %v5049
        %v5051 = vsub.f32 1.0, %v5050
        %v5052 = vmul.f32 %v5049, %v5051
        %v5053 = vadd.f32 %v5049, %v5052
        %vm5054 = vweird.f32 %v5003
        %vm5055 = vweird.f32 %v5049
        %vm5056 = vmor %vm5054, %vm5055
        %v5057 = vsel %vm5056, %v5049, %v5053
        %v5058 = vand.u32 2147483647, %v5003
        %vm5059 = vcmp.eq.f32.partialorder %v5058, 8.507059e+37
        %v5060 = vand.u32 %v5003, 2147483648
        %v5061 = vor.u32 1.1754944e-38, %v5060
        %v5062 = vsel %vm5059, %v5061, %v5057
        %v5063 = vmul.f32 1.0, %v5062
        %v5064 = vrcp.pop %v5004
        %v5065 = vmul.f32 %v5004, %v5064
        %v5066 = vsub.f32 1.0, %v5065
        %v5067 = vmul.f32 %v5064, %v5066
        %v5068 = vadd.f32 %v5064, %v5067
        %vm5069 = vweird.f32 %v5004
        %vm5070 = vweird.f32 %v5064
        %vm5071 = vmor %vm5069, %vm5070
        %v5072 = vsel %vm5071, %v5064, %v5068
        %v5073 = vand.u32 2147483647, %v5004
        %vm5074 = vcmp.eq.f32.partialorder %v5073, 8.507059e+37
        %v5075 = vand.u32 %v5004, 2147483648
        %v5076 = vor.u32 1.1754944e-38, %v5075
        %v5077 = vsel %vm5074, %v5076, %v5072
        %v5078 = vmul.f32 1.0, %v5077
        %v5079 = vrcp.pop %v5005
        %v5080 = vmul.f32 %v5005, %v5079
        %v5081 = vsub.f32 1.0, %v5080
        %v5082 = vmul.f32 %v5079, %v5081
        %v5083 = vadd.f32 %v5079, %v5082
        %vm5084 = vweird.f32 %v5005
        %vm5085 = vweird.f32 %v5079
        %vm5086 = vmor %vm5084, %vm5085
        %v5087 = vsel %vm5086, %v5079, %v5083
        %v5088 = vand.u32 2147483647, %v5005
        %vm5089 = vcmp.eq.f32.partialorder %v5088, 8.507059e+37
        %v5090 = vand.u32 %v5005, 2147483648
        %v5091 = vor.u32 1.1754944e-38, %v5090
        %v5092 = vsel %vm5089, %v5091, %v5087
        %v5093 = vmul.f32 1.0, %v5092
        %v5094 = vrcp.pop %v5006
        %v5095 = vmul.f32 %v5006, %v5094
        %v5096 = vsub.f32 1.0, %v5095
        %v5097 = vmul.f32 %v5094, %v5096
        %v5098 = vadd.f32 %v5094, %v5097
        %vm5099 = vweird.f32 %v5006
        %vm5100 = vweird.f32 %v5094
        %vm5101 = vmor %vm5099, %vm5100
        %v5102 = vsel %vm5101, %v5094, %v5098
        %v5103 = vand.u32 2147483647, %v5006
        %vm5104 = vcmp.eq.f32.partialorder %v5103, 8.507059e+37
        %v5105 = vand.u32 %v5006, 2147483648
        %v5106 = vor.u32 1.1754944e-38, %v5105
        %v5107 = vsel %vm5104, %v5106, %v5102
        %v5108 = vmul.f32 1.0, %v5107
        %v5109 = vrcp.pop %v5007
        %v5110 = vmul.f32 %v5007, %v5109
        %v5111 = vsub.f32 1.0, %v5110
        %v5112 = vmul.f32 %v5109, %v5111
        %v5113 = vadd.f32 %v5109, %v5112
        %vm5114 = vweird.f32 %v5007
        %vm5115 = vweird.f32 %v5109
        %vm5116 = vmor %vm5114, %vm5115
        %v5117 = vsel %vm5116, %v5109, %v5113
        %v5118 = vand.u32 2147483647, %v5007
        %vm5119 = vcmp.eq.f32.partialorder %v5118, 8.507059e+37
        %v5120 = vand.u32 %v5007, 2147483648
        %v5121 = vor.u32 1.1754944e-38, %v5120
        %v5122 = vsel %vm5119, %v5121, %v5117
        %v5123 = vmul.f32 1.0, %v5122
        %v5124 = vrcp.pop %v5008
        %v5125 = vmul.f32 %v5008, %v5124
        %v5126 = vsub.f32 1.0, %v5125
        %v5127 = vmul.f32 %v5124, %v5126
        %v5128 = vadd.f32 %v5124, %v5127
        %vm5129 = vweird.f32 %v5008
        %vm5130 = vweird.f32 %v5124
        %vm5131 = vmor %vm5129, %vm5130
        %v5132 = vsel %vm5131, %v5124, %v5128
        %v5133 = vand.u32 2147483647, %v5008
        %vm5134 = vcmp.eq.f32.partialorder %v5133, 8.507059e+37
        %v5135 = vand.u32 %v5008, 2147483648
        %v5136 = vor.u32 1.1754944e-38, %v5135
        %v5137 = vsel %vm5134, %v5136, %v5132
        %v5138 = vmul.f32 1.0, %v5137
        %v5139 = vrcp.pop %v5009
        %v5140 = vmul.f32 %v5009, %v5139
        %v5141 = vsub.f32 1.0, %v5140
        %v5142 = vmul.f32 %v5139, %v5141
        %v5143 = vadd.f32 %v5139, %v5142
        %vm5144 = vweird.f32 %v5009
        %vm5145 = vweird.f32 %v5139
        %vm5146 = vmor %vm5144, %vm5145
        %v5147 = vsel %vm5146, %v5139, %v5143
        %v5148 = vand.u32 2147483647, %v5009
        %vm5149 = vcmp.eq.f32.partialorder %v5148, 8.507059e+37
        %v5150 = vand.u32 %v5009, 2147483648
        %v5151 = vor.u32 1.1754944e-38, %v5150
        %v5152 = vsel %vm5149, %v5151, %v5147
        %v5153 = vmul.f32 1.0, %v5152
        %v5154 = vrcp.pop %v5010
        %v5155 = vmul.f32 %v5010, %v5154
        %v5156 = vsub.f32 1.0, %v5155
        %v5157 = vmul.f32 %v5154, %v5156
        %v5158 = vadd.f32 %v5154, %v5157
        %vm5159 = vweird.f32 %v5010
        %vm5160 = vweird.f32 %v5154
        %vm5161 = vmor %vm5159, %vm5160
        %v5162 = vsel %vm5161, %v5154, %v5158
        %v5163 = vand.u32 2147483647, %v5010
        %vm5164 = vcmp.eq.f32.partialorder %v5163, 8.507059e+37
        %v5165 = vand.u32 %v5010, 2147483648
        %v5166 = vor.u32 1.1754944e-38, %v5165
        %v5167 = vsel %vm5164, %v5166, %v5162
        %v5168 = vmul.f32 1.0, %v5167
        %v5169 = vrcp.pop %v5011
        %v5170 = vmul.f32 %v5011, %v5169
        %v5171 = vsub.f32 1.0, %v5170
        %v5172 = vmul.f32 %v5169, %v5171
        %v5173 = vadd.f32 %v5169, %v5172
        %vm5174 = vweird.f32 %v5011
        %vm5175 = vweird.f32 %v5169
        %vm5176 = vmor %vm5174, %vm5175
        %v5177 = vsel %vm5176, %v5169, %v5173
        %v5178 = vand.u32 2147483647, %v5011
        %vm5179 = vcmp.eq.f32.partialorder %v5178, 8.507059e+37
        %v5180 = vand.u32 %v5011, 2147483648
        %v5181 = vor.u32 1.1754944e-38, %v5180
        %v5182 = vsel %vm5179, %v5181, %v5177
        %v5183 = vmul.f32 1.0, %v5182
        %v5184 = vrcp.pop %v5012
        %v5185 = vmul.f32 %v5012, %v5184
        %v5186 = vsub.f32 1.0, %v5185
        %v5187 = vmul.f32 %v5184, %v5186
        %v5188 = vadd.f32 %v5184, %v5187
        %vm5189 = vweird.f32 %v5012
        %vm5190 = vweird.f32 %v5184
        %vm5191 = vmor %vm5189, %vm5190
        %v5192 = vsel %vm5191, %v5184, %v5188
        %v5193 = vand.u32 2147483647, %v5012
        %vm5194 = vcmp.eq.f32.partialorder %v5193, 8.507059e+37
        %v5195 = vand.u32 %v5012, 2147483648
        %v5196 = vor.u32 1.1754944e-38, %v5195
        %v5197 = vsel %vm5194, %v5196, %v5192
        %v5198 = vmul.f32 1.0, %v5197
        %v5199 = vrcp.pop %v5013
        %v5200 = vmul.f32 %v5013, %v5199
        %v5201 = vsub.f32 1.0, %v5200
        %v5202 = vmul.f32 %v5199, %v5201
        %v5203 = vadd.f32 %v5199, %v5202
        %vm5204 = vweird.f32 %v5013
        %vm5205 = vweird.f32 %v5199
        %vm5206 = vmor %vm5204, %vm5205
        %v5207 = vsel %vm5206, %v5199, %v5203
        %v5208 = vand.u32 2147483647, %v5013
        %vm5209 = vcmp.eq.f32.partialorder %v5208, 8.507059e+37
        %v5210 = vand.u32 %v5013, 2147483648
        %v5211 = vor.u32 1.1754944e-38, %v5210
        %v5212 = vsel %vm5209, %v5211, %v5207
        %v5213 = vmul.f32 1.0, %v5212
        %v5214 = vrcp.pop %v5014
        %v5215 = vmul.f32 %v5014, %v5214
        %v5216 = vsub.f32 1.0, %v5215
        %v5217 = vmul.f32 %v5214, %v5216
        %v5218 = vadd.f32 %v5214, %v5217
        %vm5219 = vweird.f32 %v5014
        %vm5220 = vweird.f32 %v5214
        %vm5221 = vmor %vm5219, %vm5220
        %v5222 = vsel %vm5221, %v5214, %v5218
        %v5223 = vand.u32 2147483647, %v5014
        %vm5224 = vcmp.eq.f32.partialorder %v5223, 8.507059e+37
        %v5225 = vand.u32 %v5014, 2147483648
        %v5226 = vor.u32 1.1754944e-38, %v5225
        %v5227 = vsel %vm5224, %v5226, %v5222
        %v5228 = vmul.f32 1.0, %v5227
        %v5229 = vrcp.pop %v5015
        %v5230 = vmul.f32 %v5015, %v5229
        %v5231 = vsub.f32 1.0, %v5230
        %v5232 = vmul.f32 %v5229, %v5231
        %v5233 = vadd.f32 %v5229, %v5232
        %vm5234 = vweird.f32 %v5015
        %vm5235 = vweird.f32 %v5229
        %vm5236 = vmor %vm5234, %vm5235
        %v5237 = vsel %vm5236, %v5229, %v5233
        %v5238 = vand.u32 2147483647, %v5015
        %vm5239 = vcmp.eq.f32.partialorder %v5238, 8.507059e+37
        %v5240 = vand.u32 %v5015, 2147483648
        %v5241 = vor.u32 1.1754944e-38, %v5240
        %v5242 = vsel %vm5239, %v5241, %v5237
        %v5243 = vmul.f32 1.0, %v5242
        %v5244 = vrcp.pop %v5016
        %v5245 = vmul.f32 %v5016, %v5244
        %v5246 = vsub.f32 1.0, %v5245
        %v5247 = vmul.f32 %v5244, %v5246
        %v5248 = vadd.f32 %v5244, %v5247
        %vm5249 = vweird.f32 %v5016
        %vm5250 = vweird.f32 %v5244
        %vm5251 = vmor %vm5249, %vm5250
        %v5252 = vsel %vm5251, %v5244, %v5248
        %v5253 = vand.u32 2147483647, %v5016
        %vm5254 = vcmp.eq.f32.partialorder %v5253, 8.507059e+37
        %v5255 = vand.u32 %v5016, 2147483648
        %v5256 = vor.u32 1.1754944e-38, %v5255
        %v5257 = vsel %vm5254, %v5256, %v5252
        %v5258 = vmul.f32 1.0, %v5257
        %v5259 = vrcp.pop %v5017
        %v5260 = vmul.f32 %v5017, %v5259
        %v5261 = vsub.f32 1.0, %v5260
        %v5262 = vmul.f32 %v5259, %v5261
        %v5263 = vadd.f32 %v5259, %v5262
        %vm5264 = vweird.f32 %v5017
        %vm5265 = vweird.f32 %v5259
        %vm5266 = vmor %vm5264, %vm5265
        %v5267 = vsel %vm5266, %v5259, %v5263
        %v5268 = vand.u32 2147483647, %v5017
        %vm5269 = vcmp.eq.f32.partialorder %v5268, 8.507059e+37
        %v5270 = vand.u32 %v5017, 2147483648
        %v5271 = vor.u32 1.1754944e-38, %v5270
        %v5272 = vsel %vm5269, %v5271, %v5267
        %v5273 = vmul.f32 1.0, %v5272
        %v5274 = vrcp.pop %v5018
        %v5275 = vmul.f32 %v5018, %v5274
        %v5276 = vsub.f32 1.0, %v5275
        %v5277 = vmul.f32 %v5274, %v5276
        %v5278 = vadd.f32 %v5274, %v5277
        %vm5279 = vweird.f32 %v5018
        %vm5280 = vweird.f32 %v5274
        %vm5281 = vmor %vm5279, %vm5280
        %v5282 = vsel %vm5281, %v5274, %v5278
        %v5283 = vand.u32 2147483647, %v5018
        %vm5284 = vcmp.eq.f32.partialorder %v5283, 8.507059e+37
        %v5285 = vand.u32 %v5018, 2147483648
        %v5286 = vor.u32 1.1754944e-38, %v5285
        %v5287 = vsel %vm5284, %v5286, %v5282
        %v5288 = vmul.f32 1.0, %v5287
        %v5289 = vrcp.pop %v5019
        %v5290 = vmul.f32 %v5019, %v5289
        %v5291 = vsub.f32 1.0, %v5290
        %v5292 = vmul.f32 %v5289, %v5291
        %v5293 = vadd.f32 %v5289, %v5292
        %vm5294 = vweird.f32 %v5019
        %vm5295 = vweird.f32 %v5289
        %vm5296 = vmor %vm5294, %vm5295
        %v5297 = vsel %vm5296, %v5289, %v5293
        %v5298 = vand.u32 2147483647, %v5019
        %vm5299 = vcmp.eq.f32.partialorder %v5298, 8.507059e+37
        %v5300 = vand.u32 %v5019, 2147483648
        %v5301 = vor.u32 1.1754944e-38, %v5300
        %v5302 = vsel %vm5299, %v5301, %v5297
        %v5303 = vmul.f32 1.0, %v5302
        %v5304 = vrcp.pop %v5020
        %v5305 = vmul.f32 %v5020, %v5304
        %v5306 = vsub.f32 1.0, %v5305
        %v5307 = vmul.f32 %v5304, %v5306
        %v5308 = vadd.f32 %v5304, %v5307
        %vm5309 = vweird.f32 %v5020
        %vm5310 = vweird.f32 %v5304
        %vm5311 = vmor %vm5309, %vm5310
        %v5312 = vsel %vm5311, %v5304, %v5308
        %v5313 = vand.u32 2147483647, %v5020
        %vm5314 = vcmp.eq.f32.partialorder %v5313, 8.507059e+37
        %v5315 = vand.u32 %v5020, 2147483648
        %v5316 = vor.u32 1.1754944e-38, %v5315
        %v5317 = vsel %vm5314, %v5316, %v5312
        %v5318 = vmul.f32 1.0, %v5317
        %v5319 = vrcp.pop %v5021
        %v5320 = vmul.f32 %v5021, %v5319
        %v5321 = vsub.f32 1.0, %v5320
        %v5322 = vmul.f32 %v5319, %v5321
        %v5323 = vadd.f32 %v5319, %v5322
        %vm5324 = vweird.f32 %v5021
        %vm5325 = vweird.f32 %v5319
        %vm5326 = vmor %vm5324, %vm5325
        %v5327 = vsel %vm5326, %v5319, %v5323
        %v5328 = vand.u32 2147483647, %v5021
        %vm5329 = vcmp.eq.f32.partialorder %v5328, 8.507059e+37
        %v5330 = vand.u32 %v5021, 2147483648
        %v5331 = vor.u32 1.1754944e-38, %v5330
        %v5332 = vsel %vm5329, %v5331, %v5327
        %v5333 = vmul.f32 1.0, %v5332
        %v5334 = vrcp.pop %v5022
        %v5335 = vmul.f32 %v5022, %v5334
        %v5336 = vsub.f32 1.0, %v5335
        %v5337 = vmul.f32 %v5334, %v5336
        %v5338 = vadd.f32 %v5334, %v5337
        %vm5339 = vweird.f32 %v5022
        %vm5340 = vweird.f32 %v5334
        %vm5341 = vmor %vm5339, %vm5340
        %v5342 = vsel %vm5341, %v5334, %v5338
        %v5343 = vand.u32 2147483647, %v5022
        %vm5344 = vcmp.eq.f32.partialorder %v5343, 8.507059e+37
        %v5345 = vand.u32 %v5022, 2147483648
        %v5346 = vor.u32 1.1754944e-38, %v5345
        %v5347 = vsel %vm5344, %v5346, %v5342
        %v5348 = vmul.f32 1.0, %v5347
        %v5349 = vrcp.pop %v5023
        %v5350 = vmul.f32 %v5023, %v5349
        %v5351 = vsub.f32 1.0, %v5350
        %v5352 = vmul.f32 %v5349, %v5351
        %v5353 = vadd.f32 %v5349, %v5352
        %vm5354 = vweird.f32 %v5023
        %vm5355 = vweird.f32 %v5349
        %vm5356 = vmor %vm5354, %vm5355
        %v5357 = vsel %vm5356, %v5349, %v5353
        %v5358 = vand.u32 2147483647, %v5023
        %vm5359 = vcmp.eq.f32.partialorder %v5358, 8.507059e+37
        %v5360 = vand.u32 %v5023, 2147483648
        %v5361 = vor.u32 1.1754944e-38, %v5360
        %v5362 = vsel %vm5359, %v5361, %v5357
        %v5363 = vmul.f32 1.0, %v5362
        %v5364 = vrcp.pop %v5024
        %v5365 = vmul.f32 %v5024, %v5364
        %v5366 = vsub.f32 1.0, %v5365
        %v5367 = vmul.f32 %v5364, %v5366
        %v5368 = vadd.f32 %v5364, %v5367
        %vm5369 = vweird.f32 %v5024
        %vm5370 = vweird.f32 %v5364
        %vm5371 = vmor %vm5369, %vm5370
        %v5372 = vsel %vm5371, %v5364, %v5368
        %v5373 = vand.u32 2147483647, %v5024
        %vm5374 = vcmp.eq.f32.partialorder %v5373, 8.507059e+37
        %v5375 = vand.u32 %v5024, 2147483648
        %v5376 = vor.u32 1.1754944e-38, %v5375
        %v5377 = vsel %vm5374, %v5376, %v5372
        %v5378 = vmul.f32 1.0, %v5377
        %v5379 = vrcp.pop %v5025
        %v5380 = vmul.f32 %v5025, %v5379
        %v5381 = vsub.f32 1.0, %v5380
        %v5382 = vmul.f32 %v5379, %v5381
        %v5383 = vadd.f32 %v5379, %v5382
        %vm5384 = vweird.f32 %v5025
        %vm5385 = vweird.f32 %v5379
        %vm5386 = vmor %vm5384, %vm5385
        %v5387 = vsel %vm5386, %v5379, %v5383
        %v5388 = vand.u32 2147483647, %v5025
        %vm5389 = vcmp.eq.f32.partialorder %v5388, 8.507059e+37
        %v5390 = vand.u32 %v5025, 2147483648
        %v5391 = vor.u32 1.1754944e-38, %v5390
        %v5392 = vsel %vm5389, %v5391, %v5387
        %v5393 = vmul.f32 1.0, %v5392
        %v5394 = vrcp.pop %v5026
        %v5395 = vmul.f32 %v5026, %v5394
        %v5396 = vsub.f32 1.0, %v5395
        %v5397 = vmul.f32 %v5394, %v5396
        %v5398 = vadd.f32 %v5394, %v5397
        %vm5399 = vweird.f32 %v5026
        %vm5400 = vweird.f32 %v5394
        %vm5401 = vmor %vm5399, %vm5400
        %v5402 = vsel %vm5401, %v5394, %v5398
        %v5403 = vand.u32 2147483647, %v5026
        %vm5404 = vcmp.eq.f32.partialorder %v5403, 8.507059e+37
        %v5405 = vand.u32 %v5026, 2147483648
        %v5406 = vor.u32 1.1754944e-38, %v5405
        %v5407 = vsel %vm5404, %v5406, %v5402
        %v5408 = vmul.f32 1.0, %v5407
        %v5409 = vrcp.pop %v5027
        %v5410 = vmul.f32 %v5027, %v5409
        %v5411 = vsub.f32 1.0, %v5410
        %v5412 = vmul.f32 %v5409, %v5411
        %v5413 = vadd.f32 %v5409, %v5412
        %vm5414 = vweird.f32 %v5027
        %vm5415 = vweird.f32 %v5409
        %vm5416 = vmor %vm5414, %vm5415
        %v5417 = vsel %vm5416, %v5409, %v5413
        %v5418 = vand.u32 2147483647, %v5027
        %vm5419 = vcmp.eq.f32.partialorder %v5418, 8.507059e+37
        %v5420 = vand.u32 %v5027, 2147483648
        %v5421 = vor.u32 1.1754944e-38, %v5420
        %v5422 = vsel %vm5419, %v5421, %v5417
        %v5423 = vmul.f32 1.0, %v5422
        %v5424 = vrcp.pop %v5028
        %v5425 = vmul.f32 %v5028, %v5424
        %v5426 = vsub.f32 1.0, %v5425
        %v5427 = vmul.f32 %v5424, %v5426
        %v5428 = vadd.f32 %v5424, %v5427
        %vm5429 = vweird.f32 %v5028
        %vm5430 = vweird.f32 %v5424
        %vm5431 = vmor %vm5429, %vm5430
        %v5432 = vsel %vm5431, %v5424, %v5428
        %v5433 = vand.u32 2147483647, %v5028
        %vm5434 = vcmp.eq.f32.partialorder %v5433, 8.507059e+37
        %v5435 = vand.u32 %v5028, 2147483648
        %v5436 = vor.u32 1.1754944e-38, %v5435
        %v5437 = vsel %vm5434, %v5436, %v5432
        %v5438 = vmul.f32 1.0, %v5437
        %v5439 = vrcp.pop %v5029
        %v5440 = vmul.f32 %v5029, %v5439
        %v5441 = vsub.f32 1.0, %v5440
        %v5442 = vmul.f32 %v5439, %v5441
        %v5443 = vadd.f32 %v5439, %v5442
        %vm5444 = vweird.f32 %v5029
        %vm5445 = vweird.f32 %v5439
        %vm5446 = vmor %vm5444, %vm5445
        %v5447 = vsel %vm5446, %v5439, %v5443
        %v5448 = vand.u32 2147483647, %v5029
        %vm5449 = vcmp.eq.f32.partialorder %v5448, 8.507059e+37
        %v5450 = vand.u32 %v5029, 2147483648
        %v5451 = vor.u32 1.1754944e-38, %v5450
        %v5452 = vsel %vm5449, %v5451, %v5447
        %v5453 = vmul.f32 1.0, %v5452
        %v5454 = vrcp.pop %v5030
        %v5455 = vmul.f32 %v5030, %v5454
        %v5456 = vsub.f32 1.0, %v5455
        %v5457 = vmul.f32 %v5454, %v5456
        %v5458 = vadd.f32 %v5454, %v5457
        %vm5459 = vweird.f32 %v5030
        %vm5460 = vweird.f32 %v5454
        %vm5461 = vmor %vm5459, %vm5460
        %v5462 = vsel %vm5461, %v5454, %v5458
        %v5463 = vand.u32 2147483647, %v5030
        %vm5464 = vcmp.eq.f32.partialorder %v5463, 8.507059e+37
        %v5465 = vand.u32 %v5030, 2147483648
        %v5466 = vor.u32 1.1754944e-38, %v5465
        %v5467 = vsel %vm5464, %v5466, %v5462
        %v5468 = vmul.f32 1.0, %v5467
        %v5469 = vrcp.pop %v5031
        %v5470 = vmul.f32 %v5031, %v5469
        %v5471 = vsub.f32 1.0, %v5470
        %v5472 = vmul.f32 %v5469, %v5471
        %v5473 = vadd.f32 %v5469, %v5472
        %vm5474 = vweird.f32 %v5031
        %vm5475 = vweird.f32 %v5469
        %vm5476 = vmor %vm5474, %vm5475
        %v5477 = vsel %vm5476, %v5469, %v5473
        %v5478 = vand.u32 2147483647, %v5031
        %vm5479 = vcmp.eq.f32.partialorder %v5478, 8.507059e+37
        %v5480 = vand.u32 %v5031, 2147483648
        %v5481 = vor.u32 1.1754944e-38, %v5480
        %v5482 = vsel %vm5479, %v5481, %v5477
        %v5483 = vmul.f32 1.0, %v5482
        %v5484 = vrcp.pop %v5032
        %v5485 = vmul.f32 %v5032, %v5484
        %v5486 = vsub.f32 1.0, %v5485
        %v5487 = vmul.f32 %v5484, %v5486
        %v5488 = vadd.f32 %v5484, %v5487
        %vm5489 = vweird.f32 %v5032
        %vm5490 = vweird.f32 %v5484
        %vm5491 = vmor %vm5489, %vm5490
        %v5492 = vsel %vm5491, %v5484, %v5488
        %v5493 = vand.u32 2147483647, %v5032
        %vm5494 = vcmp.eq.f32.partialorder %v5493, 8.507059e+37
        %v5495 = vand.u32 %v5032, 2147483648
        %v5496 = vor.u32 1.1754944e-38, %v5495
        %v5497 = vsel %vm5494, %v5496, %v5492
        %v5498 = vmul.f32 1.0, %v5497
        %v5499 = vrcp.pop %v5033
        %v5500 = vmul.f32 %v5033, %v5499
        %v5501 = vsub.f32 1.0, %v5500
        %v5502 = vmul.f32 %v5499, %v5501
        %v5503 = vadd.f32 %v5499, %v5502
        %vm5504 = vweird.f32 %v5033
        %vm5505 = vweird.f32 %v5499
        %vm5506 = vmor %vm5504, %vm5505
        %v5507 = vsel %vm5506, %v5499, %v5503
        %v5508 = vand.u32 2147483647, %v5033
        %vm5509 = vcmp.eq.f32.partialorder %v5508, 8.507059e+37
        %v5510 = vand.u32 %v5033, 2147483648
        %v5511 = vor.u32 1.1754944e-38, %v5510
        %v5512 = vsel %vm5509, %v5511, %v5507
        %v5513 = vmul.f32 1.0, %v5512
        %v5514 = vmul.f32 %v4874, %v5048
        %v5515 = vmul.f32 %v4875, %v5063
        %v5516 = vmul.f32 %v4876, %v5078
        %v5517 = vmul.f32 %v4877, %v5093
        %v5518 = vmul.f32 %v4878, %v5108
        %v5519 = vmul.f32 %v4879, %v5123
        %v5520 = vmul.f32 %v4880, %v5138
        %v5521 = vmul.f32 %v4881, %v5153
        %v5522 = vmul.f32 %v4882, %v5168
        %v5523 = vmul.f32 %v4883, %v5183
        %v5524 = vmul.f32 %v4884, %v5198
        %v5525 = vmul.f32 %v4885, %v5213
        %v5526 = vmul.f32 %v4886, %v5228
        %v5527 = vmul.f32 %v4887, %v5243
        %v5528 = vmul.f32 %v4888, %v5258
        %v5529 = vmul.f32 %v4889, %v5273
        %v5530 = vmul.f32 %v4890, %v5288
        %v5531 = vmul.f32 %v4891, %v5303
        %v5532 = vmul.f32 %v4892, %v5318
        %v5533 = vmul.f32 %v4893, %v5333
        %v5534 = vmul.f32 %v4894, %v5348
        %v5535 = vmul.f32 %v4895, %v5363
        %v5536 = vmul.f32 %v4896, %v5378
        %v5537 = vmul.f32 %v4897, %v5393
        %v5538 = vmul.f32 %v4898, %v5408
        %v5539 = vmul.f32 %v4899, %v5423
        %v5540 = vmul.f32 %v4900, %v5438
        %v5541 = vmul.f32 %v4901, %v5453
        %v5542 = vmul.f32 %v4902, %v5468
        %v5543 = vmul.f32 %v4903, %v5483
        %v5544 = vmul.f32 %v4904, %v5498
        %v5545 = vmul.f32 %v4905, %v5513
        %v5546 = vld [vmem:[%s11] sm:$0x1]
        %5547 = vst [vmem:[#allocation2 + $0x10] sm:$0xff] %v5514
        %5548 = vst [vmem:[#allocation2 + $0x18] sm:$0xff] %v5515
        %5549 = vst [vmem:[#allocation2 + $0x20] sm:$0xff] %v5516
        %5550 = vst [vmem:[#allocation2 + $0x28] sm:$0xff] %v5517
        %5551 = vst [vmem:[#allocation2 + $0x30] sm:$0xff] %v5518
        %5552 = vst [vmem:[#allocation2 + $0x38] sm:$0xff] %v5519
        %5553 = vst [vmem:[#allocation2 + $0x40] sm:$0xff] %v5520
        %5554 = vst [vmem:[#allocation2 + $0x48] sm:$0xff] %v5521
        %5555 = vst [vmem:[#allocation2 + $0x50] sm:$0xff] %v5522
        %5556 = vst [vmem:[#allocation2 + $0x58] sm:$0xff] %v5523
        %5557 = vst [vmem:[#allocation2 + $0x60] sm:$0xff] %v5524
        %5558 = vst [vmem:[#allocation2 + $0x68] sm:$0xff] %v5525
        %5559 = vst [vmem:[#allocation2 + $0x70] sm:$0xff] %v5526
        %5560 = vst [vmem:[#allocation2 + $0x78] sm:$0xff] %v5527
        %5561 = vst [vmem:[#allocation2 + $0x80] sm:$0xff] %v5528
        %5562 = vst [vmem:[#allocation2 + $0x88] sm:$0xff] %v5529
        %5563 = vst [vmem:[#allocation2 + $0x90] sm:$0xff] %v5530
        %5564 = vst [vmem:[#allocation2 + $0x98] sm:$0xff] %v5531
        %5565 = vst [vmem:[#allocation2 + $0xa0] sm:$0xff] %v5532
        %5566 = vst [vmem:[#allocation2 + $0xa8] sm:$0xff] %v5533
        %5567 = vst [vmem:[#allocation2 + $0xb0] sm:$0xff] %v5534
        %5568 = vst [vmem:[#allocation2 + $0xb8] sm:$0xff] %v5535
        %5569 = vst [vmem:[#allocation2 + $0xc0] sm:$0xff] %v5536
        %5570 = vst [vmem:[#allocation2 + $0xc8] sm:$0xff] %v5537
        %5571 = vst [vmem:[#allocation2 + $0xd0] sm:$0xff] %v5538
        %5572 = vst [vmem:[#allocation2 + $0xd8] sm:$0xff] %v5539
        %5573 = vst [vmem:[#allocation2 + $0xe0] sm:$0xff] %v5540
        %5574 = vst [vmem:[#allocation2 + $0xe8] sm:$0xff] %v5541
        %5575 = vst [vmem:[#allocation2 + $0xf0] sm:$0xff] %v5542
        %5576 = vst [vmem:[#allocation2 + $0xf8] sm:$0xff] %v5543
        %5577 = vst [vmem:[#allocation2 + $0x100] sm:$0xff] %v5544
        %5578 = vst [vmem:[#allocation2 + $0x108] sm:$0xff] %v5545
        %v5579 = vld [vmem:[#allocation2] sm:$0xff]
        %v5580 = vld [vmem:[#allocation2 + $0x8] sm:$0xff]
        %v5581 = vld [vmem:[#allocation2 + $0x10] sm:$0xff]
        %v5582 = vld [vmem:[#allocation2 + $0x18] sm:$0xff]
        %v5583 = vld [vmem:[#allocation2 + $0x20] sm:$0xff]
        %v5584 = vld [vmem:[#allocation2 + $0x28] sm:$0xff]
        %v5585 = vld [vmem:[#allocation2 + $0x30] sm:$0xff]
        %v5586 = vld [vmem:[#allocation2 + $0x38] sm:$0xff]
        %v5587 = vld [vmem:[#allocation2 + $0x40] sm:$0xff]
        %v5588 = vld [vmem:[#allocation2 + $0x48] sm:$0xff]
        %v5589 = vld [vmem:[#allocation2 + $0x50] sm:$0xff]
        %v5590 = vld [vmem:[#allocation2 + $0x58] sm:$0xff]
        %v5591 = vld [vmem:[#allocation2 + $0x60] sm:$0xff]
        %v5592 = vld [vmem:[#allocation2 + $0x68] sm:$0xff]
        %v5593 = vld [vmem:[#allocation2 + $0x70] sm:$0xff]
        %v5594 = vld [vmem:[#allocation2 + $0x78] sm:$0xff]
        %v5595 = vld [vmem:[#allocation2 + $0x80] sm:$0xff]
        %v5596 = vld [vmem:[#allocation2 + $0x88] sm:$0xff]
        %v5597 = vld [vmem:[#allocation2 + $0x90] sm:$0xff]
        %v5598 = vld [vmem:[#allocation2 + $0x98] sm:$0xff]
        %v5599 = vld [vmem:[#allocation2 + $0xa0] sm:$0xff]
        %v5600 = vld [vmem:[#allocation2 + $0xa8] sm:$0xff]
        %v5601 = vld [vmem:[#allocation2 + $0xb0] sm:$0xff]
        %v5602 = vld [vmem:[#allocation2 + $0xb8] sm:$0xff]
        %v5603 = vld [vmem:[#allocation2 + $0xc0] sm:$0xff]
        %v5604 = vld [vmem:[#allocation2 + $0xc8] sm:$0xff]
        %v5605 = vld [vmem:[#allocation2 + $0xd0] sm:$0xff]
        %v5606 = vld [vmem:[#allocation2 + $0xd8] sm:$0xff]
        %v5607 = vld [vmem:[#allocation2 + $0xe0] sm:$0xff]
        %v5608 = vld [vmem:[#allocation2 + $0xe8] sm:$0xff]
        %v5609 = vld [vmem:[#allocation2 + $0xf0] sm:$0xff]
        %v5610 = vld [vmem:[#allocation2 + $0xf8] sm:$0xff]
        %v5611 = vrot.slane %v5579, 7
        %v5612 = vrot.slane %v5580, 7
        %v5613 = vrot.slane %v5581, 7
        %v5614 = vrot.slane %v5582, 7
        %v5615 = vrot.slane %v5583, 7
        %v5616 = vrot.slane %v5584, 7
        %v5617 = vrot.slane %v5585, 7
        %v5618 = vrot.slane %v5586, 7
        %v5619 = vrot.slane %v5587, 7
        %v5620 = vrot.slane %v5588, 7
        %v5621 = vrot.slane %v5589, 7
        %v5622 = vrot.slane %v5590, 7
        %v5623 = vrot.slane %v5591, 7
        %v5624 = vrot.slane %v5592, 7
        %v5625 = vrot.slane %v5593, 7
        %v5626 = vrot.slane %v5594, 7
        %v5627 = vrot.slane %v5595, 7
        %v5628 = vrot.slane %v5596, 7
        %v5629 = vrot.slane %v5597, 7
        %v5630 = vrot.slane %v5598, 7
        %v5631 = vrot.slane %v5599, 7
        %v5632 = vrot.slane %v5600, 7
        %v5633 = vrot.slane %v5601, 7
        %v5634 = vrot.slane %v5602, 7
        %v5635 = vrot.slane %v5603, 7
        %v5636 = vrot.slane %v5604, 7
        %v5637 = vrot.slane %v5605, 7
        %v5638 = vrot.slane %v5606, 7
        %v5639 = vrot.slane %v5607, 7
        %v5640 = vrot.slane %v5608, 7
        %v5641 = vrot.slane %v5609, 7
        %v5642 = vrot.slane %v5610, 7
        %v5643 = vsel %vm2144, %v5641, %v5642
        %v5644 = vsel %vm2144, %v5640, %v5641
        %v5645 = vsel %vm2144, %v5639, %v5640
        %v5646 = vsel %vm2144, %v5638, %v5639
        %v5647 = vsel %vm2144, %v5637, %v5638
        %v5648 = vsel %vm2144, %v5636, %v5637
        %v5649 = vsel %vm2144, %v5635, %v5636
        %v5650 = vsel %vm2144, %v5634, %v5635
        %v5651 = vsel %vm2144, %v5633, %v5634
        %v5652 = vsel %vm2144, %v5632, %v5633
        %v5653 = vsel %vm2144, %v5631, %v5632
        %v5654 = vsel %vm2144, %v5630, %v5631
        %v5655 = vsel %vm2144, %v5629, %v5630
        %v5656 = vsel %vm2144, %v5628, %v5629
        %v5657 = vsel %vm2144, %v5627, %v5628
        %v5658 = vsel %vm2144, %v5626, %v5627
        %v5659 = vsel %vm2144, %v5625, %v5626
        %v5660 = vsel %vm2144, %v5624, %v5625
        %v5661 = vsel %vm2144, %v5623, %v5624
        %v5662 = vsel %vm2144, %v5622, %v5623
        %v5663 = vsel %vm2144, %v5621, %v5622
        %v5664 = vsel %vm2144, %v5620, %v5621
        %v5665 = vsel %vm2144, %v5619, %v5620
        %v5666 = vsel %vm2144, %v5618, %v5619
        %v5667 = vsel %vm2144, %v5617, %v5618
        %v5668 = vsel %vm2144, %v5616, %v5617
        %v5669 = vsel %vm2144, %v5615, %v5616
        %v5670 = vsel %vm2144, %v5614, %v5615
        %v5671 = vsel %vm2144, %v5613, %v5614
        %v5672 = vsel %vm2144, %v5612, %v5613
        %v5673 = vsel %vm2144, %v5611, %v5612
        %v5674 = vsel %vm2144, %v5642, %v5611
        %v5675 = vmul.f32 %v5674, %v911
        %v5676 = vmul.f32 %v5673, %v912
        %v5677 = vmul.f32 %v5672, %v913
        %v5678 = vmul.f32 %v5671, %v914
        %v5679 = vmul.f32 %v5670, %v915
        %v5680 = vmul.f32 %v5669, %v916
        %v5681 = vmul.f32 %v5668, %v917
        %v5682 = vmul.f32 %v5667, %v918
        %v5683 = vmul.f32 %v5666, %v919
        %v5684 = vmul.f32 %v5665, %v920
        %v5685 = vmul.f32 %v5664, %v921
        %v5686 = vmul.f32 %v5663, %v922
        %v5687 = vmul.f32 %v5662, %v923
        %v5688 = vmul.f32 %v5661, %v924
        %v5689 = vmul.f32 %v5660, %v925
        %v5690 = vmul.f32 %v5659, %v926
        %v5691 = vmul.f32 %v5658, %v927
        %v5692 = vmul.f32 %v5657, %v928
        %v5693 = vmul.f32 %v5656, %v929
        %v5694 = vmul.f32 %v5655, %v930
        %v5695 = vmul.f32 %v5654, %v931
        %v5696 = vmul.f32 %v5653, %v932
        %v5697 = vmul.f32 %v5652, %v933
        %v5698 = vmul.f32 %v5651, %v934
        %v5699 = vmul.f32 %v5650, %v935
        %v5700 = vmul.f32 %v5649, %v936
        %v5701 = vmul.f32 %v5648, %v937
        %v5702 = vmul.f32 %v5647, %v938
        %v5703 = vmul.f32 %v5646, %v939
        %v5704 = vmul.f32 %v5645, %v940
        %v5705 = vmul.f32 %v5644, %v941
        %v5706 = vmul.f32 %v5643, %v942
        %v5707 = vpack.c.bf16 %v5676, %v5675
        %v5708 = vpack.c.bf16 %v5678, %v5677
        %v5709 = vpack.c.bf16 %v5680, %v5679
        %v5710 = vpack.c.bf16 %v5682, %v5681
        %v5711 = vpack.c.bf16 %v5684, %v5683
        %v5712 = vpack.c.bf16 %v5686, %v5685
        %v5713 = vpack.c.bf16 %v5688, %v5687
        %v5714 = vpack.c.bf16 %v5690, %v5689
        %v5715 = vpack.c.bf16 %v5692, %v5691
        %v5716 = vpack.c.bf16 %v5694, %v5693
        %v5717 = vpack.c.bf16 %v5696, %v5695
        %v5718 = vpack.c.bf16 %v5698, %v5697
        %v5719 = vpack.c.bf16 %v5700, %v5699
        %v5720 = vpack.c.bf16 %v5702, %v5701
        %v5721 = vpack.c.bf16 %v5704, %v5703
        %v5722 = vpack.c.bf16 %v5706, %v5705
        %v5723 = vld [vmem:[%s10] sm:$0xf]
        %v5724 = vld [vmem:[%s10 + $0x4] sm:$0xf]
        %v5725 = vld [vmem:[%s10 + $0x8] sm:$0xf]
        %v5726 = vld [vmem:[%s10 + $0xc] sm:$0xf]
        %v5727 = vld [vmem:[%s10 + $0x10] sm:$0xf]
        %v5728 = vld [vmem:[%s10 + $0x14] sm:$0xf]
        %v5729 = vld [vmem:[%s10 + $0x18] sm:$0xf]
        %v5730 = vld [vmem:[%s10 + $0x1c] sm:$0xf]
        %v5731 = vld [vmem:[%s10 + $0x20] sm:$0xf]
        %v5732 = vld [vmem:[%s10 + $0x24] sm:$0xf]
        %v5733 = vld [vmem:[%s10 + $0x28] sm:$0xf]
        %v5734 = vld [vmem:[%s10 + $0x2c] sm:$0xf]
        %v5735 = vld [vmem:[%s10 + $0x30] sm:$0xf]
        %v5736 = vld [vmem:[%s10 + $0x34] sm:$0xf]
        %v5737 = vld [vmem:[%s10 + $0x38] sm:$0xf]
        %v5738 = vld [vmem:[%s10 + $0x3c] sm:$0xf]
        %v5739 = vpack.c.bf16 %v5580, %v5579
        %v5740 = vpack.c.bf16 %v5582, %v5581
        %v5741 = vpack.c.bf16 %v5584, %v5583
        %v5742 = vpack.c.bf16 %v5586, %v5585
        %v5743 = vpack.c.bf16 %v5588, %v5587
        %v5744 = vpack.c.bf16 %v5590, %v5589
        %v5745 = vpack.c.bf16 %v5592, %v5591
        %v5746 = vpack.c.bf16 %v5594, %v5593
        %v5747 = vpack.c.bf16 %v5596, %v5595
        %v5748 = vpack.c.bf16 %v5598, %v5597
        %v5749 = vpack.c.bf16 %v5600, %v5599
        %v5750 = vpack.c.bf16 %v5602, %v5601
        %v5751 = vpack.c.bf16 %v5604, %v5603
        %v5752 = vpack.c.bf16 %v5606, %v5605
        %v5753 = vpack.c.bf16 %v5608, %v5607
        %v5754 = vpack.c.bf16 %v5610, %v5609
        %s5755 = scalar_lea.vmem %s10, 64
        %v5756 = vld [vmem:[%s5755] sm:$0xf]
        %v5757 = vld [vmem:[%s5755 + $0x4] sm:$0xf]
        %v5758 = vld [vmem:[%s5755 + $0x8] sm:$0xf]
        %v5759 = vld [vmem:[%s5755 + $0xc] sm:$0xf]
        %v5760 = vld [vmem:[%s5755 + $0x10] sm:$0xf]
        %v5761 = vld [vmem:[%s5755 + $0x14] sm:$0xf]
        %v5762 = vld [vmem:[%s5755 + $0x18] sm:$0xf]
        %v5763 = vld [vmem:[%s5755 + $0x1c] sm:$0xf]
        %v5764 = vld [vmem:[%s5755 + $0x20] sm:$0xf]
        %v5765 = vld [vmem:[%s5755 + $0x24] sm:$0xf]
        %v5766 = vld [vmem:[%s5755 + $0x28] sm:$0xf]
        %v5767 = vld [vmem:[%s5755 + $0x2c] sm:$0xf]
        %v5768 = vld [vmem:[%s5755 + $0x30] sm:$0xf]
        %v5769 = vld [vmem:[%s5755 + $0x34] sm:$0xf]
        %v5770 = vld [vmem:[%s5755 + $0x38] sm:$0xf]
        %v5771 = vld [vmem:[%s5755 + $0x3c] sm:$0xf]
        %v5788 = vunpack.c.l.b16 %v5756
        %v5789 = vunpack.c.l.b16 %v5757
        %v5790 = vunpack.c.l.b16 %v5758
        %v5791 = vunpack.c.l.b16 %v5759
        %v5792 = vunpack.c.l.b16 %v5760
        %v5793 = vunpack.c.l.b16 %v5761
        %v5794 = vunpack.c.l.b16 %v5762
        %v5795 = vunpack.c.l.b16 %v5763
        %v5796 = vunpack.c.l.b16 %v5764
        %v5797 = vunpack.c.l.b16 %v5765
        %v5798 = vunpack.c.l.b16 %v5766
        %v5799 = vunpack.c.l.b16 %v5767
        %v5800 = vunpack.c.l.b16 %v5768
        %v5801 = vunpack.c.l.b16 %v5769
        %v5802 = vunpack.c.l.b16 %v5770
        %v5803 = vunpack.c.l.b16 %v5771
        %v5804 = vpack.c.b16 %v5789, %v5788
        %v5805 = vpack.c.b16 %v5791, %v5790
        %v5806 = vpack.c.b16 %v5793, %v5792
        %v5807 = vpack.c.b16 %v5795, %v5794
        %v5808 = vpack.c.b16 %v5797, %v5796
        %v5809 = vpack.c.b16 %v5799, %v5798
        %v5810 = vpack.c.b16 %v5801, %v5800
        %v5811 = vpack.c.b16 %v5803, %v5802
        %5820 = vmatpush.bf16.msra.mxu0 %v5811
        %5821 = vmatpush.bf16.msra.mxu0 %v5810
        %5822 = vmatpush.bf16.msra.mxu0 %v5809
        %5823 = vmatpush.bf16.msra.mxu0 %v5808
        %5824 = vmatpush.bf16.msra.mxu0 %v5807
        %5825 = vmatpush.bf16.msra.mxu0 %v5806
        %5826 = vmatpush.bf16.msra.mxu0 %v5805
        %5827 = vmatpush.bf16.msra.mxu0 %v5804
        %5828 = vmatmul.bf16.gmra.mxu0 %v5739
        %v5829 = vpop.f32.mrf.mxu0
        %v5830 = vadd.f32 0.0, %v5829
        %v5831 = vpop.f32.mrf.mxu0
        %v5832 = vadd.f32 0.0, %v5831
        %5833 = vmatmul.bf16.gmra.mxu0 %v5740
        %v5834 = vpop.f32.mrf.mxu0
        %v5835 = vadd.f32 0.0, %v5834
        %v5836 = vpop.f32.mrf.mxu0
        %v5837 = vadd.f32 0.0, %v5836
        %5838 = vmatmul.bf16.gmra.mxu0 %v5741
        %v5839 = vpop.f32.mrf.mxu0
        %v5840 = vadd.f32 0.0, %v5839
        %v5841 = vpop.f32.mrf.mxu0
        %v5842 = vadd.f32 0.0, %v5841
        %5843 = vmatmul.bf16.gmra.mxu0 %v5742
        %v5844 = vpop.f32.mrf.mxu0
        %v5845 = vadd.f32 0.0, %v5844
        %v5846 = vpop.f32.mrf.mxu0
        %v5847 = vadd.f32 0.0, %v5846
        %5848 = vmatmul.bf16.gmra.mxu0 %v5743
        %v5849 = vpop.f32.mrf.mxu0
        %v5850 = vadd.f32 0.0, %v5849
        %v5851 = vpop.f32.mrf.mxu0
        %v5852 = vadd.f32 0.0, %v5851
        %5853 = vmatmul.bf16.gmra.mxu0 %v5744
        %v5854 = vpop.f32.mrf.mxu0
        %v5855 = vadd.f32 0.0, %v5854
        %v5856 = vpop.f32.mrf.mxu0
        %v5857 = vadd.f32 0.0, %v5856
        %5858 = vmatmul.bf16.gmra.mxu0 %v5745
        %v5859 = vpop.f32.mrf.mxu0
        %v5860 = vadd.f32 0.0, %v5859
        %v5861 = vpop.f32.mrf.mxu0
        %v5862 = vadd.f32 0.0, %v5861
        %5863 = vmatmul.bf16.gmra.mxu0 %v5746
        %v5864 = vpop.f32.mrf.mxu0
        %v5865 = vadd.f32 0.0, %v5864
        %v5866 = vpop.f32.mrf.mxu0
        %v5867 = vadd.f32 0.0, %v5866
        %5868 = vmatmul.bf16.gmra.mxu0 %v5747
        %v5869 = vpop.f32.mrf.mxu0
        %v5870 = vadd.f32 0.0, %v5869
        %v5871 = vpop.f32.mrf.mxu0
        %v5872 = vadd.f32 0.0, %v5871
        %5873 = vmatmul.bf16.gmra.mxu0 %v5748
        %v5874 = vpop.f32.mrf.mxu0
        %v5875 = vadd.f32 0.0, %v5874
        %v5876 = vpop.f32.mrf.mxu0
        %v5877 = vadd.f32 0.0, %v5876
        %5878 = vmatmul.bf16.gmra.mxu0 %v5749
        %v5879 = vpop.f32.mrf.mxu0
        %v5880 = vadd.f32 0.0, %v5879
        %v5881 = vpop.f32.mrf.mxu0
        %v5882 = vadd.f32 0.0, %v5881
        %5883 = vmatmul.bf16.gmra.mxu0 %v5750
        %v5884 = vpop.f32.mrf.mxu0
        %v5885 = vadd.f32 0.0, %v5884
        %v5886 = vpop.f32.mrf.mxu0
        %v5887 = vadd.f32 0.0, %v5886
        %5888 = vmatmul.bf16.gmra.mxu0 %v5751
        %v5889 = vpop.f32.mrf.mxu0
        %v5890 = vadd.f32 0.0, %v5889
        %v5891 = vpop.f32.mrf.mxu0
        %v5892 = vadd.f32 0.0, %v5891
        %5893 = vmatmul.bf16.gmra.mxu0 %v5752
        %v5894 = vpop.f32.mrf.mxu0
        %v5895 = vadd.f32 0.0, %v5894
        %v5896 = vpop.f32.mrf.mxu0
        %v5897 = vadd.f32 0.0, %v5896
        %5898 = vmatmul.bf16.gmra.mxu0 %v5753
        %v5899 = vpop.f32.mrf.mxu0
        %v5900 = vadd.f32 0.0, %v5899
        %v5901 = vpop.f32.mrf.mxu0
        %v5902 = vadd.f32 0.0, %v5901
        %5903 = vmatmul.bf16.gmra.mxu0 %v5754
        %v5904 = vpop.f32.mrf.mxu0
        %v5905 = vadd.f32 0.0, %v5904
        %v5906 = vpop.f32.mrf.mxu0
        %v5907 = vadd.f32 0.0, %v5906
        %5908 = vdwg.mxu0
        %v5925 = vunpack.c.l.b16 %v5723
        %v5926 = vunpack.c.l.b16 %v5724
        %v5927 = vunpack.c.l.b16 %v5725
        %v5928 = vunpack.c.l.b16 %v5726
        %v5929 = vunpack.c.l.b16 %v5727
        %v5930 = vunpack.c.l.b16 %v5728
        %v5931 = vunpack.c.l.b16 %v5729
        %v5932 = vunpack.c.l.b16 %v5730
        %v5933 = vunpack.c.l.b16 %v5731
        %v5934 = vunpack.c.l.b16 %v5732
        %v5935 = vunpack.c.l.b16 %v5733
        %v5936 = vunpack.c.l.b16 %v5734
        %v5937 = vunpack.c.l.b16 %v5735
        %v5938 = vunpack.c.l.b16 %v5736
        %v5939 = vunpack.c.l.b16 %v5737
        %v5940 = vunpack.c.l.b16 %v5738
        %v5941 = vpack.c.b16 %v5926, %v5925
        %v5942 = vpack.c.b16 %v5928, %v5927
        %v5943 = vpack.c.b16 %v5930, %v5929
        %v5944 = vpack.c.b16 %v5932, %v5931
        %v5945 = vpack.c.b16 %v5934, %v5933
        %v5946 = vpack.c.b16 %v5936, %v5935
        %v5947 = vpack.c.b16 %v5938, %v5937
        %v5948 = vpack.c.b16 %v5940, %v5939
        %5957 = vmatpush.bf16.msra.mxu0 %v5948
        %5958 = vmatpush.bf16.msra.mxu0 %v5947
        %5959 = vmatpush.bf16.msra.mxu0 %v5946
        %5960 = vmatpush.bf16.msra.mxu0 %v5945
        %5961 = vmatpush.bf16.msra.mxu0 %v5944
        %5962 = vmatpush.bf16.msra.mxu0 %v5943
        %5963 = vmatpush.bf16.msra.mxu0 %v5942
        %5964 = vmatpush.bf16.msra.mxu0 %v5941
        %5965 = vmatmul.bf16.gmra.mxu0 %v5707
        %v5966 = vpop.f32.mrf.mxu0
        %v5967 = vadd.f32 %v5830, %v5966
        %v5968 = vpop.f32.mrf.mxu0
        %v5969 = vadd.f32 %v5832, %v5968
        %5970 = vmatmul.bf16.gmra.mxu0 %v5708
        %v5971 = vpop.f32.mrf.mxu0
        %v5972 = vadd.f32 %v5835, %v5971
        %v5973 = vpop.f32.mrf.mxu0
        %v5974 = vadd.f32 %v5837, %v5973
        %5975 = vmatmul.bf16.gmra.mxu0 %v5709
        %v5976 = vpop.f32.mrf.mxu0
        %v5977 = vadd.f32 %v5840, %v5976
        %v5978 = vpop.f32.mrf.mxu0
        %v5979 = vadd.f32 %v5842, %v5978
        %5980 = vmatmul.bf16.gmra.mxu0 %v5710
        %v5981 = vpop.f32.mrf.mxu0
        %v5982 = vadd.f32 %v5845, %v5981
        %v5983 = vpop.f32.mrf.mxu0
        %v5984 = vadd.f32 %v5847, %v5983
        %5985 = vmatmul.bf16.gmra.mxu0 %v5711
        %v5986 = vpop.f32.mrf.mxu0
        %v5987 = vadd.f32 %v5850, %v5986
        %v5988 = vpop.f32.mrf.mxu0
        %v5989 = vadd.f32 %v5852, %v5988
        %5990 = vmatmul.bf16.gmra.mxu0 %v5712
        %v5991 = vpop.f32.mrf.mxu0
        %v5992 = vadd.f32 %v5855, %v5991
        %v5993 = vpop.f32.mrf.mxu0
        %v5994 = vadd.f32 %v5857, %v5993
        %5995 = vmatmul.bf16.gmra.mxu0 %v5713
        %v5996 = vpop.f32.mrf.mxu0
        %v5997 = vadd.f32 %v5860, %v5996
        %v5998 = vpop.f32.mrf.mxu0
        %v5999 = vadd.f32 %v5862, %v5998
        %6000 = vmatmul.bf16.gmra.mxu0 %v5714
        %v6001 = vpop.f32.mrf.mxu0
        %v6002 = vadd.f32 %v5865, %v6001
        %v6003 = vpop.f32.mrf.mxu0
        %v6004 = vadd.f32 %v5867, %v6003
        %6005 = vmatmul.bf16.gmra.mxu0 %v5715
        %v6006 = vpop.f32.mrf.mxu0
        %v6007 = vadd.f32 %v5870, %v6006
        %v6008 = vpop.f32.mrf.mxu0
        %v6009 = vadd.f32 %v5872, %v6008
        %6010 = vmatmul.bf16.gmra.mxu0 %v5716
        %v6011 = vpop.f32.mrf.mxu0
        %v6012 = vadd.f32 %v5875, %v6011
        %v6013 = vpop.f32.mrf.mxu0
        %v6014 = vadd.f32 %v5877, %v6013
        %6015 = vmatmul.bf16.gmra.mxu0 %v5717
        %v6016 = vpop.f32.mrf.mxu0
        %v6017 = vadd.f32 %v5880, %v6016
        %v6018 = vpop.f32.mrf.mxu0
        %v6019 = vadd.f32 %v5882, %v6018
        %6020 = vmatmul.bf16.gmra.mxu0 %v5718
        %v6021 = vpop.f32.mrf.mxu0
        %v6022 = vadd.f32 %v5885, %v6021
        %v6023 = vpop.f32.mrf.mxu0
        %v6024 = vadd.f32 %v5887, %v6023
        %6025 = vmatmul.bf16.gmra.mxu0 %v5719
        %v6026 = vpop.f32.mrf.mxu0
        %v6027 = vadd.f32 %v5890, %v6026
        %v6028 = vpop.f32.mrf.mxu0
        %v6029 = vadd.f32 %v5892, %v6028
        %6030 = vmatmul.bf16.gmra.mxu0 %v5720
        %v6031 = vpop.f32.mrf.mxu0
        %v6032 = vadd.f32 %v5895, %v6031
        %v6033 = vpop.f32.mrf.mxu0
        %v6034 = vadd.f32 %v5897, %v6033
        %6035 = vmatmul.bf16.gmra.mxu0 %v5721
        %v6036 = vpop.f32.mrf.mxu0
        %v6037 = vadd.f32 %v5900, %v6036
        %v6038 = vpop.f32.mrf.mxu0
        %v6039 = vadd.f32 %v5902, %v6038
        %6040 = vmatmul.bf16.gmra.mxu0 %v5722
        %v6041 = vpop.f32.mrf.mxu0
        %v6042 = vadd.f32 %v5905, %v6041
        %v6043 = vpop.f32.mrf.mxu0
        %v6044 = vadd.f32 %v5907, %v6043
        %6045 = vdwg.mxu0
        %v6046 = vrot.slane %v5579, 1
        %v6047 = vrot.slane %v5580, 1
        %v6048 = vrot.slane %v5581, 1
        %v6049 = vrot.slane %v5582, 1
        %v6050 = vrot.slane %v5583, 1
        %v6051 = vrot.slane %v5584, 1
        %v6052 = vrot.slane %v5585, 1
        %v6053 = vrot.slane %v5586, 1
        %v6054 = vrot.slane %v5587, 1
        %v6055 = vrot.slane %v5588, 1
        %v6056 = vrot.slane %v5589, 1
        %v6057 = vrot.slane %v5590, 1
        %v6058 = vrot.slane %v5591, 1
        %v6059 = vrot.slane %v5592, 1
        %v6060 = vrot.slane %v5593, 1
        %v6061 = vrot.slane %v5594, 1
        %v6062 = vrot.slane %v5595, 1
        %v6063 = vrot.slane %v5596, 1
        %v6064 = vrot.slane %v5597, 1
        %v6065 = vrot.slane %v5598, 1
        %v6066 = vrot.slane %v5599, 1
        %v6067 = vrot.slane %v5600, 1
        %v6068 = vrot.slane %v5601, 1
        %v6069 = vrot.slane %v5602, 1
        %v6070 = vrot.slane %v5603, 1
        %v6071 = vrot.slane %v5604, 1
        %v6072 = vrot.slane %v5605, 1
        %v6073 = vrot.slane %v5606, 1
        %v6074 = vrot.slane %v5607, 1
        %v6075 = vrot.slane %v5608, 1
        %v6076 = vrot.slane %v5609, 1
        %v6077 = vrot.slane %v5610, 1
        %v6078 = vsel %vm2580, %v6076, %v6077
        %v6079 = vsel %vm2580, %v6075, %v6076
        %v6080 = vsel %vm2580, %v6074, %v6075
        %v6081 = vsel %vm2580, %v6073, %v6074
        %v6082 = vsel %vm2580, %v6072, %v6073
        %v6083 = vsel %vm2580, %v6071, %v6072
        %v6084 = vsel %vm2580, %v6070, %v6071
        %v6085 = vsel %vm2580, %v6069, %v6070
        %v6086 = vsel %vm2580, %v6068, %v6069
        %v6087 = vsel %vm2580, %v6067, %v6068
        %v6088 = vsel %vm2580, %v6066, %v6067
        %v6089 = vsel %vm2580, %v6065, %v6066
        %v6090 = vsel %vm2580, %v6064, %v6065
        %v6091 = vsel %vm2580, %v6063, %v6064
        %v6092 = vsel %vm2580, %v6062, %v6063
        %v6093 = vsel %vm2580, %v6061, %v6062
        %v6094 = vsel %vm2580, %v6060, %v6061
        %v6095 = vsel %vm2580, %v6059, %v6060
        %v6096 = vsel %vm2580, %v6058, %v6059
        %v6097 = vsel %vm2580, %v6057, %v6058
        %v6098 = vsel %vm2580, %v6056, %v6057
        %v6099 = vsel %vm2580, %v6055, %v6056
        %v6100 = vsel %vm2580, %v6054, %v6055
        %v6101 = vsel %vm2580, %v6053, %v6054
        %v6102 = vsel %vm2580, %v6052, %v6053
        %v6103 = vsel %vm2580, %v6051, %v6052
        %v6104 = vsel %vm2580, %v6050, %v6051
        %v6105 = vsel %vm2580, %v6049, %v6050
        %v6106 = vsel %vm2580, %v6048, %v6049
        %v6107 = vsel %vm2580, %v6047, %v6048
        %v6108 = vsel %vm2580, %v6046, %v6047
        %v6109 = vsel %vm2580, %v6077, %v6046
        %v6110 = vmul.f32 %v6108, %v1007
        %v6111 = vmul.f32 %v6107, %v1008
        %v6112 = vmul.f32 %v6106, %v1009
        %v6113 = vmul.f32 %v6105, %v1010
        %v6114 = vmul.f32 %v6104, %v1011
        %v6115 = vmul.f32 %v6103, %v1012
        %v6116 = vmul.f32 %v6102, %v1013
        %v6117 = vmul.f32 %v6101, %v1014
        %v6118 = vmul.f32 %v6100, %v1015
        %v6119 = vmul.f32 %v6099, %v1016
        %v6120 = vmul.f32 %v6098, %v1017
        %v6121 = vmul.f32 %v6097, %v1018
        %v6122 = vmul.f32 %v6096, %v1019
        %v6123 = vmul.f32 %v6095, %v1020
        %v6124 = vmul.f32 %v6094, %v1021
        %v6125 = vmul.f32 %v6093, %v1022
        %v6126 = vmul.f32 %v6092, %v1023
        %v6127 = vmul.f32 %v6091, %v1024
        %v6128 = vmul.f32 %v6090, %v1025
        %v6129 = vmul.f32 %v6089, %v1026
        %v6130 = vmul.f32 %v6088, %v1027
        %v6131 = vmul.f32 %v6087, %v1028
        %v6132 = vmul.f32 %v6086, %v1029
        %v6133 = vmul.f32 %v6085, %v1030
        %v6134 = vmul.f32 %v6084, %v1031
        %v6135 = vmul.f32 %v6083, %v1032
        %v6136 = vmul.f32 %v6082, %v1033
        %v6137 = vmul.f32 %v6081, %v1034
        %v6138 = vmul.f32 %v6080, %v1035
        %v6139 = vmul.f32 %v6079, %v1036
        %v6140 = vmul.f32 %v6078, %v1037
        %v6141 = vmul.f32 %v6109, %v1038
        %v6142 = vpack.c.bf16 %v6111, %v6110
        %v6143 = vpack.c.bf16 %v6113, %v6112
        %v6144 = vpack.c.bf16 %v6115, %v6114
        %v6145 = vpack.c.bf16 %v6117, %v6116
        %v6146 = vpack.c.bf16 %v6119, %v6118
        %v6147 = vpack.c.bf16 %v6121, %v6120
        %v6148 = vpack.c.bf16 %v6123, %v6122
        %v6149 = vpack.c.bf16 %v6125, %v6124
        %v6150 = vpack.c.bf16 %v6127, %v6126
        %v6151 = vpack.c.bf16 %v6129, %v6128
        %v6152 = vpack.c.bf16 %v6131, %v6130
        %v6153 = vpack.c.bf16 %v6133, %v6132
        %v6154 = vpack.c.bf16 %v6135, %v6134
        %v6155 = vpack.c.bf16 %v6137, %v6136
        %v6156 = vpack.c.bf16 %v6139, %v6138
        %v6157 = vpack.c.bf16 %v6141, %v6140
        %s6158 = scalar_lea.vmem %s10, 128
        %v6159 = vld [vmem:[%s6158] sm:$0xf]
        %v6160 = vld [vmem:[%s6158 + $0x4] sm:$0xf]
        %v6161 = vld [vmem:[%s6158 + $0x8] sm:$0xf]
        %v6162 = vld [vmem:[%s6158 + $0xc] sm:$0xf]
        %v6163 = vld [vmem:[%s6158 + $0x10] sm:$0xf]
        %v6164 = vld [vmem:[%s6158 + $0x14] sm:$0xf]
        %v6165 = vld [vmem:[%s6158 + $0x18] sm:$0xf]
        %v6166 = vld [vmem:[%s6158 + $0x1c] sm:$0xf]
        %v6167 = vld [vmem:[%s6158 + $0x20] sm:$0xf]
        %v6168 = vld [vmem:[%s6158 + $0x24] sm:$0xf]
        %v6169 = vld [vmem:[%s6158 + $0x28] sm:$0xf]
        %v6170 = vld [vmem:[%s6158 + $0x2c] sm:$0xf]
        %v6171 = vld [vmem:[%s6158 + $0x30] sm:$0xf]
        %v6172 = vld [vmem:[%s6158 + $0x34] sm:$0xf]
        %v6173 = vld [vmem:[%s6158 + $0x38] sm:$0xf]
        %v6174 = vld [vmem:[%s6158 + $0x3c] sm:$0xf]
        %v6191 = vunpack.c.l.b16 %v6159
        %v6192 = vunpack.c.l.b16 %v6160
        %v6193 = vunpack.c.l.b16 %v6161
        %v6194 = vunpack.c.l.b16 %v6162
        %v6195 = vunpack.c.l.b16 %v6163
        %v6196 = vunpack.c.l.b16 %v6164
        %v6197 = vunpack.c.l.b16 %v6165
        %v6198 = vunpack.c.l.b16 %v6166
        %v6199 = vunpack.c.l.b16 %v6167
        %v6200 = vunpack.c.l.b16 %v6168
        %v6201 = vunpack.c.l.b16 %v6169
        %v6202 = vunpack.c.l.b16 %v6170
        %v6203 = vunpack.c.l.b16 %v6171
        %v6204 = vunpack.c.l.b16 %v6172
        %v6205 = vunpack.c.l.b16 %v6173
        %v6206 = vunpack.c.l.b16 %v6174
        %v6207 = vpack.c.b16 %v6192, %v6191
        %v6208 = vpack.c.b16 %v6194, %v6193
        %v6209 = vpack.c.b16 %v6196, %v6195
        %v6210 = vpack.c.b16 %v6198, %v6197
        %v6211 = vpack.c.b16 %v6200, %v6199
        %v6212 = vpack.c.b16 %v6202, %v6201
        %v6213 = vpack.c.b16 %v6204, %v6203
        %v6214 = vpack.c.b16 %v6206, %v6205
        %6223 = vmatpush.bf16.msra.mxu0 %v6214
        %6224 = vmatpush.bf16.msra.mxu0 %v6213
        %6225 = vmatpush.bf16.msra.mxu0 %v6212
        %6226 = vmatpush.bf16.msra.mxu0 %v6211
        %6227 = vmatpush.bf16.msra.mxu0 %v6210
        %6228 = vmatpush.bf16.msra.mxu0 %v6209
        %6229 = vmatpush.bf16.msra.mxu0 %v6208
        %6230 = vmatpush.bf16.msra.mxu0 %v6207
        %6231 = vmatmul.bf16.gmra.mxu0 %v6142
        %v6232 = vpop.f32.mrf.mxu0
        %v6233 = vadd.f32 0.0, %v6232
        %v6234 = vpop.f32.mrf.mxu0
        %v6235 = vadd.f32 0.0, %v6234
        %6236 = vmatmul.bf16.gmra.mxu0 %v6143
        %v6237 = vpop.f32.mrf.mxu0
        %v6238 = vadd.f32 0.0, %v6237
        %v6239 = vpop.f32.mrf.mxu0
        %v6240 = vadd.f32 0.0, %v6239
        %6241 = vmatmul.bf16.gmra.mxu0 %v6144
        %v6242 = vpop.f32.mrf.mxu0
        %v6243 = vadd.f32 0.0, %v6242
        %v6244 = vpop.f32.mrf.mxu0
        %v6245 = vadd.f32 0.0, %v6244
        %6246 = vmatmul.bf16.gmra.mxu0 %v6145
        %v6247 = vpop.f32.mrf.mxu0
        %v6248 = vadd.f32 0.0, %v6247
        %v6249 = vpop.f32.mrf.mxu0
        %v6250 = vadd.f32 0.0, %v6249
        %6251 = vmatmul.bf16.gmra.mxu0 %v6146
        %v6252 = vpop.f32.mrf.mxu0
        %v6253 = vadd.f32 0.0, %v6252
        %v6254 = vpop.f32.mrf.mxu0
        %v6255 = vadd.f32 0.0, %v6254
        %6256 = vmatmul.bf16.gmra.mxu0 %v6147
        %v6257 = vpop.f32.mrf.mxu0
        %v6258 = vadd.f32 0.0, %v6257
        %v6259 = vpop.f32.mrf.mxu0
        %v6260 = vadd.f32 0.0, %v6259
        %6261 = vmatmul.bf16.gmra.mxu0 %v6148
        %v6262 = vpop.f32.mrf.mxu0
        %v6263 = vadd.f32 0.0, %v6262
        %v6264 = vpop.f32.mrf.mxu0
        %v6265 = vadd.f32 0.0, %v6264
        %6266 = vmatmul.bf16.gmra.mxu0 %v6149
        %v6267 = vpop.f32.mrf.mxu0
        %v6268 = vadd.f32 0.0, %v6267
        %v6269 = vpop.f32.mrf.mxu0
        %v6270 = vadd.f32 0.0, %v6269
        %6271 = vmatmul.bf16.gmra.mxu0 %v6150
        %v6272 = vpop.f32.mrf.mxu0
        %v6273 = vadd.f32 0.0, %v6272
        %v6274 = vpop.f32.mrf.mxu0
        %v6275 = vadd.f32 0.0, %v6274
        %6276 = vmatmul.bf16.gmra.mxu0 %v6151
        %v6277 = vpop.f32.mrf.mxu0
        %v6278 = vadd.f32 0.0, %v6277
        %v6279 = vpop.f32.mrf.mxu0
        %v6280 = vadd.f32 0.0, %v6279
        %6281 = vmatmul.bf16.gmra.mxu0 %v6152
        %v6282 = vpop.f32.mrf.mxu0
        %v6283 = vadd.f32 0.0, %v6282
        %v6284 = vpop.f32.mrf.mxu0
        %v6285 = vadd.f32 0.0, %v6284
        %6286 = vmatmul.bf16.gmra.mxu0 %v6153
        %v6287 = vpop.f32.mrf.mxu0
        %v6288 = vadd.f32 0.0, %v6287
        %v6289 = vpop.f32.mrf.mxu0
        %v6290 = vadd.f32 0.0, %v6289
        %6291 = vmatmul.bf16.gmra.mxu0 %v6154
        %v6292 = vpop.f32.mrf.mxu0
        %v6293 = vadd.f32 0.0, %v6292
        %v6294 = vpop.f32.mrf.mxu0
        %v6295 = vadd.f32 0.0, %v6294
        %6296 = vmatmul.bf16.gmra.mxu0 %v6155
        %v6297 = vpop.f32.mrf.mxu0
        %v6298 = vadd.f32 0.0, %v6297
        %v6299 = vpop.f32.mrf.mxu0
        %v6300 = vadd.f32 0.0, %v6299
        %6301 = vmatmul.bf16.gmra.mxu0 %v6156
        %v6302 = vpop.f32.mrf.mxu0
        %v6303 = vadd.f32 0.0, %v6302
        %v6304 = vpop.f32.mrf.mxu0
        %v6305 = vadd.f32 0.0, %v6304
        %6306 = vmatmul.bf16.gmra.mxu0 %v6157
        %v6307 = vpop.f32.mrf.mxu0
        %v6308 = vadd.f32 0.0, %v6307
        %v6309 = vpop.f32.mrf.mxu0
        %v6310 = vadd.f32 0.0, %v6309
        %6311 = vdwg.mxu0
        %v6312 = vadd.f32 %v5967, %v6233
        %v6313 = vadd.f32 %v5969, %v6235
        %v6314 = vadd.f32 %v5972, %v6238
        %v6315 = vadd.f32 %v5974, %v6240
        %v6316 = vadd.f32 %v5977, %v6243
        %v6317 = vadd.f32 %v5979, %v6245
        %v6318 = vadd.f32 %v5982, %v6248
        %v6319 = vadd.f32 %v5984, %v6250
        %v6320 = vadd.f32 %v5987, %v6253
        %v6321 = vadd.f32 %v5989, %v6255
        %v6322 = vadd.f32 %v5992, %v6258
        %v6323 = vadd.f32 %v5994, %v6260
        %v6324 = vadd.f32 %v5997, %v6263
        %v6325 = vadd.f32 %v5999, %v6265
        %v6326 = vadd.f32 %v6002, %v6268
        %v6327 = vadd.f32 %v6004, %v6270
        %v6328 = vadd.f32 %v6007, %v6273
        %v6329 = vadd.f32 %v6009, %v6275
        %v6330 = vadd.f32 %v6012, %v6278
        %v6331 = vadd.f32 %v6014, %v6280
        %v6332 = vadd.f32 %v6017, %v6283
        %v6333 = vadd.f32 %v6019, %v6285
        %v6334 = vadd.f32 %v6022, %v6288
        %v6335 = vadd.f32 %v6024, %v6290
        %v6336 = vadd.f32 %v6027, %v6293
        %v6337 = vadd.f32 %v6029, %v6295
        %v6338 = vadd.f32 %v6032, %v6298
        %v6339 = vadd.f32 %v6034, %v6300
        %v6340 = vadd.f32 %v6037, %v6303
        %v6341 = vadd.f32 %v6039, %v6305
        %v6342 = vadd.f32 %v6042, %v6308
        %v6343 = vadd.f32 %v6044, %v6310
        %v6344 = vld [vmem:[#allocation2 + $0x10] sm:$0xff]
        %v6345 = vld [vmem:[#allocation2 + $0x18] sm:$0xff]
        %v6346 = vld [vmem:[#allocation2 + $0x20] sm:$0xff]
        %v6347 = vld [vmem:[#allocation2 + $0x28] sm:$0xff]
        %v6348 = vld [vmem:[#allocation2 + $0x30] sm:$0xff]
        %v6349 = vld [vmem:[#allocation2 + $0x38] sm:$0xff]
        %v6350 = vld [vmem:[#allocation2 + $0x40] sm:$0xff]
        %v6351 = vld [vmem:[#allocation2 + $0x48] sm:$0xff]
        %v6352 = vld [vmem:[#allocation2 + $0x50] sm:$0xff]
        %v6353 = vld [vmem:[#allocation2 + $0x58] sm:$0xff]
        %v6354 = vld [vmem:[#allocation2 + $0x60] sm:$0xff]
        %v6355 = vld [vmem:[#allocation2 + $0x68] sm:$0xff]
        %v6356 = vld [vmem:[#allocation2 + $0x70] sm:$0xff]
        %v6357 = vld [vmem:[#allocation2 + $0x78] sm:$0xff]
        %v6358 = vld [vmem:[#allocation2 + $0x80] sm:$0xff]
        %v6359 = vld [vmem:[#allocation2 + $0x88] sm:$0xff]
        %v6360 = vld [vmem:[#allocation2 + $0x90] sm:$0xff]
        %v6361 = vld [vmem:[#allocation2 + $0x98] sm:$0xff]
        %v6362 = vld [vmem:[#allocation2 + $0xa0] sm:$0xff]
        %v6363 = vld [vmem:[#allocation2 + $0xa8] sm:$0xff]
        %v6364 = vld [vmem:[#allocation2 + $0xb0] sm:$0xff]
        %v6365 = vld [vmem:[#allocation2 + $0xb8] sm:$0xff]
        %v6366 = vld [vmem:[#allocation2 + $0xc0] sm:$0xff]
        %v6367 = vld [vmem:[#allocation2 + $0xc8] sm:$0xff]
        %v6368 = vld [vmem:[#allocation2 + $0xd0] sm:$0xff]
        %v6369 = vld [vmem:[#allocation2 + $0xd8] sm:$0xff]
        %v6370 = vld [vmem:[#allocation2 + $0xe0] sm:$0xff]
        %v6371 = vld [vmem:[#allocation2 + $0xe8] sm:$0xff]
        %v6372 = vld [vmem:[#allocation2 + $0xf0] sm:$0xff]
        %v6373 = vld [vmem:[#allocation2 + $0xf8] sm:$0xff]
        %v6374 = vld [vmem:[#allocation2 + $0x100] sm:$0xff]
        %v6375 = vld [vmem:[#allocation2 + $0x108] sm:$0xff]
        %v6376 = vrot.slane %v6344, 7
        %v6377 = vrot.slane %v6345, 7
        %v6378 = vrot.slane %v6346, 7
        %v6379 = vrot.slane %v6347, 7
        %v6380 = vrot.slane %v6348, 7
        %v6381 = vrot.slane %v6349, 7
        %v6382 = vrot.slane %v6350, 7
        %v6383 = vrot.slane %v6351, 7
        %v6384 = vrot.slane %v6352, 7
        %v6385 = vrot.slane %v6353, 7
        %v6386 = vrot.slane %v6354, 7
        %v6387 = vrot.slane %v6355, 7
        %v6388 = vrot.slane %v6356, 7
        %v6389 = vrot.slane %v6357, 7
        %v6390 = vrot.slane %v6358, 7
        %v6391 = vrot.slane %v6359, 7
        %v6392 = vrot.slane %v6360, 7
        %v6393 = vrot.slane %v6361, 7
        %v6394 = vrot.slane %v6362, 7
        %v6395 = vrot.slane %v6363, 7
        %v6396 = vrot.slane %v6364, 7
        %v6397 = vrot.slane %v6365, 7
        %v6398 = vrot.slane %v6366, 7
        %v6399 = vrot.slane %v6367, 7
        %v6400 = vrot.slane %v6368, 7
        %v6401 = vrot.slane %v6369, 7
        %v6402 = vrot.slane %v6370, 7
        %v6403 = vrot.slane %v6371, 7
        %v6404 = vrot.slane %v6372, 7
        %v6405 = vrot.slane %v6373, 7
        %v6406 = vrot.slane %v6374, 7
        %v6407 = vrot.slane %v6375, 7
        %v6408 = vsel %vm2144, %v6406, %v6407
        %v6409 = vsel %vm2144, %v6405, %v6406
        %v6410 = vsel %vm2144, %v6404, %v6405
        %v6411 = vsel %vm2144, %v6403, %v6404
        %v6412 = vsel %vm2144, %v6402, %v6403
        %v6413 = vsel %vm2144, %v6401, %v6402
        %v6414 = vsel %vm2144, %v6400, %v6401
        %v6415 = vsel %vm2144, %v6399, %v6400
        %v6416 = vsel %vm2144, %v6398, %v6399
        %v6417 = vsel %vm2144, %v6397, %v6398
        %v6418 = vsel %vm2144, %v6396, %v6397
        %v6419 = vsel %vm2144, %v6395, %v6396
        %v6420 = vsel %vm2144, %v6394, %v6395
        %v6421 = vsel %vm2144, %v6393, %v6394
        %v6422 = vsel %vm2144, %v6392, %v6393
        %v6423 = vsel %vm2144, %v6391, %v6392
        %v6424 = vsel %vm2144, %v6390, %v6391
        %v6425 = vsel %vm2144, %v6389, %v6390
        %v6426 = vsel %vm2144, %v6388, %v6389
        %v6427 = vsel %vm2144, %v6387, %v6388
        %v6428 = vsel %vm2144, %v6386, %v6387
        %v6429 = vsel %vm2144, %v6385, %v6386
        %v6430 = vsel %vm2144, %v6384, %v6385
        %v6431 = vsel %vm2144, %v6383, %v6384
        %v6432 = vsel %vm2144, %v6382, %v6383
        %v6433 = vsel %vm2144, %v6381, %v6382
        %v6434 = vsel %vm2144, %v6380, %v6381
        %v6435 = vsel %vm2144, %v6379, %v6380
        %v6436 = vsel %vm2144, %v6378, %v6379
        %v6437 = vsel %vm2144, %v6377, %v6378
        %v6438 = vsel %vm2144, %v6376, %v6377
        %v6439 = vsel %vm2144, %v6407, %v6376
        %v6440 = vmul.f32 %v6439, %v911
        %v6441 = vmul.f32 %v6438, %v912
        %v6442 = vmul.f32 %v6437, %v913
        %v6443 = vmul.f32 %v6436, %v914
        %v6444 = vmul.f32 %v6435, %v915
        %v6445 = vmul.f32 %v6434, %v916
        %v6446 = vmul.f32 %v6433, %v917
        %v6447 = vmul.f32 %v6432, %v918
        %v6448 = vmul.f32 %v6431, %v919
        %v6449 = vmul.f32 %v6430, %v920
        %v6450 = vmul.f32 %v6429, %v921
        %v6451 = vmul.f32 %v6428, %v922
        %v6452 = vmul.f32 %v6427, %v923
        %v6453 = vmul.f32 %v6426, %v924
        %v6454 = vmul.f32 %v6425, %v925
        %v6455 = vmul.f32 %v6424, %v926
        %v6456 = vmul.f32 %v6423, %v927
        %v6457 = vmul.f32 %v6422, %v928
        %v6458 = vmul.f32 %v6421, %v929
        %v6459 = vmul.f32 %v6420, %v930
        %v6460 = vmul.f32 %v6419, %v931
        %v6461 = vmul.f32 %v6418, %v932
        %v6462 = vmul.f32 %v6417, %v933
        %v6463 = vmul.f32 %v6416, %v934
        %v6464 = vmul.f32 %v6415, %v935
        %v6465 = vmul.f32 %v6414, %v936
        %v6466 = vmul.f32 %v6413, %v937
        %v6467 = vmul.f32 %v6412, %v938
        %v6468 = vmul.f32 %v6411, %v939
        %v6469 = vmul.f32 %v6410, %v940
        %v6470 = vmul.f32 %v6409, %v941
        %v6471 = vmul.f32 %v6408, %v942
        %v6472 = vpack.c.bf16 %v6441, %v6440
        %v6473 = vpack.c.bf16 %v6443, %v6442
        %v6474 = vpack.c.bf16 %v6445, %v6444
        %v6475 = vpack.c.bf16 %v6447, %v6446
        %v6476 = vpack.c.bf16 %v6449, %v6448
        %v6477 = vpack.c.bf16 %v6451, %v6450
        %v6478 = vpack.c.bf16 %v6453, %v6452
        %v6479 = vpack.c.bf16 %v6455, %v6454
        %v6480 = vpack.c.bf16 %v6457, %v6456
        %v6481 = vpack.c.bf16 %v6459, %v6458
        %v6482 = vpack.c.bf16 %v6461, %v6460
        %v6483 = vpack.c.bf16 %v6463, %v6462
        %v6484 = vpack.c.bf16 %v6465, %v6464
        %v6485 = vpack.c.bf16 %v6467, %v6466
        %v6486 = vpack.c.bf16 %v6469, %v6468
        %v6487 = vpack.c.bf16 %v6471, %v6470
        %s6488 = scalar_lea.vmem %s10, 192
        %v6489 = vld [vmem:[%s6488] sm:$0xf]
        %v6490 = vld [vmem:[%s6488 + $0x4] sm:$0xf]
        %v6491 = vld [vmem:[%s6488 + $0x8] sm:$0xf]
        %v6492 = vld [vmem:[%s6488 + $0xc] sm:$0xf]
        %v6493 = vld [vmem:[%s6488 + $0x10] sm:$0xf]
        %v6494 = vld [vmem:[%s6488 + $0x14] sm:$0xf]
        %v6495 = vld [vmem:[%s6488 + $0x18] sm:$0xf]
        %v6496 = vld [vmem:[%s6488 + $0x1c] sm:$0xf]
        %v6497 = vld [vmem:[%s6488 + $0x20] sm:$0xf]
        %v6498 = vld [vmem:[%s6488 + $0x24] sm:$0xf]
        %v6499 = vld [vmem:[%s6488 + $0x28] sm:$0xf]
        %v6500 = vld [vmem:[%s6488 + $0x2c] sm:$0xf]
        %v6501 = vld [vmem:[%s6488 + $0x30] sm:$0xf]
        %v6502 = vld [vmem:[%s6488 + $0x34] sm:$0xf]
        %v6503 = vld [vmem:[%s6488 + $0x38] sm:$0xf]
        %v6504 = vld [vmem:[%s6488 + $0x3c] sm:$0xf]
        %v6521 = vunpack.c.l.b16 %v6489
        %v6522 = vunpack.c.l.b16 %v6490
        %v6523 = vunpack.c.l.b16 %v6491
        %v6524 = vunpack.c.l.b16 %v6492
        %v6525 = vunpack.c.l.b16 %v6493
        %v6526 = vunpack.c.l.b16 %v6494
        %v6527 = vunpack.c.l.b16 %v6495
        %v6528 = vunpack.c.l.b16 %v6496
        %v6529 = vunpack.c.l.b16 %v6497
        %v6530 = vunpack.c.l.b16 %v6498
        %v6531 = vunpack.c.l.b16 %v6499
        %v6532 = vunpack.c.l.b16 %v6500
        %v6533 = vunpack.c.l.b16 %v6501
        %v6534 = vunpack.c.l.b16 %v6502
        %v6535 = vunpack.c.l.b16 %v6503
        %v6536 = vunpack.c.l.b16 %v6504
        %v6537 = vpack.c.b16 %v6522, %v6521
        %v6538 = vpack.c.b16 %v6524, %v6523
        %v6539 = vpack.c.b16 %v6526, %v6525
        %v6540 = vpack.c.b16 %v6528, %v6527
        %v6541 = vpack.c.b16 %v6530, %v6529
        %v6542 = vpack.c.b16 %v6532, %v6531
        %v6543 = vpack.c.b16 %v6534, %v6533
        %v6544 = vpack.c.b16 %v6536, %v6535
        %6553 = vmatpush.bf16.msra.mxu0 %v6544
        %6554 = vmatpush.bf16.msra.mxu0 %v6543
        %6555 = vmatpush.bf16.msra.mxu0 %v6542
        %6556 = vmatpush.bf16.msra.mxu0 %v6541
        %6557 = vmatpush.bf16.msra.mxu0 %v6540
        %6558 = vmatpush.bf16.msra.mxu0 %v6539
        %6559 = vmatpush.bf16.msra.mxu0 %v6538
        %6560 = vmatpush.bf16.msra.mxu0 %v6537
        %6561 = vmatmul.bf16.gmra.mxu0 %v6472
        %v6562 = vpop.f32.mrf.mxu0
        %v6563 = vadd.f32 0.0, %v6562
        %v6564 = vpop.f32.mrf.mxu0
        %v6565 = vadd.f32 0.0, %v6564
        %6566 = vmatmul.bf16.gmra.mxu0 %v6473
        %v6567 = vpop.f32.mrf.mxu0
        %v6568 = vadd.f32 0.0, %v6567
        %v6569 = vpop.f32.mrf.mxu0
        %v6570 = vadd.f32 0.0, %v6569
        %6571 = vmatmul.bf16.gmra.mxu0 %v6474
        %v6572 = vpop.f32.mrf.mxu0
        %v6573 = vadd.f32 0.0, %v6572
        %v6574 = vpop.f32.mrf.mxu0
        %v6575 = vadd.f32 0.0, %v6574
        %6576 = vmatmul.bf16.gmra.mxu0 %v6475
        %v6577 = vpop.f32.mrf.mxu0
        %v6578 = vadd.f32 0.0, %v6577
        %v6579 = vpop.f32.mrf.mxu0
        %v6580 = vadd.f32 0.0, %v6579
        %6581 = vmatmul.bf16.gmra.mxu0 %v6476
        %v6582 = vpop.f32.mrf.mxu0
        %v6583 = vadd.f32 0.0, %v6582
        %v6584 = vpop.f32.mrf.mxu0
        %v6585 = vadd.f32 0.0, %v6584
        %6586 = vmatmul.bf16.gmra.mxu0 %v6477
        %v6587 = vpop.f32.mrf.mxu0
        %v6588 = vadd.f32 0.0, %v6587
        %v6589 = vpop.f32.mrf.mxu0
        %v6590 = vadd.f32 0.0, %v6589
        %6591 = vmatmul.bf16.gmra.mxu0 %v6478
        %v6592 = vpop.f32.mrf.mxu0
        %v6593 = vadd.f32 0.0, %v6592
        %v6594 = vpop.f32.mrf.mxu0
        %v6595 = vadd.f32 0.0, %v6594
        %6596 = vmatmul.bf16.gmra.mxu0 %v6479
        %v6597 = vpop.f32.mrf.mxu0
        %v6598 = vadd.f32 0.0, %v6597
        %v6599 = vpop.f32.mrf.mxu0
        %v6600 = vadd.f32 0.0, %v6599
        %6601 = vmatmul.bf16.gmra.mxu0 %v6480
        %v6602 = vpop.f32.mrf.mxu0
        %v6603 = vadd.f32 0.0, %v6602
        %v6604 = vpop.f32.mrf.mxu0
        %v6605 = vadd.f32 0.0, %v6604
        %6606 = vmatmul.bf16.gmra.mxu0 %v6481
        %v6607 = vpop.f32.mrf.mxu0
        %v6608 = vadd.f32 0.0, %v6607
        %v6609 = vpop.f32.mrf.mxu0
        %v6610 = vadd.f32 0.0, %v6609
        %6611 = vmatmul.bf16.gmra.mxu0 %v6482
        %v6612 = vpop.f32.mrf.mxu0
        %v6613 = vadd.f32 0.0, %v6612
        %v6614 = vpop.f32.mrf.mxu0
        %v6615 = vadd.f32 0.0, %v6614
        %6616 = vmatmul.bf16.gmra.mxu0 %v6483
        %v6617 = vpop.f32.mrf.mxu0
        %v6618 = vadd.f32 0.0, %v6617
        %v6619 = vpop.f32.mrf.mxu0
        %v6620 = vadd.f32 0.0, %v6619
        %6621 = vmatmul.bf16.gmra.mxu0 %v6484
        %v6622 = vpop.f32.mrf.mxu0
        %v6623 = vadd.f32 0.0, %v6622
        %v6624 = vpop.f32.mrf.mxu0
        %v6625 = vadd.f32 0.0, %v6624
        %6626 = vmatmul.bf16.gmra.mxu0 %v6485
        %v6627 = vpop.f32.mrf.mxu0
        %v6628 = vadd.f32 0.0, %v6627
        %v6629 = vpop.f32.mrf.mxu0
        %v6630 = vadd.f32 0.0, %v6629
        %6631 = vmatmul.bf16.gmra.mxu0 %v6486
        %v6632 = vpop.f32.mrf.mxu0
        %v6633 = vadd.f32 0.0, %v6632
        %v6634 = vpop.f32.mrf.mxu0
        %v6635 = vadd.f32 0.0, %v6634
        %6636 = vmatmul.bf16.gmra.mxu0 %v6487
        %v6637 = vpop.f32.mrf.mxu0
        %v6638 = vadd.f32 0.0, %v6637
        %v6639 = vpop.f32.mrf.mxu0
        %v6640 = vadd.f32 0.0, %v6639
        %6641 = vdwg.mxu0
        %v6642 = vadd.f32 %v6312, %v6563
        %v6643 = vadd.f32 %v6313, %v6565
        %v6644 = vadd.f32 %v6314, %v6568
        %v6645 = vadd.f32 %v6315, %v6570
        %v6646 = vadd.f32 %v6316, %v6573
        %v6647 = vadd.f32 %v6317, %v6575
        %v6648 = vadd.f32 %v6318, %v6578
        %v6649 = vadd.f32 %v6319, %v6580
        %v6650 = vadd.f32 %v6320, %v6583
        %v6651 = vadd.f32 %v6321, %v6585
        %v6652 = vadd.f32 %v6322, %v6588
        %v6653 = vadd.f32 %v6323, %v6590
        %v6654 = vadd.f32 %v6324, %v6593
        %v6655 = vadd.f32 %v6325, %v6595
        %v6656 = vadd.f32 %v6326, %v6598
        %v6657 = vadd.f32 %v6327, %v6600
        %v6658 = vadd.f32 %v6328, %v6603
        %v6659 = vadd.f32 %v6329, %v6605
        %v6660 = vadd.f32 %v6330, %v6608
        %v6661 = vadd.f32 %v6331, %v6610
        %v6662 = vadd.f32 %v6332, %v6613
        %v6663 = vadd.f32 %v6333, %v6615
        %v6664 = vadd.f32 %v6334, %v6618
        %v6665 = vadd.f32 %v6335, %v6620
        %v6666 = vadd.f32 %v6336, %v6623
        %v6667 = vadd.f32 %v6337, %v6625
        %v6668 = vadd.f32 %v6338, %v6628
        %v6669 = vadd.f32 %v6339, %v6630
        %v6670 = vadd.f32 %v6340, %v6633
        %v6671 = vadd.f32 %v6341, %v6635
        %v6672 = vadd.f32 %v6342, %v6638
        %v6673 = vadd.f32 %v6343, %v6640
        %v6674 = vpack.c.bf16 %v6345, %v6344
        %v6675 = vpack.c.bf16 %v6347, %v6346
        %v6676 = vpack.c.bf16 %v6349, %v6348
        %v6677 = vpack.c.bf16 %v6351, %v6350
        %v6678 = vpack.c.bf16 %v6353, %v6352
        %v6679 = vpack.c.bf16 %v6355, %v6354
        %v6680 = vpack.c.bf16 %v6357, %v6356
        %v6681 = vpack.c.bf16 %v6359, %v6358
        %v6682 = vpack.c.bf16 %v6361, %v6360
        %v6683 = vpack.c.bf16 %v6363, %v6362
        %v6684 = vpack.c.bf16 %v6365, %v6364
        %v6685 = vpack.c.bf16 %v6367, %v6366
        %v6686 = vpack.c.bf16 %v6369, %v6368
        %v6687 = vpack.c.bf16 %v6371, %v6370
        %v6688 = vpack.c.bf16 %v6373, %v6372
        %v6689 = vpack.c.bf16 %v6375, %v6374
        %s6690 = scalar_lea.vmem %s10, 256
        %v6691 = vld [vmem:[%s6690] sm:$0xf]
        %v6692 = vld [vmem:[%s6690 + $0x4] sm:$0xf]
        %v6693 = vld [vmem:[%s6690 + $0x8] sm:$0xf]
        %v6694 = vld [vmem:[%s6690 + $0xc] sm:$0xf]
        %v6695 = vld [vmem:[%s6690 + $0x10] sm:$0xf]
        %v6696 = vld [vmem:[%s6690 + $0x14] sm:$0xf]
        %v6697 = vld [vmem:[%s6690 + $0x18] sm:$0xf]
        %v6698 = vld [vmem:[%s6690 + $0x1c] sm:$0xf]
        %v6699 = vld [vmem:[%s6690 + $0x20] sm:$0xf]
        %v6700 = vld [vmem:[%s6690 + $0x24] sm:$0xf]
        %v6701 = vld [vmem:[%s6690 + $0x28] sm:$0xf]
        %v6702 = vld [vmem:[%s6690 + $0x2c] sm:$0xf]
        %v6703 = vld [vmem:[%s6690 + $0x30] sm:$0xf]
        %v6704 = vld [vmem:[%s6690 + $0x34] sm:$0xf]
        %v6705 = vld [vmem:[%s6690 + $0x38] sm:$0xf]
        %v6706 = vld [vmem:[%s6690 + $0x3c] sm:$0xf]
        %v6723 = vunpack.c.l.b16 %v6691
        %v6724 = vunpack.c.l.b16 %v6692
        %v6725 = vunpack.c.l.b16 %v6693
        %v6726 = vunpack.c.l.b16 %v6694
        %v6727 = vunpack.c.l.b16 %v6695
        %v6728 = vunpack.c.l.b16 %v6696
        %v6729 = vunpack.c.l.b16 %v6697
        %v6730 = vunpack.c.l.b16 %v6698
        %v6731 = vunpack.c.l.b16 %v6699
        %v6732 = vunpack.c.l.b16 %v6700
        %v6733 = vunpack.c.l.b16 %v6701
        %v6734 = vunpack.c.l.b16 %v6702
        %v6735 = vunpack.c.l.b16 %v6703
        %v6736 = vunpack.c.l.b16 %v6704
        %v6737 = vunpack.c.l.b16 %v6705
        %v6738 = vunpack.c.l.b16 %v6706
        %v6739 = vpack.c.b16 %v6724, %v6723
        %v6740 = vpack.c.b16 %v6726, %v6725
        %v6741 = vpack.c.b16 %v6728, %v6727
        %v6742 = vpack.c.b16 %v6730, %v6729
        %v6743 = vpack.c.b16 %v6732, %v6731
        %v6744 = vpack.c.b16 %v6734, %v6733
        %v6745 = vpack.c.b16 %v6736, %v6735
        %v6746 = vpack.c.b16 %v6738, %v6737
        %6755 = vmatpush.bf16.msra.mxu0 %v6746
        %6756 = vmatpush.bf16.msra.mxu0 %v6745
        %6757 = vmatpush.bf16.msra.mxu0 %v6744
        %6758 = vmatpush.bf16.msra.mxu0 %v6743
        %6759 = vmatpush.bf16.msra.mxu0 %v6742
        %6760 = vmatpush.bf16.msra.mxu0 %v6741
        %6761 = vmatpush.bf16.msra.mxu0 %v6740
        %6762 = vmatpush.bf16.msra.mxu0 %v6739
        %6763 = vmatmul.bf16.gmra.mxu0 %v6674
        %v6764 = vpop.f32.mrf.mxu0
        %v6765 = vadd.f32 0.0, %v6764
        %v6766 = vpop.f32.mrf.mxu0
        %v6767 = vadd.f32 0.0, %v6766
        %6768 = vmatmul.bf16.gmra.mxu0 %v6675
        %v6769 = vpop.f32.mrf.mxu0
        %v6770 = vadd.f32 0.0, %v6769
        %v6771 = vpop.f32.mrf.mxu0
        %v6772 = vadd.f32 0.0, %v6771
        %6773 = vmatmul.bf16.gmra.mxu0 %v6676
        %v6774 = vpop.f32.mrf.mxu0
        %v6775 = vadd.f32 0.0, %v6774
        %v6776 = vpop.f32.mrf.mxu0
        %v6777 = vadd.f32 0.0, %v6776
        %6778 = vmatmul.bf16.gmra.mxu0 %v6677
        %v6779 = vpop.f32.mrf.mxu0
        %v6780 = vadd.f32 0.0, %v6779
        %v6781 = vpop.f32.mrf.mxu0
        %v6782 = vadd.f32 0.0, %v6781
        %6783 = vmatmul.bf16.gmra.mxu0 %v6678
        %v6784 = vpop.f32.mrf.mxu0
        %v6785 = vadd.f32 0.0, %v6784
        %v6786 = vpop.f32.mrf.mxu0
        %v6787 = vadd.f32 0.0, %v6786
        %6788 = vmatmul.bf16.gmra.mxu0 %v6679
        %v6789 = vpop.f32.mrf.mxu0
        %v6790 = vadd.f32 0.0, %v6789
        %v6791 = vpop.f32.mrf.mxu0
        %v6792 = vadd.f32 0.0, %v6791
        %6793 = vmatmul.bf16.gmra.mxu0 %v6680
        %v6794 = vpop.f32.mrf.mxu0
        %v6795 = vadd.f32 0.0, %v6794
        %v6796 = vpop.f32.mrf.mxu0
        %v6797 = vadd.f32 0.0, %v6796
        %6798 = vmatmul.bf16.gmra.mxu0 %v6681
        %v6799 = vpop.f32.mrf.mxu0
        %v6800 = vadd.f32 0.0, %v6799
        %v6801 = vpop.f32.mrf.mxu0
        %v6802 = vadd.f32 0.0, %v6801
        %6803 = vmatmul.bf16.gmra.mxu0 %v6682
        %v6804 = vpop.f32.mrf.mxu0
        %v6805 = vadd.f32 0.0, %v6804
        %v6806 = vpop.f32.mrf.mxu0
        %v6807 = vadd.f32 0.0, %v6806
        %6808 = vmatmul.bf16.gmra.mxu0 %v6683
        %v6809 = vpop.f32.mrf.mxu0
        %v6810 = vadd.f32 0.0, %v6809
        %v6811 = vpop.f32.mrf.mxu0
        %v6812 = vadd.f32 0.0, %v6811
        %6813 = vmatmul.bf16.gmra.mxu0 %v6684
        %v6814 = vpop.f32.mrf.mxu0
        %v6815 = vadd.f32 0.0, %v6814
        %v6816 = vpop.f32.mrf.mxu0
        %v6817 = vadd.f32 0.0, %v6816
        %6818 = vmatmul.bf16.gmra.mxu0 %v6685
        %v6819 = vpop.f32.mrf.mxu0
        %v6820 = vadd.f32 0.0, %v6819
        %v6821 = vpop.f32.mrf.mxu0
        %v6822 = vadd.f32 0.0, %v6821
        %6823 = vmatmul.bf16.gmra.mxu0 %v6686
        %v6824 = vpop.f32.mrf.mxu0
        %v6825 = vadd.f32 0.0, %v6824
        %v6826 = vpop.f32.mrf.mxu0
        %v6827 = vadd.f32 0.0, %v6826
        %6828 = vmatmul.bf16.gmra.mxu0 %v6687
        %v6829 = vpop.f32.mrf.mxu0
        %v6830 = vadd.f32 0.0, %v6829
        %v6831 = vpop.f32.mrf.mxu0
        %v6832 = vadd.f32 0.0, %v6831
        %6833 = vmatmul.bf16.gmra.mxu0 %v6688
        %v6834 = vpop.f32.mrf.mxu0
        %v6835 = vadd.f32 0.0, %v6834
        %v6836 = vpop.f32.mrf.mxu0
        %v6837 = vadd.f32 0.0, %v6836
        %6838 = vmatmul.bf16.gmra.mxu0 %v6689
        %v6839 = vpop.f32.mrf.mxu0
        %v6840 = vadd.f32 0.0, %v6839
        %v6841 = vpop.f32.mrf.mxu0
        %v6842 = vadd.f32 0.0, %v6841
        %6843 = vdwg.mxu0
        %v6844 = vadd.f32 %v6642, %v6765
        %v6845 = vadd.f32 %v6643, %v6767
        %v6846 = vadd.f32 %v6644, %v6770
        %v6847 = vadd.f32 %v6645, %v6772
        %v6848 = vadd.f32 %v6646, %v6775
        %v6849 = vadd.f32 %v6647, %v6777
        %v6850 = vadd.f32 %v6648, %v6780
        %v6851 = vadd.f32 %v6649, %v6782
        %v6852 = vadd.f32 %v6650, %v6785
        %v6853 = vadd.f32 %v6651, %v6787
        %v6854 = vadd.f32 %v6652, %v6790
        %v6855 = vadd.f32 %v6653, %v6792
        %v6856 = vadd.f32 %v6654, %v6795
        %v6857 = vadd.f32 %v6655, %v6797
        %v6858 = vadd.f32 %v6656, %v6800
        %v6859 = vadd.f32 %v6657, %v6802
        %v6860 = vadd.f32 %v6658, %v6805
        %v6861 = vadd.f32 %v6659, %v6807
        %v6862 = vadd.f32 %v6660, %v6810
        %v6863 = vadd.f32 %v6661, %v6812
        %v6864 = vadd.f32 %v6662, %v6815
        %v6865 = vadd.f32 %v6663, %v6817
        %v6866 = vadd.f32 %v6664, %v6820
        %v6867 = vadd.f32 %v6665, %v6822
        %v6868 = vadd.f32 %v6666, %v6825
        %v6869 = vadd.f32 %v6667, %v6827
        %v6870 = vadd.f32 %v6668, %v6830
        %v6871 = vadd.f32 %v6669, %v6832
        %v6872 = vadd.f32 %v6670, %v6835
        %v6873 = vadd.f32 %v6671, %v6837
        %v6874 = vadd.f32 %v6672, %v6840
        %v6875 = vadd.f32 %v6673, %v6842
        %v6876 = vrot.slane %v6344, 1
        %v6877 = vrot.slane %v6345, 1
        %v6878 = vrot.slane %v6346, 1
        %v6879 = vrot.slane %v6347, 1
        %v6880 = vrot.slane %v6348, 1
        %v6881 = vrot.slane %v6349, 1
        %v6882 = vrot.slane %v6350, 1
        %v6883 = vrot.slane %v6351, 1
        %v6884 = vrot.slane %v6352, 1
        %v6885 = vrot.slane %v6353, 1
        %v6886 = vrot.slane %v6354, 1
        %v6887 = vrot.slane %v6355, 1
        %v6888 = vrot.slane %v6356, 1
        %v6889 = vrot.slane %v6357, 1
        %v6890 = vrot.slane %v6358, 1
        %v6891 = vrot.slane %v6359, 1
        %v6892 = vrot.slane %v6360, 1
        %v6893 = vrot.slane %v6361, 1
        %v6894 = vrot.slane %v6362, 1
        %v6895 = vrot.slane %v6363, 1
        %v6896 = vrot.slane %v6364, 1
        %v6897 = vrot.slane %v6365, 1
        %v6898 = vrot.slane %v6366, 1
        %v6899 = vrot.slane %v6367, 1
        %v6900 = vrot.slane %v6368, 1
        %v6901 = vrot.slane %v6369, 1
        %v6902 = vrot.slane %v6370, 1
        %v6903 = vrot.slane %v6371, 1
        %v6904 = vrot.slane %v6372, 1
        %v6905 = vrot.slane %v6373, 1
        %v6906 = vrot.slane %v6374, 1
        %v6907 = vrot.slane %v6375, 1
        %v6908 = vsel %vm2580, %v6906, %v6907
        %v6909 = vsel %vm2580, %v6905, %v6906
        %v6910 = vsel %vm2580, %v6904, %v6905
        %v6911 = vsel %vm2580, %v6903, %v6904
        %v6912 = vsel %vm2580, %v6902, %v6903
        %v6913 = vsel %vm2580, %v6901, %v6902
        %v6914 = vsel %vm2580, %v6900, %v6901
        %v6915 = vsel %vm2580, %v6899, %v6900
        %v6916 = vsel %vm2580, %v6898, %v6899
        %v6917 = vsel %vm2580, %v6897, %v6898
        %v6918 = vsel %vm2580, %v6896, %v6897
        %v6919 = vsel %vm2580, %v6895, %v6896
        %v6920 = vsel %vm2580, %v6894, %v6895
        %v6921 = vsel %vm2580, %v6893, %v6894
        %v6922 = vsel %vm2580, %v6892, %v6893
        %v6923 = vsel %vm2580, %v6891, %v6892
        %v6924 = vsel %vm2580, %v6890, %v6891
        %v6925 = vsel %vm2580, %v6889, %v6890
        %v6926 = vsel %vm2580, %v6888, %v6889
        %v6927 = vsel %vm2580, %v6887, %v6888
        %v6928 = vsel %vm2580, %v6886, %v6887
        %v6929 = vsel %vm2580, %v6885, %v6886
        %v6930 = vsel %vm2580, %v6884, %v6885
        %v6931 = vsel %vm2580, %v6883, %v6884
        %v6932 = vsel %vm2580, %v6882, %v6883
        %v6933 = vsel %vm2580, %v6881, %v6882
        %v6934 = vsel %vm2580, %v6880, %v6881
        %v6935 = vsel %vm2580, %v6879, %v6880
        %v6936 = vsel %vm2580, %v6878, %v6879
        %v6937 = vsel %vm2580, %v6877, %v6878
        %v6938 = vsel %vm2580, %v6876, %v6877
        %v6939 = vsel %vm2580, %v6907, %v6876
        %v6940 = vmul.f32 %v6938, %v1007
        %v6941 = vmul.f32 %v6937, %v1008
        %v6942 = vmul.f32 %v6936, %v1009
        %v6943 = vmul.f32 %v6935, %v1010
        %v6944 = vmul.f32 %v6934, %v1011
        %v6945 = vmul.f32 %v6933, %v1012
        %v6946 = vmul.f32 %v6932, %v1013
        %v6947 = vmul.f32 %v6931, %v1014
        %v6948 = vmul.f32 %v6930, %v1015
        %v6949 = vmul.f32 %v6929, %v1016
        %v6950 = vmul.f32 %v6928, %v1017
        %v6951 = vmul.f32 %v6927, %v1018
        %v6952 = vmul.f32 %v6926, %v1019
        %v6953 = vmul.f32 %v6925, %v1020
        %v6954 = vmul.f32 %v6924, %v1021
        %v6955 = vmul.f32 %v6923, %v1022
        %v6956 = vmul.f32 %v6922, %v1023
        %v6957 = vmul.f32 %v6921, %v1024
        %v6958 = vmul.f32 %v6920, %v1025
        %v6959 = vmul.f32 %v6919, %v1026
        %v6960 = vmul.f32 %v6918, %v1027
        %v6961 = vmul.f32 %v6917, %v1028
        %v6962 = vmul.f32 %v6916, %v1029
        %v6963 = vmul.f32 %v6915, %v1030
        %v6964 = vmul.f32 %v6914, %v1031
        %v6965 = vmul.f32 %v6913, %v1032
        %v6966 = vmul.f32 %v6912, %v1033
        %v6967 = vmul.f32 %v6911, %v1034
        %v6968 = vmul.f32 %v6910, %v1035
        %v6969 = vmul.f32 %v6909, %v1036
        %v6970 = vmul.f32 %v6908, %v1037
        %v6971 = vmul.f32 %v6939, %v1038
        %v6972 = vpack.c.bf16 %v6941, %v6940
        %v6973 = vpack.c.bf16 %v6943, %v6942
        %v6974 = vpack.c.bf16 %v6945, %v6944
        %v6975 = vpack.c.bf16 %v6947, %v6946
        %v6976 = vpack.c.bf16 %v6949, %v6948
        %v6977 = vpack.c.bf16 %v6951, %v6950
        %v6978 = vpack.c.bf16 %v6953, %v6952
        %v6979 = vpack.c.bf16 %v6955, %v6954
        %v6980 = vpack.c.bf16 %v6957, %v6956
        %v6981 = vpack.c.bf16 %v6959, %v6958
        %v6982 = vpack.c.bf16 %v6961, %v6960
        %v6983 = vpack.c.bf16 %v6963, %v6962
        %v6984 = vpack.c.bf16 %v6965, %v6964
        %v6985 = vpack.c.bf16 %v6967, %v6966
        %v6986 = vpack.c.bf16 %v6969, %v6968
        %v6987 = vpack.c.bf16 %v6971, %v6970
        %s6988 = scalar_lea.vmem %s10, 320
        %v6989 = vld [vmem:[%s6988] sm:$0xf]
        %v6990 = vld [vmem:[%s6988 + $0x4] sm:$0xf]
        %v6991 = vld [vmem:[%s6988 + $0x8] sm:$0xf]
        %v6992 = vld [vmem:[%s6988 + $0xc] sm:$0xf]
        %v6993 = vld [vmem:[%s6988 + $0x10] sm:$0xf]
        %v6994 = vld [vmem:[%s6988 + $0x14] sm:$0xf]
        %v6995 = vld [vmem:[%s6988 + $0x18] sm:$0xf]
        %v6996 = vld [vmem:[%s6988 + $0x1c] sm:$0xf]
        %v6997 = vld [vmem:[%s6988 + $0x20] sm:$0xf]
        %v6998 = vld [vmem:[%s6988 + $0x24] sm:$0xf]
        %v6999 = vld [vmem:[%s6988 + $0x28] sm:$0xf]
        %v7000 = vld [vmem:[%s6988 + $0x2c] sm:$0xf]
        %v7001 = vld [vmem:[%s6988 + $0x30] sm:$0xf]
        %v7002 = vld [vmem:[%s6988 + $0x34] sm:$0xf]
        %v7003 = vld [vmem:[%s6988 + $0x38] sm:$0xf]
        %v7004 = vld [vmem:[%s6988 + $0x3c] sm:$0xf]
        %v7021 = vunpack.c.l.b16 %v6989
        %v7022 = vunpack.c.l.b16 %v6990
        %v7023 = vunpack.c.l.b16 %v6991
        %v7024 = vunpack.c.l.b16 %v6992
        %v7025 = vunpack.c.l.b16 %v6993
        %v7026 = vunpack.c.l.b16 %v6994
        %v7027 = vunpack.c.l.b16 %v6995
        %v7028 = vunpack.c.l.b16 %v6996
        %v7029 = vunpack.c.l.b16 %v6997
        %v7030 = vunpack.c.l.b16 %v6998
        %v7031 = vunpack.c.l.b16 %v6999
        %v7032 = vunpack.c.l.b16 %v7000
        %v7033 = vunpack.c.l.b16 %v7001
        %v7034 = vunpack.c.l.b16 %v7002
        %v7035 = vunpack.c.l.b16 %v7003
        %v7036 = vunpack.c.l.b16 %v7004
        %v7037 = vpack.c.b16 %v7022, %v7021
        %v7038 = vpack.c.b16 %v7024, %v7023
        %v7039 = vpack.c.b16 %v7026, %v7025
        %v7040 = vpack.c.b16 %v7028, %v7027
        %v7041 = vpack.c.b16 %v7030, %v7029
        %v7042 = vpack.c.b16 %v7032, %v7031
        %v7043 = vpack.c.b16 %v7034, %v7033
        %v7044 = vpack.c.b16 %v7036, %v7035
        %7053 = vmatpush.bf16.msra.mxu0 %v7044
        %7054 = vmatpush.bf16.msra.mxu0 %v7043
        %7055 = vmatpush.bf16.msra.mxu0 %v7042
        %7056 = vmatpush.bf16.msra.mxu0 %v7041
        %7057 = vmatpush.bf16.msra.mxu0 %v7040
        %7058 = vmatpush.bf16.msra.mxu0 %v7039
        %7059 = vmatpush.bf16.msra.mxu0 %v7038
        %7060 = vmatpush.bf16.msra.mxu0 %v7037
        %7061 = vmatmul.bf16.gmra.mxu0 %v6972
        %v7062 = vpop.f32.mrf.mxu0
        %v7063 = vadd.f32 0.0, %v7062
        %v7064 = vpop.f32.mrf.mxu0
        %v7065 = vadd.f32 0.0, %v7064
        %7066 = vmatmul.bf16.gmra.mxu0 %v6973
        %v7067 = vpop.f32.mrf.mxu0
        %v7068 = vadd.f32 0.0, %v7067
        %v7069 = vpop.f32.mrf.mxu0
        %v7070 = vadd.f32 0.0, %v7069
        %7071 = vmatmul.bf16.gmra.mxu0 %v6974
        %v7072 = vpop.f32.mrf.mxu0
        %v7073 = vadd.f32 0.0, %v7072
        %v7074 = vpop.f32.mrf.mxu0
        %v7075 = vadd.f32 0.0, %v7074
        %7076 = vmatmul.bf16.gmra.mxu0 %v6975
        %v7077 = vpop.f32.mrf.mxu0
        %v7078 = vadd.f32 0.0, %v7077
        %v7079 = vpop.f32.mrf.mxu0
        %v7080 = vadd.f32 0.0, %v7079
        %7081 = vmatmul.bf16.gmra.mxu0 %v6976
        %v7082 = vpop.f32.mrf.mxu0
        %v7083 = vadd.f32 0.0, %v7082
        %v7084 = vpop.f32.mrf.mxu0
        %v7085 = vadd.f32 0.0, %v7084
        %7086 = vmatmul.bf16.gmra.mxu0 %v6977
        %v7087 = vpop.f32.mrf.mxu0
        %v7088 = vadd.f32 0.0, %v7087
        %v7089 = vpop.f32.mrf.mxu0
        %v7090 = vadd.f32 0.0, %v7089
        %7091 = vmatmul.bf16.gmra.mxu0 %v6978
        %v7092 = vpop.f32.mrf.mxu0
        %v7093 = vadd.f32 0.0, %v7092
        %v7094 = vpop.f32.mrf.mxu0
        %v7095 = vadd.f32 0.0, %v7094
        %7096 = vmatmul.bf16.gmra.mxu0 %v6979
        %v7097 = vpop.f32.mrf.mxu0
        %v7098 = vadd.f32 0.0, %v7097
        %v7099 = vpop.f32.mrf.mxu0
        %v7100 = vadd.f32 0.0, %v7099
        %7101 = vmatmul.bf16.gmra.mxu0 %v6980
        %v7102 = vpop.f32.mrf.mxu0
        %v7103 = vadd.f32 0.0, %v7102
        %v7104 = vpop.f32.mrf.mxu0
        %v7105 = vadd.f32 0.0, %v7104
        %7106 = vmatmul.bf16.gmra.mxu0 %v6981
        %v7107 = vpop.f32.mrf.mxu0
        %v7108 = vadd.f32 0.0, %v7107
        %v7109 = vpop.f32.mrf.mxu0
        %v7110 = vadd.f32 0.0, %v7109
        %7111 = vmatmul.bf16.gmra.mxu0 %v6982
        %v7112 = vpop.f32.mrf.mxu0
        %v7113 = vadd.f32 0.0, %v7112
        %v7114 = vpop.f32.mrf.mxu0
        %v7115 = vadd.f32 0.0, %v7114
        %7116 = vmatmul.bf16.gmra.mxu0 %v6983
        %v7117 = vpop.f32.mrf.mxu0
        %v7118 = vadd.f32 0.0, %v7117
        %v7119 = vpop.f32.mrf.mxu0
        %v7120 = vadd.f32 0.0, %v7119
        %7121 = vmatmul.bf16.gmra.mxu0 %v6984
        %v7122 = vpop.f32.mrf.mxu0
        %v7123 = vadd.f32 0.0, %v7122
        %v7124 = vpop.f32.mrf.mxu0
        %v7125 = vadd.f32 0.0, %v7124
        %7126 = vmatmul.bf16.gmra.mxu0 %v6985
        %v7127 = vpop.f32.mrf.mxu0
        %v7128 = vadd.f32 0.0, %v7127
        %v7129 = vpop.f32.mrf.mxu0
        %v7130 = vadd.f32 0.0, %v7129
        %7131 = vmatmul.bf16.gmra.mxu0 %v6986
        %v7132 = vpop.f32.mrf.mxu0
        %v7133 = vadd.f32 0.0, %v7132
        %v7134 = vpop.f32.mrf.mxu0
        %v7135 = vadd.f32 0.0, %v7134
        %7136 = vmatmul.bf16.gmra.mxu0 %v6987
        %v7137 = vpop.f32.mrf.mxu0
        %v7138 = vadd.f32 0.0, %v7137
        %v7139 = vpop.f32.mrf.mxu0
        %v7140 = vadd.f32 0.0, %v7139
        %7141 = vdwg.mxu0
        %v7142 = vadd.f32 %v6844, %v7063
        %v7143 = vadd.f32 %v6845, %v7065
        %v7144 = vadd.f32 %v6846, %v7068
        %v7145 = vadd.f32 %v6847, %v7070
        %v7146 = vadd.f32 %v6848, %v7073
        %v7147 = vadd.f32 %v6849, %v7075
        %v7148 = vadd.f32 %v6850, %v7078
        %v7149 = vadd.f32 %v6851, %v7080
        %v7150 = vadd.f32 %v6852, %v7083
        %v7151 = vadd.f32 %v6853, %v7085
        %v7152 = vadd.f32 %v6854, %v7088
        %v7153 = vadd.f32 %v6855, %v7090
        %v7154 = vadd.f32 %v6856, %v7093
        %v7155 = vadd.f32 %v6857, %v7095
        %v7156 = vadd.f32 %v6858, %v7098
        %v7157 = vadd.f32 %v6859, %v7100
        %v7158 = vadd.f32 %v6860, %v7103
        %v7159 = vadd.f32 %v6861, %v7105
        %v7160 = vadd.f32 %v6862, %v7108
        %v7161 = vadd.f32 %v6863, %v7110
        %v7162 = vadd.f32 %v6864, %v7113
        %v7163 = vadd.f32 %v6865, %v7115
        %v7164 = vadd.f32 %v6866, %v7118
        %v7165 = vadd.f32 %v6867, %v7120
        %v7166 = vadd.f32 %v6868, %v7123
        %v7167 = vadd.f32 %v6869, %v7125
        %v7168 = vadd.f32 %v6870, %v7128
        %v7169 = vadd.f32 %v6871, %v7130
        %v7170 = vadd.f32 %v6872, %v7133
        %v7171 = vadd.f32 %v6873, %v7135
        %v7172 = vadd.f32 %v6874, %v7138
        %v7173 = vadd.f32 %v6875, %v7140
        %v7174 = vld [vmem:[#allocation2 + $0x20] sm:$0xff]
        %v7175 = vld [vmem:[#allocation2 + $0x28] sm:$0xff]
        %v7176 = vld [vmem:[#allocation2 + $0x30] sm:$0xff]
        %v7177 = vld [vmem:[#allocation2 + $0x38] sm:$0xff]
        %v7178 = vld [vmem:[#allocation2 + $0x40] sm:$0xff]
        %v7179 = vld [vmem:[#allocation2 + $0x48] sm:$0xff]
        %v7180 = vld [vmem:[#allocation2 + $0x50] sm:$0xff]
        %v7181 = vld [vmem:[#allocation2 + $0x58] sm:$0xff]
        %v7182 = vld [vmem:[#allocation2 + $0x60] sm:$0xff]
        %v7183 = vld [vmem:[#allocation2 + $0x68] sm:$0xff]
        %v7184 = vld [vmem:[#allocation2 + $0x70] sm:$0xff]
        %v7185 = vld [vmem:[#allocation2 + $0x78] sm:$0xff]
        %v7186 = vld [vmem:[#allocation2 + $0x80] sm:$0xff]
        %v7187 = vld [vmem:[#allocation2 + $0x88] sm:$0xff]
        %v7188 = vld [vmem:[#allocation2 + $0x90] sm:$0xff]
        %v7189 = vld [vmem:[#allocation2 + $0x98] sm:$0xff]
        %v7190 = vld [vmem:[#allocation2 + $0xa0] sm:$0xff]
        %v7191 = vld [vmem:[#allocation2 + $0xa8] sm:$0xff]
        %v7192 = vld [vmem:[#allocation2 + $0xb0] sm:$0xff]
        %v7193 = vld [vmem:[#allocation2 + $0xb8] sm:$0xff]
        %v7194 = vld [vmem:[#allocation2 + $0xc0] sm:$0xff]
        %v7195 = vld [vmem:[#allocation2 + $0xc8] sm:$0xff]
        %v7196 = vld [vmem:[#allocation2 + $0xd0] sm:$0xff]
        %v7197 = vld [vmem:[#allocation2 + $0xd8] sm:$0xff]
        %v7198 = vld [vmem:[#allocation2 + $0xe0] sm:$0xff]
        %v7199 = vld [vmem:[#allocation2 + $0xe8] sm:$0xff]
        %v7200 = vld [vmem:[#allocation2 + $0xf0] sm:$0xff]
        %v7201 = vld [vmem:[#allocation2 + $0xf8] sm:$0xff]
        %v7202 = vld [vmem:[#allocation2 + $0x100] sm:$0xff]
        %v7203 = vld [vmem:[#allocation2 + $0x108] sm:$0xff]
        %v7204 = vld [vmem:[#allocation2 + $0x110] sm:$0xff]
        %v7205 = vld [vmem:[#allocation2 + $0x118] sm:$0xff]
        %v7206 = vrot.slane %v7174, 7
        %v7207 = vrot.slane %v7175, 7
        %v7208 = vrot.slane %v7176, 7
        %v7209 = vrot.slane %v7177, 7
        %v7210 = vrot.slane %v7178, 7
        %v7211 = vrot.slane %v7179, 7
        %v7212 = vrot.slane %v7180, 7
        %v7213 = vrot.slane %v7181, 7
        %v7214 = vrot.slane %v7182, 7
        %v7215 = vrot.slane %v7183, 7
        %v7216 = vrot.slane %v7184, 7
        %v7217 = vrot.slane %v7185, 7
        %v7218 = vrot.slane %v7186, 7
        %v7219 = vrot.slane %v7187, 7
        %v7220 = vrot.slane %v7188, 7
        %v7221 = vrot.slane %v7189, 7
        %v7222 = vrot.slane %v7190, 7
        %v7223 = vrot.slane %v7191, 7
        %v7224 = vrot.slane %v7192, 7
        %v7225 = vrot.slane %v7193, 7
        %v7226 = vrot.slane %v7194, 7
        %v7227 = vrot.slane %v7195, 7
        %v7228 = vrot.slane %v7196, 7
        %v7229 = vrot.slane %v7197, 7
        %v7230 = vrot.slane %v7198, 7
        %v7231 = vrot.slane %v7199, 7
        %v7232 = vrot.slane %v7200, 7
        %v7233 = vrot.slane %v7201, 7
        %v7234 = vrot.slane %v7202, 7
        %v7235 = vrot.slane %v7203, 7
        %v7236 = vrot.slane %v7204, 7
        %v7237 = vrot.slane %v7205, 7
        %v7238 = vsel %vm2144, %v7236, %v7237
        %v7239 = vsel %vm2144, %v7235, %v7236
        %v7240 = vsel %vm2144, %v7234, %v7235
        %v7241 = vsel %vm2144, %v7233, %v7234
        %v7242 = vsel %vm2144, %v7232, %v7233
        %v7243 = vsel %vm2144, %v7231, %v7232
        %v7244 = vsel %vm2144, %v7230, %v7231
        %v7245 = vsel %vm2144, %v7229, %v7230
        %v7246 = vsel %vm2144, %v7228, %v7229
        %v7247 = vsel %vm2144, %v7227, %v7228
        %v7248 = vsel %vm2144, %v7226, %v7227
        %v7249 = vsel %vm2144, %v7225, %v7226
        %v7250 = vsel %vm2144, %v7224, %v7225
        %v7251 = vsel %vm2144, %v7223, %v7224
        %v7252 = vsel %vm2144, %v7222, %v7223
        %v7253 = vsel %vm2144, %v7221, %v7222
        %v7254 = vsel %vm2144, %v7220, %v7221
        %v7255 = vsel %vm2144, %v7219, %v7220
        %v7256 = vsel %vm2144, %v7218, %v7219
        %v7257 = vsel %vm2144, %v7217, %v7218
        %v7258 = vsel %vm2144, %v7216, %v7217
        %v7259 = vsel %vm2144, %v7215, %v7216
        %v7260 = vsel %vm2144, %v7214, %v7215
        %v7261 = vsel %vm2144, %v7213, %v7214
        %v7262 = vsel %vm2144, %v7212, %v7213
        %v7263 = vsel %vm2144, %v7211, %v7212
        %v7264 = vsel %vm2144, %v7210, %v7211
        %v7265 = vsel %vm2144, %v7209, %v7210
        %v7266 = vsel %vm2144, %v7208, %v7209
        %v7267 = vsel %vm2144, %v7207, %v7208
        %v7268 = vsel %vm2144, %v7206, %v7207
        %v7269 = vsel %vm2144, %v7237, %v7206
        %v7270 = vmul.f32 %v7269, %v911
        %v7271 = vmul.f32 %v7268, %v912
        %v7272 = vmul.f32 %v7267, %v913
        %v7273 = vmul.f32 %v7266, %v914
        %v7274 = vmul.f32 %v7265, %v915
        %v7275 = vmul.f32 %v7264, %v916
        %v7276 = vmul.f32 %v7263, %v917
        %v7277 = vmul.f32 %v7262, %v918
        %v7278 = vmul.f32 %v7261, %v919
        %v7279 = vmul.f32 %v7260, %v920
        %v7280 = vmul.f32 %v7259, %v921
        %v7281 = vmul.f32 %v7258, %v922
        %v7282 = vmul.f32 %v7257, %v923
        %v7283 = vmul.f32 %v7256, %v924
        %v7284 = vmul.f32 %v7255, %v925
        %v7285 = vmul.f32 %v7254, %v926
        %v7286 = vmul.f32 %v7253, %v927
        %v7287 = vmul.f32 %v7252, %v928
        %v7288 = vmul.f32 %v7251, %v929
        %v7289 = vmul.f32 %v7250, %v930
        %v7290 = vmul.f32 %v7249, %v931
        %v7291 = vmul.f32 %v7248, %v932
        %v7292 = vmul.f32 %v7247, %v933
        %v7293 = vmul.f32 %v7246, %v934
        %v7294 = vmul.f32 %v7245, %v935
        %v7295 = vmul.f32 %v7244, %v936
        %v7296 = vmul.f32 %v7243, %v937
        %v7297 = vmul.f32 %v7242, %v938
        %v7298 = vmul.f32 %v7241, %v939
        %v7299 = vmul.f32 %v7240, %v940
        %v7300 = vmul.f32 %v7239, %v941
        %v7301 = vmul.f32 %v7238, %v942
        %v7302 = vpack.c.bf16 %v7271, %v7270
        %v7303 = vpack.c.bf16 %v7273, %v7272
        %v7304 = vpack.c.bf16 %v7275, %v7274
        %v7305 = vpack.c.bf16 %v7277, %v7276
        %v7306 = vpack.c.bf16 %v7279, %v7278
        %v7307 = vpack.c.bf16 %v7281, %v7280
        %v7308 = vpack.c.bf16 %v7283, %v7282
        %v7309 = vpack.c.bf16 %v7285, %v7284
        %v7310 = vpack.c.bf16 %v7287, %v7286
        %v7311 = vpack.c.bf16 %v7289, %v7288
        %v7312 = vpack.c.bf16 %v7291, %v7290
        %v7313 = vpack.c.bf16 %v7293, %v7292
        %v7314 = vpack.c.bf16 %v7295, %v7294
        %v7315 = vpack.c.bf16 %v7297, %v7296
        %v7316 = vpack.c.bf16 %v7299, %v7298
        %v7317 = vpack.c.bf16 %v7301, %v7300
        %s7318 = scalar_lea.vmem %s10, 384
        %v7319 = vld [vmem:[%s7318] sm:$0xf]
        %v7320 = vld [vmem:[%s7318 + $0x4] sm:$0xf]
        %v7321 = vld [vmem:[%s7318 + $0x8] sm:$0xf]
        %v7322 = vld [vmem:[%s7318 + $0xc] sm:$0xf]
        %v7323 = vld [vmem:[%s7318 + $0x10] sm:$0xf]
        %v7324 = vld [vmem:[%s7318 + $0x14] sm:$0xf]
        %v7325 = vld [vmem:[%s7318 + $0x18] sm:$0xf]
        %v7326 = vld [vmem:[%s7318 + $0x1c] sm:$0xf]
        %v7327 = vld [vmem:[%s7318 + $0x20] sm:$0xf]
        %v7328 = vld [vmem:[%s7318 + $0x24] sm:$0xf]
        %v7329 = vld [vmem:[%s7318 + $0x28] sm:$0xf]
        %v7330 = vld [vmem:[%s7318 + $0x2c] sm:$0xf]
        %v7331 = vld [vmem:[%s7318 + $0x30] sm:$0xf]
        %v7332 = vld [vmem:[%s7318 + $0x34] sm:$0xf]
        %v7333 = vld [vmem:[%s7318 + $0x38] sm:$0xf]
        %v7334 = vld [vmem:[%s7318 + $0x3c] sm:$0xf]
        %v7351 = vunpack.c.l.b16 %v7319
        %v7352 = vunpack.c.l.b16 %v7320
        %v7353 = vunpack.c.l.b16 %v7321
        %v7354 = vunpack.c.l.b16 %v7322
        %v7355 = vunpack.c.l.b16 %v7323
        %v7356 = vunpack.c.l.b16 %v7324
        %v7357 = vunpack.c.l.b16 %v7325
        %v7358 = vunpack.c.l.b16 %v7326
        %v7359 = vunpack.c.l.b16 %v7327
        %v7360 = vunpack.c.l.b16 %v7328
        %v7361 = vunpack.c.l.b16 %v7329
        %v7362 = vunpack.c.l.b16 %v7330
        %v7363 = vunpack.c.l.b16 %v7331
        %v7364 = vunpack.c.l.b16 %v7332
        %v7365 = vunpack.c.l.b16 %v7333
        %v7366 = vunpack.c.l.b16 %v7334
        %v7367 = vpack.c.b16 %v7352, %v7351
        %v7368 = vpack.c.b16 %v7354, %v7353
        %v7369 = vpack.c.b16 %v7356, %v7355
        %v7370 = vpack.c.b16 %v7358, %v7357
        %v7371 = vpack.c.b16 %v7360, %v7359
        %v7372 = vpack.c.b16 %v7362, %v7361
        %v7373 = vpack.c.b16 %v7364, %v7363
        %v7374 = vpack.c.b16 %v7366, %v7365
        %7383 = vmatpush.bf16.msra.mxu0 %v7374
        %7384 = vmatpush.bf16.msra.mxu0 %v7373
        %7385 = vmatpush.bf16.msra.mxu0 %v7372
        %7386 = vmatpush.bf16.msra.mxu0 %v7371
        %7387 = vmatpush.bf16.msra.mxu0 %v7370
        %7388 = vmatpush.bf16.msra.mxu0 %v7369
        %7389 = vmatpush.bf16.msra.mxu0 %v7368
        %7390 = vmatpush.bf16.msra.mxu0 %v7367
        %7391 = vmatmul.bf16.gmra.mxu0 %v7302
        %v7392 = vpop.f32.mrf.mxu0
        %v7393 = vadd.f32 0.0, %v7392
        %v7394 = vpop.f32.mrf.mxu0
        %v7395 = vadd.f32 0.0, %v7394
        %7396 = vmatmul.bf16.gmra.mxu0 %v7303
        %v7397 = vpop.f32.mrf.mxu0
        %v7398 = vadd.f32 0.0, %v7397
        %v7399 = vpop.f32.mrf.mxu0
        %v7400 = vadd.f32 0.0, %v7399
        %7401 = vmatmul.bf16.gmra.mxu0 %v7304
        %v7402 = vpop.f32.mrf.mxu0
        %v7403 = vadd.f32 0.0, %v7402
        %v7404 = vpop.f32.mrf.mxu0
        %v7405 = vadd.f32 0.0, %v7404
        %7406 = vmatmul.bf16.gmra.mxu0 %v7305
        %v7407 = vpop.f32.mrf.mxu0
        %v7408 = vadd.f32 0.0, %v7407
        %v7409 = vpop.f32.mrf.mxu0
        %v7410 = vadd.f32 0.0, %v7409
        %7411 = vmatmul.bf16.gmra.mxu0 %v7306
        %v7412 = vpop.f32.mrf.mxu0
        %v7413 = vadd.f32 0.0, %v7412
        %v7414 = vpop.f32.mrf.mxu0
        %v7415 = vadd.f32 0.0, %v7414
        %7416 = vmatmul.bf16.gmra.mxu0 %v7307
        %v7417 = vpop.f32.mrf.mxu0
        %v7418 = vadd.f32 0.0, %v7417
        %v7419 = vpop.f32.mrf.mxu0
        %v7420 = vadd.f32 0.0, %v7419
        %7421 = vmatmul.bf16.gmra.mxu0 %v7308
        %v7422 = vpop.f32.mrf.mxu0
        %v7423 = vadd.f32 0.0, %v7422
        %v7424 = vpop.f32.mrf.mxu0
        %v7425 = vadd.f32 0.0, %v7424
        %7426 = vmatmul.bf16.gmra.mxu0 %v7309
        %v7427 = vpop.f32.mrf.mxu0
        %v7428 = vadd.f32 0.0, %v7427
        %v7429 = vpop.f32.mrf.mxu0
        %v7430 = vadd.f32 0.0, %v7429
        %7431 = vmatmul.bf16.gmra.mxu0 %v7310
        %v7432 = vpop.f32.mrf.mxu0
        %v7433 = vadd.f32 0.0, %v7432
        %v7434 = vpop.f32.mrf.mxu0
        %v7435 = vadd.f32 0.0, %v7434
        %7436 = vmatmul.bf16.gmra.mxu0 %v7311
        %v7437 = vpop.f32.mrf.mxu0
        %v7438 = vadd.f32 0.0, %v7437
        %v7439 = vpop.f32.mrf.mxu0
        %v7440 = vadd.f32 0.0, %v7439
        %7441 = vmatmul.bf16.gmra.mxu0 %v7312
        %v7442 = vpop.f32.mrf.mxu0
        %v7443 = vadd.f32 0.0, %v7442
        %v7444 = vpop.f32.mrf.mxu0
        %v7445 = vadd.f32 0.0, %v7444
        %7446 = vmatmul.bf16.gmra.mxu0 %v7313
        %v7447 = vpop.f32.mrf.mxu0
        %v7448 = vadd.f32 0.0, %v7447
        %v7449 = vpop.f32.mrf.mxu0
        %v7450 = vadd.f32 0.0, %v7449
        %7451 = vmatmul.bf16.gmra.mxu0 %v7314
        %v7452 = vpop.f32.mrf.mxu0
        %v7453 = vadd.f32 0.0, %v7452
        %v7454 = vpop.f32.mrf.mxu0
        %v7455 = vadd.f32 0.0, %v7454
        %7456 = vmatmul.bf16.gmra.mxu0 %v7315
        %v7457 = vpop.f32.mrf.mxu0
        %v7458 = vadd.f32 0.0, %v7457
        %v7459 = vpop.f32.mrf.mxu0
        %v7460 = vadd.f32 0.0, %v7459
        %7461 = vmatmul.bf16.gmra.mxu0 %v7316
        %v7462 = vpop.f32.mrf.mxu0
        %v7463 = vadd.f32 0.0, %v7462
        %v7464 = vpop.f32.mrf.mxu0
        %v7465 = vadd.f32 0.0, %v7464
        %7466 = vmatmul.bf16.gmra.mxu0 %v7317
        %v7467 = vpop.f32.mrf.mxu0
        %v7468 = vadd.f32 0.0, %v7467
        %v7469 = vpop.f32.mrf.mxu0
        %v7470 = vadd.f32 0.0, %v7469
        %7471 = vdwg.mxu0
        %v7472 = vadd.f32 %v7142, %v7393
        %v7473 = vadd.f32 %v7143, %v7395
        %v7474 = vadd.f32 %v7144, %v7398
        %v7475 = vadd.f32 %v7145, %v7400
        %v7476 = vadd.f32 %v7146, %v7403
        %v7477 = vadd.f32 %v7147, %v7405
        %v7478 = vadd.f32 %v7148, %v7408
        %v7479 = vadd.f32 %v7149, %v7410
        %v7480 = vadd.f32 %v7150, %v7413
        %v7481 = vadd.f32 %v7151, %v7415
        %v7482 = vadd.f32 %v7152, %v7418
        %v7483 = vadd.f32 %v7153, %v7420
        %v7484 = vadd.f32 %v7154, %v7423
        %v7485 = vadd.f32 %v7155, %v7425
        %v7486 = vadd.f32 %v7156, %v7428
        %v7487 = vadd.f32 %v7157, %v7430
        %v7488 = vadd.f32 %v7158, %v7433
        %v7489 = vadd.f32 %v7159, %v7435
        %v7490 = vadd.f32 %v7160, %v7438
        %v7491 = vadd.f32 %v7161, %v7440
        %v7492 = vadd.f32 %v7162, %v7443
        %v7493 = vadd.f32 %v7163, %v7445
        %v7494 = vadd.f32 %v7164, %v7448
        %v7495 = vadd.f32 %v7165, %v7450
        %v7496 = vadd.f32 %v7166, %v7453
        %v7497 = vadd.f32 %v7167, %v7455
        %v7498 = vadd.f32 %v7168, %v7458
        %v7499 = vadd.f32 %v7169, %v7460
        %v7500 = vadd.f32 %v7170, %v7463
        %v7501 = vadd.f32 %v7171, %v7465
        %v7502 = vadd.f32 %v7172, %v7468
        %v7503 = vadd.f32 %v7173, %v7470
        %v7504 = vpack.c.bf16 %v7175, %v7174
        %v7505 = vpack.c.bf16 %v7177, %v7176
        %v7506 = vpack.c.bf16 %v7179, %v7178
        %v7507 = vpack.c.bf16 %v7181, %v7180
        %v7508 = vpack.c.bf16 %v7183, %v7182
        %v7509 = vpack.c.bf16 %v7185, %v7184
        %v7510 = vpack.c.bf16 %v7187, %v7186
        %v7511 = vpack.c.bf16 %v7189, %v7188
        %v7512 = vpack.c.bf16 %v7191, %v7190
        %v7513 = vpack.c.bf16 %v7193, %v7192
        %v7514 = vpack.c.bf16 %v7195, %v7194
        %v7515 = vpack.c.bf16 %v7197, %v7196
        %v7516 = vpack.c.bf16 %v7199, %v7198
        %v7517 = vpack.c.bf16 %v7201, %v7200
        %v7518 = vpack.c.bf16 %v7203, %v7202
        %v7519 = vpack.c.bf16 %v7205, %v7204
        %s7520 = scalar_lea.vmem %s10, 448
        %v7521 = vld [vmem:[%s7520] sm:$0xf]
        %v7522 = vld [vmem:[%s7520 + $0x4] sm:$0xf]
        %v7523 = vld [vmem:[%s7520 + $0x8] sm:$0xf]
        %v7524 = vld [vmem:[%s7520 + $0xc] sm:$0xf]
        %v7525 = vld [vmem:[%s7520 + $0x10] sm:$0xf]
        %v7526 = vld [vmem:[%s7520 + $0x14] sm:$0xf]
        %v7527 = vld [vmem:[%s7520 + $0x18] sm:$0xf]
        %v7528 = vld [vmem:[%s7520 + $0x1c] sm:$0xf]
        %v7529 = vld [vmem:[%s7520 + $0x20] sm:$0xf]
        %v7530 = vld [vmem:[%s7520 + $0x24] sm:$0xf]
        %v7531 = vld [vmem:[%s7520 + $0x28] sm:$0xf]
        %v7532 = vld [vmem:[%s7520 + $0x2c] sm:$0xf]
        %v7533 = vld [vmem:[%s7520 + $0x30] sm:$0xf]
        %v7534 = vld [vmem:[%s7520 + $0x34] sm:$0xf]
        %v7535 = vld [vmem:[%s7520 + $0x38] sm:$0xf]
        %v7536 = vld [vmem:[%s7520 + $0x3c] sm:$0xf]
        %v7553 = vunpack.c.l.b16 %v7521
        %v7554 = vunpack.c.l.b16 %v7522
        %v7555 = vunpack.c.l.b16 %v7523
        %v7556 = vunpack.c.l.b16 %v7524
        %v7557 = vunpack.c.l.b16 %v7525
        %v7558 = vunpack.c.l.b16 %v7526
        %v7559 = vunpack.c.l.b16 %v7527
        %v7560 = vunpack.c.l.b16 %v7528
        %v7561 = vunpack.c.l.b16 %v7529
        %v7562 = vunpack.c.l.b16 %v7530
        %v7563 = vunpack.c.l.b16 %v7531
        %v7564 = vunpack.c.l.b16 %v7532
        %v7565 = vunpack.c.l.b16 %v7533
        %v7566 = vunpack.c.l.b16 %v7534
        %v7567 = vunpack.c.l.b16 %v7535
        %v7568 = vunpack.c.l.b16 %v7536
        %v7569 = vpack.c.b16 %v7554, %v7553
        %v7570 = vpack.c.b16 %v7556, %v7555
        %v7571 = vpack.c.b16 %v7558, %v7557
        %v7572 = vpack.c.b16 %v7560, %v7559
        %v7573 = vpack.c.b16 %v7562, %v7561
        %v7574 = vpack.c.b16 %v7564, %v7563
        %v7575 = vpack.c.b16 %v7566, %v7565
        %v7576 = vpack.c.b16 %v7568, %v7567
        %7585 = vmatpush.bf16.msra.mxu0 %v7576
        %7586 = vmatpush.bf16.msra.mxu0 %v7575
        %7587 = vmatpush.bf16.msra.mxu0 %v7574
        %7588 = vmatpush.bf16.msra.mxu0 %v7573
        %7589 = vmatpush.bf16.msra.mxu0 %v7572
        %7590 = vmatpush.bf16.msra.mxu0 %v7571
        %7591 = vmatpush.bf16.msra.mxu0 %v7570
        %7592 = vmatpush.bf16.msra.mxu0 %v7569
        %7593 = vmatmul.bf16.gmra.mxu0 %v7504
        %v7594 = vpop.f32.mrf.mxu0
        %v7595 = vadd.f32 0.0, %v7594
        %v7596 = vpop.f32.mrf.mxu0
        %v7597 = vadd.f32 0.0, %v7596
        %7598 = vmatmul.bf16.gmra.mxu0 %v7505
        %v7599 = vpop.f32.mrf.mxu0
        %v7600 = vadd.f32 0.0, %v7599
        %v7601 = vpop.f32.mrf.mxu0
        %v7602 = vadd.f32 0.0, %v7601
        %7603 = vmatmul.bf16.gmra.mxu0 %v7506
        %v7604 = vpop.f32.mrf.mxu0
        %v7605 = vadd.f32 0.0, %v7604
        %v7606 = vpop.f32.mrf.mxu0
        %v7607 = vadd.f32 0.0, %v7606
        %7608 = vmatmul.bf16.gmra.mxu0 %v7507
        %v7609 = vpop.f32.mrf.mxu0
        %v7610 = vadd.f32 0.0, %v7609
        %v7611 = vpop.f32.mrf.mxu0
        %v7612 = vadd.f32 0.0, %v7611
        %7613 = vmatmul.bf16.gmra.mxu0 %v7508
        %v7614 = vpop.f32.mrf.mxu0
        %v7615 = vadd.f32 0.0, %v7614
        %v7616 = vpop.f32.mrf.mxu0
        %v7617 = vadd.f32 0.0, %v7616
        %7618 = vmatmul.bf16.gmra.mxu0 %v7509
        %v7619 = vpop.f32.mrf.mxu0
        %v7620 = vadd.f32 0.0, %v7619
        %v7621 = vpop.f32.mrf.mxu0
        %v7622 = vadd.f32 0.0, %v7621
        %7623 = vmatmul.bf16.gmra.mxu0 %v7510
        %v7624 = vpop.f32.mrf.mxu0
        %v7625 = vadd.f32 0.0, %v7624
        %v7626 = vpop.f32.mrf.mxu0
        %v7627 = vadd.f32 0.0, %v7626
        %7628 = vmatmul.bf16.gmra.mxu0 %v7511
        %v7629 = vpop.f32.mrf.mxu0
        %v7630 = vadd.f32 0.0, %v7629
        %v7631 = vpop.f32.mrf.mxu0
        %v7632 = vadd.f32 0.0, %v7631
        %7633 = vmatmul.bf16.gmra.mxu0 %v7512
        %v7634 = vpop.f32.mrf.mxu0
        %v7635 = vadd.f32 0.0, %v7634
        %v7636 = vpop.f32.mrf.mxu0
        %v7637 = vadd.f32 0.0, %v7636
        %7638 = vmatmul.bf16.gmra.mxu0 %v7513
        %v7639 = vpop.f32.mrf.mxu0
        %v7640 = vadd.f32 0.0, %v7639
        %v7641 = vpop.f32.mrf.mxu0
        %v7642 = vadd.f32 0.0, %v7641
        %7643 = vmatmul.bf16.gmra.mxu0 %v7514
        %v7644 = vpop.f32.mrf.mxu0
        %v7645 = vadd.f32 0.0, %v7644
        %v7646 = vpop.f32.mrf.mxu0
        %v7647 = vadd.f32 0.0, %v7646
        %7648 = vmatmul.bf16.gmra.mxu0 %v7515
        %v7649 = vpop.f32.mrf.mxu0
        %v7650 = vadd.f32 0.0, %v7649
        %v7651 = vpop.f32.mrf.mxu0
        %v7652 = vadd.f32 0.0, %v7651
        %7653 = vmatmul.bf16.gmra.mxu0 %v7516
        %v7654 = vpop.f32.mrf.mxu0
        %v7655 = vadd.f32 0.0, %v7654
        %v7656 = vpop.f32.mrf.mxu0
        %v7657 = vadd.f32 0.0, %v7656
        %7658 = vmatmul.bf16.gmra.mxu0 %v7517
        %v7659 = vpop.f32.mrf.mxu0
        %v7660 = vadd.f32 0.0, %v7659
        %v7661 = vpop.f32.mrf.mxu0
        %v7662 = vadd.f32 0.0, %v7661
        %7663 = vmatmul.bf16.gmra.mxu0 %v7518
        %v7664 = vpop.f32.mrf.mxu0
        %v7665 = vadd.f32 0.0, %v7664
        %v7666 = vpop.f32.mrf.mxu0
        %v7667 = vadd.f32 0.0, %v7666
        %7668 = vmatmul.bf16.gmra.mxu0 %v7519
        %v7669 = vpop.f32.mrf.mxu0
        %v7670 = vadd.f32 0.0, %v7669
        %v7671 = vpop.f32.mrf.mxu0
        %v7672 = vadd.f32 0.0, %v7671
        %7673 = vdwg.mxu0
        %v7674 = vadd.f32 %v7472, %v7595
        %v7675 = vadd.f32 %v7473, %v7597
        %v7676 = vadd.f32 %v7474, %v7600
        %v7677 = vadd.f32 %v7475, %v7602
        %v7678 = vadd.f32 %v7476, %v7605
        %v7679 = vadd.f32 %v7477, %v7607
        %v7680 = vadd.f32 %v7478, %v7610
        %v7681 = vadd.f32 %v7479, %v7612
        %v7682 = vadd.f32 %v7480, %v7615
        %v7683 = vadd.f32 %v7481, %v7617
        %v7684 = vadd.f32 %v7482, %v7620
        %v7685 = vadd.f32 %v7483, %v7622
        %v7686 = vadd.f32 %v7484, %v7625
        %v7687 = vadd.f32 %v7485, %v7627
        %v7688 = vadd.f32 %v7486, %v7630
        %v7689 = vadd.f32 %v7487, %v7632
        %v7690 = vadd.f32 %v7488, %v7635
        %v7691 = vadd.f32 %v7489, %v7637
        %v7692 = vadd.f32 %v7490, %v7640
        %v7693 = vadd.f32 %v7491, %v7642
        %v7694 = vadd.f32 %v7492, %v7645
        %v7695 = vadd.f32 %v7493, %v7647
        %v7696 = vadd.f32 %v7494, %v7650
        %v7697 = vadd.f32 %v7495, %v7652
        %v7698 = vadd.f32 %v7496, %v7655
        %v7699 = vadd.f32 %v7497, %v7657
        %v7700 = vadd.f32 %v7498, %v7660
        %v7701 = vadd.f32 %v7499, %v7662
        %v7702 = vadd.f32 %v7500, %v7665
        %v7703 = vadd.f32 %v7501, %v7667
        %v7704 = vadd.f32 %v7502, %v7670
        %v7705 = vadd.f32 %v7503, %v7672
        %v7706 = vrot.slane %v7174, 1
        %v7707 = vrot.slane %v7175, 1
        %v7708 = vrot.slane %v7176, 1
        %v7709 = vrot.slane %v7177, 1
        %v7710 = vrot.slane %v7178, 1
        %v7711 = vrot.slane %v7179, 1
        %v7712 = vrot.slane %v7180, 1
        %v7713 = vrot.slane %v7181, 1
        %v7714 = vrot.slane %v7182, 1
        %v7715 = vrot.slane %v7183, 1
        %v7716 = vrot.slane %v7184, 1
        %v7717 = vrot.slane %v7185, 1
        %v7718 = vrot.slane %v7186, 1
        %v7719 = vrot.slane %v7187, 1
        %v7720 = vrot.slane %v7188, 1
        %v7721 = vrot.slane %v7189, 1
        %v7722 = vrot.slane %v7190, 1
        %v7723 = vrot.slane %v7191, 1
        %v7724 = vrot.slane %v7192, 1
        %v7725 = vrot.slane %v7193, 1
        %v7726 = vrot.slane %v7194, 1
        %v7727 = vrot.slane %v7195, 1
        %v7728 = vrot.slane %v7196, 1
        %v7729 = vrot.slane %v7197, 1
        %v7730 = vrot.slane %v7198, 1
        %v7731 = vrot.slane %v7199, 1
        %v7732 = vrot.slane %v7200, 1
        %v7733 = vrot.slane %v7201, 1
        %v7734 = vrot.slane %v7202, 1
        %v7735 = vrot.slane %v7203, 1
        %v7736 = vrot.slane %v7204, 1
        %v7737 = vrot.slane %v7205, 1
        %v7738 = vsel %vm2580, %v7736, %v7737
        %v7739 = vsel %vm2580, %v7735, %v7736
        %v7740 = vsel %vm2580, %v7734, %v7735
        %v7741 = vsel %vm2580, %v7733, %v7734
        %v7742 = vsel %vm2580, %v7732, %v7733
        %v7743 = vsel %vm2580, %v7731, %v7732
        %v7744 = vsel %vm2580, %v7730, %v7731
        %v7745 = vsel %vm2580, %v7729, %v7730
        %v7746 = vsel %vm2580, %v7728, %v7729
        %v7747 = vsel %vm2580, %v7727, %v7728
        %v7748 = vsel %vm2580, %v7726, %v7727
        %v7749 = vsel %vm2580, %v7725, %v7726
        %v7750 = vsel %vm2580, %v7724, %v7725
        %v7751 = vsel %vm2580, %v7723, %v7724
        %v7752 = vsel %vm2580, %v7722, %v7723
        %v7753 = vsel %vm2580, %v7721, %v7722
        %v7754 = vsel %vm2580, %v7720, %v7721
        %v7755 = vsel %vm2580, %v7719, %v7720
        %v7756 = vsel %vm2580, %v7718, %v7719
        %v7757 = vsel %vm2580, %v7717, %v7718
        %v7758 = vsel %vm2580, %v7716, %v7717
        %v7759 = vsel %vm2580, %v7715, %v7716
        %v7760 = vsel %vm2580, %v7714, %v7715
        %v7761 = vsel %vm2580, %v7713, %v7714
        %v7762 = vsel %vm2580, %v7712, %v7713
        %v7763 = vsel %vm2580, %v7711, %v7712
        %v7764 = vsel %vm2580, %v7710, %v7711
        %v7765 = vsel %vm2580, %v7709, %v7710
        %v7766 = vsel %vm2580, %v7708, %v7709
        %v7767 = vsel %vm2580, %v7707, %v7708
        %v7768 = vsel %vm2580, %v7706, %v7707
        %v7769 = vsel %vm2580, %v7737, %v7706
        %v7770 = vmul.f32 %v7768, %v1007
        %v7771 = vmul.f32 %v7767, %v1008
        %v7772 = vmul.f32 %v7766, %v1009
        %v7773 = vmul.f32 %v7765, %v1010
        %v7774 = vmul.f32 %v7764, %v1011
        %v7775 = vmul.f32 %v7763, %v1012
        %v7776 = vmul.f32 %v7762, %v1013
        %v7777 = vmul.f32 %v7761, %v1014
        %v7778 = vmul.f32 %v7760, %v1015
        %v7779 = vmul.f32 %v7759, %v1016
        %v7780 = vmul.f32 %v7758, %v1017
        %v7781 = vmul.f32 %v7757, %v1018
        %v7782 = vmul.f32 %v7756, %v1019
        %v7783 = vmul.f32 %v7755, %v1020
        %v7784 = vmul.f32 %v7754, %v1021
        %v7785 = vmul.f32 %v7753, %v1022
        %v7786 = vmul.f32 %v7752, %v1023
        %v7787 = vmul.f32 %v7751, %v1024
        %v7788 = vmul.f32 %v7750, %v1025
        %v7789 = vmul.f32 %v7749, %v1026
        %v7790 = vmul.f32 %v7748, %v1027
        %v7791 = vmul.f32 %v7747, %v1028
        %v7792 = vmul.f32 %v7746, %v1029
        %v7793 = vmul.f32 %v7745, %v1030
        %v7794 = vmul.f32 %v7744, %v1031
        %v7795 = vmul.f32 %v7743, %v1032
        %v7796 = vmul.f32 %v7742, %v1033
        %v7797 = vmul.f32 %v7741, %v1034
        %v7798 = vmul.f32 %v7740, %v1035
        %v7799 = vmul.f32 %v7739, %v1036
        %v7800 = vmul.f32 %v7738, %v1037
        %v7801 = vmul.f32 %v7769, %v1038
        %v7802 = vpack.c.bf16 %v7771, %v7770
        %v7803 = vpack.c.bf16 %v7773, %v7772
        %v7804 = vpack.c.bf16 %v7775, %v7774
        %v7805 = vpack.c.bf16 %v7777, %v7776
        %v7806 = vpack.c.bf16 %v7779, %v7778
        %v7807 = vpack.c.bf16 %v7781, %v7780
        %v7808 = vpack.c.bf16 %v7783, %v7782
        %v7809 = vpack.c.bf16 %v7785, %v7784
        %v7810 = vpack.c.bf16 %v7787, %v7786
        %v7811 = vpack.c.bf16 %v7789, %v7788
        %v7812 = vpack.c.bf16 %v7791, %v7790
        %v7813 = vpack.c.bf16 %v7793, %v7792
        %v7814 = vpack.c.bf16 %v7795, %v7794
        %v7815 = vpack.c.bf16 %v7797, %v7796
        %v7816 = vpack.c.bf16 %v7799, %v7798
        %v7817 = vpack.c.bf16 %v7801, %v7800
        %s7818 = scalar_lea.vmem %s10, 512
        %v7819 = vld [vmem:[%s7818] sm:$0xf]
        %v7820 = vld [vmem:[%s7818 + $0x4] sm:$0xf]
        %v7821 = vld [vmem:[%s7818 + $0x8] sm:$0xf]
        %v7822 = vld [vmem:[%s7818 + $0xc] sm:$0xf]
        %v7823 = vld [vmem:[%s7818 + $0x10] sm:$0xf]
        %v7824 = vld [vmem:[%s7818 + $0x14] sm:$0xf]
        %v7825 = vld [vmem:[%s7818 + $0x18] sm:$0xf]
        %v7826 = vld [vmem:[%s7818 + $0x1c] sm:$0xf]
        %v7827 = vld [vmem:[%s7818 + $0x20] sm:$0xf]
        %v7828 = vld [vmem:[%s7818 + $0x24] sm:$0xf]
        %v7829 = vld [vmem:[%s7818 + $0x28] sm:$0xf]
        %v7830 = vld [vmem:[%s7818 + $0x2c] sm:$0xf]
        %v7831 = vld [vmem:[%s7818 + $0x30] sm:$0xf]
        %v7832 = vld [vmem:[%s7818 + $0x34] sm:$0xf]
        %v7833 = vld [vmem:[%s7818 + $0x38] sm:$0xf]
        %v7834 = vld [vmem:[%s7818 + $0x3c] sm:$0xf]
        %v7851 = vunpack.c.l.b16 %v7819
        %v7852 = vunpack.c.l.b16 %v7820
        %v7853 = vunpack.c.l.b16 %v7821
        %v7854 = vunpack.c.l.b16 %v7822
        %v7855 = vunpack.c.l.b16 %v7823
        %v7856 = vunpack.c.l.b16 %v7824
        %v7857 = vunpack.c.l.b16 %v7825
        %v7858 = vunpack.c.l.b16 %v7826
        %v7859 = vunpack.c.l.b16 %v7827
        %v7860 = vunpack.c.l.b16 %v7828
        %v7861 = vunpack.c.l.b16 %v7829
        %v7862 = vunpack.c.l.b16 %v7830
        %v7863 = vunpack.c.l.b16 %v7831
        %v7864 = vunpack.c.l.b16 %v7832
        %v7865 = vunpack.c.l.b16 %v7833
        %v7866 = vunpack.c.l.b16 %v7834
        %v7867 = vpack.c.b16 %v7852, %v7851
        %v7868 = vpack.c.b16 %v7854, %v7853
        %v7869 = vpack.c.b16 %v7856, %v7855
        %v7870 = vpack.c.b16 %v7858, %v7857
        %v7871 = vpack.c.b16 %v7860, %v7859
        %v7872 = vpack.c.b16 %v7862, %v7861
        %v7873 = vpack.c.b16 %v7864, %v7863
        %v7874 = vpack.c.b16 %v7866, %v7865
        %7883 = vmatpush.bf16.msra.mxu0 %v7874
        %7884 = vmatpush.bf16.msra.mxu0 %v7873
        %7885 = vmatpush.bf16.msra.mxu0 %v7872
        %7886 = vmatpush.bf16.msra.mxu0 %v7871
        %7887 = vmatpush.bf16.msra.mxu0 %v7870
        %7888 = vmatpush.bf16.msra.mxu0 %v7869
        %7889 = vmatpush.bf16.msra.mxu0 %v7868
        %7890 = vmatpush.bf16.msra.mxu0 %v7867
        %7891 = vmatmul.bf16.gmra.mxu0 %v7802
        %v7892 = vpop.f32.mrf.mxu0
        %v7893 = vadd.f32 0.0, %v7892
        %v7894 = vpop.f32.mrf.mxu0
        %v7895 = vadd.f32 0.0, %v7894
        %7896 = vmatmul.bf16.gmra.mxu0 %v7803
        %v7897 = vpop.f32.mrf.mxu0
        %v7898 = vadd.f32 0.0, %v7897
        %v7899 = vpop.f32.mrf.mxu0
        %v7900 = vadd.f32 0.0, %v7899
        %7901 = vmatmul.bf16.gmra.mxu0 %v7804
        %v7902 = vpop.f32.mrf.mxu0
        %v7903 = vadd.f32 0.0, %v7902
        %v7904 = vpop.f32.mrf.mxu0
        %v7905 = vadd.f32 0.0, %v7904
        %7906 = vmatmul.bf16.gmra.mxu0 %v7805
        %v7907 = vpop.f32.mrf.mxu0
        %v7908 = vadd.f32 0.0, %v7907
        %v7909 = vpop.f32.mrf.mxu0
        %v7910 = vadd.f32 0.0, %v7909
        %7911 = vmatmul.bf16.gmra.mxu0 %v7806
        %v7912 = vpop.f32.mrf.mxu0
        %v7913 = vadd.f32 0.0, %v7912
        %v7914 = vpop.f32.mrf.mxu0
        %v7915 = vadd.f32 0.0, %v7914
        %7916 = vmatmul.bf16.gmra.mxu0 %v7807
        %v7917 = vpop.f32.mrf.mxu0
        %v7918 = vadd.f32 0.0, %v7917
        %v7919 = vpop.f32.mrf.mxu0
        %v7920 = vadd.f32 0.0, %v7919
        %7921 = vmatmul.bf16.gmra.mxu0 %v7808
        %v7922 = vpop.f32.mrf.mxu0
        %v7923 = vadd.f32 0.0, %v7922
        %v7924 = vpop.f32.mrf.mxu0
        %v7925 = vadd.f32 0.0, %v7924
        %7926 = vmatmul.bf16.gmra.mxu0 %v7809
        %v7927 = vpop.f32.mrf.mxu0
        %v7928 = vadd.f32 0.0, %v7927
        %v7929 = vpop.f32.mrf.mxu0
        %v7930 = vadd.f32 0.0, %v7929
        %7931 = vmatmul.bf16.gmra.mxu0 %v7810
        %v7932 = vpop.f32.mrf.mxu0
        %v7933 = vadd.f32 0.0, %v7932
        %v7934 = vpop.f32.mrf.mxu0
        %v7935 = vadd.f32 0.0, %v7934
        %7936 = vmatmul.bf16.gmra.mxu0 %v7811
        %v7937 = vpop.f32.mrf.mxu0
        %v7938 = vadd.f32 0.0, %v7937
        %v7939 = vpop.f32.mrf.mxu0
        %v7940 = vadd.f32 0.0, %v7939
        %7941 = vmatmul.bf16.gmra.mxu0 %v7812
        %v7942 = vpop.f32.mrf.mxu0
        %v7943 = vadd.f32 0.0, %v7942
        %v7944 = vpop.f32.mrf.mxu0
        %v7945 = vadd.f32 0.0, %v7944
        %7946 = vmatmul.bf16.gmra.mxu0 %v7813
        %v7947 = vpop.f32.mrf.mxu0
        %v7948 = vadd.f32 0.0, %v7947
        %v7949 = vpop.f32.mrf.mxu0
        %v7950 = vadd.f32 0.0, %v7949
        %7951 = vmatmul.bf16.gmra.mxu0 %v7814
        %v7952 = vpop.f32.mrf.mxu0
        %v7953 = vadd.f32 0.0, %v7952
        %v7954 = vpop.f32.mrf.mxu0
        %v7955 = vadd.f32 0.0, %v7954
        %7956 = vmatmul.bf16.gmra.mxu0 %v7815
        %v7957 = vpop.f32.mrf.mxu0
        %v7958 = vadd.f32 0.0, %v7957
        %v7959 = vpop.f32.mrf.mxu0
        %v7960 = vadd.f32 0.0, %v7959
        %7961 = vmatmul.bf16.gmra.mxu0 %v7816
        %v7962 = vpop.f32.mrf.mxu0
        %v7963 = vadd.f32 0.0, %v7962
        %v7964 = vpop.f32.mrf.mxu0
        %v7965 = vadd.f32 0.0, %v7964
        %7966 = vmatmul.bf16.gmra.mxu0 %v7817
        %v7967 = vpop.f32.mrf.mxu0
        %v7968 = vadd.f32 0.0, %v7967
        %v7969 = vpop.f32.mrf.mxu0
        %v7970 = vadd.f32 0.0, %v7969
        %7971 = vdwg.mxu0
        %v7972 = vadd.f32 %v7674, %v7893
        %v7973 = vadd.f32 %v7675, %v7895
        %v7974 = vadd.f32 %v7676, %v7898
        %v7975 = vadd.f32 %v7677, %v7900
        %v7976 = vadd.f32 %v7678, %v7903
        %v7977 = vadd.f32 %v7679, %v7905
        %v7978 = vadd.f32 %v7680, %v7908
        %v7979 = vadd.f32 %v7681, %v7910
        %v7980 = vadd.f32 %v7682, %v7913
        %v7981 = vadd.f32 %v7683, %v7915
        %v7982 = vadd.f32 %v7684, %v7918
        %v7983 = vadd.f32 %v7685, %v7920
        %v7984 = vadd.f32 %v7686, %v7923
        %v7985 = vadd.f32 %v7687, %v7925
        %v7986 = vadd.f32 %v7688, %v7928
        %v7987 = vadd.f32 %v7689, %v7930
        %v7988 = vadd.f32 %v7690, %v7933
        %v7989 = vadd.f32 %v7691, %v7935
        %v7990 = vadd.f32 %v7692, %v7938
        %v7991 = vadd.f32 %v7693, %v7940
        %v7992 = vadd.f32 %v7694, %v7943
        %v7993 = vadd.f32 %v7695, %v7945
        %v7994 = vadd.f32 %v7696, %v7948
        %v7995 = vadd.f32 %v7697, %v7950
        %v7996 = vadd.f32 %v7698, %v7953
        %v7997 = vadd.f32 %v7699, %v7955
        %v7998 = vadd.f32 %v7700, %v7958
        %v7999 = vadd.f32 %v7701, %v7960
        %v8000 = vadd.f32 %v7702, %v7963
        %v8001 = vadd.f32 %v7703, %v7965
        %v8002 = vadd.f32 %v7704, %v7968
        %v8003 = vadd.f32 %v7705, %v7970
        %v8005 = vperm.slane %v5546, 0
        %v8007 = vadd.f32 %v7972, %v8005
        %v8008 = vadd.f32 %v7973, %v8005
        %v8009 = vadd.f32 %v7974, %v8005
        %v8010 = vadd.f32 %v7975, %v8005
        %v8011 = vadd.f32 %v7976, %v8005
        %v8012 = vadd.f32 %v7977, %v8005
        %v8013 = vadd.f32 %v7978, %v8005
        %v8014 = vadd.f32 %v7979, %v8005
        %v8015 = vadd.f32 %v7980, %v8005
        %v8016 = vadd.f32 %v7981, %v8005
        %v8017 = vadd.f32 %v7982, %v8005
        %v8018 = vadd.f32 %v7983, %v8005
        %v8019 = vadd.f32 %v7984, %v8005
        %v8020 = vadd.f32 %v7985, %v8005
        %v8021 = vadd.f32 %v7986, %v8005
        %v8022 = vadd.f32 %v7987, %v8005
        %v8023 = vadd.f32 %v7988, %v8005
        %v8024 = vadd.f32 %v7989, %v8005
        %v8025 = vadd.f32 %v7990, %v8005
        %v8026 = vadd.f32 %v7991, %v8005
        %v8027 = vadd.f32 %v7992, %v8005
        %v8028 = vadd.f32 %v7993, %v8005
        %v8029 = vadd.f32 %v7994, %v8005
        %v8030 = vadd.f32 %v7995, %v8005
        %v8031 = vadd.f32 %v7996, %v8005
        %v8032 = vadd.f32 %v7997, %v8005
        %v8033 = vadd.f32 %v7998, %v8005
        %v8034 = vadd.f32 %v7999, %v8005
        %v8035 = vadd.f32 %v8000, %v8005
        %v8036 = vadd.f32 %v8001, %v8005
        %v8037 = vadd.f32 %v8002, %v8005
        %v8038 = vadd.f32 %v8003, %v8005
        %v8039 = vld [vmem:[%s422] sm:$0xff]
        %v8040 = vld [vmem:[%s422 + $0x8] sm:$0xff]
        %v8041 = vld [vmem:[%s422 + $0x10] sm:$0xff]
        %v8042 = vld [vmem:[%s422 + $0x18] sm:$0xff]
        %v8043 = vld [vmem:[%s422 + $0x20] sm:$0xff]
        %v8044 = vld [vmem:[%s422 + $0x28] sm:$0xff]
        %v8045 = vld [vmem:[%s422 + $0x30] sm:$0xff]
        %v8046 = vld [vmem:[%s422 + $0x38] sm:$0xff]
        %v8047 = vld [vmem:[%s422 + $0x40] sm:$0xff]
        %v8048 = vld [vmem:[%s422 + $0x48] sm:$0xff]
        %v8049 = vld [vmem:[%s422 + $0x50] sm:$0xff]
        %v8050 = vld [vmem:[%s422 + $0x58] sm:$0xff]
        %v8051 = vld [vmem:[%s422 + $0x60] sm:$0xff]
        %v8052 = vld [vmem:[%s422 + $0x68] sm:$0xff]
        %v8053 = vld [vmem:[%s422 + $0x70] sm:$0xff]
        %v8054 = vld [vmem:[%s422 + $0x78] sm:$0xff]
        %v8055 = vld [vmem:[%s422 + $0x80] sm:$0xff]
        %v8056 = vld [vmem:[%s422 + $0x88] sm:$0xff]
        %v8057 = vld [vmem:[%s422 + $0x90] sm:$0xff]
        %v8058 = vld [vmem:[%s422 + $0x98] sm:$0xff]
        %v8059 = vld [vmem:[%s422 + $0xa0] sm:$0xff]
        %v8060 = vld [vmem:[%s422 + $0xa8] sm:$0xff]
        %v8061 = vld [vmem:[%s422 + $0xb0] sm:$0xff]
        %v8062 = vld [vmem:[%s422 + $0xb8] sm:$0xff]
        %v8063 = vld [vmem:[%s422 + $0xc0] sm:$0xff]
        %v8064 = vld [vmem:[%s422 + $0xc8] sm:$0xff]
        %v8065 = vld [vmem:[%s422 + $0xd0] sm:$0xff]
        %v8066 = vld [vmem:[%s422 + $0xd8] sm:$0xff]
        %v8067 = vld [vmem:[%s422 + $0xe0] sm:$0xff]
        %v8068 = vld [vmem:[%s422 + $0xe8] sm:$0xff]
        %v8069 = vld [vmem:[%s422 + $0xf0] sm:$0xff]
        %v8070 = vld [vmem:[%s422 + $0xf8] sm:$0xff]
        %v8071 = vadd.f32 %v8039, %v8007
        %v8072 = vadd.f32 %v8040, %v8008
        %v8073 = vadd.f32 %v8041, %v8009
        %v8074 = vadd.f32 %v8042, %v8010
        %v8075 = vadd.f32 %v8043, %v8011
        %v8076 = vadd.f32 %v8044, %v8012
        %v8077 = vadd.f32 %v8045, %v8013
        %v8078 = vadd.f32 %v8046, %v8014
        %v8079 = vadd.f32 %v8047, %v8015
        %v8080 = vadd.f32 %v8048, %v8016
        %v8081 = vadd.f32 %v8049, %v8017
        %v8082 = vadd.f32 %v8050, %v8018
        %v8083 = vadd.f32 %v8051, %v8019
        %v8084 = vadd.f32 %v8052, %v8020
        %v8085 = vadd.f32 %v8053, %v8021
        %v8086 = vadd.f32 %v8054, %v8022
        %v8087 = vadd.f32 %v8055, %v8023
        %v8088 = vadd.f32 %v8056, %v8024
        %v8089 = vadd.f32 %v8057, %v8025
        %v8090 = vadd.f32 %v8058, %v8026
        %v8091 = vadd.f32 %v8059, %v8027
        %v8092 = vadd.f32 %v8060, %v8028
        %v8093 = vadd.f32 %v8061, %v8029
        %v8094 = vadd.f32 %v8062, %v8030
        %v8095 = vadd.f32 %v8063, %v8031
        %v8096 = vadd.f32 %v8064, %v8032
        %v8097 = vadd.f32 %v8065, %v8033
        %v8098 = vadd.f32 %v8066, %v8034
        %v8099 = vadd.f32 %v8067, %v8035
        %v8100 = vadd.f32 %v8068, %v8036
        %v8101 = vadd.f32 %v8069, %v8037
        %v8102 = vadd.f32 %v8070, %v8038
        %8103 = vst [vmem:[%s417] sm:$0xff] %v8071
        %8104 = vst [vmem:[%s417 + $0x8] sm:$0xff] %v8072
        %8105 = vst [vmem:[%s417 + $0x10] sm:$0xff] %v8073
        %8106 = vst [vmem:[%s417 + $0x18] sm:$0xff] %v8074
        %8107 = vst [vmem:[%s417 + $0x20] sm:$0xff] %v8075
        %8108 = vst [vmem:[%s417 + $0x28] sm:$0xff] %v8076
        %8109 = vst [vmem:[%s417 + $0x30] sm:$0xff] %v8077
        %8110 = vst [vmem:[%s417 + $0x38] sm:$0xff] %v8078
        %8111 = vst [vmem:[%s417 + $0x40] sm:$0xff] %v8079
        %8112 = vst [vmem:[%s417 + $0x48] sm:$0xff] %v8080
        %8113 = vst [vmem:[%s417 + $0x50] sm:$0xff] %v8081
        %8114 = vst [vmem:[%s417 + $0x58] sm:$0xff] %v8082
        %8115 = vst [vmem:[%s417 + $0x60] sm:$0xff] %v8083
        %8116 = vst [vmem:[%s417 + $0x68] sm:$0xff] %v8084
        %8117 = vst [vmem:[%s417 + $0x70] sm:$0xff] %v8085
        %8118 = vst [vmem:[%s417 + $0x78] sm:$0xff] %v8086
        %8119 = vst [vmem:[%s417 + $0x80] sm:$0xff] %v8087
        %8120 = vst [vmem:[%s417 + $0x88] sm:$0xff] %v8088
        %8121 = vst [vmem:[%s417 + $0x90] sm:$0xff] %v8089
        %8122 = vst [vmem:[%s417 + $0x98] sm:$0xff] %v8090
        %8123 = vst [vmem:[%s417 + $0xa0] sm:$0xff] %v8091
        %8124 = vst [vmem:[%s417 + $0xa8] sm:$0xff] %v8092
        %8125 = vst [vmem:[%s417 + $0xb0] sm:$0xff] %v8093
        %8126 = vst [vmem:[%s417 + $0xb8] sm:$0xff] %v8094
        %8127 = vst [vmem:[%s417 + $0xc0] sm:$0xff] %v8095
        %8128 = vst [vmem:[%s417 + $0xc8] sm:$0xff] %v8096
        %8129 = vst [vmem:[%s417 + $0xd0] sm:$0xff] %v8097
        %8130 = vst [vmem:[%s417 + $0xd8] sm:$0xff] %v8098
        %8131 = vst [vmem:[%s417 + $0xe0] sm:$0xff] %v8099
        %8132 = vst [vmem:[%s417 + $0xe8] sm:$0xff] %v8100
        %8133 = vst [vmem:[%s417 + $0xf0] sm:$0xff] %v8101
        %8134 = vst [vmem:[%s417 + $0xf8] sm:$0xff] %v8102
        %s8135 = sand.u32 %s296, 1
        %s8136 = scalar_lea.sflag [#allocation4], %s8135
        %s8137 = sand.u32 %s296, 1
        %s8138 = smul.addr %s8137, 256
        %s8139 = scalar_lea.vmem [#allocation3], %s8138
        // Predicated region
        $region69: #{resblock_forward.1} parent=67 // pred_check
          %p8140 = pneg %p306
        $region70: #{resblock_forward.1} parent=67 // pred_check_branch
          %8142 = sbr.rel (%p8140) target = $region72
        $region71: #{resblock_forward.1} parent=67 // pred_region
          %8144 = vsyncadd %s8136, 0
          %s8145 = smul.addr %s26, 32
          %s8146 = smul.addr %s8145, 8
          %s8147 = scalar_lea.hbm %s12, %s8146
          %s8148 = sshll.u32 %s8139, 4
          %s8149 = int_to_ptr.vmem [resolvable:$true] %s8148
          %s8150 = sshll.u32 %s8147, 4
          %s8151 = int_to_ptr.hbm [resolvable:$true] %s8150
          %8156 = dma.vmem_to_hbm [thread:$0]  %s8149, 4096, %s8151, %s8136, 128, 128, 8
        $region72: #{resblock_forward.1} parent=67 // pred_fallthru
          _
      $region68: #{resblock_forward.1} parent=5 // pred_fallthru
        _
      %p8157 = scmp.le.s32.totalorder 2, %s21
      // Predicated region
      $region73: #{resblock_forward.1} parent=5 // pred_check
        %p8158 = pneg %p8157
      $region74: #{resblock_forward.1} parent=5 // pred_check_branch
        %8160 = sbr.rel (%p8158) target = $region76
      $region75: #{resblock_forward.1} parent=5 // pred_region
        %s8161 = ssub.s32 %s21, 2
        // Predicated region
        $region77: #{resblock_forward.1} parent=75 // pred_check
          %p8162 = pneg %p312
        $region78: #{resblock_forward.1} parent=75 // pred_check_branch
          %8164 = sbr.rel (%p8162) target = $region80
        $region79: #{resblock_forward.1} parent=75 // pred_region
          %s8165 = sand.u32 %s297, 1
          %s8166 = scalar_lea.sflag [#allocation4], %s8165
          %s8167 = sand.u32 %s297, 1
          %s8168 = smul.addr %s8167, 256
          %s8169 = scalar_lea.vmem [#allocation3], %s8168
          %8171 = dma.done %s8166, 4096
        $region80: #{resblock_forward.1} parent=75 // pred_fallthru
          _
      $region76: #{resblock_forward.1} parent=5 // pred_fallthru
        _
    $region6: #{resblock_forward.1} parent=1 // loop_footer
      %s25 = sadd.s32 1, %s21
    $region7: #{resblock_forward.1} parent=1 // loop_footer_branch
      %20 = sbr.rel target = $region3
    $region8: #{resblock_forward.1} parent=1 // loop_exit
      _
    %8172 = vsyncpa [#allocation4], 1
    %s8173 = scalar_lea.sflag [#allocation4], 1
    %8174 = vsyncpa %s8173, 1

</llo_original>
